<compile_context>
chip_gen: v5e
topology: v5e:2x2
jax: 0.10.0
libtpu: 0.0.40
codegen_flags: <defaults>
</compile_context>

<pallas_src>
import jax
import jax.numpy as jnp
from jax.experimental import pallas as pl
from jax.experimental.pallas import tpu as pltpu


def classifier_kernel(pre_tok_ref, hyp_tok_ref, pre_len_ref, hyp_len_ref,
                      table_ref, w_ref, b_ref, out_ref):
    TB, L, _ = pre_tok_ref.shape
    V, D = table_ref.shape

    # Hoisted iotas (reused by both pools) and the resident-table load.
    pos = jax.lax.broadcasted_iota(jnp.int32, (TB, L, 1), 1)      # token positions
    vocab = jax.lax.broadcasted_iota(jnp.int32, (TB, L, V), 2)    # vocab ids
    table = table_ref[...]                                        # [V, D] bf16

    def pool(tok_ref, len_ref):
        lens = len_ref[...]                                       # [TB, 1] int32
        mask = pos < lens[:, None, :]                             # [TB, L, 1] exact int compare
        tok = jnp.where(mask, tok_ref[...], -1)                   # masked-out tokens match no row
        # Fused gather + masked sum-pool: one bf16 MXU push replaces the
        # whole [TB, L, D] embedding stream.  Counts <= L are exact in bf16.
        cnt = jnp.sum((tok == vocab).astype(jnp.float32), axis=1)  # [TB, V] f32
        summed = jnp.dot(cnt.astype(jnp.bfloat16), table,
                         preferred_element_type=jnp.float32)       # [TB, D] f32
        lens_f = jnp.maximum(lens, 1).astype(jnp.float32)          # 0-len guard (padded rows)
        return summed / lens_f                                     # exact masked mean

    u = pool(pre_tok_ref, pre_len_ref)
    v = pool(hyp_tok_ref, hyp_len_ref)
    diff = jnp.abs(u - v)
    prod = u * v

    # Folded classifier head: concat([u, v, |u-v|, u*v]) @ W_eff + b_eff with
    # W_eff row-sliced per feature chunk (no lane-axis concat materialized).
    # bf16 operands feed the MXU; accumulation is f32; output is lane-dense.
    bf = jnp.bfloat16
    out_ref[...] = (
        jnp.dot(u.astype(bf),    w_ref[0 * D:1 * D, :], preferred_element_type=jnp.float32)
        + jnp.dot(v.astype(bf),    w_ref[1 * D:2 * D, :], preferred_element_type=jnp.float32)
        + jnp.dot(diff.astype(bf), w_ref[2 * D:3 * D, :], preferred_element_type=jnp.float32)
        + jnp.dot(prod.astype(bf), w_ref[3 * D:4 * D, :], preferred_element_type=jnp.float32)
        + b_ref[...])


def _vmem_limit_bytes():
    """Per-generation scoped-VMEM limit with headroom for Mosaic scratch."""
    cap = 64 * 1024 * 1024        # conservative fallback (v7x physical)
    try:
        info = pltpu.get_tpu_info()
        cap = int(getattr(info, "vmem_capacity_bytes", cap))
    except Exception:
        pass
    # v5e/v6e (128 MiB) -> 96 MiB, v7x (64 MiB) -> 48 MiB.
    return int(min(cap * 3 // 4, 96 * 1024 * 1024))


def _pick_block_b(block_b, B, L, V_pad, D, C_pad, vmem_limit):
    """Derive the batch tile from the VMEM budget (multiple of 128, cap 512)."""
    if block_b is None:
        budget = vmem_limit // 2                                   # headroom for temporaries
        resident = V_pad * D * 2 + 4 * D * C_pad * 2 + C_pad * 4   # table + folded head
        per_row = (2 * L * V_pad * 4        # one-hot / count f32 intermediates (2 pools)
                   + 4 * (L + 1) * 4        # double-buffered token + length blocks
                   + 2 * C_pad * 4          # double-buffered output block
                   + 16 * D * 4)            # pooled features and bf16 staging
        avail = max(budget - resident, per_row)
        block_b = avail // per_row
        block_b = min(block_b, 512, max(128, -(-B // 128) * 128))
    return int(max(8, (int(block_b) // 8) * 8))                    # sublane-aligned


def classifier_forward(embedding_bf16, pre_tokens, pre_len, hyp_tokens, hyp_len,
                       w1, b1, w2, b2, *, block_b=None):
    """embedding_bf16: [V, D]; *_tokens: [B, L] int32; *_len: [B] int32.
    w1: [4D, H], b1: [1, H], w2: [H, C], b2: [1, C].  Returns logits [B, C] f32."""
    V, D = embedding_bf16.shape
    B, L = pre_tokens.shape
    C = w2.shape[1]
    C_PAD = ((C + 127) // 128) * 128
    V_PAD = ((V + 127) // 128) * 128

    if V_PAD * D * 2 > 8 * 1024 * 1024 or V_PAD > 2048:
        # TODO(synk): large-vocab path — scalar-prefetch token ids and DMA-gather
        # embedding rows from HBM instead of a VMEM-resident table.
        raise NotImplementedError("embedding table too large for the VMEM-resident gather path")

    # Fold the activation-free Linear->Linear head into one affine map; pad the
    # class dim to a full 128-lane tile; bf16 weights feed the MXU.
    w_eff = w1.astype(jnp.float32) @ w2.astype(jnp.float32)          # [4D, C]
    b_eff = (b1.astype(jnp.float32) @ w2.astype(jnp.float32)
             + b2.astype(jnp.float32))                               # [1, C]
    w_eff_p = jnp.zeros((4 * D, C_PAD), jnp.bfloat16).at[:, :C].set(w_eff.astype(jnp.bfloat16))
    b_eff_p = jnp.zeros((1, C_PAD), jnp.float32).at[:, :C].set(b_eff)

    # VMEM-resident, row-padded embedding table (padded rows are never matched).
    table_p = jnp.zeros((V_PAD, D), jnp.bfloat16).at[:V, :].set(embedding_bf16.astype(jnp.bfloat16))

    vmem_limit = _vmem_limit_bytes()
    TB = _pick_block_b(block_b, B, L, V_PAD, D, C_PAD, vmem_limit)

    # Pad the batch up to a TB multiple (padded rows: tokens 0, length 0).
    B_pad = -(-B // TB) * TB
    padB = B_pad - B
    pre_tok = pre_tokens.astype(jnp.int32).reshape(B, L, 1)
    hyp_tok = hyp_tokens.astype(jnp.int32).reshape(B, L, 1)
    pre_l = pre_len.astype(jnp.int32).reshape(B, 1)
    hyp_l = hyp_len.astype(jnp.int32).reshape(B, 1)
    if padB:
        pre_tok = jnp.pad(pre_tok, ((0, padB), (0, 0), (0, 0)))
        hyp_tok = jnp.pad(hyp_tok, ((0, padB), (0, 0), (0, 0)))
        pre_l = jnp.pad(pre_l, ((0, padB), (0, 0)))
        hyp_l = jnp.pad(hyp_l, ((0, padB), (0, 0)))

    grid = (B_pad // TB,)

    # Advisory cost estimate so XLA schedules around the kernel sensibly.
    flops = B_pad * (4 * L * V_PAD + 4 * V_PAD * D + 2 * 4 * D * C_PAD)
    bytes_accessed = (B_pad * (2 * L * 4 + 2 * 4 + C_PAD * 4)
                      + V_PAD * D * 2 + 4 * D * C_PAD * 2 + C_PAD * 4)
    cost = pl.CostEstimate(flops=int(flops), transcendentals=int(2 * B_pad),
                           bytes_accessed=int(bytes_accessed))

    out = pl.pallas_call(
        classifier_kernel,
        out_shape=jax.ShapeDtypeStruct((B_pad, C_PAD), jnp.float32),
        grid=grid,
        in_specs=[
            pl.BlockSpec((TB, L, 1), lambda i: (i, 0, 0)),       # premise token ids
            pl.BlockSpec((TB, L, 1), lambda i: (i, 0, 0)),       # hypothesis token ids
            pl.BlockSpec((TB, 1), lambda i: (i, 0)),             # premise lengths
            pl.BlockSpec((TB, 1), lambda i: (i, 0)),             # hypothesis lengths
            pl.BlockSpec((V_PAD, D), lambda i: (0, 0)),          # embedding table (resident)
            pl.BlockSpec((4 * D, C_PAD), lambda i: (0, 0)),      # folded head weights (resident)
            pl.BlockSpec((1, C_PAD), lambda i: (0, 0)),          # folded head bias (resident)
        ],
        out_specs=pl.BlockSpec((TB, C_PAD), lambda i: (i, 0)),
        compiler_params=pltpu.CompilerParams(
            dimension_semantics=("parallel",),                   # batch axis independent
            vmem_limit_bytes=vmem_limit),
        cost_estimate=cost,
    )(pre_tok, hyp_tok, pre_l, hyp_l, table_p, w_eff_p, b_eff_p)

    return out[:B, :C]


def _reference_forward(embedding_bf16, pre_tokens, pre_len, hyp_tokens, hyp_len,
                       w1, b1, w2, b2):
    """Pure-JAX reference mirroring the PyTorch forward (two separate Linears)."""
    def encode(tokens, lens):
        emb = jnp.take(embedding_bf16, tokens, axis=0).astype(jnp.float32)  # [B, L, D]
        L = emb.shape[1]
        mask = (jnp.arange(L)[None, :] < lens[:, None]).astype(jnp.float32)
        return jnp.sum(emb * mask[:, :, None], axis=1) / lens[:, None].astype(jnp.float32)

    u = encode(pre_tokens, pre_len)
    v = encode(hyp_tokens, hyp_len)
    feats = jnp.concatenate([u, v, jnp.abs(u - v), u * v], axis=1)          # [B, 4D]
    h = feats @ w1 + b1
    return h @ w2 + b2


if __name__ == "__main__":
    key = jax.random.PRNGKey(0)
    kE, kW1, kB1, kW2, kB2, kP, kH, kPL, kHL = jax.random.split(key, 9)

    # Small, forward-consistent shapes.  B is chosen so that the batch grid has
    # multiple steps and a padded tail when block_b=128.
    VOCAB, D, L, B = 64, 32, 8, 200
    INPUT_SIZE = 4 * D            # concat of [u, v, |u-v|, u*v]
    HIDDEN = 32
    CLASSES = 3

    # Deterministic parameters (nn.Embedding.from_pretrained + two Linears).
    embedding = jax.random.normal(kE, (VOCAB, D), dtype=jnp.float32)
    embedding_bf16 = embedding.astype(jnp.bfloat16)
    w1 = jax.random.normal(kW1, (INPUT_SIZE, HIDDEN), dtype=jnp.float32) * 0.05
    b1 = jax.random.normal(kB1, (1, HIDDEN), dtype=jnp.float32) * 0.05
    w2 = jax.random.normal(kW2, (HIDDEN, CLASSES), dtype=jnp.float32) * 0.05
    b2 = jax.random.normal(kB2, (1, CLASSES), dtype=jnp.float32) * 0.05

    # Deterministic inputs: (sentence tokens, sentence lengths) pairs.
    pre_tokens = jax.random.randint(kP, (B, L), 0, VOCAB, dtype=jnp.int32)
    hyp_tokens = jax.random.randint(kH, (B, L), 0, VOCAB, dtype=jnp.int32)
    pre_len = jax.random.randint(kPL, (B,), 1, L + 1, dtype=jnp.int32)
    hyp_len = jax.random.randint(kHL, (B,), 1, L + 1, dtype=jnp.int32)

    # block_b=128 exercises the multi-step grid + padded-tail path at this toy
    # batch; block_b=None derives a larger VMEM-budget tile for real batches.
    out = classifier_forward(embedding_bf16, pre_tokens, pre_len,
                             hyp_tokens, hyp_len, w1, b1, w2, b2, block_b=128)
    out = jax.block_until_ready(out)

    ref = _reference_forward(embedding_bf16, pre_tokens, pre_len,
                             hyp_tokens, hyp_len, w1, b1, w2, b2)
    assert out.shape == (B, CLASSES)
    assert jnp.allclose(out, ref, atol=5e-3, rtol=1e-2), (out, ref)

    print("KERNEL_OK")
</pallas_src>

<mosaic_0001>
module attributes {stable_mosaic.version = 11 : i64} {
  func.func @classifier_kernel(%arg0: i32, %arg1: memref<128x8x1xi32, #tpu.memory_space<vmem>>, %arg2: memref<128x8x1xi32, #tpu.memory_space<vmem>>, %arg3: memref<128x1xi32, #tpu.memory_space<vmem>>, %arg4: memref<128x1xi32, #tpu.memory_space<vmem>>, %arg5: memref<128x32xbf16, #tpu.memory_space<vmem>>, %arg6: memref<128x128xbf16, #tpu.memory_space<vmem>>, %arg7: memref<1x128xf32, #tpu.memory_space<vmem>>, %arg8: memref<128x128xf32, #tpu.memory_space<vmem>>) attributes {dimension_semantics = [#tpu.dimension_semantics<parallel>], iteration_bounds = array<i64: 2>, scalar_prefetch = 0 : i64, scratch_operands = 0 : i64, tpu.core_type = #tpu.core_type<tc>, window_params = [{transform_indices = @transform_0, window_bounds = array<i64: 128, 8, 1>}, {transform_indices = @transform_1, window_bounds = array<i64: 128, 8, 1>}, {transform_indices = @transform_2, window_bounds = array<i64: 128, 1>}, {transform_indices = @transform_3, window_bounds = array<i64: 128, 1>}, {pipeline_mode = #tpu.pipeline_mode<synchronous>, transform_indices = @transform_4, window_bounds = array<i64: 128, 32>}, {pipeline_mode = #tpu.pipeline_mode<synchronous>, transform_indices = @transform_5, window_bounds = array<i64: 128, 128>}, {pipeline_mode = #tpu.pipeline_mode<synchronous>, transform_indices = @transform_6, window_bounds = array<i64: 1, 128>}, {transform_indices = @transform_7, window_bounds = array<i64: 128, 128>}]} {
    %0 = tpu.iota {dimensions = array<i32: 1>} : vector<128x8x1xi32>
    %1 = tpu.iota {dimensions = array<i32: 2>} : vector<128x8x128xi32>
    %c0 = arith.constant 0 : index
    %c0_0 = arith.constant 0 : index
    %2 = vector.load %arg5[%c0, %c0_0] : memref<128x32xbf16, #tpu.memory_space<vmem>>, vector<128x32xbf16>
    %c0_1 = arith.constant 0 : index
    %c0_2 = arith.constant 0 : index
    %3 = vector.load %arg3[%c0_1, %c0_2] : memref<128x1xi32, #tpu.memory_space<vmem>>, vector<128x1xi32>
    %4 = vector.shape_cast %3 : vector<128x1xi32> to vector<128x1x1xi32>
    %5 = vector.broadcast %4 : vector<128x1x1xi32> to vector<128x8x1xi32>
    %6 = arith.cmpi slt, %0, %5 : vector<128x8x1xi32>
    %c0_3 = arith.constant 0 : index
    %c0_4 = arith.constant 0 : index
    %c0_5 = arith.constant 0 : index
    %7 = vector.load %arg1[%c0_3, %c0_4, %c0_5] : memref<128x8x1xi32, #tpu.memory_space<vmem>>, vector<128x8x1xi32>
    %c-1_i32 = arith.constant -1 : i32
    %8 = vector.broadcast %c-1_i32 : i32 to vector<128x8x1xi32>
    %9 = arith.select %6, %7, %8 : vector<128x8x1xi1>, vector<128x8x1xi32>
    %10 = vector.broadcast %9 : vector<128x8x1xi32> to vector<128x8x128xi32>
    %11 = arith.cmpi eq, %10, %1 : vector<128x8x128xi32>
    %12 = arith.extui %11 : vector<128x8x128xi1> to vector<128x8x128xi32>
    %13 = arith.sitofp %12 : vector<128x8x128xi32> to vector<128x8x128xf32>
    %cst = arith.constant dense<0.000000e+00> : vector<128x128xf32>
    %14 = vector.multi_reduction <add>, %13, %cst [1] : vector<128x8x128xf32> to vector<128x128xf32>
    %15 = arith.truncf %14 : vector<128x128xf32> to vector<128x128xbf16>
    %cst_6 = arith.constant dense<0.000000e+00> : vector<128x32xf32>
    %16 = tpu.matmul %15, %2, %cst_6 {dimension_numbers = #tpu.dot_dimension_numbers<[1], [0], [0], [1], [0, 0, 1, 1], [], []>} : vector<128x128xbf16>, vector<128x32xbf16>, vector<128x32xf32> -> vector<128x32xf32>
    %c1_i32 = arith.constant 1 : i32
    %17 = vector.broadcast %c1_i32 : i32 to vector<128x1xi32>
    %18 = arith.maxsi %3, %17 : vector<128x1xi32>
    %19 = arith.sitofp %18 : vector<128x1xi32> to vector<128x1xf32>
    %20 = vector.broadcast %19 : vector<128x1xf32> to vector<128x32xf32>
    %21 = arith.divf %16, %20 : vector<128x32xf32>
    %c0_7 = arith.constant 0 : index
    %c0_8 = arith.constant 0 : index
    %22 = vector.load %arg4[%c0_7, %c0_8] : memref<128x1xi32, #tpu.memory_space<vmem>>, vector<128x1xi32>
    %23 = vector.shape_cast %22 : vector<128x1xi32> to vector<128x1x1xi32>
    %24 = vector.broadcast %23 : vector<128x1x1xi32> to vector<128x8x1xi32>
    %25 = arith.cmpi slt, %0, %24 : vector<128x8x1xi32>
    %c0_9 = arith.constant 0 : index
    %c0_10 = arith.constant 0 : index
    %c0_11 = arith.constant 0 : index
    %26 = vector.load %arg2[%c0_9, %c0_10, %c0_11] : memref<128x8x1xi32, #tpu.memory_space<vmem>>, vector<128x8x1xi32>
    %c-1_i32_12 = arith.constant -1 : i32
    %27 = vector.broadcast %c-1_i32_12 : i32 to vector<128x8x1xi32>
    %28 = arith.select %25, %26, %27 : vector<128x8x1xi1>, vector<128x8x1xi32>
    %29 = vector.broadcast %28 : vector<128x8x1xi32> to vector<128x8x128xi32>
    %30 = arith.cmpi eq, %29, %1 : vector<128x8x128xi32>
    %31 = arith.extui %30 : vector<128x8x128xi1> to vector<128x8x128xi32>
    %32 = arith.sitofp %31 : vector<128x8x128xi32> to vector<128x8x128xf32>
    %cst_13 = arith.constant dense<0.000000e+00> : vector<128x128xf32>
    %33 = vector.multi_reduction <add>, %32, %cst_13 [1] : vector<128x8x128xf32> to vector<128x128xf32>
    %34 = arith.truncf %33 : vector<128x128xf32> to vector<128x128xbf16>
    %cst_14 = arith.constant dense<0.000000e+00> : vector<128x32xf32>
    %35 = tpu.matmul %34, %2, %cst_14 {dimension_numbers = #tpu.dot_dimension_numbers<[1], [0], [0], [1], [0, 0, 1, 1], [], []>} : vector<128x128xbf16>, vector<128x32xbf16>, vector<128x32xf32> -> vector<128x32xf32>
    %c1_i32_15 = arith.constant 1 : i32
    %36 = vector.broadcast %c1_i32_15 : i32 to vector<128x1xi32>
    %37 = arith.maxsi %22, %36 : vector<128x1xi32>
    %38 = arith.sitofp %37 : vector<128x1xi32> to vector<128x1xf32>
    %39 = vector.broadcast %38 : vector<128x1xf32> to vector<128x32xf32>
    %40 = arith.divf %35, %39 : vector<128x32xf32>
    %41 = arith.subf %21, %40 : vector<128x32xf32>
    %42 = math.absf %41 : vector<128x32xf32>
    %43 = arith.mulf %21, %40 : vector<128x32xf32>
    %44 = arith.truncf %21 : vector<128x32xf32> to vector<128x32xbf16>
    %c0_16 = arith.constant 0 : index
    %c0_17 = arith.constant 0 : index
    %45 = vector.load %arg6[%c0_16, %c0_17] : memref<128x128xbf16, #tpu.memory_space<vmem>>, vector<32x128xbf16>
    %cst_18 = arith.constant dense<0.000000e+00> : vector<128x128xf32>
    %46 = tpu.matmul %44, %45, %cst_18 {dimension_numbers = #tpu.dot_dimension_numbers<[1], [0], [0], [1], [0, 0, 1, 1], [], []>} : vector<128x32xbf16>, vector<32x128xbf16>, vector<128x128xf32> -> vector<128x128xf32>
    %47 = arith.truncf %40 : vector<128x32xf32> to vector<128x32xbf16>
    %c32 = arith.constant 32 : index
    %c0_19 = arith.constant 0 : index
    %48 = vector.load %arg6[%c32, %c0_19] : memref<128x128xbf16, #tpu.memory_space<vmem>>, vector<32x128xbf16>
    %cst_20 = arith.constant dense<0.000000e+00> : vector<128x128xf32>
    %49 = tpu.matmul %47, %48, %cst_20 {dimension_numbers = #tpu.dot_dimension_numbers<[1], [0], [0], [1], [0, 0, 1, 1], [], []>} : vector<128x32xbf16>, vector<32x128xbf16>, vector<128x128xf32> -> vector<128x128xf32>
    %50 = arith.addf %46, %49 : vector<128x128xf32>
    %51 = arith.truncf %42 : vector<128x32xf32> to vector<128x32xbf16>
    %c64 = arith.constant 64 : index
    %c0_21 = arith.constant 0 : index
    %52 = vector.load %arg6[%c64, %c0_21] : memref<128x128xbf16, #tpu.memory_space<vmem>>, vector<32x128xbf16>
    %cst_22 = arith.constant dense<0.000000e+00> : vector<128x128xf32>
    %53 = tpu.matmul %51, %52, %cst_22 {dimension_numbers = #tpu.dot_dimension_numbers<[1], [0], [0], [1], [0, 0, 1, 1], [], []>} : vector<128x32xbf16>, vector<32x128xbf16>, vector<128x128xf32> -> vector<128x128xf32>
    %54 = arith.addf %50, %53 : vector<128x128xf32>
    %55 = arith.truncf %43 : vector<128x32xf32> to vector<128x32xbf16>
    %c96 = arith.constant 96 : index
    %c0_23 = arith.constant 0 : index
    %56 = vector.load %arg6[%c96, %c0_23] : memref<128x128xbf16, #tpu.memory_space<vmem>>, vector<32x128xbf16>
    %cst_24 = arith.constant dense<0.000000e+00> : vector<128x128xf32>
    %57 = tpu.matmul %55, %56, %cst_24 {dimension_numbers = #tpu.dot_dimension_numbers<[1], [0], [0], [1], [0, 0, 1, 1], [], []>} : vector<128x32xbf16>, vector<32x128xbf16>, vector<128x128xf32> -> vector<128x128xf32>
    %58 = arith.addf %54, %57 : vector<128x128xf32>
    %c0_25 = arith.constant 0 : index
    %c0_26 = arith.constant 0 : index
    %59 = vector.load %arg7[%c0_25, %c0_26] : memref<1x128xf32, #tpu.memory_space<vmem>>, vector<1x128xf32>
    %60 = vector.broadcast %59 : vector<1x128xf32> to vector<128x128xf32>
    %61 = arith.addf %58, %60 : vector<128x128xf32>
    %c0_27 = arith.constant 0 : index
    %c0_28 = arith.constant 0 : index
    %62 = vector.load %arg8[%c0_27, %c0_28] : memref<128x128xf32, #tpu.memory_space<vmem>>, vector<128x128xf32>
    tpu.vector_store %arg8[%c0_27, %c0_28], %61 {strides = array<i32>} : memref<128x128xf32, #tpu.memory_space<vmem>>, vector<128x128xf32>,
    return
  }
  func.func @transform_0(%arg0: i32) -> (i32, i32, i32) {
    %c0_i32 = arith.constant 0 : i32
    %c0_i32_0 = arith.constant 0 : i32
    %c0_i32_1 = arith.constant 0 : i32
    return %arg0, %c0_i32, %c0_i32_0 : i32, i32, i32
  }
  func.func @transform_1(%arg0: i32) -> (i32, i32, i32) {
    %c0_i32 = arith.constant 0 : i32
    %c0_i32_0 = arith.constant 0 : i32
    %c0_i32_1 = arith.constant 0 : i32
    return %arg0, %c0_i32, %c0_i32_0 : i32, i32, i32
  }
  func.func @transform_2(%arg0: i32) -> (i32, i32) {
    %c0_i32 = arith.constant 0 : i32
    %c0_i32_0 = arith.constant 0 : i32
    return %arg0, %c0_i32 : i32, i32
  }
  func.func @transform_3(%arg0: i32) -> (i32, i32) {
    %c0_i32 = arith.constant 0 : i32
    %c0_i32_0 = arith.constant 0 : i32
    return %arg0, %c0_i32 : i32, i32
  }
  func.func @transform_4(%arg0: i32) -> (i32, i32) {
    %c0_i32 = arith.constant 0 : i32
    %c0_i32_0 = arith.constant 0 : i32
    %c0_i32_1 = arith.constant 0 : i32
    return %c0_i32, %c0_i32_0 : i32, i32
  }
  func.func @transform_5(%arg0: i32) -> (i32, i32) {
    %c0_i32 = arith.constant 0 : i32
    %c0_i32_0 = arith.constant 0 : i32
    %c0_i32_1 = arith.constant 0 : i32
    return %c0_i32, %c0_i32_0 : i32, i32
  }
  func.func @transform_6(%arg0: i32) -> (i32, i32) {
    %c0_i32 = arith.constant 0 : i32
    %c0_i32_0 = arith.constant 0 : i32
    %c0_i32_1 = arith.constant 0 : i32
    return %c0_i32, %c0_i32_0 : i32, i32
  }
  func.func @transform_7(%arg0: i32) -> (i32, i32) {
    %c0_i32 = arith.constant 0 : i32
    %c0_i32_0 = arith.constant 0 : i32
    return %arg0, %c0_i32 : i32, i32
  }
}

</mosaic_0001>

<llo_original>
// kernel: tpu_custom_call.1
$region0: #{tpu_custom_call.1}
  #allocation0 [shape = 'u32[]', space=smem, size = 0x4, offset = 0x4, fixed_abs, tag = 'smem constant byte address 0x4 - core index']
  #allocation1 [shape = 'u32[72,128]{1,0:T(1,128)}', space=vmem, size = 0x9000, scoped, tag = 'internal scratch']
  %s0 = inlined_call_operand.vmem [shape: s32[256,8,1], index: 0, kind: input, shape index: {}]
  %s1 = inlined_call_operand.vmem [shape: s32[256,8,1], index: 1, kind: input, shape index: {}]
  %s2 = inlined_call_operand.vmem [shape: s32[256,1], index: 2, kind: input, shape index: {}]
  %s3 = inlined_call_operand.vmem [shape: s32[256,1], index: 3, kind: input, shape index: {}]
  %s4 = inlined_call_operand.vmem [shape: bf16[128,32], index: 4, kind: input, shape index: {}]
  %s5 = inlined_call_operand.vmem [shape: bf16[128,128], index: 5, kind: input, shape index: {}]
  %s6 = inlined_call_operand.vmem [shape: f32[1,128], index: 6, kind: input, shape index: {}]
  %s7 = inlined_call_operand.hbm [shape: f32[256,128], index: 7, kind: output, shape index: {}]
  %s8 = sld [smem:[#allocation0]]
  $region61: #{tpu_custom_call.1} parent=0
    _
  %s10 = ssub.s32 1, %s8
  %s11 = scalar_select 0, %s10, %s8
  $region1: #{tpu_custom_call.1} parent=0
    #allocation2 [shape = 'u8[131072]{0}', space=vmem, size = 0x20000, scoped, tag = 'output window, operand 0']
    #allocation3 [shape = 's32[2]{0}', space=sflag, size = 0x8, scoped, tag = 'scoped memory for tpu_custom_call.1']
    %12 = vsyncpa [#allocation3], 0
    %s13 = scalar_lea.sflag [#allocation3], 1
    %14 = vsyncpa %s13, 0
    loop: start=0, step=1, limit=4
    $region2: #{tpu_custom_call.1} parent=1 // loop_pre_header
      _
    $region3: #{tpu_custom_call.1} parent=1 // loop_header
      %s16 = sphi 0, %s20
      %p17 = scmp.ge.s32.totalorder %s16, 4
      %s26 = sphi 0, %s28
      %s29 = sphi 0, %s26
      %s30 = sphi 0, %s29
      %s46 = sphi 0, %s30
      %s52 = sphi 0, %s54
      %s55 = sphi 0, %s52
      %s56 = sphi 0, %s55
      %s72 = sphi 0, %s56
      %s78 = sphi 0, %s80
      %s81 = sphi 0, %s78
      %s82 = sphi 0, %s81
      %s98 = sphi 0, %s82
      %s104 = sphi 0, %s106
      %s107 = sphi 0, %s104
      %s108 = sphi 0, %s107
      %s124 = sphi 0, %s108
      %s128 = sphi 0, %s128
      %s130 = sphi 0, %s128
      %s131 = sphi 0, %s130
      %s145 = sphi 0, %s131
      %s149 = sphi 0, %s149
      %s151 = sphi 0, %s149
      %s152 = sphi 0, %s151
      %s166 = sphi 0, %s152
      %s170 = sphi 0, %s170
      %s172 = sphi 0, %s170
      %s173 = sphi 0, %s172
      %s187 = sphi 0, %s173
      %s193 = sphi 0, %s195
      %s196 = sphi 0, %s193
      %s197 = sphi 0, %s196
      %s213 = sphi 0, %s197
    $region4: #{tpu_custom_call.1} parent=1 // loop_header_branch
      %19 = sbr.rel (%p17) target = $region8
    $region5: #{tpu_custom_call.1} parent=1 // loop_body
      %s21 = ssub.s32 %s16, 1
      %s22 = ssub.s32 %s16, 2
      %s23 = sadd.s32 %s16, 1
      %s24 = ssub.s32 %s16, %s23
      %p25 = scmp.eq.s32.totalorder %s24, 0
      %s27 = sadd.s32 %s26, 1
      %s28 = scalar_select %p25, %s26, %s27
      %p31 = pneg %p25
      %p32 = scmp.eq.s32.totalorder %s16, 1
      %p33 = por %p31, %p32
      %p34 = scmp.ne.s32.totalorder %s26, %s29
      %p35 = scmp.eq.s32.totalorder %s16, 0
      %p36 = por %p34, %p35
      %p37 = scmp.ne.s32.totalorder %s26, %s29
      %p38 = scmp.eq.s32.totalorder %s21, 1
      %p39 = por %p37, %p38
      %p40 = scmp.ne.s32.totalorder %s29, %s30
      %p41 = scmp.eq.s32.totalorder %s21, 0
      %p42 = por %p40, %p41
      %p43 = scmp.ne.s32.totalorder %s29, %s30
      %p44 = scmp.eq.s32.totalorder %s22, 1
      %p45 = por %p43, %p44
      %p47 = scmp.ne.s32.totalorder %s30, %s46
      %p48 = scmp.eq.s32.totalorder %s22, 0
      %p49 = por %p47, %p48
      %s50 = ssub.s32 %s16, %s23
      %p51 = scmp.eq.s32.totalorder %s50, 0
      %s53 = sadd.s32 %s52, 1
      %s54 = scalar_select %p51, %s52, %s53
      %p57 = pneg %p51
      %p58 = scmp.eq.s32.totalorder %s16, 1
      %p59 = por %p57, %p58
      %p60 = scmp.ne.s32.totalorder %s52, %s55
      %p61 = scmp.eq.s32.totalorder %s16, 0
      %p62 = por %p60, %p61
      %p63 = scmp.ne.s32.totalorder %s52, %s55
      %p64 = scmp.eq.s32.totalorder %s21, 1
      %p65 = por %p63, %p64
      %p66 = scmp.ne.s32.totalorder %s55, %s56
      %p67 = scmp.eq.s32.totalorder %s21, 0
      %p68 = por %p66, %p67
      %p69 = scmp.ne.s32.totalorder %s55, %s56
      %p70 = scmp.eq.s32.totalorder %s22, 1
      %p71 = por %p69, %p70
      %p73 = scmp.ne.s32.totalorder %s56, %s72
      %p74 = scmp.eq.s32.totalorder %s22, 0
      %p75 = por %p73, %p74
      %s76 = ssub.s32 %s16, %s23
      %p77 = scmp.eq.s32.totalorder %s76, 0
      %s79 = sadd.s32 %s78, 1
      %s80 = scalar_select %p77, %s78, %s79
      %p83 = pneg %p77
      %p84 = scmp.eq.s32.totalorder %s16, 1
      %p85 = por %p83, %p84
      %p86 = scmp.ne.s32.totalorder %s78, %s81
      %p87 = scmp.eq.s32.totalorder %s16, 0
      %p88 = por %p86, %p87
      %p89 = scmp.ne.s32.totalorder %s78, %s81
      %p90 = scmp.eq.s32.totalorder %s21, 1
      %p91 = por %p89, %p90
      %p92 = scmp.ne.s32.totalorder %s81, %s82
      %p93 = scmp.eq.s32.totalorder %s21, 0
      %p94 = por %p92, %p93
      %p95 = scmp.ne.s32.totalorder %s81, %s82
      %p96 = scmp.eq.s32.totalorder %s22, 1
      %p97 = por %p95, %p96
      %p99 = scmp.ne.s32.totalorder %s82, %s98
      %p100 = scmp.eq.s32.totalorder %s22, 0
      %p101 = por %p99, %p100
      %s102 = ssub.s32 %s16, %s23
      %p103 = scmp.eq.s32.totalorder %s102, 0
      %s105 = sadd.s32 %s104, 1
      %s106 = scalar_select %p103, %s104, %s105
      %p109 = pneg %p103
      %p110 = scmp.eq.s32.totalorder %s16, 1
      %p111 = por %p109, %p110
      %p112 = scmp.ne.s32.totalorder %s104, %s107
      %p113 = scmp.eq.s32.totalorder %s16, 0
      %p114 = por %p112, %p113
      %p115 = scmp.ne.s32.totalorder %s104, %s107
      %p116 = scmp.eq.s32.totalorder %s21, 1
      %p117 = por %p115, %p116
      %p118 = scmp.ne.s32.totalorder %s107, %s108
      %p119 = scmp.eq.s32.totalorder %s21, 0
      %p120 = por %p118, %p119
      %p121 = scmp.ne.s32.totalorder %s107, %s108
      %p122 = scmp.eq.s32.totalorder %s22, 1
      %p123 = por %p121, %p122
      %p125 = scmp.ne.s32.totalorder %s108, %s124
      %p126 = scmp.eq.s32.totalorder %s22, 0
      %p127 = por %p125, %p126
      %s129 = sadd.s32 %s128, 1
      %p132 = scmp.eq.s32.totalorder %s16, 1
      %p133 = scmp.ne.s32.totalorder %s128, %s130
      %p134 = scmp.eq.s32.totalorder %s16, 0
      %p135 = por %p133, %p134
      %p136 = scmp.ne.s32.totalorder %s128, %s130
      %p137 = scmp.eq.s32.totalorder %s21, 1
      %p138 = por %p136, %p137
      %p139 = scmp.ne.s32.totalorder %s130, %s131
      %p140 = scmp.eq.s32.totalorder %s21, 0
      %p141 = por %p139, %p140
      %p142 = scmp.ne.s32.totalorder %s130, %s131
      %p143 = scmp.eq.s32.totalorder %s22, 1
      %p144 = por %p142, %p143
      %p146 = scmp.ne.s32.totalorder %s131, %s145
      %p147 = scmp.eq.s32.totalorder %s22, 0
      %p148 = por %p146, %p147
      %s150 = sadd.s32 %s149, 1
      %p153 = scmp.eq.s32.totalorder %s16, 1
      %p154 = scmp.ne.s32.totalorder %s149, %s151
      %p155 = scmp.eq.s32.totalorder %s16, 0
      %p156 = por %p154, %p155
      %p157 = scmp.ne.s32.totalorder %s149, %s151
      %p158 = scmp.eq.s32.totalorder %s21, 1
      %p159 = por %p157, %p158
      %p160 = scmp.ne.s32.totalorder %s151, %s152
      %p161 = scmp.eq.s32.totalorder %s21, 0
      %p162 = por %p160, %p161
      %p163 = scmp.ne.s32.totalorder %s151, %s152
      %p164 = scmp.eq.s32.totalorder %s22, 1
      %p165 = por %p163, %p164
      %p167 = scmp.ne.s32.totalorder %s152, %s166
      %p168 = scmp.eq.s32.totalorder %s22, 0
      %p169 = por %p167, %p168
      %s171 = sadd.s32 %s170, 1
      %p174 = scmp.eq.s32.totalorder %s16, 1
      %p175 = scmp.ne.s32.totalorder %s170, %s172
      %p176 = scmp.eq.s32.totalorder %s16, 0
      %p177 = por %p175, %p176
      %p178 = scmp.ne.s32.totalorder %s170, %s172
      %p179 = scmp.eq.s32.totalorder %s21, 1
      %p180 = por %p178, %p179
      %p181 = scmp.ne.s32.totalorder %s172, %s173
      %p182 = scmp.eq.s32.totalorder %s21, 0
      %p183 = por %p181, %p182
      %p184 = scmp.ne.s32.totalorder %s172, %s173
      %p185 = scmp.eq.s32.totalorder %s22, 1
      %p186 = por %p184, %p185
      %p188 = scmp.ne.s32.totalorder %s173, %s187
      %p189 = scmp.eq.s32.totalorder %s22, 0
      %p190 = por %p188, %p189
      %s191 = ssub.s32 %s16, %s23
      %p192 = scmp.eq.s32.totalorder %s191, 0
      %s194 = sadd.s32 %s193, 1
      %s195 = scalar_select %p192, %s193, %s194
      %p198 = pneg %p192
      %p199 = scmp.eq.s32.totalorder %s16, 1
      %p200 = por %p198, %p199
      %p201 = scmp.ne.s32.totalorder %s193, %s196
      %p202 = scmp.eq.s32.totalorder %s16, 0
      %p203 = por %p201, %p202
      %p204 = scmp.ne.s32.totalorder %s193, %s196
      %p205 = scmp.eq.s32.totalorder %s21, 1
      %p206 = por %p204, %p205
      %p207 = scmp.ne.s32.totalorder %s196, %s197
      %p208 = scmp.eq.s32.totalorder %s21, 0
      %p209 = por %p207, %p208
      %p210 = scmp.ne.s32.totalorder %s196, %s197
      %p211 = scmp.eq.s32.totalorder %s22, 1
      %p212 = por %p210, %p211
      %p214 = scmp.ne.s32.totalorder %s197, %s213
      %p215 = scmp.eq.s32.totalorder %s22, 0
      %p216 = por %p214, %p215
      %p217 = scmp.le.s32.totalorder 1, %s16
      %p218 = scmp.lt.s32.totalorder %s16, 3
      %p219 = pnand %p217, %p218
      %p220 = pneg %p219
      // Predicated region
      $region9: #{tpu_custom_call.1} parent=5 // pred_check
        _
      $region10: #{tpu_custom_call.1} parent=5 // pred_check_branch
        %222 = sbr.rel (%p219) target = $region12
      $region11: #{tpu_custom_call.1} parent=5 // pred_region
        %s223 = ssub.s32 %s16, 1
        // Predicated region
        $region13: #{tpu_custom_call.1} parent=11 // pred_check
          %p224 = pneg %p141
        $region14: #{tpu_custom_call.1} parent=11 // pred_check_branch
          %226 = sbr.rel (%p224) target = $region16
        $region15: #{tpu_custom_call.1} parent=11 // pred_region
          _
        $region16: #{tpu_custom_call.1} parent=11 // pred_fallthru
          _
        // Predicated region
        $region17: #{tpu_custom_call.1} parent=11 // pred_check
          %p227 = pneg %p162
        $region18: #{tpu_custom_call.1} parent=11 // pred_check_branch
          %229 = sbr.rel (%p227) target = $region20
        $region19: #{tpu_custom_call.1} parent=11 // pred_region
          _
        $region20: #{tpu_custom_call.1} parent=11 // pred_fallthru
          _
        // Predicated region
        $region21: #{tpu_custom_call.1} parent=11 // pred_check
          %p230 = pneg %p183
        $region22: #{tpu_custom_call.1} parent=11 // pred_check_branch
          %232 = sbr.rel (%p230) target = $region24
        $region23: #{tpu_custom_call.1} parent=11 // pred_region
          _
        $region24: #{tpu_custom_call.1} parent=11 // pred_fallthru
          _
      $region12: #{tpu_custom_call.1} parent=5 // pred_fallthru
        _
      %p233 = scmp.lt.s32.totalorder %s16, 2
      // Predicated region
      $region25: #{tpu_custom_call.1} parent=5 // pred_check
        %p234 = pneg %p233
      $region26: #{tpu_custom_call.1} parent=5 // pred_check_branch
        %236 = sbr.rel (%p234) target = $region28
      $region27: #{tpu_custom_call.1} parent=5 // pred_region
        // Predicated region
        $region29: #{tpu_custom_call.1} parent=27 // pred_check
          %p237 = pneg %p36
        $region30: #{tpu_custom_call.1} parent=27 // pred_check_branch
          %239 = sbr.rel (%p237) target = $region32
        $region31: #{tpu_custom_call.1} parent=27 // pred_region
          %s240 = smul.u32 128, %s16
          %p241 = scmp.lt.s32.totalorder %s240, 255
          %s242 = scalar_select %p241, %s240, 255
          %s243 = smul.addr %s242, 8
          %s244 = scalar_lea.vmem %s0, %s243
          %s245 = smul.u32 128, %s16
        $region32: #{tpu_custom_call.1} parent=27 // pred_fallthru
          _
        // Predicated region
        $region33: #{tpu_custom_call.1} parent=27 // pred_check
          %p246 = pneg %p62
        $region34: #{tpu_custom_call.1} parent=27 // pred_check_branch
          %248 = sbr.rel (%p246) target = $region36
        $region35: #{tpu_custom_call.1} parent=27 // pred_region
          %s249 = smul.u32 128, %s16
          %p250 = scmp.lt.s32.totalorder %s249, 255
          %s251 = scalar_select %p250, %s249, 255
          %s252 = smul.addr %s251, 8
          %s253 = scalar_lea.vmem %s1, %s252
          %s254 = smul.u32 128, %s16
        $region36: #{tpu_custom_call.1} parent=27 // pred_fallthru
          _
        // Predicated region
        $region37: #{tpu_custom_call.1} parent=27 // pred_check
          %p255 = pneg %p88
        $region38: #{tpu_custom_call.1} parent=27 // pred_check_branch
          %257 = sbr.rel (%p255) target = $region40
        $region39: #{tpu_custom_call.1} parent=27 // pred_region
          %s258 = smul.u32 16, %s16
          %p259 = scmp.lt.s32.totalorder %s258, 31
          %s260 = scalar_select %p259, %s258, 31
          %s261 = smul.addr %s260, 8
          %s262 = scalar_lea.vmem %s2, %s261
          %s263 = smul.u32 16, %s16
        $region40: #{tpu_custom_call.1} parent=27 // pred_fallthru
          _
        // Predicated region
        $region41: #{tpu_custom_call.1} parent=27 // pred_check
          %p264 = pneg %p114
        $region42: #{tpu_custom_call.1} parent=27 // pred_check_branch
          %266 = sbr.rel (%p264) target = $region44
        $region43: #{tpu_custom_call.1} parent=27 // pred_region
          %s267 = smul.u32 16, %s16
          %p268 = scmp.lt.s32.totalorder %s267, 31
          %s269 = scalar_select %p268, %s267, 31
          %s270 = smul.addr %s269, 8
          %s271 = scalar_lea.vmem %s3, %s270
          %s272 = smul.u32 16, %s16
        $region44: #{tpu_custom_call.1} parent=27 // pred_fallthru
          _
      $region28: #{tpu_custom_call.1} parent=5 // pred_fallthru
        _
      %p273 = scmp.le.s32.totalorder 1, %s16
      %p274 = scmp.lt.s32.totalorder %s16, 3
      %p275 = pnand %p273, %p274
      %p276 = pneg %p275
      // Predicated region
      $region45: #{tpu_custom_call.1} parent=5 // pred_check
        _
      $region46: #{tpu_custom_call.1} parent=5 // pred_check_branch
        %278 = sbr.rel (%p275) target = $region48
      $region47: #{tpu_custom_call.1} parent=5 // pred_region
        %s279 = ssub.s32 %s16, 1
        %s280 = smul.u32 128, %s21
        %p281 = scmp.lt.s32.totalorder %s280, 255
        %s282 = scalar_select %p281, %s280, 255
        %s283 = smul.addr %s282, 8
        %s284 = scalar_lea.vmem %s0, %s283
        %p285 = pneg %p42
        %p286 = pneg %p39
        %s287 = smul.u32 128, %s21
        %p288 = scmp.lt.s32.totalorder %s287, 255
        %s289 = scalar_select %p288, %s287, 255
        %s290 = smul.addr %s289, 8
        %s291 = scalar_lea.vmem %s1, %s290
        %p292 = pneg %p68
        %p293 = pneg %p65
        %s294 = smul.u32 16, %s21
        %p295 = scmp.lt.s32.totalorder %s294, 31
        %s296 = scalar_select %p295, %s294, 31
        %s297 = smul.addr %s296, 8
        %s298 = scalar_lea.vmem %s2, %s297
        %p299 = pneg %p94
        %p300 = pneg %p91
        %s301 = smul.u32 16, %s21
        %p302 = scmp.lt.s32.totalorder %s301, 31
        %s303 = scalar_select %p302, %s301, 31
        %s304 = smul.addr %s303, 8
        %s305 = scalar_lea.vmem %s3, %s304
        %p306 = pneg %p120
        %p307 = pneg %p117
        %p308 = pneg %p141
        %p309 = pneg %p138
        %p310 = pneg %p162
        %p311 = pneg %p159
        %p312 = pneg %p183
        %p313 = pneg %p180
        %p314 = pneg %p209
        %p315 = pneg %p206
        %s316 = sand.u32 %s196, 1
        %s317 = scalar_lea.sflag [#allocation3], %s316
        %s318 = sand.u32 %s196, 1
        %s319 = smul.addr %s318, 128
        %s320 = scalar_lea.vmem [#allocation2], %s319
        %s321 = smul.u32 128, %s21
        %p322 = scmp.lt.s32.totalorder %s321, 255
        %s323 = scalar_select %p322, %s321, 255
        %s324 = smul.addr %s323, 8
        %s325 = scalar_lea.vmem %s0, %s324
        %s326 = smul.u32 128, %s21
        %s327 = smul.u32 128, %s21
        %p328 = scmp.lt.s32.totalorder %s327, 255
        %s329 = scalar_select %p328, %s327, 255
        %s330 = smul.addr %s329, 8
        %s331 = scalar_lea.vmem %s1, %s330
        %s332 = smul.u32 128, %s21
        %s333 = smul.u32 16, %s21
        %p334 = scmp.lt.s32.totalorder %s333, 31
        %s335 = scalar_select %p334, %s333, 31
        %s336 = smul.addr %s335, 8
        %s337 = scalar_lea.vmem %s2, %s336
        %s338 = smul.u32 16, %s21
        %s339 = smul.u32 16, %s21
        %p340 = scmp.lt.s32.totalorder %s339, 31
        %s341 = scalar_select %p340, %s339, 31
        %s342 = smul.addr %s341, 8
        %s343 = scalar_lea.vmem %s3, %s342
        %s344 = smul.u32 16, %s21
        %s345 = smul.u32 16, %s21
        %v347 = vlaneseq
        %v348 = vshrl.u32 %v347, 7
        %v349 = vlaneseq
        %v350 = vand.u32 %v349, 127
        %v351 = vld [vmem:[%s4] sm:$0xf]
        %v352 = vld [vmem:[%s4 + $0x4] sm:$0xf]
        %v353 = vld [vmem:[%s4 + $0x8] sm:$0xf]
        %v354 = vld [vmem:[%s4 + $0xc] sm:$0xf]
        %v355 = vld [vmem:[%s4 + $0x10] sm:$0xf]
        %v356 = vld [vmem:[%s4 + $0x14] sm:$0xf]
        %v357 = vld [vmem:[%s4 + $0x18] sm:$0xf]
        %v358 = vld [vmem:[%s4 + $0x1c] sm:$0xf]
        %v359 = vld [vmem:[%s4 + $0x20] sm:$0xf]
        %v360 = vld [vmem:[%s4 + $0x24] sm:$0xf]
        %v361 = vld [vmem:[%s4 + $0x28] sm:$0xf]
        %v362 = vld [vmem:[%s4 + $0x2c] sm:$0xf]
        %v363 = vld [vmem:[%s4 + $0x30] sm:$0xf]
        %v364 = vld [vmem:[%s4 + $0x34] sm:$0xf]
        %v365 = vld [vmem:[%s4 + $0x38] sm:$0xf]
        %v366 = vld [vmem:[%s4 + $0x3c] sm:$0xf]
        %v367 = vld [vmem:[%s337] sm:$0xff]
        %v368 = vld [vmem:[%s337 + $0x8] sm:$0xff]
        %v369 = vld [vmem:[%s337 + $0x10] sm:$0xff]
        %v370 = vld [vmem:[%s337 + $0x18] sm:$0xff]
        %v371 = vld [vmem:[%s337 + $0x20] sm:$0xff]
        %v372 = vld [vmem:[%s337 + $0x28] sm:$0xff]
        %v373 = vld [vmem:[%s337 + $0x30] sm:$0xff]
        %v374 = vld [vmem:[%s337 + $0x38] sm:$0xff]
        %v375 = vld [vmem:[%s337 + $0x40] sm:$0xff]
        %v376 = vld [vmem:[%s337 + $0x48] sm:$0xff]
        %v377 = vld [vmem:[%s337 + $0x50] sm:$0xff]
        %v378 = vld [vmem:[%s337 + $0x58] sm:$0xff]
        %v379 = vld [vmem:[%s337 + $0x60] sm:$0xff]
        %v380 = vld [vmem:[%s337 + $0x68] sm:$0xff]
        %v381 = vld [vmem:[%s337 + $0x70] sm:$0xff]
        %v382 = vld [vmem:[%s337 + $0x78] sm:$0xff]
        %v383 = vrot.slane %v367, 1
        %v384 = vrot.slane %v367, 2
        %v385 = vrot.slane %v367, 3
        %v386 = vrot.slane %v367, 4
        %v387 = vrot.slane %v367, 5
        %v388 = vrot.slane %v367, 6
        %v389 = vrot.slane %v367, 7
        %v390 = vrot.slane %v368, 1
        %v391 = vrot.slane %v368, 2
        %v392 = vrot.slane %v368, 3
        %v393 = vrot.slane %v368, 4
        %v394 = vrot.slane %v368, 5
        %v395 = vrot.slane %v368, 6
        %v396 = vrot.slane %v368, 7
        %v397 = vrot.slane %v369, 1
        %v398 = vrot.slane %v369, 2
        %v399 = vrot.slane %v369, 3
        %v400 = vrot.slane %v369, 4
        %v401 = vrot.slane %v369, 5
        %v402 = vrot.slane %v369, 6
        %v403 = vrot.slane %v369, 7
        %v404 = vrot.slane %v370, 1
        %v405 = vrot.slane %v370, 2
        %v406 = vrot.slane %v370, 3
        %v407 = vrot.slane %v370, 4
        %v408 = vrot.slane %v370, 5
        %v409 = vrot.slane %v370, 6
        %v410 = vrot.slane %v370, 7
        %v411 = vrot.slane %v371, 1
        %v412 = vrot.slane %v371, 2
        %v413 = vrot.slane %v371, 3
        %v414 = vrot.slane %v371, 4
        %v415 = vrot.slane %v371, 5
        %v416 = vrot.slane %v371, 6
        %v417 = vrot.slane %v371, 7
        %v418 = vrot.slane %v372, 1
        %v419 = vrot.slane %v372, 2
        %v420 = vrot.slane %v372, 3
        %v421 = vrot.slane %v372, 4
        %v422 = vrot.slane %v372, 5
        %v423 = vrot.slane %v372, 6
        %v424 = vrot.slane %v372, 7
        %v425 = vrot.slane %v373, 1
        %v426 = vrot.slane %v373, 2
        %v427 = vrot.slane %v373, 3
        %v428 = vrot.slane %v373, 4
        %v429 = vrot.slane %v373, 5
        %v430 = vrot.slane %v373, 6
        %v431 = vrot.slane %v373, 7
        %v432 = vrot.slane %v374, 1
        %v433 = vrot.slane %v374, 2
        %v434 = vrot.slane %v374, 3
        %v435 = vrot.slane %v374, 4
        %v436 = vrot.slane %v374, 5
        %v437 = vrot.slane %v374, 6
        %v438 = vrot.slane %v374, 7
        %v439 = vrot.slane %v375, 1
        %v440 = vrot.slane %v375, 2
        %v441 = vrot.slane %v375, 3
        %v442 = vrot.slane %v375, 4
        %v443 = vrot.slane %v375, 5
        %v444 = vrot.slane %v375, 6
        %v445 = vrot.slane %v375, 7
        %v446 = vrot.slane %v376, 1
        %v447 = vrot.slane %v376, 2
        %v448 = vrot.slane %v376, 3
        %v449 = vrot.slane %v376, 4
        %v450 = vrot.slane %v376, 5
        %v451 = vrot.slane %v376, 6
        %v452 = vrot.slane %v376, 7
        %v453 = vrot.slane %v377, 1
        %v454 = vrot.slane %v377, 2
        %v455 = vrot.slane %v377, 3
        %v456 = vrot.slane %v377, 4
        %v457 = vrot.slane %v377, 5
        %v458 = vrot.slane %v377, 6
        %v459 = vrot.slane %v377, 7
        %v460 = vrot.slane %v378, 1
        %v461 = vrot.slane %v378, 2
        %v462 = vrot.slane %v378, 3
        %v463 = vrot.slane %v378, 4
        %v464 = vrot.slane %v378, 5
        %v465 = vrot.slane %v378, 6
        %v466 = vrot.slane %v378, 7
        %v467 = vrot.slane %v379, 1
        %v468 = vrot.slane %v379, 2
        %v469 = vrot.slane %v379, 3
        %v470 = vrot.slane %v379, 4
        %v471 = vrot.slane %v379, 5
        %v472 = vrot.slane %v379, 6
        %v473 = vrot.slane %v379, 7
        %v474 = vrot.slane %v380, 1
        %v475 = vrot.slane %v380, 2
        %v476 = vrot.slane %v380, 3
        %v477 = vrot.slane %v380, 4
        %v478 = vrot.slane %v380, 5
        %v479 = vrot.slane %v380, 6
        %v480 = vrot.slane %v380, 7
        %v481 = vrot.slane %v381, 1
        %v482 = vrot.slane %v381, 2
        %v483 = vrot.slane %v381, 3
        %v484 = vrot.slane %v381, 4
        %v485 = vrot.slane %v381, 5
        %v486 = vrot.slane %v381, 6
        %v487 = vrot.slane %v381, 7
        %v488 = vrot.slane %v382, 1
        %v489 = vrot.slane %v382, 2
        %v490 = vrot.slane %v382, 3
        %v491 = vrot.slane %v382, 4
        %v492 = vrot.slane %v382, 5
        %v493 = vrot.slane %v382, 6
        %v494 = vrot.slane %v382, 7
        %v495 = vperm.slane %v367, 0
        %v496 = vperm.slane %v383, 0
        %v497 = vperm.slane %v384, 0
        %v498 = vperm.slane %v385, 0
        %v499 = vperm.slane %v386, 0
        %v500 = vperm.slane %v387, 0
        %v501 = vperm.slane %v388, 0
        %v502 = vperm.slane %v389, 0
        %v503 = vperm.slane %v368, 0
        %v504 = vperm.slane %v390, 0
        %v505 = vperm.slane %v391, 0
        %v506 = vperm.slane %v392, 0
        %v507 = vperm.slane %v393, 0
        %v508 = vperm.slane %v394, 0
        %v509 = vperm.slane %v395, 0
        %v510 = vperm.slane %v396, 0
        %v511 = vperm.slane %v369, 0
        %v512 = vperm.slane %v397, 0
        %v513 = vperm.slane %v398, 0
        %v514 = vperm.slane %v399, 0
        %v515 = vperm.slane %v400, 0
        %v516 = vperm.slane %v401, 0
        %v517 = vperm.slane %v402, 0
        %v518 = vperm.slane %v403, 0
        %v519 = vperm.slane %v370, 0
        %v520 = vperm.slane %v404, 0
        %v521 = vperm.slane %v405, 0
        %v522 = vperm.slane %v406, 0
        %v523 = vperm.slane %v407, 0
        %v524 = vperm.slane %v408, 0
        %v525 = vperm.slane %v409, 0
        %v526 = vperm.slane %v410, 0
        %v527 = vperm.slane %v371, 0
        %v528 = vperm.slane %v411, 0
        %v529 = vperm.slane %v412, 0
        %v530 = vperm.slane %v413, 0
        %v531 = vperm.slane %v414, 0
        %v532 = vperm.slane %v415, 0
        %v533 = vperm.slane %v416, 0
        %v534 = vperm.slane %v417, 0
        %v535 = vperm.slane %v372, 0
        %v536 = vperm.slane %v418, 0
        %v537 = vperm.slane %v419, 0
        %v538 = vperm.slane %v420, 0
        %v539 = vperm.slane %v421, 0
        %v540 = vperm.slane %v422, 0
        %v541 = vperm.slane %v423, 0
        %v542 = vperm.slane %v424, 0
        %v543 = vperm.slane %v373, 0
        %v544 = vperm.slane %v425, 0
        %v545 = vperm.slane %v426, 0
        %v546 = vperm.slane %v427, 0
        %v547 = vperm.slane %v428, 0
        %v548 = vperm.slane %v429, 0
        %v549 = vperm.slane %v430, 0
        %v550 = vperm.slane %v431, 0
        %v551 = vperm.slane %v374, 0
        %v552 = vperm.slane %v432, 0
        %v553 = vperm.slane %v433, 0
        %v554 = vperm.slane %v434, 0
        %v555 = vperm.slane %v435, 0
        %v556 = vperm.slane %v436, 0
        %v557 = vperm.slane %v437, 0
        %v558 = vperm.slane %v438, 0
        %v559 = vperm.slane %v375, 0
        %v560 = vperm.slane %v439, 0
        %v561 = vperm.slane %v440, 0
        %v562 = vperm.slane %v441, 0
        %v563 = vperm.slane %v442, 0
        %v564 = vperm.slane %v443, 0
        %v565 = vperm.slane %v444, 0
        %v566 = vperm.slane %v445, 0
        %v567 = vperm.slane %v376, 0
        %v568 = vperm.slane %v446, 0
        %v569 = vperm.slane %v447, 0
        %v570 = vperm.slane %v448, 0
        %v571 = vperm.slane %v449, 0
        %v572 = vperm.slane %v450, 0
        %v573 = vperm.slane %v451, 0
        %v574 = vperm.slane %v452, 0
        %v575 = vperm.slane %v377, 0
        %v576 = vperm.slane %v453, 0
        %v577 = vperm.slane %v454, 0
        %v578 = vperm.slane %v455, 0
        %v579 = vperm.slane %v456, 0
        %v580 = vperm.slane %v457, 0
        %v581 = vperm.slane %v458, 0
        %v582 = vperm.slane %v459, 0
        %v583 = vperm.slane %v378, 0
        %v584 = vperm.slane %v460, 0
        %v585 = vperm.slane %v461, 0
        %v586 = vperm.slane %v462, 0
        %v587 = vperm.slane %v463, 0
        %v588 = vperm.slane %v464, 0
        %v589 = vperm.slane %v465, 0
        %v590 = vperm.slane %v466, 0
        %v591 = vperm.slane %v379, 0
        %v592 = vperm.slane %v467, 0
        %v593 = vperm.slane %v468, 0
        %v594 = vperm.slane %v469, 0
        %v595 = vperm.slane %v470, 0
        %v596 = vperm.slane %v471, 0
        %v597 = vperm.slane %v472, 0
        %v598 = vperm.slane %v473, 0
        %v599 = vperm.slane %v380, 0
        %v600 = vperm.slane %v474, 0
        %v601 = vperm.slane %v475, 0
        %v602 = vperm.slane %v476, 0
        %v603 = vperm.slane %v477, 0
        %v604 = vperm.slane %v478, 0
        %v605 = vperm.slane %v479, 0
        %v606 = vperm.slane %v480, 0
        %v607 = vperm.slane %v381, 0
        %v608 = vperm.slane %v481, 0
        %v609 = vperm.slane %v482, 0
        %v610 = vperm.slane %v483, 0
        %v611 = vperm.slane %v484, 0
        %v612 = vperm.slane %v485, 0
        %v613 = vperm.slane %v486, 0
        %v614 = vperm.slane %v487, 0
        %v615 = vperm.slane %v382, 0
        %v616 = vperm.slane %v488, 0
        %v617 = vperm.slane %v489, 0
        %v618 = vperm.slane %v490, 0
        %v619 = vperm.slane %v491, 0
        %v620 = vperm.slane %v492, 0
        %v621 = vperm.slane %v493, 0
        %v622 = vperm.slane %v494, 0
        %vm623 = vcmp.lt.s32.totalorder %v348, %v495
        %vm624 = vcmp.lt.s32.totalorder %v348, %v496
        %vm625 = vcmp.lt.s32.totalorder %v348, %v497
        %vm626 = vcmp.lt.s32.totalorder %v348, %v498
        %vm627 = vcmp.lt.s32.totalorder %v348, %v499
        %vm628 = vcmp.lt.s32.totalorder %v348, %v500
        %vm629 = vcmp.lt.s32.totalorder %v348, %v501
        %vm630 = vcmp.lt.s32.totalorder %v348, %v502
        %vm631 = vcmp.lt.s32.totalorder %v348, %v503
        %vm632 = vcmp.lt.s32.totalorder %v348, %v504
        %vm633 = vcmp.lt.s32.totalorder %v348, %v505
        %vm634 = vcmp.lt.s32.totalorder %v348, %v506
        %vm635 = vcmp.lt.s32.totalorder %v348, %v507
        %vm636 = vcmp.lt.s32.totalorder %v348, %v508
        %vm637 = vcmp.lt.s32.totalorder %v348, %v509
        %vm638 = vcmp.lt.s32.totalorder %v348, %v510
        %vm639 = vcmp.lt.s32.totalorder %v348, %v511
        %vm640 = vcmp.lt.s32.totalorder %v348, %v512
        %vm641 = vcmp.lt.s32.totalorder %v348, %v513
        %vm642 = vcmp.lt.s32.totalorder %v348, %v514
        %vm643 = vcmp.lt.s32.totalorder %v348, %v515
        %vm644 = vcmp.lt.s32.totalorder %v348, %v516
        %vm645 = vcmp.lt.s32.totalorder %v348, %v517
        %vm646 = vcmp.lt.s32.totalorder %v348, %v518
        %vm647 = vcmp.lt.s32.totalorder %v348, %v519
        %vm648 = vcmp.lt.s32.totalorder %v348, %v520
        %vm649 = vcmp.lt.s32.totalorder %v348, %v521
        %vm650 = vcmp.lt.s32.totalorder %v348, %v522
        %vm651 = vcmp.lt.s32.totalorder %v348, %v523
        %vm652 = vcmp.lt.s32.totalorder %v348, %v524
        %vm653 = vcmp.lt.s32.totalorder %v348, %v525
        %vm654 = vcmp.lt.s32.totalorder %v348, %v526
        %vm655 = vcmp.lt.s32.totalorder %v348, %v527
        %vm656 = vcmp.lt.s32.totalorder %v348, %v528
        %vm657 = vcmp.lt.s32.totalorder %v348, %v529
        %vm658 = vcmp.lt.s32.totalorder %v348, %v530
        %vm659 = vcmp.lt.s32.totalorder %v348, %v531
        %vm660 = vcmp.lt.s32.totalorder %v348, %v532
        %vm661 = vcmp.lt.s32.totalorder %v348, %v533
        %vm662 = vcmp.lt.s32.totalorder %v348, %v534
        %vm663 = vcmp.lt.s32.totalorder %v348, %v535
        %vm664 = vcmp.lt.s32.totalorder %v348, %v536
        %vm665 = vcmp.lt.s32.totalorder %v348, %v537
        %vm666 = vcmp.lt.s32.totalorder %v348, %v538
        %vm667 = vcmp.lt.s32.totalorder %v348, %v539
        %vm668 = vcmp.lt.s32.totalorder %v348, %v540
        %vm669 = vcmp.lt.s32.totalorder %v348, %v541
        %vm670 = vcmp.lt.s32.totalorder %v348, %v542
        %vm671 = vcmp.lt.s32.totalorder %v348, %v543
        %vm672 = vcmp.lt.s32.totalorder %v348, %v544
        %vm673 = vcmp.lt.s32.totalorder %v348, %v545
        %vm674 = vcmp.lt.s32.totalorder %v348, %v546
        %vm675 = vcmp.lt.s32.totalorder %v348, %v547
        %vm676 = vcmp.lt.s32.totalorder %v348, %v548
        %vm677 = vcmp.lt.s32.totalorder %v348, %v549
        %vm678 = vcmp.lt.s32.totalorder %v348, %v550
        %vm679 = vcmp.lt.s32.totalorder %v348, %v551
        %vm680 = vcmp.lt.s32.totalorder %v348, %v552
        %vm681 = vcmp.lt.s32.totalorder %v348, %v553
        %vm682 = vcmp.lt.s32.totalorder %v348, %v554
        %vm683 = vcmp.lt.s32.totalorder %v348, %v555
        %vm684 = vcmp.lt.s32.totalorder %v348, %v556
        %vm685 = vcmp.lt.s32.totalorder %v348, %v557
        %vm686 = vcmp.lt.s32.totalorder %v348, %v558
        %vm687 = vcmp.lt.s32.totalorder %v348, %v559
        %vm688 = vcmp.lt.s32.totalorder %v348, %v560
        %vm689 = vcmp.lt.s32.totalorder %v348, %v561
        %vm690 = vcmp.lt.s32.totalorder %v348, %v562
        %vm691 = vcmp.lt.s32.totalorder %v348, %v563
        %vm692 = vcmp.lt.s32.totalorder %v348, %v564
        %vm693 = vcmp.lt.s32.totalorder %v348, %v565
        %vm694 = vcmp.lt.s32.totalorder %v348, %v566
        %vm695 = vcmp.lt.s32.totalorder %v348, %v567
        %vm696 = vcmp.lt.s32.totalorder %v348, %v568
        %vm697 = vcmp.lt.s32.totalorder %v348, %v569
        %vm698 = vcmp.lt.s32.totalorder %v348, %v570
        %vm699 = vcmp.lt.s32.totalorder %v348, %v571
        %vm700 = vcmp.lt.s32.totalorder %v348, %v572
        %vm701 = vcmp.lt.s32.totalorder %v348, %v573
        %vm702 = vcmp.lt.s32.totalorder %v348, %v574
        %vm703 = vcmp.lt.s32.totalorder %v348, %v575
        %vm704 = vcmp.lt.s32.totalorder %v348, %v576
        %vm705 = vcmp.lt.s32.totalorder %v348, %v577
        %vm706 = vcmp.lt.s32.totalorder %v348, %v578
        %vm707 = vcmp.lt.s32.totalorder %v348, %v579
        %vm708 = vcmp.lt.s32.totalorder %v348, %v580
        %vm709 = vcmp.lt.s32.totalorder %v348, %v581
        %vm710 = vcmp.lt.s32.totalorder %v348, %v582
        %vm711 = vcmp.lt.s32.totalorder %v348, %v583
        %vm712 = vcmp.lt.s32.totalorder %v348, %v584
        %vm713 = vcmp.lt.s32.totalorder %v348, %v585
        %vm714 = vcmp.lt.s32.totalorder %v348, %v586
        %vm715 = vcmp.lt.s32.totalorder %v348, %v587
        %vm716 = vcmp.lt.s32.totalorder %v348, %v588
        %vm717 = vcmp.lt.s32.totalorder %v348, %v589
        %vm718 = vcmp.lt.s32.totalorder %v348, %v590
        %vm719 = vcmp.lt.s32.totalorder %v348, %v591
        %vm720 = vcmp.lt.s32.totalorder %v348, %v592
        %vm721 = vcmp.lt.s32.totalorder %v348, %v593
        %vm722 = vcmp.lt.s32.totalorder %v348, %v594
        %vm723 = vcmp.lt.s32.totalorder %v348, %v595
        %vm724 = vcmp.lt.s32.totalorder %v348, %v596
        %vm725 = vcmp.lt.s32.totalorder %v348, %v597
        %vm726 = vcmp.lt.s32.totalorder %v348, %v598
        %vm727 = vcmp.lt.s32.totalorder %v348, %v599
        %vm728 = vcmp.lt.s32.totalorder %v348, %v600
        %vm729 = vcmp.lt.s32.totalorder %v348, %v601
        %vm730 = vcmp.lt.s32.totalorder %v348, %v602
        %vm731 = vcmp.lt.s32.totalorder %v348, %v603
        %vm732 = vcmp.lt.s32.totalorder %v348, %v604
        %vm733 = vcmp.lt.s32.totalorder %v348, %v605
        %vm734 = vcmp.lt.s32.totalorder %v348, %v606
        %vm735 = vcmp.lt.s32.totalorder %v348, %v607
        %vm736 = vcmp.lt.s32.totalorder %v348, %v608
        %vm737 = vcmp.lt.s32.totalorder %v348, %v609
        %vm738 = vcmp.lt.s32.totalorder %v348, %v610
        %vm739 = vcmp.lt.s32.totalorder %v348, %v611
        %vm740 = vcmp.lt.s32.totalorder %v348, %v612
        %vm741 = vcmp.lt.s32.totalorder %v348, %v613
        %vm742 = vcmp.lt.s32.totalorder %v348, %v614
        %vm743 = vcmp.lt.s32.totalorder %v348, %v615
        %vm744 = vcmp.lt.s32.totalorder %v348, %v616
        %vm745 = vcmp.lt.s32.totalorder %v348, %v617
        %vm746 = vcmp.lt.s32.totalorder %v348, %v618
        %vm747 = vcmp.lt.s32.totalorder %v348, %v619
        %vm748 = vcmp.lt.s32.totalorder %v348, %v620
        %vm749 = vcmp.lt.s32.totalorder %v348, %v621
        %vm750 = vcmp.lt.s32.totalorder %v348, %v622
        %v751 = vld [vmem:[%s325] sm:$0xff]
        %v752 = vld [vmem:[%s325 + $0x8] sm:$0xff]
        %v753 = vld [vmem:[%s325 + $0x10] sm:$0xff]
        %v754 = vld [vmem:[%s325 + $0x18] sm:$0xff]
        %v755 = vld [vmem:[%s325 + $0x20] sm:$0xff]
        %v756 = vld [vmem:[%s325 + $0x28] sm:$0xff]
        %v757 = vld [vmem:[%s325 + $0x30] sm:$0xff]
        %v758 = vld [vmem:[%s325 + $0x38] sm:$0xff]
        %v759 = vld [vmem:[%s325 + $0x40] sm:$0xff]
        %v760 = vld [vmem:[%s325 + $0x48] sm:$0xff]
        %v761 = vld [vmem:[%s325 + $0x50] sm:$0xff]
        %v762 = vld [vmem:[%s325 + $0x58] sm:$0xff]
        %v763 = vld [vmem:[%s325 + $0x60] sm:$0xff]
        %v764 = vld [vmem:[%s325 + $0x68] sm:$0xff]
        %v765 = vld [vmem:[%s325 + $0x70] sm:$0xff]
        %v766 = vld [vmem:[%s325 + $0x78] sm:$0xff]
        %v767 = vld [vmem:[%s325 + $0x80] sm:$0xff]
        %v768 = vld [vmem:[%s325 + $0x88] sm:$0xff]
        %v769 = vld [vmem:[%s325 + $0x90] sm:$0xff]
        %v770 = vld [vmem:[%s325 + $0x98] sm:$0xff]
        %v771 = vld [vmem:[%s325 + $0xa0] sm:$0xff]
        %v772 = vld [vmem:[%s325 + $0xa8] sm:$0xff]
        %v773 = vld [vmem:[%s325 + $0xb0] sm:$0xff]
        %v774 = vld [vmem:[%s325 + $0xb8] sm:$0xff]
        %v775 = vld [vmem:[%s325 + $0xc0] sm:$0xff]
        %v776 = vld [vmem:[%s325 + $0xc8] sm:$0xff]
        %v777 = vld [vmem:[%s325 + $0xd0] sm:$0xff]
        %v778 = vld [vmem:[%s325 + $0xd8] sm:$0xff]
        %v779 = vld [vmem:[%s325 + $0xe0] sm:$0xff]
        %v780 = vld [vmem:[%s325 + $0xe8] sm:$0xff]
        %v781 = vld [vmem:[%s325 + $0xf0] sm:$0xff]
        %v782 = vld [vmem:[%s325 + $0xf8] sm:$0xff]
        %v783 = vld [vmem:[%s325 + $0x100] sm:$0xff]
        %v784 = vld [vmem:[%s325 + $0x108] sm:$0xff]
        %v785 = vld [vmem:[%s325 + $0x110] sm:$0xff]
        %v786 = vld [vmem:[%s325 + $0x118] sm:$0xff]
        %v787 = vld [vmem:[%s325 + $0x120] sm:$0xff]
        %v788 = vld [vmem:[%s325 + $0x128] sm:$0xff]
        %v789 = vld [vmem:[%s325 + $0x130] sm:$0xff]
        %v790 = vld [vmem:[%s325 + $0x138] sm:$0xff]
        %v791 = vld [vmem:[%s325 + $0x140] sm:$0xff]
        %v792 = vld [vmem:[%s325 + $0x148] sm:$0xff]
        %v793 = vld [vmem:[%s325 + $0x150] sm:$0xff]
        %v794 = vld [vmem:[%s325 + $0x158] sm:$0xff]
        %v795 = vld [vmem:[%s325 + $0x160] sm:$0xff]
        %v796 = vld [vmem:[%s325 + $0x168] sm:$0xff]
        %v797 = vld [vmem:[%s325 + $0x170] sm:$0xff]
        %v798 = vld [vmem:[%s325 + $0x178] sm:$0xff]
        %v799 = vld [vmem:[%s325 + $0x180] sm:$0xff]
        %v800 = vld [vmem:[%s325 + $0x188] sm:$0xff]
        %v801 = vld [vmem:[%s325 + $0x190] sm:$0xff]
        %v802 = vld [vmem:[%s325 + $0x198] sm:$0xff]
        %v803 = vld [vmem:[%s325 + $0x1a0] sm:$0xff]
        %v804 = vld [vmem:[%s325 + $0x1a8] sm:$0xff]
        %v805 = vld [vmem:[%s325 + $0x1b0] sm:$0xff]
        %v806 = vld [vmem:[%s325 + $0x1b8] sm:$0xff]
        %v807 = vld [vmem:[%s325 + $0x1c0] sm:$0xff]
        %v808 = vld [vmem:[%s325 + $0x1c8] sm:$0xff]
        %v809 = vld [vmem:[%s325 + $0x1d0] sm:$0xff]
        %v810 = vld [vmem:[%s325 + $0x1d8] sm:$0xff]
        %v811 = vld [vmem:[%s325 + $0x1e0] sm:$0xff]
        %v812 = vld [vmem:[%s325 + $0x1e8] sm:$0xff]
        %v813 = vld [vmem:[%s325 + $0x1f0] sm:$0xff]
        %v814 = vld [vmem:[%s325 + $0x1f8] sm:$0xff]
        %v815 = vld [vmem:[%s325 + $0x200] sm:$0xff]
        %v816 = vld [vmem:[%s325 + $0x208] sm:$0xff]
        %v817 = vld [vmem:[%s325 + $0x210] sm:$0xff]
        %v818 = vld [vmem:[%s325 + $0x218] sm:$0xff]
        %v819 = vld [vmem:[%s325 + $0x220] sm:$0xff]
        %v820 = vld [vmem:[%s325 + $0x228] sm:$0xff]
        %v821 = vld [vmem:[%s325 + $0x230] sm:$0xff]
        %v822 = vld [vmem:[%s325 + $0x238] sm:$0xff]
        %v823 = vld [vmem:[%s325 + $0x240] sm:$0xff]
        %v824 = vld [vmem:[%s325 + $0x248] sm:$0xff]
        %v825 = vld [vmem:[%s325 + $0x250] sm:$0xff]
        %v826 = vld [vmem:[%s325 + $0x258] sm:$0xff]
        %v827 = vld [vmem:[%s325 + $0x260] sm:$0xff]
        %v828 = vld [vmem:[%s325 + $0x268] sm:$0xff]
        %v829 = vld [vmem:[%s325 + $0x270] sm:$0xff]
        %v830 = vld [vmem:[%s325 + $0x278] sm:$0xff]
        %v831 = vld [vmem:[%s325 + $0x280] sm:$0xff]
        %v832 = vld [vmem:[%s325 + $0x288] sm:$0xff]
        %v833 = vld [vmem:[%s325 + $0x290] sm:$0xff]
        %v834 = vld [vmem:[%s325 + $0x298] sm:$0xff]
        %v835 = vld [vmem:[%s325 + $0x2a0] sm:$0xff]
        %v836 = vld [vmem:[%s325 + $0x2a8] sm:$0xff]
        %v837 = vld [vmem:[%s325 + $0x2b0] sm:$0xff]
        %v838 = vld [vmem:[%s325 + $0x2b8] sm:$0xff]
        %v839 = vld [vmem:[%s325 + $0x2c0] sm:$0xff]
        %v840 = vld [vmem:[%s325 + $0x2c8] sm:$0xff]
        %v841 = vld [vmem:[%s325 + $0x2d0] sm:$0xff]
        %v842 = vld [vmem:[%s325 + $0x2d8] sm:$0xff]
        %v843 = vld [vmem:[%s325 + $0x2e0] sm:$0xff]
        %v844 = vld [vmem:[%s325 + $0x2e8] sm:$0xff]
        %v845 = vld [vmem:[%s325 + $0x2f0] sm:$0xff]
        %v846 = vld [vmem:[%s325 + $0x2f8] sm:$0xff]
        %v847 = vld [vmem:[%s325 + $0x300] sm:$0xff]
        %v848 = vld [vmem:[%s325 + $0x308] sm:$0xff]
        %v849 = vld [vmem:[%s325 + $0x310] sm:$0xff]
        %v850 = vld [vmem:[%s325 + $0x318] sm:$0xff]
        %v851 = vld [vmem:[%s325 + $0x320] sm:$0xff]
        %v852 = vld [vmem:[%s325 + $0x328] sm:$0xff]
        %v853 = vld [vmem:[%s325 + $0x330] sm:$0xff]
        %v854 = vld [vmem:[%s325 + $0x338] sm:$0xff]
        %v855 = vld [vmem:[%s325 + $0x340] sm:$0xff]
        %v856 = vld [vmem:[%s325 + $0x348] sm:$0xff]
        %v857 = vld [vmem:[%s325 + $0x350] sm:$0xff]
        %v858 = vld [vmem:[%s325 + $0x358] sm:$0xff]
        %v859 = vld [vmem:[%s325 + $0x360] sm:$0xff]
        %v860 = vld [vmem:[%s325 + $0x368] sm:$0xff]
        %v861 = vld [vmem:[%s325 + $0x370] sm:$0xff]
        %v862 = vld [vmem:[%s325 + $0x378] sm:$0xff]
        %v863 = vld [vmem:[%s325 + $0x380] sm:$0xff]
        %v864 = vld [vmem:[%s325 + $0x388] sm:$0xff]
        %v865 = vld [vmem:[%s325 + $0x390] sm:$0xff]
        %v866 = vld [vmem:[%s325 + $0x398] sm:$0xff]
        %v867 = vld [vmem:[%s325 + $0x3a0] sm:$0xff]
        %v868 = vld [vmem:[%s325 + $0x3a8] sm:$0xff]
        %v869 = vld [vmem:[%s325 + $0x3b0] sm:$0xff]
        %v870 = vld [vmem:[%s325 + $0x3b8] sm:$0xff]
        %v871 = vld [vmem:[%s325 + $0x3c0] sm:$0xff]
        %v872 = vld [vmem:[%s325 + $0x3c8] sm:$0xff]
        %v873 = vld [vmem:[%s325 + $0x3d0] sm:$0xff]
        %v874 = vld [vmem:[%s325 + $0x3d8] sm:$0xff]
        %v875 = vld [vmem:[%s325 + $0x3e0] sm:$0xff]
        %v876 = vld [vmem:[%s325 + $0x3e8] sm:$0xff]
        %v877 = vld [vmem:[%s325 + $0x3f0] sm:$0xff]
        %v878 = vld [vmem:[%s325 + $0x3f8] sm:$0xff]
        %v879 = vsel %vm623, %v751, 4294967295
        %v880 = vsel %vm624, %v752, 4294967295
        %v881 = vsel %vm625, %v753, 4294967295
        %v882 = vsel %vm626, %v754, 4294967295
        %v883 = vsel %vm627, %v755, 4294967295
        %v884 = vsel %vm628, %v756, 4294967295
        %v885 = vsel %vm629, %v757, 4294967295
        %v886 = vsel %vm630, %v758, 4294967295
        %v887 = vsel %vm631, %v759, 4294967295
        %v888 = vsel %vm632, %v760, 4294967295
        %v889 = vsel %vm633, %v761, 4294967295
        %v890 = vsel %vm634, %v762, 4294967295
        %v891 = vsel %vm635, %v763, 4294967295
        %v892 = vsel %vm636, %v764, 4294967295
        %v893 = vsel %vm637, %v765, 4294967295
        %v894 = vsel %vm638, %v766, 4294967295
        %v895 = vsel %vm639, %v767, 4294967295
        %v896 = vsel %vm640, %v768, 4294967295
        %v897 = vsel %vm641, %v769, 4294967295
        %v898 = vsel %vm642, %v770, 4294967295
        %v899 = vsel %vm643, %v771, 4294967295
        %v900 = vsel %vm644, %v772, 4294967295
        %v901 = vsel %vm645, %v773, 4294967295
        %v902 = vsel %vm646, %v774, 4294967295
        %v903 = vsel %vm647, %v775, 4294967295
        %v904 = vsel %vm648, %v776, 4294967295
        %v905 = vsel %vm649, %v777, 4294967295
        %v906 = vsel %vm650, %v778, 4294967295
        %v907 = vsel %vm651, %v779, 4294967295
        %v908 = vsel %vm652, %v780, 4294967295
        %v909 = vsel %vm653, %v781, 4294967295
        %v910 = vsel %vm654, %v782, 4294967295
        %v911 = vsel %vm655, %v783, 4294967295
        %v912 = vsel %vm656, %v784, 4294967295
        %v913 = vsel %vm657, %v785, 4294967295
        %v914 = vsel %vm658, %v786, 4294967295
        %v915 = vsel %vm659, %v787, 4294967295
        %v916 = vsel %vm660, %v788, 4294967295
        %v917 = vsel %vm661, %v789, 4294967295
        %v918 = vsel %vm662, %v790, 4294967295
        %v919 = vsel %vm663, %v791, 4294967295
        %v920 = vsel %vm664, %v792, 4294967295
        %v921 = vsel %vm665, %v793, 4294967295
        %v922 = vsel %vm666, %v794, 4294967295
        %v923 = vsel %vm667, %v795, 4294967295
        %v924 = vsel %vm668, %v796, 4294967295
        %v925 = vsel %vm669, %v797, 4294967295
        %v926 = vsel %vm670, %v798, 4294967295
        %v927 = vsel %vm671, %v799, 4294967295
        %v928 = vsel %vm672, %v800, 4294967295
        %v929 = vsel %vm673, %v801, 4294967295
        %v930 = vsel %vm674, %v802, 4294967295
        %v931 = vsel %vm675, %v803, 4294967295
        %v932 = vsel %vm676, %v804, 4294967295
        %v933 = vsel %vm677, %v805, 4294967295
        %v934 = vsel %vm678, %v806, 4294967295
        %v935 = vsel %vm679, %v807, 4294967295
        %v936 = vsel %vm680, %v808, 4294967295
        %v937 = vsel %vm681, %v809, 4294967295
        %v938 = vsel %vm682, %v810, 4294967295
        %v939 = vsel %vm683, %v811, 4294967295
        %v940 = vsel %vm684, %v812, 4294967295
        %v941 = vsel %vm685, %v813, 4294967295
        %v942 = vsel %vm686, %v814, 4294967295
        %v943 = vsel %vm687, %v815, 4294967295
        %v944 = vsel %vm688, %v816, 4294967295
        %v945 = vsel %vm689, %v817, 4294967295
        %v946 = vsel %vm690, %v818, 4294967295
        %v947 = vsel %vm691, %v819, 4294967295
        %v948 = vsel %vm692, %v820, 4294967295
        %v949 = vsel %vm693, %v821, 4294967295
        %v950 = vsel %vm694, %v822, 4294967295
        %v951 = vsel %vm695, %v823, 4294967295
        %v952 = vsel %vm696, %v824, 4294967295
        %v953 = vsel %vm697, %v825, 4294967295
        %v954 = vsel %vm698, %v826, 4294967295
        %v955 = vsel %vm699, %v827, 4294967295
        %v956 = vsel %vm700, %v828, 4294967295
        %v957 = vsel %vm701, %v829, 4294967295
        %v958 = vsel %vm702, %v830, 4294967295
        %v959 = vsel %vm703, %v831, 4294967295
        %v960 = vsel %vm704, %v832, 4294967295
        %v961 = vsel %vm705, %v833, 4294967295
        %v962 = vsel %vm706, %v834, 4294967295
        %v963 = vsel %vm707, %v835, 4294967295
        %v964 = vsel %vm708, %v836, 4294967295
        %v965 = vsel %vm709, %v837, 4294967295
        %v966 = vsel %vm710, %v838, 4294967295
        %v967 = vsel %vm711, %v839, 4294967295
        %v968 = vsel %vm712, %v840, 4294967295
        %v969 = vsel %vm713, %v841, 4294967295
        %v970 = vsel %vm714, %v842, 4294967295
        %v971 = vsel %vm715, %v843, 4294967295
        %v972 = vsel %vm716, %v844, 4294967295
        %v973 = vsel %vm717, %v845, 4294967295
        %v974 = vsel %vm718, %v846, 4294967295
        %v975 = vsel %vm719, %v847, 4294967295
        %v976 = vsel %vm720, %v848, 4294967295
        %v977 = vsel %vm721, %v849, 4294967295
        %v978 = vsel %vm722, %v850, 4294967295
        %v979 = vsel %vm723, %v851, 4294967295
        %v980 = vsel %vm724, %v852, 4294967295
        %v981 = vsel %vm725, %v853, 4294967295
        %v982 = vsel %vm726, %v854, 4294967295
        %v983 = vsel %vm727, %v855, 4294967295
        %v984 = vsel %vm728, %v856, 4294967295
        %v985 = vsel %vm729, %v857, 4294967295
        %v986 = vsel %vm730, %v858, 4294967295
        %v987 = vsel %vm731, %v859, 4294967295
        %v988 = vsel %vm732, %v860, 4294967295
        %v989 = vsel %vm733, %v861, 4294967295
        %v990 = vsel %vm734, %v862, 4294967295
        %v991 = vsel %vm735, %v863, 4294967295
        %v992 = vsel %vm736, %v864, 4294967295
        %v993 = vsel %vm737, %v865, 4294967295
        %v994 = vsel %vm738, %v866, 4294967295
        %v995 = vsel %vm739, %v867, 4294967295
        %v996 = vsel %vm740, %v868, 4294967295
        %v997 = vsel %vm741, %v869, 4294967295
        %v998 = vsel %vm742, %v870, 4294967295
        %v999 = vsel %vm743, %v871, 4294967295
        %v1000 = vsel %vm744, %v872, 4294967295
        %v1001 = vsel %vm745, %v873, 4294967295
        %v1002 = vsel %vm746, %v874, 4294967295
        %v1003 = vsel %vm747, %v875, 4294967295
        %v1004 = vsel %vm748, %v876, 4294967295
        %v1005 = vsel %vm749, %v877, 4294967295
        %v1006 = vsel %vm750, %v878, 4294967295
        %1007 = vset.pattern.permute.xlu0 0
        %1008 = vperm.xlu0 %1007, %v879
        %v1009 = vpop.permute.xlu0 %1008
        %1010 = vset.pattern.permute.xlu0 0
        %1011 = vperm.xlu0 %1010, %v880
        %v1012 = vpop.permute.xlu0 %1011
        %1013 = vset.pattern.permute.xlu0 0
        %1014 = vperm.xlu0 %1013, %v881
        %v1015 = vpop.permute.xlu0 %1014
        %1016 = vset.pattern.permute.xlu0 0
        %1017 = vperm.xlu0 %1016, %v882
        %v1018 = vpop.permute.xlu0 %1017
        %1019 = vset.pattern.permute.xlu0 0
        %1020 = vperm.xlu0 %1019, %v883
        %v1021 = vpop.permute.xlu0 %1020
        %1022 = vset.pattern.permute.xlu0 0
        %1023 = vperm.xlu0 %1022, %v884
        %v1024 = vpop.permute.xlu0 %1023
        %1025 = vset.pattern.permute.xlu0 0
        %1026 = vperm.xlu0 %1025, %v885
        %v1027 = vpop.permute.xlu0 %1026
        %1028 = vset.pattern.permute.xlu0 0
        %1029 = vperm.xlu0 %1028, %v886
        %v1030 = vpop.permute.xlu0 %1029
        %1031 = vset.pattern.permute.xlu0 0
        %1032 = vperm.xlu0 %1031, %v887
        %v1033 = vpop.permute.xlu0 %1032
        %1034 = vset.pattern.permute.xlu0 0
        %1035 = vperm.xlu0 %1034, %v888
        %v1036 = vpop.permute.xlu0 %1035
        %1037 = vset.pattern.permute.xlu0 0
        %1038 = vperm.xlu0 %1037, %v889
        %v1039 = vpop.permute.xlu0 %1038
        %1040 = vset.pattern.permute.xlu0 0
        %1041 = vperm.xlu0 %1040, %v890
        %v1042 = vpop.permute.xlu0 %1041
        %1043 = vset.pattern.permute.xlu0 0
        %1044 = vperm.xlu0 %1043, %v891
        %v1045 = vpop.permute.xlu0 %1044
        %1046 = vset.pattern.permute.xlu0 0
        %1047 = vperm.xlu0 %1046, %v892
        %v1048 = vpop.permute.xlu0 %1047
        %1049 = vset.pattern.permute.xlu0 0
        %1050 = vperm.xlu0 %1049, %v893
        %v1051 = vpop.permute.xlu0 %1050
        %1052 = vset.pattern.permute.xlu0 0
        %1053 = vperm.xlu0 %1052, %v894
        %v1054 = vpop.permute.xlu0 %1053
        %1055 = vset.pattern.permute.xlu0 0
        %1056 = vperm.xlu0 %1055, %v895
        %v1057 = vpop.permute.xlu0 %1056
        %1058 = vset.pattern.permute.xlu0 0
        %1059 = vperm.xlu0 %1058, %v896
        %v1060 = vpop.permute.xlu0 %1059
        %1061 = vset.pattern.permute.xlu0 0
        %1062 = vperm.xlu0 %1061, %v897
        %v1063 = vpop.permute.xlu0 %1062
        %1064 = vset.pattern.permute.xlu0 0
        %1065 = vperm.xlu0 %1064, %v898
        %v1066 = vpop.permute.xlu0 %1065
        %1067 = vset.pattern.permute.xlu0 0
        %1068 = vperm.xlu0 %1067, %v899
        %v1069 = vpop.permute.xlu0 %1068
        %1070 = vset.pattern.permute.xlu0 0
        %1071 = vperm.xlu0 %1070, %v900
        %v1072 = vpop.permute.xlu0 %1071
        %1073 = vset.pattern.permute.xlu0 0
        %1074 = vperm.xlu0 %1073, %v901
        %v1075 = vpop.permute.xlu0 %1074
        %1076 = vset.pattern.permute.xlu0 0
        %1077 = vperm.xlu0 %1076, %v902
        %v1078 = vpop.permute.xlu0 %1077
        %1079 = vset.pattern.permute.xlu0 0
        %1080 = vperm.xlu0 %1079, %v903
        %v1081 = vpop.permute.xlu0 %1080
        %1082 = vset.pattern.permute.xlu0 0
        %1083 = vperm.xlu0 %1082, %v904
        %v1084 = vpop.permute.xlu0 %1083
        %1085 = vset.pattern.permute.xlu0 0
        %1086 = vperm.xlu0 %1085, %v905
        %v1087 = vpop.permute.xlu0 %1086
        %1088 = vset.pattern.permute.xlu0 0
        %1089 = vperm.xlu0 %1088, %v906
        %v1090 = vpop.permute.xlu0 %1089
        %1091 = vset.pattern.permute.xlu0 0
        %1092 = vperm.xlu0 %1091, %v907
        %v1093 = vpop.permute.xlu0 %1092
        %1094 = vset.pattern.permute.xlu0 0
        %1095 = vperm.xlu0 %1094, %v908
        %v1096 = vpop.permute.xlu0 %1095
        %1097 = vset.pattern.permute.xlu0 0
        %1098 = vperm.xlu0 %1097, %v909
        %v1099 = vpop.permute.xlu0 %1098
        %1100 = vset.pattern.permute.xlu0 0
        %1101 = vperm.xlu0 %1100, %v910
        %v1102 = vpop.permute.xlu0 %1101
        %1103 = vset.pattern.permute.xlu0 0
        %1104 = vperm.xlu0 %1103, %v911
        %v1105 = vpop.permute.xlu0 %1104
        %1106 = vset.pattern.permute.xlu0 0
        %1107 = vperm.xlu0 %1106, %v912
        %v1108 = vpop.permute.xlu0 %1107
        %1109 = vset.pattern.permute.xlu0 0
        %1110 = vperm.xlu0 %1109, %v913
        %v1111 = vpop.permute.xlu0 %1110
        %1112 = vset.pattern.permute.xlu0 0
        %1113 = vperm.xlu0 %1112, %v914
        %v1114 = vpop.permute.xlu0 %1113
        %1115 = vset.pattern.permute.xlu0 0
        %1116 = vperm.xlu0 %1115, %v915
        %v1117 = vpop.permute.xlu0 %1116
        %1118 = vset.pattern.permute.xlu0 0
        %1119 = vperm.xlu0 %1118, %v916
        %v1120 = vpop.permute.xlu0 %1119
        %1121 = vset.pattern.permute.xlu0 0
        %1122 = vperm.xlu0 %1121, %v917
        %v1123 = vpop.permute.xlu0 %1122
        %1124 = vset.pattern.permute.xlu0 0
        %1125 = vperm.xlu0 %1124, %v918
        %v1126 = vpop.permute.xlu0 %1125
        %1127 = vset.pattern.permute.xlu0 0
        %1128 = vperm.xlu0 %1127, %v919
        %v1129 = vpop.permute.xlu0 %1128
        %1130 = vset.pattern.permute.xlu0 0
        %1131 = vperm.xlu0 %1130, %v920
        %v1132 = vpop.permute.xlu0 %1131
        %1133 = vset.pattern.permute.xlu0 0
        %1134 = vperm.xlu0 %1133, %v921
        %v1135 = vpop.permute.xlu0 %1134
        %1136 = vset.pattern.permute.xlu0 0
        %1137 = vperm.xlu0 %1136, %v922
        %v1138 = vpop.permute.xlu0 %1137
        %1139 = vset.pattern.permute.xlu0 0
        %1140 = vperm.xlu0 %1139, %v923
        %v1141 = vpop.permute.xlu0 %1140
        %1142 = vset.pattern.permute.xlu0 0
        %1143 = vperm.xlu0 %1142, %v924
        %v1144 = vpop.permute.xlu0 %1143
        %1145 = vset.pattern.permute.xlu0 0
        %1146 = vperm.xlu0 %1145, %v925
        %v1147 = vpop.permute.xlu0 %1146
        %1148 = vset.pattern.permute.xlu0 0
        %1149 = vperm.xlu0 %1148, %v926
        %v1150 = vpop.permute.xlu0 %1149
        %1151 = vset.pattern.permute.xlu0 0
        %1152 = vperm.xlu0 %1151, %v927
        %v1153 = vpop.permute.xlu0 %1152
        %1154 = vset.pattern.permute.xlu0 0
        %1155 = vperm.xlu0 %1154, %v928
        %v1156 = vpop.permute.xlu0 %1155
        %1157 = vset.pattern.permute.xlu0 0
        %1158 = vperm.xlu0 %1157, %v929
        %v1159 = vpop.permute.xlu0 %1158
        %1160 = vset.pattern.permute.xlu0 0
        %1161 = vperm.xlu0 %1160, %v930
        %v1162 = vpop.permute.xlu0 %1161
        %1163 = vset.pattern.permute.xlu0 0
        %1164 = vperm.xlu0 %1163, %v931
        %v1165 = vpop.permute.xlu0 %1164
        %1166 = vset.pattern.permute.xlu0 0
        %1167 = vperm.xlu0 %1166, %v932
        %v1168 = vpop.permute.xlu0 %1167
        %1169 = vset.pattern.permute.xlu0 0
        %1170 = vperm.xlu0 %1169, %v933
        %v1171 = vpop.permute.xlu0 %1170
        %1172 = vset.pattern.permute.xlu0 0
        %1173 = vperm.xlu0 %1172, %v934
        %v1174 = vpop.permute.xlu0 %1173
        %1175 = vset.pattern.permute.xlu0 0
        %1176 = vperm.xlu0 %1175, %v935
        %v1177 = vpop.permute.xlu0 %1176
        %1178 = vset.pattern.permute.xlu0 0
        %1179 = vperm.xlu0 %1178, %v936
        %v1180 = vpop.permute.xlu0 %1179
        %1181 = vset.pattern.permute.xlu0 0
        %1182 = vperm.xlu0 %1181, %v937
        %v1183 = vpop.permute.xlu0 %1182
        %1184 = vset.pattern.permute.xlu0 0
        %1185 = vperm.xlu0 %1184, %v938
        %v1186 = vpop.permute.xlu0 %1185
        %1187 = vset.pattern.permute.xlu0 0
        %1188 = vperm.xlu0 %1187, %v939
        %v1189 = vpop.permute.xlu0 %1188
        %1190 = vset.pattern.permute.xlu0 0
        %1191 = vperm.xlu0 %1190, %v940
        %v1192 = vpop.permute.xlu0 %1191
        %1193 = vset.pattern.permute.xlu0 0
        %1194 = vperm.xlu0 %1193, %v941
        %v1195 = vpop.permute.xlu0 %1194
        %1196 = vset.pattern.permute.xlu0 0
        %1197 = vperm.xlu0 %1196, %v942
        %v1198 = vpop.permute.xlu0 %1197
        %1199 = vset.pattern.permute.xlu0 0
        %1200 = vperm.xlu0 %1199, %v943
        %v1201 = vpop.permute.xlu0 %1200
        %1202 = vset.pattern.permute.xlu0 0
        %1203 = vperm.xlu0 %1202, %v944
        %v1204 = vpop.permute.xlu0 %1203
        %1205 = vset.pattern.permute.xlu0 0
        %1206 = vperm.xlu0 %1205, %v945
        %v1207 = vpop.permute.xlu0 %1206
        %1208 = vset.pattern.permute.xlu0 0
        %1209 = vperm.xlu0 %1208, %v946
        %v1210 = vpop.permute.xlu0 %1209
        %1211 = vset.pattern.permute.xlu0 0
        %1212 = vperm.xlu0 %1211, %v947
        %v1213 = vpop.permute.xlu0 %1212
        %1214 = vset.pattern.permute.xlu0 0
        %1215 = vperm.xlu0 %1214, %v948
        %v1216 = vpop.permute.xlu0 %1215
        %1217 = vset.pattern.permute.xlu0 0
        %1218 = vperm.xlu0 %1217, %v949
        %v1219 = vpop.permute.xlu0 %1218
        %1220 = vset.pattern.permute.xlu0 0
        %1221 = vperm.xlu0 %1220, %v950
        %v1222 = vpop.permute.xlu0 %1221
        %1223 = vset.pattern.permute.xlu0 0
        %1224 = vperm.xlu0 %1223, %v951
        %v1225 = vpop.permute.xlu0 %1224
        %1226 = vset.pattern.permute.xlu0 0
        %1227 = vperm.xlu0 %1226, %v952
        %v1228 = vpop.permute.xlu0 %1227
        %1229 = vset.pattern.permute.xlu0 0
        %1230 = vperm.xlu0 %1229, %v953
        %v1231 = vpop.permute.xlu0 %1230
        %1232 = vset.pattern.permute.xlu0 0
        %1233 = vperm.xlu0 %1232, %v954
        %v1234 = vpop.permute.xlu0 %1233
        %1235 = vset.pattern.permute.xlu0 0
        %1236 = vperm.xlu0 %1235, %v955
        %v1237 = vpop.permute.xlu0 %1236
        %1238 = vset.pattern.permute.xlu0 0
        %1239 = vperm.xlu0 %1238, %v956
        %v1240 = vpop.permute.xlu0 %1239
        %1241 = vset.pattern.permute.xlu0 0
        %1242 = vperm.xlu0 %1241, %v957
        %v1243 = vpop.permute.xlu0 %1242
        %1244 = vset.pattern.permute.xlu0 0
        %1245 = vperm.xlu0 %1244, %v958
        %v1246 = vpop.permute.xlu0 %1245
        %1247 = vset.pattern.permute.xlu0 0
        %1248 = vperm.xlu0 %1247, %v959
        %v1249 = vpop.permute.xlu0 %1248
        %1250 = vset.pattern.permute.xlu0 0
        %1251 = vperm.xlu0 %1250, %v960
        %v1252 = vpop.permute.xlu0 %1251
        %1253 = vset.pattern.permute.xlu0 0
        %1254 = vperm.xlu0 %1253, %v961
        %v1255 = vpop.permute.xlu0 %1254
        %1256 = vset.pattern.permute.xlu0 0
        %1257 = vperm.xlu0 %1256, %v962
        %v1258 = vpop.permute.xlu0 %1257
        %1259 = vset.pattern.permute.xlu0 0
        %1260 = vperm.xlu0 %1259, %v963
        %v1261 = vpop.permute.xlu0 %1260
        %1262 = vset.pattern.permute.xlu0 0
        %1263 = vperm.xlu0 %1262, %v964
        %v1264 = vpop.permute.xlu0 %1263
        %1265 = vset.pattern.permute.xlu0 0
        %1266 = vperm.xlu0 %1265, %v965
        %v1267 = vpop.permute.xlu0 %1266
        %1268 = vset.pattern.permute.xlu0 0
        %1269 = vperm.xlu0 %1268, %v966
        %v1270 = vpop.permute.xlu0 %1269
        %1271 = vset.pattern.permute.xlu0 0
        %1272 = vperm.xlu0 %1271, %v967
        %v1273 = vpop.permute.xlu0 %1272
        %1274 = vset.pattern.permute.xlu0 0
        %1275 = vperm.xlu0 %1274, %v968
        %v1276 = vpop.permute.xlu0 %1275
        %1277 = vset.pattern.permute.xlu0 0
        %1278 = vperm.xlu0 %1277, %v969
        %v1279 = vpop.permute.xlu0 %1278
        %1280 = vset.pattern.permute.xlu0 0
        %1281 = vperm.xlu0 %1280, %v970
        %v1282 = vpop.permute.xlu0 %1281
        %1283 = vset.pattern.permute.xlu0 0
        %1284 = vperm.xlu0 %1283, %v971
        %v1285 = vpop.permute.xlu0 %1284
        %1286 = vset.pattern.permute.xlu0 0
        %1287 = vperm.xlu0 %1286, %v972
        %v1288 = vpop.permute.xlu0 %1287
        %1289 = vset.pattern.permute.xlu0 0
        %1290 = vperm.xlu0 %1289, %v973
        %v1291 = vpop.permute.xlu0 %1290
        %1292 = vset.pattern.permute.xlu0 0
        %1293 = vperm.xlu0 %1292, %v974
        %v1294 = vpop.permute.xlu0 %1293
        %1295 = vset.pattern.permute.xlu0 0
        %1296 = vperm.xlu0 %1295, %v975
        %v1297 = vpop.permute.xlu0 %1296
        %1298 = vset.pattern.permute.xlu0 0
        %1299 = vperm.xlu0 %1298, %v976
        %v1300 = vpop.permute.xlu0 %1299
        %1301 = vset.pattern.permute.xlu0 0
        %1302 = vperm.xlu0 %1301, %v977
        %v1303 = vpop.permute.xlu0 %1302
        %1304 = vset.pattern.permute.xlu0 0
        %1305 = vperm.xlu0 %1304, %v978
        %v1306 = vpop.permute.xlu0 %1305
        %1307 = vset.pattern.permute.xlu0 0
        %1308 = vperm.xlu0 %1307, %v979
        %v1309 = vpop.permute.xlu0 %1308
        %1310 = vset.pattern.permute.xlu0 0
        %1311 = vperm.xlu0 %1310, %v980
        %v1312 = vpop.permute.xlu0 %1311
        %1313 = vset.pattern.permute.xlu0 0
        %1314 = vperm.xlu0 %1313, %v981
        %v1315 = vpop.permute.xlu0 %1314
        %1316 = vset.pattern.permute.xlu0 0
        %1317 = vperm.xlu0 %1316, %v982
        %v1318 = vpop.permute.xlu0 %1317
        %1319 = vset.pattern.permute.xlu0 0
        %1320 = vperm.xlu0 %1319, %v983
        %v1321 = vpop.permute.xlu0 %1320
        %1322 = vset.pattern.permute.xlu0 0
        %1323 = vperm.xlu0 %1322, %v984
        %v1324 = vpop.permute.xlu0 %1323
        %1325 = vset.pattern.permute.xlu0 0
        %1326 = vperm.xlu0 %1325, %v985
        %v1327 = vpop.permute.xlu0 %1326
        %1328 = vset.pattern.permute.xlu0 0
        %1329 = vperm.xlu0 %1328, %v986
        %v1330 = vpop.permute.xlu0 %1329
        %1331 = vset.pattern.permute.xlu0 0
        %1332 = vperm.xlu0 %1331, %v987
        %v1333 = vpop.permute.xlu0 %1332
        %1334 = vset.pattern.permute.xlu0 0
        %1335 = vperm.xlu0 %1334, %v988
        %v1336 = vpop.permute.xlu0 %1335
        %1337 = vset.pattern.permute.xlu0 0
        %1338 = vperm.xlu0 %1337, %v989
        %v1339 = vpop.permute.xlu0 %1338
        %1340 = vset.pattern.permute.xlu0 0
        %1341 = vperm.xlu0 %1340, %v990
        %v1342 = vpop.permute.xlu0 %1341
        %1343 = vset.pattern.permute.xlu0 0
        %1344 = vperm.xlu0 %1343, %v991
        %v1345 = vpop.permute.xlu0 %1344
        %1346 = vset.pattern.permute.xlu0 0
        %1347 = vperm.xlu0 %1346, %v992
        %v1348 = vpop.permute.xlu0 %1347
        %1349 = vset.pattern.permute.xlu0 0
        %1350 = vperm.xlu0 %1349, %v993
        %v1351 = vpop.permute.xlu0 %1350
        %1352 = vset.pattern.permute.xlu0 0
        %1353 = vperm.xlu0 %1352, %v994
        %v1354 = vpop.permute.xlu0 %1353
        %1355 = vset.pattern.permute.xlu0 0
        %1356 = vperm.xlu0 %1355, %v995
        %v1357 = vpop.permute.xlu0 %1356
        %1358 = vset.pattern.permute.xlu0 0
        %1359 = vperm.xlu0 %1358, %v996
        %v1360 = vpop.permute.xlu0 %1359
        %1361 = vset.pattern.permute.xlu0 0
        %1362 = vperm.xlu0 %1361, %v997
        %v1363 = vpop.permute.xlu0 %1362
        %1364 = vset.pattern.permute.xlu0 0
        %1365 = vperm.xlu0 %1364, %v998
        %v1366 = vpop.permute.xlu0 %1365
        %1367 = vset.pattern.permute.xlu0 0
        %1368 = vperm.xlu0 %1367, %v999
        %v1369 = vpop.permute.xlu0 %1368
        %1370 = vset.pattern.permute.xlu0 0
        %1371 = vperm.xlu0 %1370, %v1000
        %v1372 = vpop.permute.xlu0 %1371
        %1373 = vset.pattern.permute.xlu0 0
        %1374 = vperm.xlu0 %1373, %v1001
        %v1375 = vpop.permute.xlu0 %1374
        %1376 = vset.pattern.permute.xlu0 0
        %1377 = vperm.xlu0 %1376, %v1002
        %v1378 = vpop.permute.xlu0 %1377
        %1379 = vset.pattern.permute.xlu0 0
        %1380 = vperm.xlu0 %1379, %v1003
        %v1381 = vpop.permute.xlu0 %1380
        %1382 = vset.pattern.permute.xlu0 0
        %1383 = vperm.xlu0 %1382, %v1004
        %v1384 = vpop.permute.xlu0 %1383
        %1385 = vset.pattern.permute.xlu0 0
        %1386 = vperm.xlu0 %1385, %v1005
        %v1387 = vpop.permute.xlu0 %1386
        %1388 = vset.pattern.permute.xlu0 0
        %1389 = vperm.xlu0 %1388, %v1006
        %v1390 = vpop.permute.xlu0 %1389
        %vm1391 = vcmp.eq.s32.totalorder %v1009, %v350
        %vm1392 = vcmp.eq.s32.totalorder %v1012, %v350
        %vm1393 = vcmp.eq.s32.totalorder %v1015, %v350
        %vm1394 = vcmp.eq.s32.totalorder %v1018, %v350
        %vm1395 = vcmp.eq.s32.totalorder %v1021, %v350
        %vm1396 = vcmp.eq.s32.totalorder %v1024, %v350
        %vm1397 = vcmp.eq.s32.totalorder %v1027, %v350
        %vm1398 = vcmp.eq.s32.totalorder %v1030, %v350
        %vm1399 = vcmp.eq.s32.totalorder %v1033, %v350
        %vm1400 = vcmp.eq.s32.totalorder %v1036, %v350
        %vm1401 = vcmp.eq.s32.totalorder %v1039, %v350
        %vm1402 = vcmp.eq.s32.totalorder %v1042, %v350
        %vm1403 = vcmp.eq.s32.totalorder %v1045, %v350
        %vm1404 = vcmp.eq.s32.totalorder %v1048, %v350
        %vm1405 = vcmp.eq.s32.totalorder %v1051, %v350
        %vm1406 = vcmp.eq.s32.totalorder %v1054, %v350
        %vm1407 = vcmp.eq.s32.totalorder %v1057, %v350
        %vm1408 = vcmp.eq.s32.totalorder %v1060, %v350
        %vm1409 = vcmp.eq.s32.totalorder %v1063, %v350
        %vm1410 = vcmp.eq.s32.totalorder %v1066, %v350
        %vm1411 = vcmp.eq.s32.totalorder %v1069, %v350
        %vm1412 = vcmp.eq.s32.totalorder %v1072, %v350
        %vm1413 = vcmp.eq.s32.totalorder %v1075, %v350
        %vm1414 = vcmp.eq.s32.totalorder %v1078, %v350
        %vm1415 = vcmp.eq.s32.totalorder %v1081, %v350
        %vm1416 = vcmp.eq.s32.totalorder %v1084, %v350
        %vm1417 = vcmp.eq.s32.totalorder %v1087, %v350
        %vm1418 = vcmp.eq.s32.totalorder %v1090, %v350
        %vm1419 = vcmp.eq.s32.totalorder %v1093, %v350
        %vm1420 = vcmp.eq.s32.totalorder %v1096, %v350
        %vm1421 = vcmp.eq.s32.totalorder %v1099, %v350
        %vm1422 = vcmp.eq.s32.totalorder %v1102, %v350
        %vm1423 = vcmp.eq.s32.totalorder %v1105, %v350
        %vm1424 = vcmp.eq.s32.totalorder %v1108, %v350
        %vm1425 = vcmp.eq.s32.totalorder %v1111, %v350
        %vm1426 = vcmp.eq.s32.totalorder %v1114, %v350
        %vm1427 = vcmp.eq.s32.totalorder %v1117, %v350
        %vm1428 = vcmp.eq.s32.totalorder %v1120, %v350
        %vm1429 = vcmp.eq.s32.totalorder %v1123, %v350
        %vm1430 = vcmp.eq.s32.totalorder %v1126, %v350
        %vm1431 = vcmp.eq.s32.totalorder %v1129, %v350
        %vm1432 = vcmp.eq.s32.totalorder %v1132, %v350
        %vm1433 = vcmp.eq.s32.totalorder %v1135, %v350
        %vm1434 = vcmp.eq.s32.totalorder %v1138, %v350
        %vm1435 = vcmp.eq.s32.totalorder %v1141, %v350
        %vm1436 = vcmp.eq.s32.totalorder %v1144, %v350
        %vm1437 = vcmp.eq.s32.totalorder %v1147, %v350
        %vm1438 = vcmp.eq.s32.totalorder %v1150, %v350
        %vm1439 = vcmp.eq.s32.totalorder %v1153, %v350
        %vm1440 = vcmp.eq.s32.totalorder %v1156, %v350
        %vm1441 = vcmp.eq.s32.totalorder %v1159, %v350
        %vm1442 = vcmp.eq.s32.totalorder %v1162, %v350
        %vm1443 = vcmp.eq.s32.totalorder %v1165, %v350
        %vm1444 = vcmp.eq.s32.totalorder %v1168, %v350
        %vm1445 = vcmp.eq.s32.totalorder %v1171, %v350
        %vm1446 = vcmp.eq.s32.totalorder %v1174, %v350
        %vm1447 = vcmp.eq.s32.totalorder %v1177, %v350
        %vm1448 = vcmp.eq.s32.totalorder %v1180, %v350
        %vm1449 = vcmp.eq.s32.totalorder %v1183, %v350
        %vm1450 = vcmp.eq.s32.totalorder %v1186, %v350
        %vm1451 = vcmp.eq.s32.totalorder %v1189, %v350
        %vm1452 = vcmp.eq.s32.totalorder %v1192, %v350
        %vm1453 = vcmp.eq.s32.totalorder %v1195, %v350
        %vm1454 = vcmp.eq.s32.totalorder %v1198, %v350
        %vm1455 = vcmp.eq.s32.totalorder %v1201, %v350
        %vm1456 = vcmp.eq.s32.totalorder %v1204, %v350
        %vm1457 = vcmp.eq.s32.totalorder %v1207, %v350
        %vm1458 = vcmp.eq.s32.totalorder %v1210, %v350
        %vm1459 = vcmp.eq.s32.totalorder %v1213, %v350
        %vm1460 = vcmp.eq.s32.totalorder %v1216, %v350
        %vm1461 = vcmp.eq.s32.totalorder %v1219, %v350
        %vm1462 = vcmp.eq.s32.totalorder %v1222, %v350
        %vm1463 = vcmp.eq.s32.totalorder %v1225, %v350
        %vm1464 = vcmp.eq.s32.totalorder %v1228, %v350
        %vm1465 = vcmp.eq.s32.totalorder %v1231, %v350
        %vm1466 = vcmp.eq.s32.totalorder %v1234, %v350
        %vm1467 = vcmp.eq.s32.totalorder %v1237, %v350
        %vm1468 = vcmp.eq.s32.totalorder %v1240, %v350
        %vm1469 = vcmp.eq.s32.totalorder %v1243, %v350
        %vm1470 = vcmp.eq.s32.totalorder %v1246, %v350
        %vm1471 = vcmp.eq.s32.totalorder %v1249, %v350
        %vm1472 = vcmp.eq.s32.totalorder %v1252, %v350
        %vm1473 = vcmp.eq.s32.totalorder %v1255, %v350
        %vm1474 = vcmp.eq.s32.totalorder %v1258, %v350
        %vm1475 = vcmp.eq.s32.totalorder %v1261, %v350
        %vm1476 = vcmp.eq.s32.totalorder %v1264, %v350
        %vm1477 = vcmp.eq.s32.totalorder %v1267, %v350
        %vm1478 = vcmp.eq.s32.totalorder %v1270, %v350
        %vm1479 = vcmp.eq.s32.totalorder %v1273, %v350
        %vm1480 = vcmp.eq.s32.totalorder %v1276, %v350
        %vm1481 = vcmp.eq.s32.totalorder %v1279, %v350
        %vm1482 = vcmp.eq.s32.totalorder %v1282, %v350
        %vm1483 = vcmp.eq.s32.totalorder %v1285, %v350
        %vm1484 = vcmp.eq.s32.totalorder %v1288, %v350
        %vm1485 = vcmp.eq.s32.totalorder %v1291, %v350
        %vm1486 = vcmp.eq.s32.totalorder %v1294, %v350
        %vm1487 = vcmp.eq.s32.totalorder %v1297, %v350
        %vm1488 = vcmp.eq.s32.totalorder %v1300, %v350
        %vm1489 = vcmp.eq.s32.totalorder %v1303, %v350
        %vm1490 = vcmp.eq.s32.totalorder %v1306, %v350
        %vm1491 = vcmp.eq.s32.totalorder %v1309, %v350
        %vm1492 = vcmp.eq.s32.totalorder %v1312, %v350
        %vm1493 = vcmp.eq.s32.totalorder %v1315, %v350
        %vm1494 = vcmp.eq.s32.totalorder %v1318, %v350
        %vm1495 = vcmp.eq.s32.totalorder %v1321, %v350
        %vm1496 = vcmp.eq.s32.totalorder %v1324, %v350
        %vm1497 = vcmp.eq.s32.totalorder %v1327, %v350
        %vm1498 = vcmp.eq.s32.totalorder %v1330, %v350
        %vm1499 = vcmp.eq.s32.totalorder %v1333, %v350
        %vm1500 = vcmp.eq.s32.totalorder %v1336, %v350
        %vm1501 = vcmp.eq.s32.totalorder %v1339, %v350
        %vm1502 = vcmp.eq.s32.totalorder %v1342, %v350
        %vm1503 = vcmp.eq.s32.totalorder %v1345, %v350
        %vm1504 = vcmp.eq.s32.totalorder %v1348, %v350
        %vm1505 = vcmp.eq.s32.totalorder %v1351, %v350
        %vm1506 = vcmp.eq.s32.totalorder %v1354, %v350
        %vm1507 = vcmp.eq.s32.totalorder %v1357, %v350
        %vm1508 = vcmp.eq.s32.totalorder %v1360, %v350
        %vm1509 = vcmp.eq.s32.totalorder %v1363, %v350
        %vm1510 = vcmp.eq.s32.totalorder %v1366, %v350
        %vm1511 = vcmp.eq.s32.totalorder %v1369, %v350
        %vm1512 = vcmp.eq.s32.totalorder %v1372, %v350
        %vm1513 = vcmp.eq.s32.totalorder %v1375, %v350
        %vm1514 = vcmp.eq.s32.totalorder %v1378, %v350
        %vm1515 = vcmp.eq.s32.totalorder %v1381, %v350
        %vm1516 = vcmp.eq.s32.totalorder %v1384, %v350
        %vm1517 = vcmp.eq.s32.totalorder %v1387, %v350
        %vm1518 = vcmp.eq.s32.totalorder %v1390, %v350
        %v1519 = vsel %vm1391, 1, 0
        %v1520 = vsel %vm1392, 1, 0
        %v1521 = vsel %vm1393, 1, 0
        %v1522 = vsel %vm1394, 1, 0
        %v1523 = vsel %vm1395, 1, 0
        %v1524 = vsel %vm1396, 1, 0
        %v1525 = vsel %vm1397, 1, 0
        %v1526 = vsel %vm1398, 1, 0
        %v1527 = vsel %vm1399, 1, 0
        %v1528 = vsel %vm1400, 1, 0
        %v1529 = vsel %vm1401, 1, 0
        %v1530 = vsel %vm1402, 1, 0
        %v1531 = vsel %vm1403, 1, 0
        %v1532 = vsel %vm1404, 1, 0
        %v1533 = vsel %vm1405, 1, 0
        %v1534 = vsel %vm1406, 1, 0
        %v1535 = vsel %vm1407, 1, 0
        %v1536 = vsel %vm1408, 1, 0
        %v1537 = vsel %vm1409, 1, 0
        %v1538 = vsel %vm1410, 1, 0
        %v1539 = vsel %vm1411, 1, 0
        %v1540 = vsel %vm1412, 1, 0
        %v1541 = vsel %vm1413, 1, 0
        %v1542 = vsel %vm1414, 1, 0
        %v1543 = vsel %vm1415, 1, 0
        %v1544 = vsel %vm1416, 1, 0
        %v1545 = vsel %vm1417, 1, 0
        %v1546 = vsel %vm1418, 1, 0
        %v1547 = vsel %vm1419, 1, 0
        %v1548 = vsel %vm1420, 1, 0
        %v1549 = vsel %vm1421, 1, 0
        %v1550 = vsel %vm1422, 1, 0
        %v1551 = vsel %vm1423, 1, 0
        %v1552 = vsel %vm1424, 1, 0
        %v1553 = vsel %vm1425, 1, 0
        %v1554 = vsel %vm1426, 1, 0
        %v1555 = vsel %vm1427, 1, 0
        %v1556 = vsel %vm1428, 1, 0
        %v1557 = vsel %vm1429, 1, 0
        %v1558 = vsel %vm1430, 1, 0
        %v1559 = vsel %vm1431, 1, 0
        %v1560 = vsel %vm1432, 1, 0
        %v1561 = vsel %vm1433, 1, 0
        %v1562 = vsel %vm1434, 1, 0
        %v1563 = vsel %vm1435, 1, 0
        %v1564 = vsel %vm1436, 1, 0
        %v1565 = vsel %vm1437, 1, 0
        %v1566 = vsel %vm1438, 1, 0
        %v1567 = vsel %vm1439, 1, 0
        %v1568 = vsel %vm1440, 1, 0
        %v1569 = vsel %vm1441, 1, 0
        %v1570 = vsel %vm1442, 1, 0
        %v1571 = vsel %vm1443, 1, 0
        %v1572 = vsel %vm1444, 1, 0
        %v1573 = vsel %vm1445, 1, 0
        %v1574 = vsel %vm1446, 1, 0
        %v1575 = vsel %vm1447, 1, 0
        %v1576 = vsel %vm1448, 1, 0
        %v1577 = vsel %vm1449, 1, 0
        %v1578 = vsel %vm1450, 1, 0
        %v1579 = vsel %vm1451, 1, 0
        %v1580 = vsel %vm1452, 1, 0
        %v1581 = vsel %vm1453, 1, 0
        %v1582 = vsel %vm1454, 1, 0
        %v1583 = vsel %vm1455, 1, 0
        %v1584 = vsel %vm1456, 1, 0
        %v1585 = vsel %vm1457, 1, 0
        %v1586 = vsel %vm1458, 1, 0
        %v1587 = vsel %vm1459, 1, 0
        %v1588 = vsel %vm1460, 1, 0
        %v1589 = vsel %vm1461, 1, 0
        %v1590 = vsel %vm1462, 1, 0
        %v1591 = vsel %vm1463, 1, 0
        %v1592 = vsel %vm1464, 1, 0
        %v1593 = vsel %vm1465, 1, 0
        %v1594 = vsel %vm1466, 1, 0
        %v1595 = vsel %vm1467, 1, 0
        %v1596 = vsel %vm1468, 1, 0
        %v1597 = vsel %vm1469, 1, 0
        %v1598 = vsel %vm1470, 1, 0
        %v1599 = vsel %vm1471, 1, 0
        %v1600 = vsel %vm1472, 1, 0
        %v1601 = vsel %vm1473, 1, 0
        %v1602 = vsel %vm1474, 1, 0
        %v1603 = vsel %vm1475, 1, 0
        %v1604 = vsel %vm1476, 1, 0
        %v1605 = vsel %vm1477, 1, 0
        %v1606 = vsel %vm1478, 1, 0
        %v1607 = vsel %vm1479, 1, 0
        %v1608 = vsel %vm1480, 1, 0
        %v1609 = vsel %vm1481, 1, 0
        %v1610 = vsel %vm1482, 1, 0
        %v1611 = vsel %vm1483, 1, 0
        %v1612 = vsel %vm1484, 1, 0
        %v1613 = vsel %vm1485, 1, 0
        %v1614 = vsel %vm1486, 1, 0
        %v1615 = vsel %vm1487, 1, 0
        %v1616 = vsel %vm1488, 1, 0
        %v1617 = vsel %vm1489, 1, 0
        %v1618 = vsel %vm1490, 1, 0
        %v1619 = vsel %vm1491, 1, 0
        %v1620 = vsel %vm1492, 1, 0
        %v1621 = vsel %vm1493, 1, 0
        %v1622 = vsel %vm1494, 1, 0
        %v1623 = vsel %vm1495, 1, 0
        %v1624 = vsel %vm1496, 1, 0
        %v1625 = vsel %vm1497, 1, 0
        %v1626 = vsel %vm1498, 1, 0
        %v1627 = vsel %vm1499, 1, 0
        %v1628 = vsel %vm1500, 1, 0
        %v1629 = vsel %vm1501, 1, 0
        %v1630 = vsel %vm1502, 1, 0
        %v1631 = vsel %vm1503, 1, 0
        %v1632 = vsel %vm1504, 1, 0
        %v1633 = vsel %vm1505, 1, 0
        %v1634 = vsel %vm1506, 1, 0
        %v1635 = vsel %vm1507, 1, 0
        %v1636 = vsel %vm1508, 1, 0
        %v1637 = vsel %vm1509, 1, 0
        %v1638 = vsel %vm1510, 1, 0
        %v1639 = vsel %vm1511, 1, 0
        %v1640 = vsel %vm1512, 1, 0
        %v1641 = vsel %vm1513, 1, 0
        %v1642 = vsel %vm1514, 1, 0
        %v1643 = vsel %vm1515, 1, 0
        %v1644 = vsel %vm1516, 1, 0
        %v1645 = vsel %vm1517, 1, 0
        %v1646 = vsel %vm1518, 1, 0
        %v1647 = vcvt.s32.f32 %v1519
        %v1648 = vcvt.s32.f32 %v1520
        %v1649 = vcvt.s32.f32 %v1521
        %v1650 = vcvt.s32.f32 %v1522
        %v1651 = vcvt.s32.f32 %v1523
        %v1652 = vcvt.s32.f32 %v1524
        %v1653 = vcvt.s32.f32 %v1525
        %v1654 = vcvt.s32.f32 %v1526
        %v1655 = vcvt.s32.f32 %v1527
        %v1656 = vcvt.s32.f32 %v1528
        %v1657 = vcvt.s32.f32 %v1529
        %v1658 = vcvt.s32.f32 %v1530
        %v1659 = vcvt.s32.f32 %v1531
        %v1660 = vcvt.s32.f32 %v1532
        %v1661 = vcvt.s32.f32 %v1533
        %v1662 = vcvt.s32.f32 %v1534
        %v1663 = vcvt.s32.f32 %v1535
        %v1664 = vcvt.s32.f32 %v1536
        %v1665 = vcvt.s32.f32 %v1537
        %v1666 = vcvt.s32.f32 %v1538
        %v1667 = vcvt.s32.f32 %v1539
        %v1668 = vcvt.s32.f32 %v1540
        %v1669 = vcvt.s32.f32 %v1541
        %v1670 = vcvt.s32.f32 %v1542
        %v1671 = vcvt.s32.f32 %v1543
        %v1672 = vcvt.s32.f32 %v1544
        %v1673 = vcvt.s32.f32 %v1545
        %v1674 = vcvt.s32.f32 %v1546
        %v1675 = vcvt.s32.f32 %v1547
        %v1676 = vcvt.s32.f32 %v1548
        %v1677 = vcvt.s32.f32 %v1549
        %v1678 = vcvt.s32.f32 %v1550
        %v1679 = vcvt.s32.f32 %v1551
        %v1680 = vcvt.s32.f32 %v1552
        %v1681 = vcvt.s32.f32 %v1553
        %v1682 = vcvt.s32.f32 %v1554
        %v1683 = vcvt.s32.f32 %v1555
        %v1684 = vcvt.s32.f32 %v1556
        %v1685 = vcvt.s32.f32 %v1557
        %v1686 = vcvt.s32.f32 %v1558
        %v1687 = vcvt.s32.f32 %v1559
        %v1688 = vcvt.s32.f32 %v1560
        %v1689 = vcvt.s32.f32 %v1561
        %v1690 = vcvt.s32.f32 %v1562
        %v1691 = vcvt.s32.f32 %v1563
        %v1692 = vcvt.s32.f32 %v1564
        %v1693 = vcvt.s32.f32 %v1565
        %v1694 = vcvt.s32.f32 %v1566
        %v1695 = vcvt.s32.f32 %v1567
        %v1696 = vcvt.s32.f32 %v1568
        %v1697 = vcvt.s32.f32 %v1569
        %v1698 = vcvt.s32.f32 %v1570
        %v1699 = vcvt.s32.f32 %v1571
        %v1700 = vcvt.s32.f32 %v1572
        %v1701 = vcvt.s32.f32 %v1573
        %v1702 = vcvt.s32.f32 %v1574
        %v1703 = vcvt.s32.f32 %v1575
        %v1704 = vcvt.s32.f32 %v1576
        %v1705 = vcvt.s32.f32 %v1577
        %v1706 = vcvt.s32.f32 %v1578
        %v1707 = vcvt.s32.f32 %v1579
        %v1708 = vcvt.s32.f32 %v1580
        %v1709 = vcvt.s32.f32 %v1581
        %v1710 = vcvt.s32.f32 %v1582
        %v1711 = vcvt.s32.f32 %v1583
        %v1712 = vcvt.s32.f32 %v1584
        %v1713 = vcvt.s32.f32 %v1585
        %v1714 = vcvt.s32.f32 %v1586
        %v1715 = vcvt.s32.f32 %v1587
        %v1716 = vcvt.s32.f32 %v1588
        %v1717 = vcvt.s32.f32 %v1589
        %v1718 = vcvt.s32.f32 %v1590
        %v1719 = vcvt.s32.f32 %v1591
        %v1720 = vcvt.s32.f32 %v1592
        %v1721 = vcvt.s32.f32 %v1593
        %v1722 = vcvt.s32.f32 %v1594
        %v1723 = vcvt.s32.f32 %v1595
        %v1724 = vcvt.s32.f32 %v1596
        %v1725 = vcvt.s32.f32 %v1597
        %v1726 = vcvt.s32.f32 %v1598
        %v1727 = vcvt.s32.f32 %v1599
        %v1728 = vcvt.s32.f32 %v1600
        %v1729 = vcvt.s32.f32 %v1601
        %v1730 = vcvt.s32.f32 %v1602
        %v1731 = vcvt.s32.f32 %v1603
        %v1732 = vcvt.s32.f32 %v1604
        %v1733 = vcvt.s32.f32 %v1605
        %v1734 = vcvt.s32.f32 %v1606
        %v1735 = vcvt.s32.f32 %v1607
        %v1736 = vcvt.s32.f32 %v1608
        %v1737 = vcvt.s32.f32 %v1609
        %v1738 = vcvt.s32.f32 %v1610
        %v1739 = vcvt.s32.f32 %v1611
        %v1740 = vcvt.s32.f32 %v1612
        %v1741 = vcvt.s32.f32 %v1613
        %v1742 = vcvt.s32.f32 %v1614
        %v1743 = vcvt.s32.f32 %v1615
        %v1744 = vcvt.s32.f32 %v1616
        %v1745 = vcvt.s32.f32 %v1617
        %v1746 = vcvt.s32.f32 %v1618
        %v1747 = vcvt.s32.f32 %v1619
        %v1748 = vcvt.s32.f32 %v1620
        %v1749 = vcvt.s32.f32 %v1621
        %v1750 = vcvt.s32.f32 %v1622
        %v1751 = vcvt.s32.f32 %v1623
        %v1752 = vcvt.s32.f32 %v1624
        %v1753 = vcvt.s32.f32 %v1625
        %v1754 = vcvt.s32.f32 %v1626
        %v1755 = vcvt.s32.f32 %v1627
        %v1756 = vcvt.s32.f32 %v1628
        %v1757 = vcvt.s32.f32 %v1629
        %v1758 = vcvt.s32.f32 %v1630
        %v1759 = vcvt.s32.f32 %v1631
        %v1760 = vcvt.s32.f32 %v1632
        %v1761 = vcvt.s32.f32 %v1633
        %v1762 = vcvt.s32.f32 %v1634
        %v1763 = vcvt.s32.f32 %v1635
        %v1764 = vcvt.s32.f32 %v1636
        %v1765 = vcvt.s32.f32 %v1637
        %v1766 = vcvt.s32.f32 %v1638
        %v1767 = vcvt.s32.f32 %v1639
        %v1768 = vcvt.s32.f32 %v1640
        %v1769 = vcvt.s32.f32 %v1641
        %v1770 = vcvt.s32.f32 %v1642
        %v1771 = vcvt.s32.f32 %v1643
        %v1772 = vcvt.s32.f32 %v1644
        %v1773 = vcvt.s32.f32 %v1645
        %v1774 = vcvt.s32.f32 %v1646
        %v1775 = vrot.slane %v1647, 4
        %v1776 = vadd.f32 %v1647, %v1775
        %v1777 = vrot.slane %v1776, 2
        %v1778 = vadd.f32 %v1776, %v1777
        %v1779 = vrot.slane %v1778, 1
        %v1780 = vadd.f32 %v1778, %v1779
        %v1781 = vrot.slane %v1648, 4
        %v1782 = vadd.f32 %v1648, %v1781
        %v1783 = vrot.slane %v1782, 2
        %v1784 = vadd.f32 %v1782, %v1783
        %v1785 = vrot.slane %v1784, 1
        %v1786 = vadd.f32 %v1784, %v1785
        %v1787 = vrot.slane %v1649, 4
        %v1788 = vadd.f32 %v1649, %v1787
        %v1789 = vrot.slane %v1788, 2
        %v1790 = vadd.f32 %v1788, %v1789
        %v1791 = vrot.slane %v1790, 1
        %v1792 = vadd.f32 %v1790, %v1791
        %v1793 = vrot.slane %v1650, 4
        %v1794 = vadd.f32 %v1650, %v1793
        %v1795 = vrot.slane %v1794, 2
        %v1796 = vadd.f32 %v1794, %v1795
        %v1797 = vrot.slane %v1796, 1
        %v1798 = vadd.f32 %v1796, %v1797
        %v1799 = vrot.slane %v1651, 4
        %v1800 = vadd.f32 %v1651, %v1799
        %v1801 = vrot.slane %v1800, 2
        %v1802 = vadd.f32 %v1800, %v1801
        %v1803 = vrot.slane %v1802, 1
        %v1804 = vadd.f32 %v1802, %v1803
        %v1805 = vrot.slane %v1652, 4
        %v1806 = vadd.f32 %v1652, %v1805
        %v1807 = vrot.slane %v1806, 2
        %v1808 = vadd.f32 %v1806, %v1807
        %v1809 = vrot.slane %v1808, 1
        %v1810 = vadd.f32 %v1808, %v1809
        %v1811 = vrot.slane %v1653, 4
        %v1812 = vadd.f32 %v1653, %v1811
        %v1813 = vrot.slane %v1812, 2
        %v1814 = vadd.f32 %v1812, %v1813
        %v1815 = vrot.slane %v1814, 1
        %v1816 = vadd.f32 %v1814, %v1815
        %v1817 = vrot.slane %v1654, 4
        %v1818 = vadd.f32 %v1654, %v1817
        %v1819 = vrot.slane %v1818, 2
        %v1820 = vadd.f32 %v1818, %v1819
        %v1821 = vrot.slane %v1820, 1
        %v1822 = vadd.f32 %v1820, %v1821
        %v1823 = vrot.slane %v1655, 4
        %v1824 = vadd.f32 %v1655, %v1823
        %v1825 = vrot.slane %v1824, 2
        %v1826 = vadd.f32 %v1824, %v1825
        %v1827 = vrot.slane %v1826, 1
        %v1828 = vadd.f32 %v1826, %v1827
        %v1829 = vrot.slane %v1656, 4
        %v1830 = vadd.f32 %v1656, %v1829
        %v1831 = vrot.slane %v1830, 2
        %v1832 = vadd.f32 %v1830, %v1831
        %v1833 = vrot.slane %v1832, 1
        %v1834 = vadd.f32 %v1832, %v1833
        %v1835 = vrot.slane %v1657, 4
        %v1836 = vadd.f32 %v1657, %v1835
        %v1837 = vrot.slane %v1836, 2
        %v1838 = vadd.f32 %v1836, %v1837
        %v1839 = vrot.slane %v1838, 1
        %v1840 = vadd.f32 %v1838, %v1839
        %v1841 = vrot.slane %v1658, 4
        %v1842 = vadd.f32 %v1658, %v1841
        %v1843 = vrot.slane %v1842, 2
        %v1844 = vadd.f32 %v1842, %v1843
        %v1845 = vrot.slane %v1844, 1
        %v1846 = vadd.f32 %v1844, %v1845
        %v1847 = vrot.slane %v1659, 4
        %v1848 = vadd.f32 %v1659, %v1847
        %v1849 = vrot.slane %v1848, 2
        %v1850 = vadd.f32 %v1848, %v1849
        %v1851 = vrot.slane %v1850, 1
        %v1852 = vadd.f32 %v1850, %v1851
        %v1853 = vrot.slane %v1660, 4
        %v1854 = vadd.f32 %v1660, %v1853
        %v1855 = vrot.slane %v1854, 2
        %v1856 = vadd.f32 %v1854, %v1855
        %v1857 = vrot.slane %v1856, 1
        %v1858 = vadd.f32 %v1856, %v1857
        %v1859 = vrot.slane %v1661, 4
        %v1860 = vadd.f32 %v1661, %v1859
        %v1861 = vrot.slane %v1860, 2
        %v1862 = vadd.f32 %v1860, %v1861
        %v1863 = vrot.slane %v1862, 1
        %v1864 = vadd.f32 %v1862, %v1863
        %v1865 = vrot.slane %v1662, 4
        %v1866 = vadd.f32 %v1662, %v1865
        %v1867 = vrot.slane %v1866, 2
        %v1868 = vadd.f32 %v1866, %v1867
        %v1869 = vrot.slane %v1868, 1
        %v1870 = vadd.f32 %v1868, %v1869
        %v1871 = vrot.slane %v1663, 4
        %v1872 = vadd.f32 %v1663, %v1871
        %v1873 = vrot.slane %v1872, 2
        %v1874 = vadd.f32 %v1872, %v1873
        %v1875 = vrot.slane %v1874, 1
        %v1876 = vadd.f32 %v1874, %v1875
        %v1877 = vrot.slane %v1664, 4
        %v1878 = vadd.f32 %v1664, %v1877
        %v1879 = vrot.slane %v1878, 2
        %v1880 = vadd.f32 %v1878, %v1879
        %v1881 = vrot.slane %v1880, 1
        %v1882 = vadd.f32 %v1880, %v1881
        %v1883 = vrot.slane %v1665, 4
        %v1884 = vadd.f32 %v1665, %v1883
        %v1885 = vrot.slane %v1884, 2
        %v1886 = vadd.f32 %v1884, %v1885
        %v1887 = vrot.slane %v1886, 1
        %v1888 = vadd.f32 %v1886, %v1887
        %v1889 = vrot.slane %v1666, 4
        %v1890 = vadd.f32 %v1666, %v1889
        %v1891 = vrot.slane %v1890, 2
        %v1892 = vadd.f32 %v1890, %v1891
        %v1893 = vrot.slane %v1892, 1
        %v1894 = vadd.f32 %v1892, %v1893
        %v1895 = vrot.slane %v1667, 4
        %v1896 = vadd.f32 %v1667, %v1895
        %v1897 = vrot.slane %v1896, 2
        %v1898 = vadd.f32 %v1896, %v1897
        %v1899 = vrot.slane %v1898, 1
        %v1900 = vadd.f32 %v1898, %v1899
        %v1901 = vrot.slane %v1668, 4
        %v1902 = vadd.f32 %v1668, %v1901
        %v1903 = vrot.slane %v1902, 2
        %v1904 = vadd.f32 %v1902, %v1903
        %v1905 = vrot.slane %v1904, 1
        %v1906 = vadd.f32 %v1904, %v1905
        %v1907 = vrot.slane %v1669, 4
        %v1908 = vadd.f32 %v1669, %v1907
        %v1909 = vrot.slane %v1908, 2
        %v1910 = vadd.f32 %v1908, %v1909
        %v1911 = vrot.slane %v1910, 1
        %v1912 = vadd.f32 %v1910, %v1911
        %v1913 = vrot.slane %v1670, 4
        %v1914 = vadd.f32 %v1670, %v1913
        %v1915 = vrot.slane %v1914, 2
        %v1916 = vadd.f32 %v1914, %v1915
        %v1917 = vrot.slane %v1916, 1
        %v1918 = vadd.f32 %v1916, %v1917
        %v1919 = vrot.slane %v1671, 4
        %v1920 = vadd.f32 %v1671, %v1919
        %v1921 = vrot.slane %v1920, 2
        %v1922 = vadd.f32 %v1920, %v1921
        %v1923 = vrot.slane %v1922, 1
        %v1924 = vadd.f32 %v1922, %v1923
        %v1925 = vrot.slane %v1672, 4
        %v1926 = vadd.f32 %v1672, %v1925
        %v1927 = vrot.slane %v1926, 2
        %v1928 = vadd.f32 %v1926, %v1927
        %v1929 = vrot.slane %v1928, 1
        %v1930 = vadd.f32 %v1928, %v1929
        %v1931 = vrot.slane %v1673, 4
        %v1932 = vadd.f32 %v1673, %v1931
        %v1933 = vrot.slane %v1932, 2
        %v1934 = vadd.f32 %v1932, %v1933
        %v1935 = vrot.slane %v1934, 1
        %v1936 = vadd.f32 %v1934, %v1935
        %v1937 = vrot.slane %v1674, 4
        %v1938 = vadd.f32 %v1674, %v1937
        %v1939 = vrot.slane %v1938, 2
        %v1940 = vadd.f32 %v1938, %v1939
        %v1941 = vrot.slane %v1940, 1
        %v1942 = vadd.f32 %v1940, %v1941
        %v1943 = vrot.slane %v1675, 4
        %v1944 = vadd.f32 %v1675, %v1943
        %v1945 = vrot.slane %v1944, 2
        %v1946 = vadd.f32 %v1944, %v1945
        %v1947 = vrot.slane %v1946, 1
        %v1948 = vadd.f32 %v1946, %v1947
        %v1949 = vrot.slane %v1676, 4
        %v1950 = vadd.f32 %v1676, %v1949
        %v1951 = vrot.slane %v1950, 2
        %v1952 = vadd.f32 %v1950, %v1951
        %v1953 = vrot.slane %v1952, 1
        %v1954 = vadd.f32 %v1952, %v1953
        %v1955 = vrot.slane %v1677, 4
        %v1956 = vadd.f32 %v1677, %v1955
        %v1957 = vrot.slane %v1956, 2
        %v1958 = vadd.f32 %v1956, %v1957
        %v1959 = vrot.slane %v1958, 1
        %v1960 = vadd.f32 %v1958, %v1959
        %v1961 = vrot.slane %v1678, 4
        %v1962 = vadd.f32 %v1678, %v1961
        %v1963 = vrot.slane %v1962, 2
        %v1964 = vadd.f32 %v1962, %v1963
        %v1965 = vrot.slane %v1964, 1
        %v1966 = vadd.f32 %v1964, %v1965
        %v1967 = vrot.slane %v1679, 4
        %v1968 = vadd.f32 %v1679, %v1967
        %v1969 = vrot.slane %v1968, 2
        %v1970 = vadd.f32 %v1968, %v1969
        %v1971 = vrot.slane %v1970, 1
        %v1972 = vadd.f32 %v1970, %v1971
        %v1973 = vrot.slane %v1680, 4
        %v1974 = vadd.f32 %v1680, %v1973
        %v1975 = vrot.slane %v1974, 2
        %v1976 = vadd.f32 %v1974, %v1975
        %v1977 = vrot.slane %v1976, 1
        %v1978 = vadd.f32 %v1976, %v1977
        %v1979 = vrot.slane %v1681, 4
        %v1980 = vadd.f32 %v1681, %v1979
        %v1981 = vrot.slane %v1980, 2
        %v1982 = vadd.f32 %v1980, %v1981
        %v1983 = vrot.slane %v1982, 1
        %v1984 = vadd.f32 %v1982, %v1983
        %v1985 = vrot.slane %v1682, 4
        %v1986 = vadd.f32 %v1682, %v1985
        %v1987 = vrot.slane %v1986, 2
        %v1988 = vadd.f32 %v1986, %v1987
        %v1989 = vrot.slane %v1988, 1
        %v1990 = vadd.f32 %v1988, %v1989
        %v1991 = vrot.slane %v1683, 4
        %v1992 = vadd.f32 %v1683, %v1991
        %v1993 = vrot.slane %v1992, 2
        %v1994 = vadd.f32 %v1992, %v1993
        %v1995 = vrot.slane %v1994, 1
        %v1996 = vadd.f32 %v1994, %v1995
        %v1997 = vrot.slane %v1684, 4
        %v1998 = vadd.f32 %v1684, %v1997
        %v1999 = vrot.slane %v1998, 2
        %v2000 = vadd.f32 %v1998, %v1999
        %v2001 = vrot.slane %v2000, 1
        %v2002 = vadd.f32 %v2000, %v2001
        %v2003 = vrot.slane %v1685, 4
        %v2004 = vadd.f32 %v1685, %v2003
        %v2005 = vrot.slane %v2004, 2
        %v2006 = vadd.f32 %v2004, %v2005
        %v2007 = vrot.slane %v2006, 1
        %v2008 = vadd.f32 %v2006, %v2007
        %v2009 = vrot.slane %v1686, 4
        %v2010 = vadd.f32 %v1686, %v2009
        %v2011 = vrot.slane %v2010, 2
        %v2012 = vadd.f32 %v2010, %v2011
        %v2013 = vrot.slane %v2012, 1
        %v2014 = vadd.f32 %v2012, %v2013
        %v2015 = vrot.slane %v1687, 4
        %v2016 = vadd.f32 %v1687, %v2015
        %v2017 = vrot.slane %v2016, 2
        %v2018 = vadd.f32 %v2016, %v2017
        %v2019 = vrot.slane %v2018, 1
        %v2020 = vadd.f32 %v2018, %v2019
        %v2021 = vrot.slane %v1688, 4
        %v2022 = vadd.f32 %v1688, %v2021
        %v2023 = vrot.slane %v2022, 2
        %v2024 = vadd.f32 %v2022, %v2023
        %v2025 = vrot.slane %v2024, 1
        %v2026 = vadd.f32 %v2024, %v2025
        %v2027 = vrot.slane %v1689, 4
        %v2028 = vadd.f32 %v1689, %v2027
        %v2029 = vrot.slane %v2028, 2
        %v2030 = vadd.f32 %v2028, %v2029
        %v2031 = vrot.slane %v2030, 1
        %v2032 = vadd.f32 %v2030, %v2031
        %v2033 = vrot.slane %v1690, 4
        %v2034 = vadd.f32 %v1690, %v2033
        %v2035 = vrot.slane %v2034, 2
        %v2036 = vadd.f32 %v2034, %v2035
        %v2037 = vrot.slane %v2036, 1
        %v2038 = vadd.f32 %v2036, %v2037
        %v2039 = vrot.slane %v1691, 4
        %v2040 = vadd.f32 %v1691, %v2039
        %v2041 = vrot.slane %v2040, 2
        %v2042 = vadd.f32 %v2040, %v2041
        %v2043 = vrot.slane %v2042, 1
        %v2044 = vadd.f32 %v2042, %v2043
        %v2045 = vrot.slane %v1692, 4
        %v2046 = vadd.f32 %v1692, %v2045
        %v2047 = vrot.slane %v2046, 2
        %v2048 = vadd.f32 %v2046, %v2047
        %v2049 = vrot.slane %v2048, 1
        %v2050 = vadd.f32 %v2048, %v2049
        %v2051 = vrot.slane %v1693, 4
        %v2052 = vadd.f32 %v1693, %v2051
        %v2053 = vrot.slane %v2052, 2
        %v2054 = vadd.f32 %v2052, %v2053
        %v2055 = vrot.slane %v2054, 1
        %v2056 = vadd.f32 %v2054, %v2055
        %v2057 = vrot.slane %v1694, 4
        %v2058 = vadd.f32 %v1694, %v2057
        %v2059 = vrot.slane %v2058, 2
        %v2060 = vadd.f32 %v2058, %v2059
        %v2061 = vrot.slane %v2060, 1
        %v2062 = vadd.f32 %v2060, %v2061
        %v2063 = vrot.slane %v1695, 4
        %v2064 = vadd.f32 %v1695, %v2063
        %v2065 = vrot.slane %v2064, 2
        %v2066 = vadd.f32 %v2064, %v2065
        %v2067 = vrot.slane %v2066, 1
        %v2068 = vadd.f32 %v2066, %v2067
        %v2069 = vrot.slane %v1696, 4
        %v2070 = vadd.f32 %v1696, %v2069
        %v2071 = vrot.slane %v2070, 2
        %v2072 = vadd.f32 %v2070, %v2071
        %v2073 = vrot.slane %v2072, 1
        %v2074 = vadd.f32 %v2072, %v2073
        %v2075 = vrot.slane %v1697, 4
        %v2076 = vadd.f32 %v1697, %v2075
        %v2077 = vrot.slane %v2076, 2
        %v2078 = vadd.f32 %v2076, %v2077
        %v2079 = vrot.slane %v2078, 1
        %v2080 = vadd.f32 %v2078, %v2079
        %v2081 = vrot.slane %v1698, 4
        %v2082 = vadd.f32 %v1698, %v2081
        %v2083 = vrot.slane %v2082, 2
        %v2084 = vadd.f32 %v2082, %v2083
        %v2085 = vrot.slane %v2084, 1
        %v2086 = vadd.f32 %v2084, %v2085
        %v2087 = vrot.slane %v1699, 4
        %v2088 = vadd.f32 %v1699, %v2087
        %v2089 = vrot.slane %v2088, 2
        %v2090 = vadd.f32 %v2088, %v2089
        %v2091 = vrot.slane %v2090, 1
        %v2092 = vadd.f32 %v2090, %v2091
        %v2093 = vrot.slane %v1700, 4
        %v2094 = vadd.f32 %v1700, %v2093
        %v2095 = vrot.slane %v2094, 2
        %v2096 = vadd.f32 %v2094, %v2095
        %v2097 = vrot.slane %v2096, 1
        %v2098 = vadd.f32 %v2096, %v2097
        %v2099 = vrot.slane %v1701, 4
        %v2100 = vadd.f32 %v1701, %v2099
        %v2101 = vrot.slane %v2100, 2
        %v2102 = vadd.f32 %v2100, %v2101
        %v2103 = vrot.slane %v2102, 1
        %v2104 = vadd.f32 %v2102, %v2103
        %v2105 = vrot.slane %v1702, 4
        %v2106 = vadd.f32 %v1702, %v2105
        %v2107 = vrot.slane %v2106, 2
        %v2108 = vadd.f32 %v2106, %v2107
        %v2109 = vrot.slane %v2108, 1
        %v2110 = vadd.f32 %v2108, %v2109
        %v2111 = vrot.slane %v1703, 4
        %v2112 = vadd.f32 %v1703, %v2111
        %v2113 = vrot.slane %v2112, 2
        %v2114 = vadd.f32 %v2112, %v2113
        %v2115 = vrot.slane %v2114, 1
        %v2116 = vadd.f32 %v2114, %v2115
        %v2117 = vrot.slane %v1704, 4
        %v2118 = vadd.f32 %v1704, %v2117
        %v2119 = vrot.slane %v2118, 2
        %v2120 = vadd.f32 %v2118, %v2119
        %v2121 = vrot.slane %v2120, 1
        %v2122 = vadd.f32 %v2120, %v2121
        %v2123 = vrot.slane %v1705, 4
        %v2124 = vadd.f32 %v1705, %v2123
        %v2125 = vrot.slane %v2124, 2
        %v2126 = vadd.f32 %v2124, %v2125
        %v2127 = vrot.slane %v2126, 1
        %v2128 = vadd.f32 %v2126, %v2127
        %v2129 = vrot.slane %v1706, 4
        %v2130 = vadd.f32 %v1706, %v2129
        %v2131 = vrot.slane %v2130, 2
        %v2132 = vadd.f32 %v2130, %v2131
        %v2133 = vrot.slane %v2132, 1
        %v2134 = vadd.f32 %v2132, %v2133
        %v2135 = vrot.slane %v1707, 4
        %v2136 = vadd.f32 %v1707, %v2135
        %v2137 = vrot.slane %v2136, 2
        %v2138 = vadd.f32 %v2136, %v2137
        %v2139 = vrot.slane %v2138, 1
        %v2140 = vadd.f32 %v2138, %v2139
        %v2141 = vrot.slane %v1708, 4
        %v2142 = vadd.f32 %v1708, %v2141
        %v2143 = vrot.slane %v2142, 2
        %v2144 = vadd.f32 %v2142, %v2143
        %v2145 = vrot.slane %v2144, 1
        %v2146 = vadd.f32 %v2144, %v2145
        %v2147 = vrot.slane %v1709, 4
        %v2148 = vadd.f32 %v1709, %v2147
        %v2149 = vrot.slane %v2148, 2
        %v2150 = vadd.f32 %v2148, %v2149
        %v2151 = vrot.slane %v2150, 1
        %v2152 = vadd.f32 %v2150, %v2151
        %v2153 = vrot.slane %v1710, 4
        %v2154 = vadd.f32 %v1710, %v2153
        %v2155 = vrot.slane %v2154, 2
        %v2156 = vadd.f32 %v2154, %v2155
        %v2157 = vrot.slane %v2156, 1
        %v2158 = vadd.f32 %v2156, %v2157
        %v2159 = vrot.slane %v1711, 4
        %v2160 = vadd.f32 %v1711, %v2159
        %v2161 = vrot.slane %v2160, 2
        %v2162 = vadd.f32 %v2160, %v2161
        %v2163 = vrot.slane %v2162, 1
        %v2164 = vadd.f32 %v2162, %v2163
        %v2165 = vrot.slane %v1712, 4
        %v2166 = vadd.f32 %v1712, %v2165
        %v2167 = vrot.slane %v2166, 2
        %v2168 = vadd.f32 %v2166, %v2167
        %v2169 = vrot.slane %v2168, 1
        %v2170 = vadd.f32 %v2168, %v2169
        %v2171 = vrot.slane %v1713, 4
        %v2172 = vadd.f32 %v1713, %v2171
        %v2173 = vrot.slane %v2172, 2
        %v2174 = vadd.f32 %v2172, %v2173
        %v2175 = vrot.slane %v2174, 1
        %v2176 = vadd.f32 %v2174, %v2175
        %v2177 = vrot.slane %v1714, 4
        %v2178 = vadd.f32 %v1714, %v2177
        %v2179 = vrot.slane %v2178, 2
        %v2180 = vadd.f32 %v2178, %v2179
        %v2181 = vrot.slane %v2180, 1
        %v2182 = vadd.f32 %v2180, %v2181
        %v2183 = vrot.slane %v1715, 4
        %v2184 = vadd.f32 %v1715, %v2183
        %v2185 = vrot.slane %v2184, 2
        %v2186 = vadd.f32 %v2184, %v2185
        %v2187 = vrot.slane %v2186, 1
        %v2188 = vadd.f32 %v2186, %v2187
        %v2189 = vrot.slane %v1716, 4
        %v2190 = vadd.f32 %v1716, %v2189
        %v2191 = vrot.slane %v2190, 2
        %v2192 = vadd.f32 %v2190, %v2191
        %v2193 = vrot.slane %v2192, 1
        %v2194 = vadd.f32 %v2192, %v2193
        %v2195 = vrot.slane %v1717, 4
        %v2196 = vadd.f32 %v1717, %v2195
        %v2197 = vrot.slane %v2196, 2
        %v2198 = vadd.f32 %v2196, %v2197
        %v2199 = vrot.slane %v2198, 1
        %v2200 = vadd.f32 %v2198, %v2199
        %v2201 = vrot.slane %v1718, 4
        %v2202 = vadd.f32 %v1718, %v2201
        %v2203 = vrot.slane %v2202, 2
        %v2204 = vadd.f32 %v2202, %v2203
        %v2205 = vrot.slane %v2204, 1
        %v2206 = vadd.f32 %v2204, %v2205
        %v2207 = vrot.slane %v1719, 4
        %v2208 = vadd.f32 %v1719, %v2207
        %v2209 = vrot.slane %v2208, 2
        %v2210 = vadd.f32 %v2208, %v2209
        %v2211 = vrot.slane %v2210, 1
        %v2212 = vadd.f32 %v2210, %v2211
        %v2213 = vrot.slane %v1720, 4
        %v2214 = vadd.f32 %v1720, %v2213
        %v2215 = vrot.slane %v2214, 2
        %v2216 = vadd.f32 %v2214, %v2215
        %v2217 = vrot.slane %v2216, 1
        %v2218 = vadd.f32 %v2216, %v2217
        %v2219 = vrot.slane %v1721, 4
        %v2220 = vadd.f32 %v1721, %v2219
        %v2221 = vrot.slane %v2220, 2
        %v2222 = vadd.f32 %v2220, %v2221
        %v2223 = vrot.slane %v2222, 1
        %v2224 = vadd.f32 %v2222, %v2223
        %v2225 = vrot.slane %v1722, 4
        %v2226 = vadd.f32 %v1722, %v2225
        %v2227 = vrot.slane %v2226, 2
        %v2228 = vadd.f32 %v2226, %v2227
        %v2229 = vrot.slane %v2228, 1
        %v2230 = vadd.f32 %v2228, %v2229
        %v2231 = vrot.slane %v1723, 4
        %v2232 = vadd.f32 %v1723, %v2231
        %v2233 = vrot.slane %v2232, 2
        %v2234 = vadd.f32 %v2232, %v2233
        %v2235 = vrot.slane %v2234, 1
        %v2236 = vadd.f32 %v2234, %v2235
        %v2237 = vrot.slane %v1724, 4
        %v2238 = vadd.f32 %v1724, %v2237
        %v2239 = vrot.slane %v2238, 2
        %v2240 = vadd.f32 %v2238, %v2239
        %v2241 = vrot.slane %v2240, 1
        %v2242 = vadd.f32 %v2240, %v2241
        %v2243 = vrot.slane %v1725, 4
        %v2244 = vadd.f32 %v1725, %v2243
        %v2245 = vrot.slane %v2244, 2
        %v2246 = vadd.f32 %v2244, %v2245
        %v2247 = vrot.slane %v2246, 1
        %v2248 = vadd.f32 %v2246, %v2247
        %v2249 = vrot.slane %v1726, 4
        %v2250 = vadd.f32 %v1726, %v2249
        %v2251 = vrot.slane %v2250, 2
        %v2252 = vadd.f32 %v2250, %v2251
        %v2253 = vrot.slane %v2252, 1
        %v2254 = vadd.f32 %v2252, %v2253
        %v2255 = vrot.slane %v1727, 4
        %v2256 = vadd.f32 %v1727, %v2255
        %v2257 = vrot.slane %v2256, 2
        %v2258 = vadd.f32 %v2256, %v2257
        %v2259 = vrot.slane %v2258, 1
        %v2260 = vadd.f32 %v2258, %v2259
        %v2261 = vrot.slane %v1728, 4
        %v2262 = vadd.f32 %v1728, %v2261
        %v2263 = vrot.slane %v2262, 2
        %v2264 = vadd.f32 %v2262, %v2263
        %v2265 = vrot.slane %v2264, 1
        %v2266 = vadd.f32 %v2264, %v2265
        %v2267 = vrot.slane %v1729, 4
        %v2268 = vadd.f32 %v1729, %v2267
        %v2269 = vrot.slane %v2268, 2
        %v2270 = vadd.f32 %v2268, %v2269
        %v2271 = vrot.slane %v2270, 1
        %v2272 = vadd.f32 %v2270, %v2271
        %v2273 = vrot.slane %v1730, 4
        %v2274 = vadd.f32 %v1730, %v2273
        %v2275 = vrot.slane %v2274, 2
        %v2276 = vadd.f32 %v2274, %v2275
        %v2277 = vrot.slane %v2276, 1
        %v2278 = vadd.f32 %v2276, %v2277
        %v2279 = vrot.slane %v1731, 4
        %v2280 = vadd.f32 %v1731, %v2279
        %v2281 = vrot.slane %v2280, 2
        %v2282 = vadd.f32 %v2280, %v2281
        %v2283 = vrot.slane %v2282, 1
        %v2284 = vadd.f32 %v2282, %v2283
        %v2285 = vrot.slane %v1732, 4
        %v2286 = vadd.f32 %v1732, %v2285
        %v2287 = vrot.slane %v2286, 2
        %v2288 = vadd.f32 %v2286, %v2287
        %v2289 = vrot.slane %v2288, 1
        %v2290 = vadd.f32 %v2288, %v2289
        %v2291 = vrot.slane %v1733, 4
        %v2292 = vadd.f32 %v1733, %v2291
        %v2293 = vrot.slane %v2292, 2
        %v2294 = vadd.f32 %v2292, %v2293
        %v2295 = vrot.slane %v2294, 1
        %v2296 = vadd.f32 %v2294, %v2295
        %v2297 = vrot.slane %v1734, 4
        %v2298 = vadd.f32 %v1734, %v2297
        %v2299 = vrot.slane %v2298, 2
        %v2300 = vadd.f32 %v2298, %v2299
        %v2301 = vrot.slane %v2300, 1
        %v2302 = vadd.f32 %v2300, %v2301
        %v2303 = vrot.slane %v1735, 4
        %v2304 = vadd.f32 %v1735, %v2303
        %v2305 = vrot.slane %v2304, 2
        %v2306 = vadd.f32 %v2304, %v2305
        %v2307 = vrot.slane %v2306, 1
        %v2308 = vadd.f32 %v2306, %v2307
        %v2309 = vrot.slane %v1736, 4
        %v2310 = vadd.f32 %v1736, %v2309
        %v2311 = vrot.slane %v2310, 2
        %v2312 = vadd.f32 %v2310, %v2311
        %v2313 = vrot.slane %v2312, 1
        %v2314 = vadd.f32 %v2312, %v2313
        %v2315 = vrot.slane %v1737, 4
        %v2316 = vadd.f32 %v1737, %v2315
        %v2317 = vrot.slane %v2316, 2
        %v2318 = vadd.f32 %v2316, %v2317
        %v2319 = vrot.slane %v2318, 1
        %v2320 = vadd.f32 %v2318, %v2319
        %v2321 = vrot.slane %v1738, 4
        %v2322 = vadd.f32 %v1738, %v2321
        %v2323 = vrot.slane %v2322, 2
        %v2324 = vadd.f32 %v2322, %v2323
        %v2325 = vrot.slane %v2324, 1
        %v2326 = vadd.f32 %v2324, %v2325
        %v2327 = vrot.slane %v1739, 4
        %v2328 = vadd.f32 %v1739, %v2327
        %v2329 = vrot.slane %v2328, 2
        %v2330 = vadd.f32 %v2328, %v2329
        %v2331 = vrot.slane %v2330, 1
        %v2332 = vadd.f32 %v2330, %v2331
        %v2333 = vrot.slane %v1740, 4
        %v2334 = vadd.f32 %v1740, %v2333
        %v2335 = vrot.slane %v2334, 2
        %v2336 = vadd.f32 %v2334, %v2335
        %v2337 = vrot.slane %v2336, 1
        %v2338 = vadd.f32 %v2336, %v2337
        %v2339 = vrot.slane %v1741, 4
        %v2340 = vadd.f32 %v1741, %v2339
        %v2341 = vrot.slane %v2340, 2
        %v2342 = vadd.f32 %v2340, %v2341
        %v2343 = vrot.slane %v2342, 1
        %v2344 = vadd.f32 %v2342, %v2343
        %v2345 = vrot.slane %v1742, 4
        %v2346 = vadd.f32 %v1742, %v2345
        %v2347 = vrot.slane %v2346, 2
        %v2348 = vadd.f32 %v2346, %v2347
        %v2349 = vrot.slane %v2348, 1
        %v2350 = vadd.f32 %v2348, %v2349
        %v2351 = vrot.slane %v1743, 4
        %v2352 = vadd.f32 %v1743, %v2351
        %v2353 = vrot.slane %v2352, 2
        %v2354 = vadd.f32 %v2352, %v2353
        %v2355 = vrot.slane %v2354, 1
        %v2356 = vadd.f32 %v2354, %v2355
        %v2357 = vrot.slane %v1744, 4
        %v2358 = vadd.f32 %v1744, %v2357
        %v2359 = vrot.slane %v2358, 2
        %v2360 = vadd.f32 %v2358, %v2359
        %v2361 = vrot.slane %v2360, 1
        %v2362 = vadd.f32 %v2360, %v2361
        %v2363 = vrot.slane %v1745, 4
        %v2364 = vadd.f32 %v1745, %v2363
        %v2365 = vrot.slane %v2364, 2
        %v2366 = vadd.f32 %v2364, %v2365
        %v2367 = vrot.slane %v2366, 1
        %v2368 = vadd.f32 %v2366, %v2367
        %v2369 = vrot.slane %v1746, 4
        %v2370 = vadd.f32 %v1746, %v2369
        %v2371 = vrot.slane %v2370, 2
        %v2372 = vadd.f32 %v2370, %v2371
        %v2373 = vrot.slane %v2372, 1
        %v2374 = vadd.f32 %v2372, %v2373
        %v2375 = vrot.slane %v1747, 4
        %v2376 = vadd.f32 %v1747, %v2375
        %v2377 = vrot.slane %v2376, 2
        %v2378 = vadd.f32 %v2376, %v2377
        %v2379 = vrot.slane %v2378, 1
        %v2380 = vadd.f32 %v2378, %v2379
        %v2381 = vrot.slane %v1748, 4
        %v2382 = vadd.f32 %v1748, %v2381
        %v2383 = vrot.slane %v2382, 2
        %v2384 = vadd.f32 %v2382, %v2383
        %v2385 = vrot.slane %v2384, 1
        %v2386 = vadd.f32 %v2384, %v2385
        %v2387 = vrot.slane %v1749, 4
        %v2388 = vadd.f32 %v1749, %v2387
        %v2389 = vrot.slane %v2388, 2
        %v2390 = vadd.f32 %v2388, %v2389
        %v2391 = vrot.slane %v2390, 1
        %v2392 = vadd.f32 %v2390, %v2391
        %v2393 = vrot.slane %v1750, 4
        %v2394 = vadd.f32 %v1750, %v2393
        %v2395 = vrot.slane %v2394, 2
        %v2396 = vadd.f32 %v2394, %v2395
        %v2397 = vrot.slane %v2396, 1
        %v2398 = vadd.f32 %v2396, %v2397
        %v2399 = vrot.slane %v1751, 4
        %v2400 = vadd.f32 %v1751, %v2399
        %v2401 = vrot.slane %v2400, 2
        %v2402 = vadd.f32 %v2400, %v2401
        %v2403 = vrot.slane %v2402, 1
        %v2404 = vadd.f32 %v2402, %v2403
        %v2405 = vrot.slane %v1752, 4
        %v2406 = vadd.f32 %v1752, %v2405
        %v2407 = vrot.slane %v2406, 2
        %v2408 = vadd.f32 %v2406, %v2407
        %v2409 = vrot.slane %v2408, 1
        %v2410 = vadd.f32 %v2408, %v2409
        %v2411 = vrot.slane %v1753, 4
        %v2412 = vadd.f32 %v1753, %v2411
        %v2413 = vrot.slane %v2412, 2
        %v2414 = vadd.f32 %v2412, %v2413
        %v2415 = vrot.slane %v2414, 1
        %v2416 = vadd.f32 %v2414, %v2415
        %v2417 = vrot.slane %v1754, 4
        %v2418 = vadd.f32 %v1754, %v2417
        %v2419 = vrot.slane %v2418, 2
        %v2420 = vadd.f32 %v2418, %v2419
        %v2421 = vrot.slane %v2420, 1
        %v2422 = vadd.f32 %v2420, %v2421
        %v2423 = vrot.slane %v1755, 4
        %v2424 = vadd.f32 %v1755, %v2423
        %v2425 = vrot.slane %v2424, 2
        %v2426 = vadd.f32 %v2424, %v2425
        %v2427 = vrot.slane %v2426, 1
        %v2428 = vadd.f32 %v2426, %v2427
        %v2429 = vrot.slane %v1756, 4
        %v2430 = vadd.f32 %v1756, %v2429
        %v2431 = vrot.slane %v2430, 2
        %v2432 = vadd.f32 %v2430, %v2431
        %v2433 = vrot.slane %v2432, 1
        %v2434 = vadd.f32 %v2432, %v2433
        %v2435 = vrot.slane %v1757, 4
        %v2436 = vadd.f32 %v1757, %v2435
        %v2437 = vrot.slane %v2436, 2
        %v2438 = vadd.f32 %v2436, %v2437
        %v2439 = vrot.slane %v2438, 1
        %v2440 = vadd.f32 %v2438, %v2439
        %v2441 = vrot.slane %v1758, 4
        %v2442 = vadd.f32 %v1758, %v2441
        %v2443 = vrot.slane %v2442, 2
        %v2444 = vadd.f32 %v2442, %v2443
        %v2445 = vrot.slane %v2444, 1
        %v2446 = vadd.f32 %v2444, %v2445
        %v2447 = vrot.slane %v1759, 4
        %v2448 = vadd.f32 %v1759, %v2447
        %v2449 = vrot.slane %v2448, 2
        %v2450 = vadd.f32 %v2448, %v2449
        %v2451 = vrot.slane %v2450, 1
        %v2452 = vadd.f32 %v2450, %v2451
        %v2453 = vrot.slane %v1760, 4
        %v2454 = vadd.f32 %v1760, %v2453
        %v2455 = vrot.slane %v2454, 2
        %v2456 = vadd.f32 %v2454, %v2455
        %v2457 = vrot.slane %v2456, 1
        %v2458 = vadd.f32 %v2456, %v2457
        %v2459 = vrot.slane %v1761, 4
        %v2460 = vadd.f32 %v1761, %v2459
        %v2461 = vrot.slane %v2460, 2
        %v2462 = vadd.f32 %v2460, %v2461
        %v2463 = vrot.slane %v2462, 1
        %v2464 = vadd.f32 %v2462, %v2463
        %v2465 = vrot.slane %v1762, 4
        %v2466 = vadd.f32 %v1762, %v2465
        %v2467 = vrot.slane %v2466, 2
        %v2468 = vadd.f32 %v2466, %v2467
        %v2469 = vrot.slane %v2468, 1
        %v2470 = vadd.f32 %v2468, %v2469
        %v2471 = vrot.slane %v1763, 4
        %v2472 = vadd.f32 %v1763, %v2471
        %v2473 = vrot.slane %v2472, 2
        %v2474 = vadd.f32 %v2472, %v2473
        %v2475 = vrot.slane %v2474, 1
        %v2476 = vadd.f32 %v2474, %v2475
        %v2477 = vrot.slane %v1764, 4
        %v2478 = vadd.f32 %v1764, %v2477
        %v2479 = vrot.slane %v2478, 2
        %v2480 = vadd.f32 %v2478, %v2479
        %v2481 = vrot.slane %v2480, 1
        %v2482 = vadd.f32 %v2480, %v2481
        %v2483 = vrot.slane %v1765, 4
        %v2484 = vadd.f32 %v1765, %v2483
        %v2485 = vrot.slane %v2484, 2
        %v2486 = vadd.f32 %v2484, %v2485
        %v2487 = vrot.slane %v2486, 1
        %v2488 = vadd.f32 %v2486, %v2487
        %v2489 = vrot.slane %v1766, 4
        %v2490 = vadd.f32 %v1766, %v2489
        %v2491 = vrot.slane %v2490, 2
        %v2492 = vadd.f32 %v2490, %v2491
        %v2493 = vrot.slane %v2492, 1
        %v2494 = vadd.f32 %v2492, %v2493
        %v2495 = vrot.slane %v1767, 4
        %v2496 = vadd.f32 %v1767, %v2495
        %v2497 = vrot.slane %v2496, 2
        %v2498 = vadd.f32 %v2496, %v2497
        %v2499 = vrot.slane %v2498, 1
        %v2500 = vadd.f32 %v2498, %v2499
        %v2501 = vrot.slane %v1768, 4
        %v2502 = vadd.f32 %v1768, %v2501
        %v2503 = vrot.slane %v2502, 2
        %v2504 = vadd.f32 %v2502, %v2503
        %v2505 = vrot.slane %v2504, 1
        %v2506 = vadd.f32 %v2504, %v2505
        %v2507 = vrot.slane %v1769, 4
        %v2508 = vadd.f32 %v1769, %v2507
        %v2509 = vrot.slane %v2508, 2
        %v2510 = vadd.f32 %v2508, %v2509
        %v2511 = vrot.slane %v2510, 1
        %v2512 = vadd.f32 %v2510, %v2511
        %v2513 = vrot.slane %v1770, 4
        %v2514 = vadd.f32 %v1770, %v2513
        %v2515 = vrot.slane %v2514, 2
        %v2516 = vadd.f32 %v2514, %v2515
        %v2517 = vrot.slane %v2516, 1
        %v2518 = vadd.f32 %v2516, %v2517
        %v2519 = vrot.slane %v1771, 4
        %v2520 = vadd.f32 %v1771, %v2519
        %v2521 = vrot.slane %v2520, 2
        %v2522 = vadd.f32 %v2520, %v2521
        %v2523 = vrot.slane %v2522, 1
        %v2524 = vadd.f32 %v2522, %v2523
        %v2525 = vrot.slane %v1772, 4
        %v2526 = vadd.f32 %v1772, %v2525
        %v2527 = vrot.slane %v2526, 2
        %v2528 = vadd.f32 %v2526, %v2527
        %v2529 = vrot.slane %v2528, 1
        %v2530 = vadd.f32 %v2528, %v2529
        %v2531 = vrot.slane %v1773, 4
        %v2532 = vadd.f32 %v1773, %v2531
        %v2533 = vrot.slane %v2532, 2
        %v2534 = vadd.f32 %v2532, %v2533
        %v2535 = vrot.slane %v2534, 1
        %v2536 = vadd.f32 %v2534, %v2535
        %v2537 = vrot.slane %v1774, 4
        %v2538 = vadd.f32 %v1774, %v2537
        %v2539 = vrot.slane %v2538, 2
        %v2540 = vadd.f32 %v2538, %v2539
        %v2541 = vrot.slane %v2540, 1
        %v2542 = vadd.f32 %v2540, %v2541
        %v2543 = vpack.c.bf16 %v1780, %v1780
        %v2544 = vpack.c.bf16 %v1786, %v1786
        %v2545 = vpack.c.bf16 %v1792, %v1792
        %v2546 = vpack.c.bf16 %v1798, %v1798
        %v2547 = vpack.c.bf16 %v1804, %v1804
        %v2548 = vpack.c.bf16 %v1810, %v1810
        %v2549 = vpack.c.bf16 %v1816, %v1816
        %v2550 = vpack.c.bf16 %v1822, %v1822
        %v2551 = vpack.c.bf16 %v1828, %v1828
        %v2552 = vpack.c.bf16 %v1834, %v1834
        %v2553 = vpack.c.bf16 %v1840, %v1840
        %v2554 = vpack.c.bf16 %v1846, %v1846
        %v2555 = vpack.c.bf16 %v1852, %v1852
        %v2556 = vpack.c.bf16 %v1858, %v1858
        %v2557 = vpack.c.bf16 %v1864, %v1864
        %v2558 = vpack.c.bf16 %v1870, %v1870
        %v2559 = vpack.c.bf16 %v1876, %v1876
        %v2560 = vpack.c.bf16 %v1882, %v1882
        %v2561 = vpack.c.bf16 %v1888, %v1888
        %v2562 = vpack.c.bf16 %v1894, %v1894
        %v2563 = vpack.c.bf16 %v1900, %v1900
        %v2564 = vpack.c.bf16 %v1906, %v1906
        %v2565 = vpack.c.bf16 %v1912, %v1912
        %v2566 = vpack.c.bf16 %v1918, %v1918
        %v2567 = vpack.c.bf16 %v1924, %v1924
        %v2568 = vpack.c.bf16 %v1930, %v1930
        %v2569 = vpack.c.bf16 %v1936, %v1936
        %v2570 = vpack.c.bf16 %v1942, %v1942
        %v2571 = vpack.c.bf16 %v1948, %v1948
        %v2572 = vpack.c.bf16 %v1954, %v1954
        %v2573 = vpack.c.bf16 %v1960, %v1960
        %v2574 = vpack.c.bf16 %v1966, %v1966
        %v2575 = vpack.c.bf16 %v1972, %v1972
        %v2576 = vpack.c.bf16 %v1978, %v1978
        %v2577 = vpack.c.bf16 %v1984, %v1984
        %v2578 = vpack.c.bf16 %v1990, %v1990
        %v2579 = vpack.c.bf16 %v1996, %v1996
        %v2580 = vpack.c.bf16 %v2002, %v2002
        %v2581 = vpack.c.bf16 %v2008, %v2008
        %v2582 = vpack.c.bf16 %v2014, %v2014
        %v2583 = vpack.c.bf16 %v2020, %v2020
        %v2584 = vpack.c.bf16 %v2026, %v2026
        %v2585 = vpack.c.bf16 %v2032, %v2032
        %v2586 = vpack.c.bf16 %v2038, %v2038
        %v2587 = vpack.c.bf16 %v2044, %v2044
        %v2588 = vpack.c.bf16 %v2050, %v2050
        %v2589 = vpack.c.bf16 %v2056, %v2056
        %v2590 = vpack.c.bf16 %v2062, %v2062
        %v2591 = vpack.c.bf16 %v2068, %v2068
        %v2592 = vpack.c.bf16 %v2074, %v2074
        %v2593 = vpack.c.bf16 %v2080, %v2080
        %v2594 = vpack.c.bf16 %v2086, %v2086
        %v2595 = vpack.c.bf16 %v2092, %v2092
        %v2596 = vpack.c.bf16 %v2098, %v2098
        %v2597 = vpack.c.bf16 %v2104, %v2104
        %v2598 = vpack.c.bf16 %v2110, %v2110
        %v2599 = vpack.c.bf16 %v2116, %v2116
        %v2600 = vpack.c.bf16 %v2122, %v2122
        %v2601 = vpack.c.bf16 %v2128, %v2128
        %v2602 = vpack.c.bf16 %v2134, %v2134
        %v2603 = vpack.c.bf16 %v2140, %v2140
        %v2604 = vpack.c.bf16 %v2146, %v2146
        %v2605 = vpack.c.bf16 %v2152, %v2152
        %v2606 = vpack.c.bf16 %v2158, %v2158
        %v2607 = vpack.c.bf16 %v2164, %v2164
        %v2608 = vpack.c.bf16 %v2170, %v2170
        %v2609 = vpack.c.bf16 %v2176, %v2176
        %v2610 = vpack.c.bf16 %v2182, %v2182
        %v2611 = vpack.c.bf16 %v2188, %v2188
        %v2612 = vpack.c.bf16 %v2194, %v2194
        %v2613 = vpack.c.bf16 %v2200, %v2200
        %v2614 = vpack.c.bf16 %v2206, %v2206
        %v2615 = vpack.c.bf16 %v2212, %v2212
        %v2616 = vpack.c.bf16 %v2218, %v2218
        %v2617 = vpack.c.bf16 %v2224, %v2224
        %v2618 = vpack.c.bf16 %v2230, %v2230
        %v2619 = vpack.c.bf16 %v2236, %v2236
        %v2620 = vpack.c.bf16 %v2242, %v2242
        %v2621 = vpack.c.bf16 %v2248, %v2248
        %v2622 = vpack.c.bf16 %v2254, %v2254
        %v2623 = vpack.c.bf16 %v2260, %v2260
        %v2624 = vpack.c.bf16 %v2266, %v2266
        %v2625 = vpack.c.bf16 %v2272, %v2272
        %v2626 = vpack.c.bf16 %v2278, %v2278
        %v2627 = vpack.c.bf16 %v2284, %v2284
        %v2628 = vpack.c.bf16 %v2290, %v2290
        %v2629 = vpack.c.bf16 %v2296, %v2296
        %v2630 = vpack.c.bf16 %v2302, %v2302
        %v2631 = vpack.c.bf16 %v2308, %v2308
        %v2632 = vpack.c.bf16 %v2314, %v2314
        %v2633 = vpack.c.bf16 %v2320, %v2320
        %v2634 = vpack.c.bf16 %v2326, %v2326
        %v2635 = vpack.c.bf16 %v2332, %v2332
        %v2636 = vpack.c.bf16 %v2338, %v2338
        %v2637 = vpack.c.bf16 %v2344, %v2344
        %v2638 = vpack.c.bf16 %v2350, %v2350
        %v2639 = vpack.c.bf16 %v2356, %v2356
        %v2640 = vpack.c.bf16 %v2362, %v2362
        %v2641 = vpack.c.bf16 %v2368, %v2368
        %v2642 = vpack.c.bf16 %v2374, %v2374
        %v2643 = vpack.c.bf16 %v2380, %v2380
        %v2644 = vpack.c.bf16 %v2386, %v2386
        %v2645 = vpack.c.bf16 %v2392, %v2392
        %v2646 = vpack.c.bf16 %v2398, %v2398
        %v2647 = vpack.c.bf16 %v2404, %v2404
        %v2648 = vpack.c.bf16 %v2410, %v2410
        %v2649 = vpack.c.bf16 %v2416, %v2416
        %v2650 = vpack.c.bf16 %v2422, %v2422
        %v2651 = vpack.c.bf16 %v2428, %v2428
        %v2652 = vpack.c.bf16 %v2434, %v2434
        %v2653 = vpack.c.bf16 %v2440, %v2440
        %v2654 = vpack.c.bf16 %v2446, %v2446
        %v2655 = vpack.c.bf16 %v2452, %v2452
        %v2656 = vpack.c.bf16 %v2458, %v2458
        %v2657 = vpack.c.bf16 %v2464, %v2464
        %v2658 = vpack.c.bf16 %v2470, %v2470
        %v2659 = vpack.c.bf16 %v2476, %v2476
        %v2660 = vpack.c.bf16 %v2482, %v2482
        %v2661 = vpack.c.bf16 %v2488, %v2488
        %v2662 = vpack.c.bf16 %v2494, %v2494
        %v2663 = vpack.c.bf16 %v2500, %v2500
        %v2664 = vpack.c.bf16 %v2506, %v2506
        %v2665 = vpack.c.bf16 %v2512, %v2512
        %v2666 = vpack.c.bf16 %v2518, %v2518
        %v2667 = vpack.c.bf16 %v2524, %v2524
        %v2668 = vpack.c.bf16 %v2530, %v2530
        %v2669 = vpack.c.bf16 %v2536, %v2536
        %v2670 = vpack.c.bf16 %v2542, %v2542
        %v2799 = vunpack.c.l.b16 %v2543
        %v2800 = vunpack.c.l.b16 %v2544
        %v2801 = vunpack.c.l.b16 %v2545
        %v2802 = vunpack.c.l.b16 %v2546
        %v2803 = vunpack.c.l.b16 %v2547
        %v2804 = vunpack.c.l.b16 %v2548
        %v2805 = vunpack.c.l.b16 %v2549
        %v2806 = vunpack.c.l.b16 %v2550
        %v2807 = vunpack.c.l.b16 %v2551
        %v2808 = vunpack.c.l.b16 %v2552
        %v2809 = vunpack.c.l.b16 %v2553
        %v2810 = vunpack.c.l.b16 %v2554
        %v2811 = vunpack.c.l.b16 %v2555
        %v2812 = vunpack.c.l.b16 %v2556
        %v2813 = vunpack.c.l.b16 %v2557
        %v2814 = vunpack.c.l.b16 %v2558
        %v2815 = vunpack.c.l.b16 %v2559
        %v2816 = vunpack.c.l.b16 %v2560
        %v2817 = vunpack.c.l.b16 %v2561
        %v2818 = vunpack.c.l.b16 %v2562
        %v2819 = vunpack.c.l.b16 %v2563
        %v2820 = vunpack.c.l.b16 %v2564
        %v2821 = vunpack.c.l.b16 %v2565
        %v2822 = vunpack.c.l.b16 %v2566
        %v2823 = vunpack.c.l.b16 %v2567
        %v2824 = vunpack.c.l.b16 %v2568
        %v2825 = vunpack.c.l.b16 %v2569
        %v2826 = vunpack.c.l.b16 %v2570
        %v2827 = vunpack.c.l.b16 %v2571
        %v2828 = vunpack.c.l.b16 %v2572
        %v2829 = vunpack.c.l.b16 %v2573
        %v2830 = vunpack.c.l.b16 %v2574
        %v2831 = vunpack.c.l.b16 %v2575
        %v2832 = vunpack.c.l.b16 %v2576
        %v2833 = vunpack.c.l.b16 %v2577
        %v2834 = vunpack.c.l.b16 %v2578
        %v2835 = vunpack.c.l.b16 %v2579
        %v2836 = vunpack.c.l.b16 %v2580
        %v2837 = vunpack.c.l.b16 %v2581
        %v2838 = vunpack.c.l.b16 %v2582
        %v2839 = vunpack.c.l.b16 %v2583
        %v2840 = vunpack.c.l.b16 %v2584
        %v2841 = vunpack.c.l.b16 %v2585
        %v2842 = vunpack.c.l.b16 %v2586
        %v2843 = vunpack.c.l.b16 %v2587
        %v2844 = vunpack.c.l.b16 %v2588
        %v2845 = vunpack.c.l.b16 %v2589
        %v2846 = vunpack.c.l.b16 %v2590
        %v2847 = vunpack.c.l.b16 %v2591
        %v2848 = vunpack.c.l.b16 %v2592
        %v2849 = vunpack.c.l.b16 %v2593
        %v2850 = vunpack.c.l.b16 %v2594
        %v2851 = vunpack.c.l.b16 %v2595
        %v2852 = vunpack.c.l.b16 %v2596
        %v2853 = vunpack.c.l.b16 %v2597
        %v2854 = vunpack.c.l.b16 %v2598
        %v2855 = vunpack.c.l.b16 %v2599
        %v2856 = vunpack.c.l.b16 %v2600
        %v2857 = vunpack.c.l.b16 %v2601
        %v2858 = vunpack.c.l.b16 %v2602
        %v2859 = vunpack.c.l.b16 %v2603
        %v2860 = vunpack.c.l.b16 %v2604
        %v2861 = vunpack.c.l.b16 %v2605
        %v2862 = vunpack.c.l.b16 %v2606
        %v2863 = vunpack.c.l.b16 %v2607
        %v2864 = vunpack.c.l.b16 %v2608
        %v2865 = vunpack.c.l.b16 %v2609
        %v2866 = vunpack.c.l.b16 %v2610
        %v2867 = vunpack.c.l.b16 %v2611
        %v2868 = vunpack.c.l.b16 %v2612
        %v2869 = vunpack.c.l.b16 %v2613
        %v2870 = vunpack.c.l.b16 %v2614
        %v2871 = vunpack.c.l.b16 %v2615
        %v2872 = vunpack.c.l.b16 %v2616
        %v2873 = vunpack.c.l.b16 %v2617
        %v2874 = vunpack.c.l.b16 %v2618
        %v2875 = vunpack.c.l.b16 %v2619
        %v2876 = vunpack.c.l.b16 %v2620
        %v2877 = vunpack.c.l.b16 %v2621
        %v2878 = vunpack.c.l.b16 %v2622
        %v2879 = vunpack.c.l.b16 %v2623
        %v2880 = vunpack.c.l.b16 %v2624
        %v2881 = vunpack.c.l.b16 %v2625
        %v2882 = vunpack.c.l.b16 %v2626
        %v2883 = vunpack.c.l.b16 %v2627
        %v2884 = vunpack.c.l.b16 %v2628
        %v2885 = vunpack.c.l.b16 %v2629
        %v2886 = vunpack.c.l.b16 %v2630
        %v2887 = vunpack.c.l.b16 %v2631
        %v2888 = vunpack.c.l.b16 %v2632
        %v2889 = vunpack.c.l.b16 %v2633
        %v2890 = vunpack.c.l.b16 %v2634
        %v2891 = vunpack.c.l.b16 %v2635
        %v2892 = vunpack.c.l.b16 %v2636
        %v2893 = vunpack.c.l.b16 %v2637
        %v2894 = vunpack.c.l.b16 %v2638
        %v2895 = vunpack.c.l.b16 %v2639
        %v2896 = vunpack.c.l.b16 %v2640
        %v2897 = vunpack.c.l.b16 %v2641
        %v2898 = vunpack.c.l.b16 %v2642
        %v2899 = vunpack.c.l.b16 %v2643
        %v2900 = vunpack.c.l.b16 %v2644
        %v2901 = vunpack.c.l.b16 %v2645
        %v2902 = vunpack.c.l.b16 %v2646
        %v2903 = vunpack.c.l.b16 %v2647
        %v2904 = vunpack.c.l.b16 %v2648
        %v2905 = vunpack.c.l.b16 %v2649
        %v2906 = vunpack.c.l.b16 %v2650
        %v2907 = vunpack.c.l.b16 %v2651
        %v2908 = vunpack.c.l.b16 %v2652
        %v2909 = vunpack.c.l.b16 %v2653
        %v2910 = vunpack.c.l.b16 %v2654
        %v2911 = vunpack.c.l.b16 %v2655
        %v2912 = vunpack.c.l.b16 %v2656
        %v2913 = vunpack.c.l.b16 %v2657
        %v2914 = vunpack.c.l.b16 %v2658
        %v2915 = vunpack.c.l.b16 %v2659
        %v2916 = vunpack.c.l.b16 %v2660
        %v2917 = vunpack.c.l.b16 %v2661
        %v2918 = vunpack.c.l.b16 %v2662
        %v2919 = vunpack.c.l.b16 %v2663
        %v2920 = vunpack.c.l.b16 %v2664
        %v2921 = vunpack.c.l.b16 %v2665
        %v2922 = vunpack.c.l.b16 %v2666
        %v2923 = vunpack.c.l.b16 %v2667
        %v2924 = vunpack.c.l.b16 %v2668
        %v2925 = vunpack.c.l.b16 %v2669
        %v2926 = vunpack.c.l.b16 %v2670
        %vm2927 = vcmask 1041409
        %v2928 = vsel %vm2927, %v2800, %v2799
        %vm2929 = vcmask 1042434
        %v2930 = vsel %vm2929, %v2801, %v2928
        %vm2931 = vcmask 1043459
        %v2932 = vsel %vm2931, %v2802, %v2930
        %vm2933 = vcmask 1044484
        %v2934 = vsel %vm2933, %v2803, %v2932
        %vm2935 = vcmask 1045509
        %v2936 = vsel %vm2935, %v2804, %v2934
        %vm2937 = vcmask 1046534
        %v2938 = vsel %vm2937, %v2805, %v2936
        %vm2939 = vcmask 1047559
        %v2940 = vsel %vm2939, %v2806, %v2938
        %v2941 = vsel %vm2927, %v2808, %v2807
        %v2942 = vsel %vm2929, %v2809, %v2941
        %v2943 = vsel %vm2931, %v2810, %v2942
        %v2944 = vsel %vm2933, %v2811, %v2943
        %v2945 = vsel %vm2935, %v2812, %v2944
        %v2946 = vsel %vm2937, %v2813, %v2945
        %v2947 = vsel %vm2939, %v2814, %v2946
        %v2948 = vsel %vm2927, %v2816, %v2815
        %v2949 = vsel %vm2929, %v2817, %v2948
        %v2950 = vsel %vm2931, %v2818, %v2949
        %v2951 = vsel %vm2933, %v2819, %v2950
        %v2952 = vsel %vm2935, %v2820, %v2951
        %v2953 = vsel %vm2937, %v2821, %v2952
        %v2954 = vsel %vm2939, %v2822, %v2953
        %v2955 = vsel %vm2927, %v2824, %v2823
        %v2956 = vsel %vm2929, %v2825, %v2955
        %v2957 = vsel %vm2931, %v2826, %v2956
        %v2958 = vsel %vm2933, %v2827, %v2957
        %v2959 = vsel %vm2935, %v2828, %v2958
        %v2960 = vsel %vm2937, %v2829, %v2959
        %v2961 = vsel %vm2939, %v2830, %v2960
        %v2962 = vsel %vm2927, %v2832, %v2831
        %v2963 = vsel %vm2929, %v2833, %v2962
        %v2964 = vsel %vm2931, %v2834, %v2963
        %v2965 = vsel %vm2933, %v2835, %v2964
        %v2966 = vsel %vm2935, %v2836, %v2965
        %v2967 = vsel %vm2937, %v2837, %v2966
        %v2968 = vsel %vm2939, %v2838, %v2967
        %v2969 = vsel %vm2927, %v2840, %v2839
        %v2970 = vsel %vm2929, %v2841, %v2969
        %v2971 = vsel %vm2931, %v2842, %v2970
        %v2972 = vsel %vm2933, %v2843, %v2971
        %v2973 = vsel %vm2935, %v2844, %v2972
        %v2974 = vsel %vm2937, %v2845, %v2973
        %v2975 = vsel %vm2939, %v2846, %v2974
        %v2976 = vsel %vm2927, %v2848, %v2847
        %v2977 = vsel %vm2929, %v2849, %v2976
        %v2978 = vsel %vm2931, %v2850, %v2977
        %v2979 = vsel %vm2933, %v2851, %v2978
        %v2980 = vsel %vm2935, %v2852, %v2979
        %v2981 = vsel %vm2937, %v2853, %v2980
        %v2982 = vsel %vm2939, %v2854, %v2981
        %v2983 = vsel %vm2927, %v2856, %v2855
        %v2984 = vsel %vm2929, %v2857, %v2983
        %v2985 = vsel %vm2931, %v2858, %v2984
        %v2986 = vsel %vm2933, %v2859, %v2985
        %v2987 = vsel %vm2935, %v2860, %v2986
        %v2988 = vsel %vm2937, %v2861, %v2987
        %v2989 = vsel %vm2939, %v2862, %v2988
        %v2990 = vsel %vm2927, %v2864, %v2863
        %v2991 = vsel %vm2929, %v2865, %v2990
        %v2992 = vsel %vm2931, %v2866, %v2991
        %v2993 = vsel %vm2933, %v2867, %v2992
        %v2994 = vsel %vm2935, %v2868, %v2993
        %v2995 = vsel %vm2937, %v2869, %v2994
        %v2996 = vsel %vm2939, %v2870, %v2995
        %v2997 = vsel %vm2927, %v2872, %v2871
        %v2998 = vsel %vm2929, %v2873, %v2997
        %v2999 = vsel %vm2931, %v2874, %v2998
        %v3000 = vsel %vm2933, %v2875, %v2999
        %v3001 = vsel %vm2935, %v2876, %v3000
        %v3002 = vsel %vm2937, %v2877, %v3001
        %v3003 = vsel %vm2939, %v2878, %v3002
        %v3004 = vsel %vm2927, %v2880, %v2879
        %v3005 = vsel %vm2929, %v2881, %v3004
        %v3006 = vsel %vm2931, %v2882, %v3005
        %v3007 = vsel %vm2933, %v2883, %v3006
        %v3008 = vsel %vm2935, %v2884, %v3007
        %v3009 = vsel %vm2937, %v2885, %v3008
        %v3010 = vsel %vm2939, %v2886, %v3009
        %v3011 = vsel %vm2927, %v2888, %v2887
        %v3012 = vsel %vm2929, %v2889, %v3011
        %v3013 = vsel %vm2931, %v2890, %v3012
        %v3014 = vsel %vm2933, %v2891, %v3013
        %v3015 = vsel %vm2935, %v2892, %v3014
        %v3016 = vsel %vm2937, %v2893, %v3015
        %v3017 = vsel %vm2939, %v2894, %v3016
        %v3018 = vsel %vm2927, %v2896, %v2895
        %v3019 = vsel %vm2929, %v2897, %v3018
        %v3020 = vsel %vm2931, %v2898, %v3019
        %v3021 = vsel %vm2933, %v2899, %v3020
        %v3022 = vsel %vm2935, %v2900, %v3021
        %v3023 = vsel %vm2937, %v2901, %v3022
        %v3024 = vsel %vm2939, %v2902, %v3023
        %v3025 = vsel %vm2927, %v2904, %v2903
        %v3026 = vsel %vm2929, %v2905, %v3025
        %v3027 = vsel %vm2931, %v2906, %v3026
        %v3028 = vsel %vm2933, %v2907, %v3027
        %v3029 = vsel %vm2935, %v2908, %v3028
        %v3030 = vsel %vm2937, %v2909, %v3029
        %v3031 = vsel %vm2939, %v2910, %v3030
        %v3032 = vsel %vm2927, %v2912, %v2911
        %v3033 = vsel %vm2929, %v2913, %v3032
        %v3034 = vsel %vm2931, %v2914, %v3033
        %v3035 = vsel %vm2933, %v2915, %v3034
        %v3036 = vsel %vm2935, %v2916, %v3035
        %v3037 = vsel %vm2937, %v2917, %v3036
        %v3038 = vsel %vm2939, %v2918, %v3037
        %v3039 = vsel %vm2927, %v2920, %v2919
        %v3040 = vsel %vm2929, %v2921, %v3039
        %v3041 = vsel %vm2931, %v2922, %v3040
        %v3042 = vsel %vm2933, %v2923, %v3041
        %v3043 = vsel %vm2935, %v2924, %v3042
        %v3044 = vsel %vm2937, %v2925, %v3043
        %v3045 = vsel %vm2939, %v2926, %v3044
        %v3046 = vpack.c.b16 %v2947, %v2940
        %v3047 = vpack.c.b16 %v2961, %v2954
        %v3048 = vpack.c.b16 %v2975, %v2968
        %v3049 = vpack.c.b16 %v2989, %v2982
        %v3050 = vpack.c.b16 %v3003, %v2996
        %v3051 = vpack.c.b16 %v3017, %v3010
        %v3052 = vpack.c.b16 %v3031, %v3024
        %v3053 = vpack.c.b16 %v3045, %v3038
        %v3078 = vunpack.c.l.b16 %v351
        %v3079 = vunpack.c.l.b16 %v352
        %v3080 = vunpack.c.l.b16 %v353
        %v3081 = vunpack.c.l.b16 %v354
        %v3082 = vunpack.c.l.b16 %v355
        %v3083 = vunpack.c.l.b16 %v356
        %v3084 = vunpack.c.l.b16 %v357
        %v3085 = vunpack.c.l.b16 %v358
        %v3086 = vunpack.c.l.b16 %v359
        %v3087 = vunpack.c.l.b16 %v360
        %v3088 = vunpack.c.l.b16 %v361
        %v3089 = vunpack.c.l.b16 %v362
        %v3090 = vunpack.c.l.b16 %v363
        %v3091 = vunpack.c.l.b16 %v364
        %v3092 = vunpack.c.l.b16 %v365
        %v3093 = vunpack.c.l.b16 %v366
        %v3094 = vpack.c.b16 %v3079, %v3078
        %v3095 = vpack.c.b16 %v3081, %v3080
        %v3096 = vpack.c.b16 %v3083, %v3082
        %v3097 = vpack.c.b16 %v3085, %v3084
        %v3098 = vpack.c.b16 %v3087, %v3086
        %v3099 = vpack.c.b16 %v3089, %v3088
        %v3100 = vpack.c.b16 %v3091, %v3090
        %v3101 = vpack.c.b16 %v3093, %v3092
        %3110 = vmatpush.bf16.msra.mxu0 %v3101
        %3111 = vmatpush.bf16.msra.mxu0 %v3100
        %3112 = vmatpush.bf16.msra.mxu0 %v3099
        %3113 = vmatpush.bf16.msra.mxu0 %v3098
        %3114 = vmatpush.bf16.msra.mxu0 %v3097
        %3115 = vmatpush.bf16.msra.mxu0 %v3096
        %3116 = vmatpush.bf16.msra.mxu0 %v3095
        %3117 = vmatpush.bf16.msra.mxu0 %v3094
        %3118 = vmatmul.bf16.gmra.mxu0 %v3046
        %v3119 = vpop.f32.mrf.mxu0
        %v3120 = vadd.f32 0.0, %v3119
        %v3121 = vpop.f32.mrf.mxu0
        %v3122 = vadd.f32 0.0, %v3121
        %3123 = vmatmul.bf16.gmra.mxu0 %v3047
        %v3124 = vpop.f32.mrf.mxu0
        %v3125 = vadd.f32 0.0, %v3124
        %v3126 = vpop.f32.mrf.mxu0
        %v3127 = vadd.f32 0.0, %v3126
        %3128 = vmatmul.bf16.gmra.mxu0 %v3048
        %v3129 = vpop.f32.mrf.mxu0
        %v3130 = vadd.f32 0.0, %v3129
        %v3131 = vpop.f32.mrf.mxu0
        %v3132 = vadd.f32 0.0, %v3131
        %3133 = vmatmul.bf16.gmra.mxu0 %v3049
        %v3134 = vpop.f32.mrf.mxu0
        %v3135 = vadd.f32 0.0, %v3134
        %v3136 = vpop.f32.mrf.mxu0
        %v3137 = vadd.f32 0.0, %v3136
        %3138 = vmatmul.bf16.gmra.mxu0 %v3050
        %v3139 = vpop.f32.mrf.mxu0
        %v3140 = vadd.f32 0.0, %v3139
        %v3141 = vpop.f32.mrf.mxu0
        %v3142 = vadd.f32 0.0, %v3141
        %3143 = vmatmul.bf16.gmra.mxu0 %v3051
        %v3144 = vpop.f32.mrf.mxu0
        %v3145 = vadd.f32 0.0, %v3144
        %v3146 = vpop.f32.mrf.mxu0
        %v3147 = vadd.f32 0.0, %v3146
        %3148 = vmatmul.bf16.gmra.mxu0 %v3052
        %v3149 = vpop.f32.mrf.mxu0
        %v3150 = vadd.f32 0.0, %v3149
        %v3151 = vpop.f32.mrf.mxu0
        %v3152 = vadd.f32 0.0, %v3151
        %3153 = vmatmul.bf16.gmra.mxu0 %v3053
        %v3154 = vpop.f32.mrf.mxu0
        %v3155 = vadd.f32 0.0, %v3154
        %v3156 = vpop.f32.mrf.mxu0
        %v3157 = vadd.f32 0.0, %v3156
        %3158 = vdwg.mxu0
        %vm3159 = vcmp.gt.s32.totalorder %v367, 1
        %v3160 = vsel %vm3159, %v367, 1
        %vm3161 = vcmp.gt.s32.totalorder %v368, 1
        %v3162 = vsel %vm3161, %v368, 1
        %vm3163 = vcmp.gt.s32.totalorder %v369, 1
        %v3164 = vsel %vm3163, %v369, 1
        %vm3165 = vcmp.gt.s32.totalorder %v370, 1
        %v3166 = vsel %vm3165, %v370, 1
        %vm3167 = vcmp.gt.s32.totalorder %v371, 1
        %v3168 = vsel %vm3167, %v371, 1
        %vm3169 = vcmp.gt.s32.totalorder %v372, 1
        %v3170 = vsel %vm3169, %v372, 1
        %vm3171 = vcmp.gt.s32.totalorder %v373, 1
        %v3172 = vsel %vm3171, %v373, 1
        %vm3173 = vcmp.gt.s32.totalorder %v374, 1
        %v3174 = vsel %vm3173, %v374, 1
        %vm3175 = vcmp.gt.s32.totalorder %v375, 1
        %v3176 = vsel %vm3175, %v375, 1
        %vm3177 = vcmp.gt.s32.totalorder %v376, 1
        %v3178 = vsel %vm3177, %v376, 1
        %vm3179 = vcmp.gt.s32.totalorder %v377, 1
        %v3180 = vsel %vm3179, %v377, 1
        %vm3181 = vcmp.gt.s32.totalorder %v378, 1
        %v3182 = vsel %vm3181, %v378, 1
        %vm3183 = vcmp.gt.s32.totalorder %v379, 1
        %v3184 = vsel %vm3183, %v379, 1
        %vm3185 = vcmp.gt.s32.totalorder %v380, 1
        %v3186 = vsel %vm3185, %v380, 1
        %vm3187 = vcmp.gt.s32.totalorder %v381, 1
        %v3188 = vsel %vm3187, %v381, 1
        %vm3189 = vcmp.gt.s32.totalorder %v382, 1
        %v3190 = vsel %vm3189, %v382, 1
        %v3191 = vcvt.s32.f32 %v3160
        %v3192 = vcvt.s32.f32 %v3162
        %v3193 = vcvt.s32.f32 %v3164
        %v3194 = vcvt.s32.f32 %v3166
        %v3195 = vcvt.s32.f32 %v3168
        %v3196 = vcvt.s32.f32 %v3170
        %v3197 = vcvt.s32.f32 %v3172
        %v3198 = vcvt.s32.f32 %v3174
        %v3199 = vcvt.s32.f32 %v3176
        %v3200 = vcvt.s32.f32 %v3178
        %v3201 = vcvt.s32.f32 %v3180
        %v3202 = vcvt.s32.f32 %v3182
        %v3203 = vcvt.s32.f32 %v3184
        %v3204 = vcvt.s32.f32 %v3186
        %v3205 = vcvt.s32.f32 %v3188
        %v3206 = vcvt.s32.f32 %v3190
        %3208 = vset.pattern.permute.xlu0 0
        %3209 = vperm.xlu0 %3208, %v3191
        %v3210 = vpop.permute.xlu0 %3209
        %3213 = vset.pattern.permute.xlu0 0
        %3214 = vperm.xlu0 %3213, %v3192
        %v3215 = vpop.permute.xlu0 %3214
        %3218 = vset.pattern.permute.xlu0 0
        %3219 = vperm.xlu0 %3218, %v3193
        %v3220 = vpop.permute.xlu0 %3219
        %3223 = vset.pattern.permute.xlu0 0
        %3224 = vperm.xlu0 %3223, %v3194
        %v3225 = vpop.permute.xlu0 %3224
        %3228 = vset.pattern.permute.xlu0 0
        %3229 = vperm.xlu0 %3228, %v3195
        %v3230 = vpop.permute.xlu0 %3229
        %3233 = vset.pattern.permute.xlu0 0
        %3234 = vperm.xlu0 %3233, %v3196
        %v3235 = vpop.permute.xlu0 %3234
        %3238 = vset.pattern.permute.xlu0 0
        %3239 = vperm.xlu0 %3238, %v3197
        %v3240 = vpop.permute.xlu0 %3239
        %3243 = vset.pattern.permute.xlu0 0
        %3244 = vperm.xlu0 %3243, %v3198
        %v3245 = vpop.permute.xlu0 %3244
        %3248 = vset.pattern.permute.xlu0 0
        %3249 = vperm.xlu0 %3248, %v3199
        %v3250 = vpop.permute.xlu0 %3249
        %3253 = vset.pattern.permute.xlu0 0
        %3254 = vperm.xlu0 %3253, %v3200
        %v3255 = vpop.permute.xlu0 %3254
        %3258 = vset.pattern.permute.xlu0 0
        %3259 = vperm.xlu0 %3258, %v3201
        %v3260 = vpop.permute.xlu0 %3259
        %3263 = vset.pattern.permute.xlu0 0
        %3264 = vperm.xlu0 %3263, %v3202
        %v3265 = vpop.permute.xlu0 %3264
        %3268 = vset.pattern.permute.xlu0 0
        %3269 = vperm.xlu0 %3268, %v3203
        %v3270 = vpop.permute.xlu0 %3269
        %3273 = vset.pattern.permute.xlu0 0
        %3274 = vperm.xlu0 %3273, %v3204
        %v3275 = vpop.permute.xlu0 %3274
        %3278 = vset.pattern.permute.xlu0 0
        %3279 = vperm.xlu0 %3278, %v3205
        %v3280 = vpop.permute.xlu0 %3279
        %3283 = vset.pattern.permute.xlu0 0
        %3284 = vperm.xlu0 %3283, %v3206
        %v3285 = vpop.permute.xlu0 %3284
        %v3287 = vrcp.pop %v3210
        %v3288 = vmul.f32 %v3210, %v3287
        %v3289 = vsub.f32 1.0, %v3288
        %v3290 = vmul.f32 %v3287, %v3289
        %v3291 = vadd.f32 %v3287, %v3290
        %vm3292 = vweird.f32 %v3210
        %vm3293 = vweird.f32 %v3287
        %vm3294 = vmor %vm3292, %vm3293
        %v3295 = vsel %vm3294, %v3287, %v3291
        %v3296 = vand.u32 2147483647, %v3210
        %vm3297 = vcmp.eq.f32.partialorder %v3296, 8.507059e+37
        %v3298 = vand.u32 %v3210, 2147483648
        %v3299 = vor.u32 1.1754944e-38, %v3298
        %v3300 = vsel %vm3297, %v3299, %v3295
        %v3301 = vmul.f32 %v3120, %v3300
        %v3302 = vrcp.pop %v3215
        %v3303 = vmul.f32 %v3215, %v3302
        %v3304 = vsub.f32 1.0, %v3303
        %v3305 = vmul.f32 %v3302, %v3304
        %v3306 = vadd.f32 %v3302, %v3305
        %vm3307 = vweird.f32 %v3215
        %vm3308 = vweird.f32 %v3302
        %vm3309 = vmor %vm3307, %vm3308
        %v3310 = vsel %vm3309, %v3302, %v3306
        %v3311 = vand.u32 2147483647, %v3215
        %vm3312 = vcmp.eq.f32.partialorder %v3311, 8.507059e+37
        %v3313 = vand.u32 %v3215, 2147483648
        %v3314 = vor.u32 1.1754944e-38, %v3313
        %v3315 = vsel %vm3312, %v3314, %v3310
        %v3316 = vmul.f32 %v3122, %v3315
        %v3317 = vrcp.pop %v3220
        %v3318 = vmul.f32 %v3220, %v3317
        %v3319 = vsub.f32 1.0, %v3318
        %v3320 = vmul.f32 %v3317, %v3319
        %v3321 = vadd.f32 %v3317, %v3320
        %vm3322 = vweird.f32 %v3220
        %vm3323 = vweird.f32 %v3317
        %vm3324 = vmor %vm3322, %vm3323
        %v3325 = vsel %vm3324, %v3317, %v3321
        %v3326 = vand.u32 2147483647, %v3220
        %vm3327 = vcmp.eq.f32.partialorder %v3326, 8.507059e+37
        %v3328 = vand.u32 %v3220, 2147483648
        %v3329 = vor.u32 1.1754944e-38, %v3328
        %v3330 = vsel %vm3327, %v3329, %v3325
        %v3331 = vmul.f32 %v3125, %v3330
        %v3332 = vrcp.pop %v3225
        %v3333 = vmul.f32 %v3225, %v3332
        %v3334 = vsub.f32 1.0, %v3333
        %v3335 = vmul.f32 %v3332, %v3334
        %v3336 = vadd.f32 %v3332, %v3335
        %vm3337 = vweird.f32 %v3225
        %vm3338 = vweird.f32 %v3332
        %vm3339 = vmor %vm3337, %vm3338
        %v3340 = vsel %vm3339, %v3332, %v3336
        %v3341 = vand.u32 2147483647, %v3225
        %vm3342 = vcmp.eq.f32.partialorder %v3341, 8.507059e+37
        %v3343 = vand.u32 %v3225, 2147483648
        %v3344 = vor.u32 1.1754944e-38, %v3343
        %v3345 = vsel %vm3342, %v3344, %v3340
        %v3346 = vmul.f32 %v3127, %v3345
        %v3347 = vrcp.pop %v3230
        %v3348 = vmul.f32 %v3230, %v3347
        %v3349 = vsub.f32 1.0, %v3348
        %v3350 = vmul.f32 %v3347, %v3349
        %v3351 = vadd.f32 %v3347, %v3350
        %vm3352 = vweird.f32 %v3230
        %vm3353 = vweird.f32 %v3347
        %vm3354 = vmor %vm3352, %vm3353
        %v3355 = vsel %vm3354, %v3347, %v3351
        %v3356 = vand.u32 2147483647, %v3230
        %vm3357 = vcmp.eq.f32.partialorder %v3356, 8.507059e+37
        %v3358 = vand.u32 %v3230, 2147483648
        %v3359 = vor.u32 1.1754944e-38, %v3358
        %v3360 = vsel %vm3357, %v3359, %v3355
        %v3361 = vmul.f32 %v3130, %v3360
        %v3362 = vrcp.pop %v3235
        %v3363 = vmul.f32 %v3235, %v3362
        %v3364 = vsub.f32 1.0, %v3363
        %v3365 = vmul.f32 %v3362, %v3364
        %v3366 = vadd.f32 %v3362, %v3365
        %vm3367 = vweird.f32 %v3235
        %vm3368 = vweird.f32 %v3362
        %vm3369 = vmor %vm3367, %vm3368
        %v3370 = vsel %vm3369, %v3362, %v3366
        %v3371 = vand.u32 2147483647, %v3235
        %vm3372 = vcmp.eq.f32.partialorder %v3371, 8.507059e+37
        %v3373 = vand.u32 %v3235, 2147483648
        %v3374 = vor.u32 1.1754944e-38, %v3373
        %v3375 = vsel %vm3372, %v3374, %v3370
        %v3376 = vmul.f32 %v3132, %v3375
        %v3377 = vrcp.pop %v3240
        %v3378 = vmul.f32 %v3240, %v3377
        %v3379 = vsub.f32 1.0, %v3378
        %v3380 = vmul.f32 %v3377, %v3379
        %v3381 = vadd.f32 %v3377, %v3380
        %vm3382 = vweird.f32 %v3240
        %vm3383 = vweird.f32 %v3377
        %vm3384 = vmor %vm3382, %vm3383
        %v3385 = vsel %vm3384, %v3377, %v3381
        %v3386 = vand.u32 2147483647, %v3240
        %vm3387 = vcmp.eq.f32.partialorder %v3386, 8.507059e+37
        %v3388 = vand.u32 %v3240, 2147483648
        %v3389 = vor.u32 1.1754944e-38, %v3388
        %v3390 = vsel %vm3387, %v3389, %v3385
        %v3391 = vmul.f32 %v3135, %v3390
        %v3392 = vrcp.pop %v3245
        %v3393 = vmul.f32 %v3245, %v3392
        %v3394 = vsub.f32 1.0, %v3393
        %v3395 = vmul.f32 %v3392, %v3394
        %v3396 = vadd.f32 %v3392, %v3395
        %vm3397 = vweird.f32 %v3245
        %vm3398 = vweird.f32 %v3392
        %vm3399 = vmor %vm3397, %vm3398
        %v3400 = vsel %vm3399, %v3392, %v3396
        %v3401 = vand.u32 2147483647, %v3245
        %vm3402 = vcmp.eq.f32.partialorder %v3401, 8.507059e+37
        %v3403 = vand.u32 %v3245, 2147483648
        %v3404 = vor.u32 1.1754944e-38, %v3403
        %v3405 = vsel %vm3402, %v3404, %v3400
        %v3406 = vmul.f32 %v3137, %v3405
        %v3407 = vrcp.pop %v3250
        %v3408 = vmul.f32 %v3250, %v3407
        %v3409 = vsub.f32 1.0, %v3408
        %v3410 = vmul.f32 %v3407, %v3409
        %v3411 = vadd.f32 %v3407, %v3410
        %vm3412 = vweird.f32 %v3250
        %vm3413 = vweird.f32 %v3407
        %vm3414 = vmor %vm3412, %vm3413
        %v3415 = vsel %vm3414, %v3407, %v3411
        %v3416 = vand.u32 2147483647, %v3250
        %vm3417 = vcmp.eq.f32.partialorder %v3416, 8.507059e+37
        %v3418 = vand.u32 %v3250, 2147483648
        %v3419 = vor.u32 1.1754944e-38, %v3418
        %v3420 = vsel %vm3417, %v3419, %v3415
        %v3421 = vmul.f32 %v3140, %v3420
        %v3422 = vrcp.pop %v3255
        %v3423 = vmul.f32 %v3255, %v3422
        %v3424 = vsub.f32 1.0, %v3423
        %v3425 = vmul.f32 %v3422, %v3424
        %v3426 = vadd.f32 %v3422, %v3425
        %vm3427 = vweird.f32 %v3255
        %vm3428 = vweird.f32 %v3422
        %vm3429 = vmor %vm3427, %vm3428
        %v3430 = vsel %vm3429, %v3422, %v3426
        %v3431 = vand.u32 2147483647, %v3255
        %vm3432 = vcmp.eq.f32.partialorder %v3431, 8.507059e+37
        %v3433 = vand.u32 %v3255, 2147483648
        %v3434 = vor.u32 1.1754944e-38, %v3433
        %v3435 = vsel %vm3432, %v3434, %v3430
        %v3436 = vmul.f32 %v3142, %v3435
        %v3437 = vrcp.pop %v3260
        %v3438 = vmul.f32 %v3260, %v3437
        %v3439 = vsub.f32 1.0, %v3438
        %v3440 = vmul.f32 %v3437, %v3439
        %v3441 = vadd.f32 %v3437, %v3440
        %vm3442 = vweird.f32 %v3260
        %vm3443 = vweird.f32 %v3437
        %vm3444 = vmor %vm3442, %vm3443
        %v3445 = vsel %vm3444, %v3437, %v3441
        %v3446 = vand.u32 2147483647, %v3260
        %vm3447 = vcmp.eq.f32.partialorder %v3446, 8.507059e+37
        %v3448 = vand.u32 %v3260, 2147483648
        %v3449 = vor.u32 1.1754944e-38, %v3448
        %v3450 = vsel %vm3447, %v3449, %v3445
        %v3451 = vmul.f32 %v3145, %v3450
        %v3452 = vrcp.pop %v3265
        %v3453 = vmul.f32 %v3265, %v3452
        %v3454 = vsub.f32 1.0, %v3453
        %v3455 = vmul.f32 %v3452, %v3454
        %v3456 = vadd.f32 %v3452, %v3455
        %vm3457 = vweird.f32 %v3265
        %vm3458 = vweird.f32 %v3452
        %vm3459 = vmor %vm3457, %vm3458
        %v3460 = vsel %vm3459, %v3452, %v3456
        %v3461 = vand.u32 2147483647, %v3265
        %vm3462 = vcmp.eq.f32.partialorder %v3461, 8.507059e+37
        %v3463 = vand.u32 %v3265, 2147483648
        %v3464 = vor.u32 1.1754944e-38, %v3463
        %v3465 = vsel %vm3462, %v3464, %v3460
        %v3466 = vmul.f32 %v3147, %v3465
        %v3467 = vrcp.pop %v3270
        %v3468 = vmul.f32 %v3270, %v3467
        %v3469 = vsub.f32 1.0, %v3468
        %v3470 = vmul.f32 %v3467, %v3469
        %v3471 = vadd.f32 %v3467, %v3470
        %vm3472 = vweird.f32 %v3270
        %vm3473 = vweird.f32 %v3467
        %vm3474 = vmor %vm3472, %vm3473
        %v3475 = vsel %vm3474, %v3467, %v3471
        %v3476 = vand.u32 2147483647, %v3270
        %vm3477 = vcmp.eq.f32.partialorder %v3476, 8.507059e+37
        %v3478 = vand.u32 %v3270, 2147483648
        %v3479 = vor.u32 1.1754944e-38, %v3478
        %v3480 = vsel %vm3477, %v3479, %v3475
        %v3481 = vmul.f32 %v3150, %v3480
        %v3482 = vrcp.pop %v3275
        %v3483 = vmul.f32 %v3275, %v3482
        %v3484 = vsub.f32 1.0, %v3483
        %v3485 = vmul.f32 %v3482, %v3484
        %v3486 = vadd.f32 %v3482, %v3485
        %vm3487 = vweird.f32 %v3275
        %vm3488 = vweird.f32 %v3482
        %vm3489 = vmor %vm3487, %vm3488
        %v3490 = vsel %vm3489, %v3482, %v3486
        %v3491 = vand.u32 2147483647, %v3275
        %vm3492 = vcmp.eq.f32.partialorder %v3491, 8.507059e+37
        %v3493 = vand.u32 %v3275, 2147483648
        %v3494 = vor.u32 1.1754944e-38, %v3493
        %v3495 = vsel %vm3492, %v3494, %v3490
        %v3496 = vmul.f32 %v3152, %v3495
        %v3497 = vrcp.pop %v3280
        %v3498 = vmul.f32 %v3280, %v3497
        %v3499 = vsub.f32 1.0, %v3498
        %v3500 = vmul.f32 %v3497, %v3499
        %v3501 = vadd.f32 %v3497, %v3500
        %vm3502 = vweird.f32 %v3280
        %vm3503 = vweird.f32 %v3497
        %vm3504 = vmor %vm3502, %vm3503
        %v3505 = vsel %vm3504, %v3497, %v3501
        %v3506 = vand.u32 2147483647, %v3280
        %vm3507 = vcmp.eq.f32.partialorder %v3506, 8.507059e+37
        %v3508 = vand.u32 %v3280, 2147483648
        %v3509 = vor.u32 1.1754944e-38, %v3508
        %v3510 = vsel %vm3507, %v3509, %v3505
        %v3511 = vmul.f32 %v3155, %v3510
        %v3512 = vrcp.pop %v3285
        %v3513 = vmul.f32 %v3285, %v3512
        %v3514 = vsub.f32 1.0, %v3513
        %v3515 = vmul.f32 %v3512, %v3514
        %v3516 = vadd.f32 %v3512, %v3515
        %vm3517 = vweird.f32 %v3285
        %vm3518 = vweird.f32 %v3512
        %vm3519 = vmor %vm3517, %vm3518
        %v3520 = vsel %vm3519, %v3512, %v3516
        %v3521 = vand.u32 2147483647, %v3285
        %vm3522 = vcmp.eq.f32.partialorder %v3521, 8.507059e+37
        %v3523 = vand.u32 %v3285, 2147483648
        %v3524 = vor.u32 1.1754944e-38, %v3523
        %v3525 = vsel %vm3522, %v3524, %v3520
        %v3526 = vmul.f32 %v3157, %v3525
        %v3527 = vld [vmem:[%s343] sm:$0xff]
        %v3528 = vld [vmem:[%s343 + $0x8] sm:$0xff]
        %v3529 = vld [vmem:[%s343 + $0x10] sm:$0xff]
        %v3530 = vld [vmem:[%s343 + $0x18] sm:$0xff]
        %v3531 = vld [vmem:[%s343 + $0x20] sm:$0xff]
        %v3532 = vld [vmem:[%s343 + $0x28] sm:$0xff]
        %v3533 = vld [vmem:[%s343 + $0x30] sm:$0xff]
        %v3534 = vld [vmem:[%s343 + $0x38] sm:$0xff]
        %v3535 = vld [vmem:[%s343 + $0x40] sm:$0xff]
        %v3536 = vld [vmem:[%s343 + $0x48] sm:$0xff]
        %v3537 = vld [vmem:[%s343 + $0x50] sm:$0xff]
        %v3538 = vld [vmem:[%s343 + $0x58] sm:$0xff]
        %v3539 = vld [vmem:[%s343 + $0x60] sm:$0xff]
        %v3540 = vld [vmem:[%s343 + $0x68] sm:$0xff]
        %v3541 = vld [vmem:[%s343 + $0x70] sm:$0xff]
        %v3542 = vld [vmem:[%s343 + $0x78] sm:$0xff]
        %v3543 = vrot.slane %v3527, 1
        %v3544 = vrot.slane %v3527, 2
        %v3545 = vrot.slane %v3527, 3
        %v3546 = vrot.slane %v3527, 4
        %v3547 = vrot.slane %v3527, 5
        %v3548 = vrot.slane %v3527, 6
        %v3549 = vrot.slane %v3527, 7
        %v3550 = vrot.slane %v3528, 1
        %v3551 = vrot.slane %v3528, 2
        %v3552 = vrot.slane %v3528, 3
        %v3553 = vrot.slane %v3528, 4
        %v3554 = vrot.slane %v3528, 5
        %v3555 = vrot.slane %v3528, 6
        %v3556 = vrot.slane %v3528, 7
        %v3557 = vrot.slane %v3529, 1
        %v3558 = vrot.slane %v3529, 2
        %v3559 = vrot.slane %v3529, 3
        %v3560 = vrot.slane %v3529, 4
        %v3561 = vrot.slane %v3529, 5
        %v3562 = vrot.slane %v3529, 6
        %v3563 = vrot.slane %v3529, 7
        %v3564 = vrot.slane %v3530, 1
        %v3565 = vrot.slane %v3530, 2
        %v3566 = vrot.slane %v3530, 3
        %v3567 = vrot.slane %v3530, 4
        %v3568 = vrot.slane %v3530, 5
        %v3569 = vrot.slane %v3530, 6
        %v3570 = vrot.slane %v3530, 7
        %v3571 = vrot.slane %v3531, 1
        %v3572 = vrot.slane %v3531, 2
        %v3573 = vrot.slane %v3531, 3
        %v3574 = vrot.slane %v3531, 4
        %v3575 = vrot.slane %v3531, 5
        %v3576 = vrot.slane %v3531, 6
        %v3577 = vrot.slane %v3531, 7
        %v3578 = vrot.slane %v3532, 1
        %v3579 = vrot.slane %v3532, 2
        %v3580 = vrot.slane %v3532, 3
        %v3581 = vrot.slane %v3532, 4
        %v3582 = vrot.slane %v3532, 5
        %v3583 = vrot.slane %v3532, 6
        %v3584 = vrot.slane %v3532, 7
        %v3585 = vrot.slane %v3533, 1
        %v3586 = vrot.slane %v3533, 2
        %v3587 = vrot.slane %v3533, 3
        %v3588 = vrot.slane %v3533, 4
        %v3589 = vrot.slane %v3533, 5
        %v3590 = vrot.slane %v3533, 6
        %v3591 = vrot.slane %v3533, 7
        %v3592 = vrot.slane %v3534, 1
        %v3593 = vrot.slane %v3534, 2
        %v3594 = vrot.slane %v3534, 3
        %v3595 = vrot.slane %v3534, 4
        %v3596 = vrot.slane %v3534, 5
        %v3597 = vrot.slane %v3534, 6
        %v3598 = vrot.slane %v3534, 7
        %v3599 = vrot.slane %v3535, 1
        %v3600 = vrot.slane %v3535, 2
        %v3601 = vrot.slane %v3535, 3
        %v3602 = vrot.slane %v3535, 4
        %v3603 = vrot.slane %v3535, 5
        %v3604 = vrot.slane %v3535, 6
        %v3605 = vrot.slane %v3535, 7
        %v3606 = vrot.slane %v3536, 1
        %v3607 = vrot.slane %v3536, 2
        %v3608 = vrot.slane %v3536, 3
        %v3609 = vrot.slane %v3536, 4
        %v3610 = vrot.slane %v3536, 5
        %v3611 = vrot.slane %v3536, 6
        %v3612 = vrot.slane %v3536, 7
        %v3613 = vrot.slane %v3537, 1
        %v3614 = vrot.slane %v3537, 2
        %v3615 = vrot.slane %v3537, 3
        %v3616 = vrot.slane %v3537, 4
        %v3617 = vrot.slane %v3537, 5
        %v3618 = vrot.slane %v3537, 6
        %v3619 = vrot.slane %v3537, 7
        %v3620 = vrot.slane %v3538, 1
        %v3621 = vrot.slane %v3538, 2
        %v3622 = vrot.slane %v3538, 3
        %v3623 = vrot.slane %v3538, 4
        %v3624 = vrot.slane %v3538, 5
        %v3625 = vrot.slane %v3538, 6
        %v3626 = vrot.slane %v3538, 7
        %v3627 = vrot.slane %v3539, 1
        %v3628 = vrot.slane %v3539, 2
        %v3629 = vrot.slane %v3539, 3
        %v3630 = vrot.slane %v3539, 4
        %v3631 = vrot.slane %v3539, 5
        %v3632 = vrot.slane %v3539, 6
        %v3633 = vrot.slane %v3539, 7
        %v3634 = vrot.slane %v3540, 1
        %v3635 = vrot.slane %v3540, 2
        %v3636 = vrot.slane %v3540, 3
        %v3637 = vrot.slane %v3540, 4
        %v3638 = vrot.slane %v3540, 5
        %v3639 = vrot.slane %v3540, 6
        %v3640 = vrot.slane %v3540, 7
        %v3641 = vrot.slane %v3541, 1
        %v3642 = vrot.slane %v3541, 2
        %v3643 = vrot.slane %v3541, 3
        %v3644 = vrot.slane %v3541, 4
        %v3645 = vrot.slane %v3541, 5
        %v3646 = vrot.slane %v3541, 6
        %v3647 = vrot.slane %v3541, 7
        %v3648 = vrot.slane %v3542, 1
        %v3649 = vrot.slane %v3542, 2
        %v3650 = vrot.slane %v3542, 3
        %v3651 = vrot.slane %v3542, 4
        %v3652 = vrot.slane %v3542, 5
        %v3653 = vrot.slane %v3542, 6
        %v3654 = vrot.slane %v3542, 7
        %v3655 = vperm.slane %v3527, 0
        %v3656 = vperm.slane %v3543, 0
        %v3657 = vperm.slane %v3544, 0
        %v3658 = vperm.slane %v3545, 0
        %v3659 = vperm.slane %v3546, 0
        %v3660 = vperm.slane %v3547, 0
        %v3661 = vperm.slane %v3548, 0
        %v3662 = vperm.slane %v3549, 0
        %v3663 = vperm.slane %v3528, 0
        %v3664 = vperm.slane %v3550, 0
        %v3665 = vperm.slane %v3551, 0
        %v3666 = vperm.slane %v3552, 0
        %v3667 = vperm.slane %v3553, 0
        %v3668 = vperm.slane %v3554, 0
        %v3669 = vperm.slane %v3555, 0
        %v3670 = vperm.slane %v3556, 0
        %v3671 = vperm.slane %v3529, 0
        %v3672 = vperm.slane %v3557, 0
        %v3673 = vperm.slane %v3558, 0
        %v3674 = vperm.slane %v3559, 0
        %v3675 = vperm.slane %v3560, 0
        %v3676 = vperm.slane %v3561, 0
        %v3677 = vperm.slane %v3562, 0
        %v3678 = vperm.slane %v3563, 0
        %v3679 = vperm.slane %v3530, 0
        %v3680 = vperm.slane %v3564, 0
        %v3681 = vperm.slane %v3565, 0
        %v3682 = vperm.slane %v3566, 0
        %v3683 = vperm.slane %v3567, 0
        %v3684 = vperm.slane %v3568, 0
        %v3685 = vperm.slane %v3569, 0
        %v3686 = vperm.slane %v3570, 0
        %v3687 = vperm.slane %v3531, 0
        %v3688 = vperm.slane %v3571, 0
        %v3689 = vperm.slane %v3572, 0
        %v3690 = vperm.slane %v3573, 0
        %v3691 = vperm.slane %v3574, 0
        %v3692 = vperm.slane %v3575, 0
        %v3693 = vperm.slane %v3576, 0
        %v3694 = vperm.slane %v3577, 0
        %v3695 = vperm.slane %v3532, 0
        %v3696 = vperm.slane %v3578, 0
        %v3697 = vperm.slane %v3579, 0
        %v3698 = vperm.slane %v3580, 0
        %v3699 = vperm.slane %v3581, 0
        %v3700 = vperm.slane %v3582, 0
        %v3701 = vperm.slane %v3583, 0
        %v3702 = vperm.slane %v3584, 0
        %v3703 = vperm.slane %v3533, 0
        %v3704 = vperm.slane %v3585, 0
        %v3705 = vperm.slane %v3586, 0
        %v3706 = vperm.slane %v3587, 0
        %v3707 = vperm.slane %v3588, 0
        %v3708 = vperm.slane %v3589, 0
        %v3709 = vperm.slane %v3590, 0
        %v3710 = vperm.slane %v3591, 0
        %v3711 = vperm.slane %v3534, 0
        %v3712 = vperm.slane %v3592, 0
        %v3713 = vperm.slane %v3593, 0
        %v3714 = vperm.slane %v3594, 0
        %v3715 = vperm.slane %v3595, 0
        %v3716 = vperm.slane %v3596, 0
        %v3717 = vperm.slane %v3597, 0
        %v3718 = vperm.slane %v3598, 0
        %v3719 = vperm.slane %v3535, 0
        %v3720 = vperm.slane %v3599, 0
        %v3721 = vperm.slane %v3600, 0
        %v3722 = vperm.slane %v3601, 0
        %v3723 = vperm.slane %v3602, 0
        %v3724 = vperm.slane %v3603, 0
        %v3725 = vperm.slane %v3604, 0
        %v3726 = vperm.slane %v3605, 0
        %v3727 = vperm.slane %v3536, 0
        %v3728 = vperm.slane %v3606, 0
        %v3729 = vperm.slane %v3607, 0
        %v3730 = vperm.slane %v3608, 0
        %v3731 = vperm.slane %v3609, 0
        %v3732 = vperm.slane %v3610, 0
        %v3733 = vperm.slane %v3611, 0
        %v3734 = vperm.slane %v3612, 0
        %v3735 = vperm.slane %v3537, 0
        %v3736 = vperm.slane %v3613, 0
        %v3737 = vperm.slane %v3614, 0
        %v3738 = vperm.slane %v3615, 0
        %v3739 = vperm.slane %v3616, 0
        %v3740 = vperm.slane %v3617, 0
        %v3741 = vperm.slane %v3618, 0
        %v3742 = vperm.slane %v3619, 0
        %v3743 = vperm.slane %v3538, 0
        %v3744 = vperm.slane %v3620, 0
        %v3745 = vperm.slane %v3621, 0
        %v3746 = vperm.slane %v3622, 0
        %v3747 = vperm.slane %v3623, 0
        %v3748 = vperm.slane %v3624, 0
        %v3749 = vperm.slane %v3625, 0
        %v3750 = vperm.slane %v3626, 0
        %v3751 = vperm.slane %v3539, 0
        %v3752 = vperm.slane %v3627, 0
        %v3753 = vperm.slane %v3628, 0
        %v3754 = vperm.slane %v3629, 0
        %v3755 = vperm.slane %v3630, 0
        %v3756 = vperm.slane %v3631, 0
        %v3757 = vperm.slane %v3632, 0
        %v3758 = vperm.slane %v3633, 0
        %v3759 = vperm.slane %v3540, 0
        %v3760 = vperm.slane %v3634, 0
        %v3761 = vperm.slane %v3635, 0
        %v3762 = vperm.slane %v3636, 0
        %v3763 = vperm.slane %v3637, 0
        %v3764 = vperm.slane %v3638, 0
        %v3765 = vperm.slane %v3639, 0
        %v3766 = vperm.slane %v3640, 0
        %v3767 = vperm.slane %v3541, 0
        %v3768 = vperm.slane %v3641, 0
        %v3769 = vperm.slane %v3642, 0
        %v3770 = vperm.slane %v3643, 0
        %v3771 = vperm.slane %v3644, 0
        %v3772 = vperm.slane %v3645, 0
        %v3773 = vperm.slane %v3646, 0
        %v3774 = vperm.slane %v3647, 0
        %v3775 = vperm.slane %v3542, 0
        %v3776 = vperm.slane %v3648, 0
        %v3777 = vperm.slane %v3649, 0
        %v3778 = vperm.slane %v3650, 0
        %v3779 = vperm.slane %v3651, 0
        %v3780 = vperm.slane %v3652, 0
        %v3781 = vperm.slane %v3653, 0
        %v3782 = vperm.slane %v3654, 0
        %vm3783 = vcmp.lt.s32.totalorder %v348, %v3655
        %vm3784 = vcmp.lt.s32.totalorder %v348, %v3656
        %vm3785 = vcmp.lt.s32.totalorder %v348, %v3657
        %vm3786 = vcmp.lt.s32.totalorder %v348, %v3658
        %vm3787 = vcmp.lt.s32.totalorder %v348, %v3659
        %vm3788 = vcmp.lt.s32.totalorder %v348, %v3660
        %vm3789 = vcmp.lt.s32.totalorder %v348, %v3661
        %vm3790 = vcmp.lt.s32.totalorder %v348, %v3662
        %vm3791 = vcmp.lt.s32.totalorder %v348, %v3663
        %vm3792 = vcmp.lt.s32.totalorder %v348, %v3664
        %vm3793 = vcmp.lt.s32.totalorder %v348, %v3665
        %vm3794 = vcmp.lt.s32.totalorder %v348, %v3666
        %vm3795 = vcmp.lt.s32.totalorder %v348, %v3667
        %vm3796 = vcmp.lt.s32.totalorder %v348, %v3668
        %vm3797 = vcmp.lt.s32.totalorder %v348, %v3669
        %vm3798 = vcmp.lt.s32.totalorder %v348, %v3670
        %vm3799 = vcmp.lt.s32.totalorder %v348, %v3671
        %vm3800 = vcmp.lt.s32.totalorder %v348, %v3672
        %vm3801 = vcmp.lt.s32.totalorder %v348, %v3673
        %vm3802 = vcmp.lt.s32.totalorder %v348, %v3674
        %vm3803 = vcmp.lt.s32.totalorder %v348, %v3675
        %vm3804 = vcmp.lt.s32.totalorder %v348, %v3676
        %vm3805 = vcmp.lt.s32.totalorder %v348, %v3677
        %vm3806 = vcmp.lt.s32.totalorder %v348, %v3678
        %vm3807 = vcmp.lt.s32.totalorder %v348, %v3679
        %vm3808 = vcmp.lt.s32.totalorder %v348, %v3680
        %vm3809 = vcmp.lt.s32.totalorder %v348, %v3681
        %vm3810 = vcmp.lt.s32.totalorder %v348, %v3682
        %vm3811 = vcmp.lt.s32.totalorder %v348, %v3683
        %vm3812 = vcmp.lt.s32.totalorder %v348, %v3684
        %vm3813 = vcmp.lt.s32.totalorder %v348, %v3685
        %vm3814 = vcmp.lt.s32.totalorder %v348, %v3686
        %vm3815 = vcmp.lt.s32.totalorder %v348, %v3687
        %vm3816 = vcmp.lt.s32.totalorder %v348, %v3688
        %vm3817 = vcmp.lt.s32.totalorder %v348, %v3689
        %vm3818 = vcmp.lt.s32.totalorder %v348, %v3690
        %vm3819 = vcmp.lt.s32.totalorder %v348, %v3691
        %vm3820 = vcmp.lt.s32.totalorder %v348, %v3692
        %vm3821 = vcmp.lt.s32.totalorder %v348, %v3693
        %vm3822 = vcmp.lt.s32.totalorder %v348, %v3694
        %vm3823 = vcmp.lt.s32.totalorder %v348, %v3695
        %vm3824 = vcmp.lt.s32.totalorder %v348, %v3696
        %vm3825 = vcmp.lt.s32.totalorder %v348, %v3697
        %vm3826 = vcmp.lt.s32.totalorder %v348, %v3698
        %vm3827 = vcmp.lt.s32.totalorder %v348, %v3699
        %vm3828 = vcmp.lt.s32.totalorder %v348, %v3700
        %vm3829 = vcmp.lt.s32.totalorder %v348, %v3701
        %vm3830 = vcmp.lt.s32.totalorder %v348, %v3702
        %vm3831 = vcmp.lt.s32.totalorder %v348, %v3703
        %vm3832 = vcmp.lt.s32.totalorder %v348, %v3704
        %vm3833 = vcmp.lt.s32.totalorder %v348, %v3705
        %vm3834 = vcmp.lt.s32.totalorder %v348, %v3706
        %vm3835 = vcmp.lt.s32.totalorder %v348, %v3707
        %vm3836 = vcmp.lt.s32.totalorder %v348, %v3708
        %vm3837 = vcmp.lt.s32.totalorder %v348, %v3709
        %vm3838 = vcmp.lt.s32.totalorder %v348, %v3710
        %vm3839 = vcmp.lt.s32.totalorder %v348, %v3711
        %vm3840 = vcmp.lt.s32.totalorder %v348, %v3712
        %vm3841 = vcmp.lt.s32.totalorder %v348, %v3713
        %vm3842 = vcmp.lt.s32.totalorder %v348, %v3714
        %vm3843 = vcmp.lt.s32.totalorder %v348, %v3715
        %vm3844 = vcmp.lt.s32.totalorder %v348, %v3716
        %vm3845 = vcmp.lt.s32.totalorder %v348, %v3717
        %vm3846 = vcmp.lt.s32.totalorder %v348, %v3718
        %vm3847 = vcmp.lt.s32.totalorder %v348, %v3719
        %vm3848 = vcmp.lt.s32.totalorder %v348, %v3720
        %vm3849 = vcmp.lt.s32.totalorder %v348, %v3721
        %vm3850 = vcmp.lt.s32.totalorder %v348, %v3722
        %vm3851 = vcmp.lt.s32.totalorder %v348, %v3723
        %vm3852 = vcmp.lt.s32.totalorder %v348, %v3724
        %vm3853 = vcmp.lt.s32.totalorder %v348, %v3725
        %vm3854 = vcmp.lt.s32.totalorder %v348, %v3726
        %vm3855 = vcmp.lt.s32.totalorder %v348, %v3727
        %vm3856 = vcmp.lt.s32.totalorder %v348, %v3728
        %vm3857 = vcmp.lt.s32.totalorder %v348, %v3729
        %vm3858 = vcmp.lt.s32.totalorder %v348, %v3730
        %vm3859 = vcmp.lt.s32.totalorder %v348, %v3731
        %vm3860 = vcmp.lt.s32.totalorder %v348, %v3732
        %vm3861 = vcmp.lt.s32.totalorder %v348, %v3733
        %vm3862 = vcmp.lt.s32.totalorder %v348, %v3734
        %vm3863 = vcmp.lt.s32.totalorder %v348, %v3735
        %vm3864 = vcmp.lt.s32.totalorder %v348, %v3736
        %vm3865 = vcmp.lt.s32.totalorder %v348, %v3737
        %vm3866 = vcmp.lt.s32.totalorder %v348, %v3738
        %vm3867 = vcmp.lt.s32.totalorder %v348, %v3739
        %vm3868 = vcmp.lt.s32.totalorder %v348, %v3740
        %vm3869 = vcmp.lt.s32.totalorder %v348, %v3741
        %vm3870 = vcmp.lt.s32.totalorder %v348, %v3742
        %vm3871 = vcmp.lt.s32.totalorder %v348, %v3743
        %vm3872 = vcmp.lt.s32.totalorder %v348, %v3744
        %vm3873 = vcmp.lt.s32.totalorder %v348, %v3745
        %vm3874 = vcmp.lt.s32.totalorder %v348, %v3746
        %vm3875 = vcmp.lt.s32.totalorder %v348, %v3747
        %vm3876 = vcmp.lt.s32.totalorder %v348, %v3748
        %vm3877 = vcmp.lt.s32.totalorder %v348, %v3749
        %vm3878 = vcmp.lt.s32.totalorder %v348, %v3750
        %vm3879 = vcmp.lt.s32.totalorder %v348, %v3751
        %vm3880 = vcmp.lt.s32.totalorder %v348, %v3752
        %vm3881 = vcmp.lt.s32.totalorder %v348, %v3753
        %vm3882 = vcmp.lt.s32.totalorder %v348, %v3754
        %vm3883 = vcmp.lt.s32.totalorder %v348, %v3755
        %vm3884 = vcmp.lt.s32.totalorder %v348, %v3756
        %vm3885 = vcmp.lt.s32.totalorder %v348, %v3757
        %vm3886 = vcmp.lt.s32.totalorder %v348, %v3758
        %vm3887 = vcmp.lt.s32.totalorder %v348, %v3759
        %vm3888 = vcmp.lt.s32.totalorder %v348, %v3760
        %vm3889 = vcmp.lt.s32.totalorder %v348, %v3761
        %vm3890 = vcmp.lt.s32.totalorder %v348, %v3762
        %vm3891 = vcmp.lt.s32.totalorder %v348, %v3763
        %vm3892 = vcmp.lt.s32.totalorder %v348, %v3764
        %vm3893 = vcmp.lt.s32.totalorder %v348, %v3765
        %vm3894 = vcmp.lt.s32.totalorder %v348, %v3766
        %vm3895 = vcmp.lt.s32.totalorder %v348, %v3767
        %vm3896 = vcmp.lt.s32.totalorder %v348, %v3768
        %vm3897 = vcmp.lt.s32.totalorder %v348, %v3769
        %vm3898 = vcmp.lt.s32.totalorder %v348, %v3770
        %vm3899 = vcmp.lt.s32.totalorder %v348, %v3771
        %vm3900 = vcmp.lt.s32.totalorder %v348, %v3772
        %vm3901 = vcmp.lt.s32.totalorder %v348, %v3773
        %vm3902 = vcmp.lt.s32.totalorder %v348, %v3774
        %vm3903 = vcmp.lt.s32.totalorder %v348, %v3775
        %vm3904 = vcmp.lt.s32.totalorder %v348, %v3776
        %vm3905 = vcmp.lt.s32.totalorder %v348, %v3777
        %vm3906 = vcmp.lt.s32.totalorder %v348, %v3778
        %vm3907 = vcmp.lt.s32.totalorder %v348, %v3779
        %vm3908 = vcmp.lt.s32.totalorder %v348, %v3780
        %vm3909 = vcmp.lt.s32.totalorder %v348, %v3781
        %vm3910 = vcmp.lt.s32.totalorder %v348, %v3782
        %v3911 = vld [vmem:[%s331] sm:$0xff]
        %v3912 = vld [vmem:[%s331 + $0x8] sm:$0xff]
        %v3913 = vld [vmem:[%s331 + $0x10] sm:$0xff]
        %v3914 = vld [vmem:[%s331 + $0x18] sm:$0xff]
        %v3915 = vld [vmem:[%s331 + $0x20] sm:$0xff]
        %v3916 = vld [vmem:[%s331 + $0x28] sm:$0xff]
        %v3917 = vld [vmem:[%s331 + $0x30] sm:$0xff]
        %v3918 = vld [vmem:[%s331 + $0x38] sm:$0xff]
        %v3919 = vld [vmem:[%s331 + $0x40] sm:$0xff]
        %v3920 = vld [vmem:[%s331 + $0x48] sm:$0xff]
        %v3921 = vld [vmem:[%s331 + $0x50] sm:$0xff]
        %v3922 = vld [vmem:[%s331 + $0x58] sm:$0xff]
        %v3923 = vld [vmem:[%s331 + $0x60] sm:$0xff]
        %v3924 = vld [vmem:[%s331 + $0x68] sm:$0xff]
        %v3925 = vld [vmem:[%s331 + $0x70] sm:$0xff]
        %v3926 = vld [vmem:[%s331 + $0x78] sm:$0xff]
        %v3927 = vld [vmem:[%s331 + $0x80] sm:$0xff]
        %v3928 = vld [vmem:[%s331 + $0x88] sm:$0xff]
        %v3929 = vld [vmem:[%s331 + $0x90] sm:$0xff]
        %v3930 = vld [vmem:[%s331 + $0x98] sm:$0xff]
        %v3931 = vld [vmem:[%s331 + $0xa0] sm:$0xff]
        %v3932 = vld [vmem:[%s331 + $0xa8] sm:$0xff]
        %v3933 = vld [vmem:[%s331 + $0xb0] sm:$0xff]
        %v3934 = vld [vmem:[%s331 + $0xb8] sm:$0xff]
        %v3935 = vld [vmem:[%s331 + $0xc0] sm:$0xff]
        %v3936 = vld [vmem:[%s331 + $0xc8] sm:$0xff]
        %v3937 = vld [vmem:[%s331 + $0xd0] sm:$0xff]
        %v3938 = vld [vmem:[%s331 + $0xd8] sm:$0xff]
        %v3939 = vld [vmem:[%s331 + $0xe0] sm:$0xff]
        %v3940 = vld [vmem:[%s331 + $0xe8] sm:$0xff]
        %v3941 = vld [vmem:[%s331 + $0xf0] sm:$0xff]
        %v3942 = vld [vmem:[%s331 + $0xf8] sm:$0xff]
        %v3943 = vld [vmem:[%s331 + $0x100] sm:$0xff]
        %v3944 = vld [vmem:[%s331 + $0x108] sm:$0xff]
        %v3945 = vld [vmem:[%s331 + $0x110] sm:$0xff]
        %v3946 = vld [vmem:[%s331 + $0x118] sm:$0xff]
        %v3947 = vld [vmem:[%s331 + $0x120] sm:$0xff]
        %v3948 = vld [vmem:[%s331 + $0x128] sm:$0xff]
        %v3949 = vld [vmem:[%s331 + $0x130] sm:$0xff]
        %v3950 = vld [vmem:[%s331 + $0x138] sm:$0xff]
        %v3951 = vld [vmem:[%s331 + $0x140] sm:$0xff]
        %v3952 = vld [vmem:[%s331 + $0x148] sm:$0xff]
        %v3953 = vld [vmem:[%s331 + $0x150] sm:$0xff]
        %v3954 = vld [vmem:[%s331 + $0x158] sm:$0xff]
        %v3955 = vld [vmem:[%s331 + $0x160] sm:$0xff]
        %v3956 = vld [vmem:[%s331 + $0x168] sm:$0xff]
        %v3957 = vld [vmem:[%s331 + $0x170] sm:$0xff]
        %v3958 = vld [vmem:[%s331 + $0x178] sm:$0xff]
        %v3959 = vld [vmem:[%s331 + $0x180] sm:$0xff]
        %v3960 = vld [vmem:[%s331 + $0x188] sm:$0xff]
        %v3961 = vld [vmem:[%s331 + $0x190] sm:$0xff]
        %v3962 = vld [vmem:[%s331 + $0x198] sm:$0xff]
        %v3963 = vld [vmem:[%s331 + $0x1a0] sm:$0xff]
        %v3964 = vld [vmem:[%s331 + $0x1a8] sm:$0xff]
        %v3965 = vld [vmem:[%s331 + $0x1b0] sm:$0xff]
        %v3966 = vld [vmem:[%s331 + $0x1b8] sm:$0xff]
        %v3967 = vld [vmem:[%s331 + $0x1c0] sm:$0xff]
        %v3968 = vld [vmem:[%s331 + $0x1c8] sm:$0xff]
        %v3969 = vld [vmem:[%s331 + $0x1d0] sm:$0xff]
        %v3970 = vld [vmem:[%s331 + $0x1d8] sm:$0xff]
        %v3971 = vld [vmem:[%s331 + $0x1e0] sm:$0xff]
        %v3972 = vld [vmem:[%s331 + $0x1e8] sm:$0xff]
        %v3973 = vld [vmem:[%s331 + $0x1f0] sm:$0xff]
        %v3974 = vld [vmem:[%s331 + $0x1f8] sm:$0xff]
        %v3975 = vld [vmem:[%s331 + $0x200] sm:$0xff]
        %v3976 = vld [vmem:[%s331 + $0x208] sm:$0xff]
        %v3977 = vld [vmem:[%s331 + $0x210] sm:$0xff]
        %v3978 = vld [vmem:[%s331 + $0x218] sm:$0xff]
        %v3979 = vld [vmem:[%s331 + $0x220] sm:$0xff]
        %v3980 = vld [vmem:[%s331 + $0x228] sm:$0xff]
        %v3981 = vld [vmem:[%s331 + $0x230] sm:$0xff]
        %v3982 = vld [vmem:[%s331 + $0x238] sm:$0xff]
        %v3983 = vld [vmem:[%s331 + $0x240] sm:$0xff]
        %v3984 = vld [vmem:[%s331 + $0x248] sm:$0xff]
        %v3985 = vld [vmem:[%s331 + $0x250] sm:$0xff]
        %v3986 = vld [vmem:[%s331 + $0x258] sm:$0xff]
        %v3987 = vld [vmem:[%s331 + $0x260] sm:$0xff]
        %v3988 = vld [vmem:[%s331 + $0x268] sm:$0xff]
        %v3989 = vld [vmem:[%s331 + $0x270] sm:$0xff]
        %v3990 = vld [vmem:[%s331 + $0x278] sm:$0xff]
        %v3991 = vld [vmem:[%s331 + $0x280] sm:$0xff]
        %v3992 = vld [vmem:[%s331 + $0x288] sm:$0xff]
        %v3993 = vld [vmem:[%s331 + $0x290] sm:$0xff]
        %v3994 = vld [vmem:[%s331 + $0x298] sm:$0xff]
        %v3995 = vld [vmem:[%s331 + $0x2a0] sm:$0xff]
        %v3996 = vld [vmem:[%s331 + $0x2a8] sm:$0xff]
        %v3997 = vld [vmem:[%s331 + $0x2b0] sm:$0xff]
        %v3998 = vld [vmem:[%s331 + $0x2b8] sm:$0xff]
        %v3999 = vld [vmem:[%s331 + $0x2c0] sm:$0xff]
        %v4000 = vld [vmem:[%s331 + $0x2c8] sm:$0xff]
        %v4001 = vld [vmem:[%s331 + $0x2d0] sm:$0xff]
        %v4002 = vld [vmem:[%s331 + $0x2d8] sm:$0xff]
        %v4003 = vld [vmem:[%s331 + $0x2e0] sm:$0xff]
        %v4004 = vld [vmem:[%s331 + $0x2e8] sm:$0xff]
        %v4005 = vld [vmem:[%s331 + $0x2f0] sm:$0xff]
        %v4006 = vld [vmem:[%s331 + $0x2f8] sm:$0xff]
        %v4007 = vld [vmem:[%s331 + $0x300] sm:$0xff]
        %v4008 = vld [vmem:[%s331 + $0x308] sm:$0xff]
        %v4009 = vld [vmem:[%s331 + $0x310] sm:$0xff]
        %v4010 = vld [vmem:[%s331 + $0x318] sm:$0xff]
        %v4011 = vld [vmem:[%s331 + $0x320] sm:$0xff]
        %v4012 = vld [vmem:[%s331 + $0x328] sm:$0xff]
        %v4013 = vld [vmem:[%s331 + $0x330] sm:$0xff]
        %v4014 = vld [vmem:[%s331 + $0x338] sm:$0xff]
        %v4015 = vld [vmem:[%s331 + $0x340] sm:$0xff]
        %v4016 = vld [vmem:[%s331 + $0x348] sm:$0xff]
        %v4017 = vld [vmem:[%s331 + $0x350] sm:$0xff]
        %v4018 = vld [vmem:[%s331 + $0x358] sm:$0xff]
        %v4019 = vld [vmem:[%s331 + $0x360] sm:$0xff]
        %v4020 = vld [vmem:[%s331 + $0x368] sm:$0xff]
        %v4021 = vld [vmem:[%s331 + $0x370] sm:$0xff]
        %v4022 = vld [vmem:[%s331 + $0x378] sm:$0xff]
        %v4023 = vld [vmem:[%s331 + $0x380] sm:$0xff]
        %v4024 = vld [vmem:[%s331 + $0x388] sm:$0xff]
        %v4025 = vld [vmem:[%s331 + $0x390] sm:$0xff]
        %v4026 = vld [vmem:[%s331 + $0x398] sm:$0xff]
        %v4027 = vld [vmem:[%s331 + $0x3a0] sm:$0xff]
        %v4028 = vld [vmem:[%s331 + $0x3a8] sm:$0xff]
        %v4029 = vld [vmem:[%s331 + $0x3b0] sm:$0xff]
        %v4030 = vld [vmem:[%s331 + $0x3b8] sm:$0xff]
        %v4031 = vld [vmem:[%s331 + $0x3c0] sm:$0xff]
        %v4032 = vld [vmem:[%s331 + $0x3c8] sm:$0xff]
        %v4033 = vld [vmem:[%s331 + $0x3d0] sm:$0xff]
        %v4034 = vld [vmem:[%s331 + $0x3d8] sm:$0xff]
        %v4035 = vld [vmem:[%s331 + $0x3e0] sm:$0xff]
        %v4036 = vld [vmem:[%s331 + $0x3e8] sm:$0xff]
        %v4037 = vld [vmem:[%s331 + $0x3f0] sm:$0xff]
        %v4038 = vld [vmem:[%s331 + $0x3f8] sm:$0xff]
        %v4039 = vsel %vm3783, %v3911, 4294967295
        %v4040 = vsel %vm3784, %v3912, 4294967295
        %v4041 = vsel %vm3785, %v3913, 4294967295
        %v4042 = vsel %vm3786, %v3914, 4294967295
        %v4043 = vsel %vm3787, %v3915, 4294967295
        %v4044 = vsel %vm3788, %v3916, 4294967295
        %v4045 = vsel %vm3789, %v3917, 4294967295
        %v4046 = vsel %vm3790, %v3918, 4294967295
        %v4047 = vsel %vm3791, %v3919, 4294967295
        %v4048 = vsel %vm3792, %v3920, 4294967295
        %v4049 = vsel %vm3793, %v3921, 4294967295
        %v4050 = vsel %vm3794, %v3922, 4294967295
        %v4051 = vsel %vm3795, %v3923, 4294967295
        %v4052 = vsel %vm3796, %v3924, 4294967295
        %v4053 = vsel %vm3797, %v3925, 4294967295
        %v4054 = vsel %vm3798, %v3926, 4294967295
        %v4055 = vsel %vm3799, %v3927, 4294967295
        %v4056 = vsel %vm3800, %v3928, 4294967295
        %v4057 = vsel %vm3801, %v3929, 4294967295
        %v4058 = vsel %vm3802, %v3930, 4294967295
        %v4059 = vsel %vm3803, %v3931, 4294967295
        %v4060 = vsel %vm3804, %v3932, 4294967295
        %v4061 = vsel %vm3805, %v3933, 4294967295
        %v4062 = vsel %vm3806, %v3934, 4294967295
        %v4063 = vsel %vm3807, %v3935, 4294967295
        %v4064 = vsel %vm3808, %v3936, 4294967295
        %v4065 = vsel %vm3809, %v3937, 4294967295
        %v4066 = vsel %vm3810, %v3938, 4294967295
        %v4067 = vsel %vm3811, %v3939, 4294967295
        %v4068 = vsel %vm3812, %v3940, 4294967295
        %v4069 = vsel %vm3813, %v3941, 4294967295
        %v4070 = vsel %vm3814, %v3942, 4294967295
        %v4071 = vsel %vm3815, %v3943, 4294967295
        %v4072 = vsel %vm3816, %v3944, 4294967295
        %v4073 = vsel %vm3817, %v3945, 4294967295
        %v4074 = vsel %vm3818, %v3946, 4294967295
        %v4075 = vsel %vm3819, %v3947, 4294967295
        %v4076 = vsel %vm3820, %v3948, 4294967295
        %v4077 = vsel %vm3821, %v3949, 4294967295
        %v4078 = vsel %vm3822, %v3950, 4294967295
        %v4079 = vsel %vm3823, %v3951, 4294967295
        %v4080 = vsel %vm3824, %v3952, 4294967295
        %v4081 = vsel %vm3825, %v3953, 4294967295
        %v4082 = vsel %vm3826, %v3954, 4294967295
        %v4083 = vsel %vm3827, %v3955, 4294967295
        %v4084 = vsel %vm3828, %v3956, 4294967295
        %v4085 = vsel %vm3829, %v3957, 4294967295
        %v4086 = vsel %vm3830, %v3958, 4294967295
        %v4087 = vsel %vm3831, %v3959, 4294967295
        %v4088 = vsel %vm3832, %v3960, 4294967295
        %v4089 = vsel %vm3833, %v3961, 4294967295
        %v4090 = vsel %vm3834, %v3962, 4294967295
        %v4091 = vsel %vm3835, %v3963, 4294967295
        %v4092 = vsel %vm3836, %v3964, 4294967295
        %v4093 = vsel %vm3837, %v3965, 4294967295
        %v4094 = vsel %vm3838, %v3966, 4294967295
        %v4095 = vsel %vm3839, %v3967, 4294967295
        %v4096 = vsel %vm3840, %v3968, 4294967295
        %v4097 = vsel %vm3841, %v3969, 4294967295
        %v4098 = vsel %vm3842, %v3970, 4294967295
        %v4099 = vsel %vm3843, %v3971, 4294967295
        %v4100 = vsel %vm3844, %v3972, 4294967295
        %v4101 = vsel %vm3845, %v3973, 4294967295
        %v4102 = vsel %vm3846, %v3974, 4294967295
        %v4103 = vsel %vm3847, %v3975, 4294967295
        %v4104 = vsel %vm3848, %v3976, 4294967295
        %v4105 = vsel %vm3849, %v3977, 4294967295
        %v4106 = vsel %vm3850, %v3978, 4294967295
        %v4107 = vsel %vm3851, %v3979, 4294967295
        %v4108 = vsel %vm3852, %v3980, 4294967295
        %v4109 = vsel %vm3853, %v3981, 4294967295
        %v4110 = vsel %vm3854, %v3982, 4294967295
        %v4111 = vsel %vm3855, %v3983, 4294967295
        %v4112 = vsel %vm3856, %v3984, 4294967295
        %v4113 = vsel %vm3857, %v3985, 4294967295
        %v4114 = vsel %vm3858, %v3986, 4294967295
        %v4115 = vsel %vm3859, %v3987, 4294967295
        %v4116 = vsel %vm3860, %v3988, 4294967295
        %v4117 = vsel %vm3861, %v3989, 4294967295
        %v4118 = vsel %vm3862, %v3990, 4294967295
        %v4119 = vsel %vm3863, %v3991, 4294967295
        %v4120 = vsel %vm3864, %v3992, 4294967295
        %v4121 = vsel %vm3865, %v3993, 4294967295
        %v4122 = vsel %vm3866, %v3994, 4294967295
        %v4123 = vsel %vm3867, %v3995, 4294967295
        %v4124 = vsel %vm3868, %v3996, 4294967295
        %v4125 = vsel %vm3869, %v3997, 4294967295
        %v4126 = vsel %vm3870, %v3998, 4294967295
        %v4127 = vsel %vm3871, %v3999, 4294967295
        %v4128 = vsel %vm3872, %v4000, 4294967295
        %v4129 = vsel %vm3873, %v4001, 4294967295
        %v4130 = vsel %vm3874, %v4002, 4294967295
        %v4131 = vsel %vm3875, %v4003, 4294967295
        %v4132 = vsel %vm3876, %v4004, 4294967295
        %v4133 = vsel %vm3877, %v4005, 4294967295
        %v4134 = vsel %vm3878, %v4006, 4294967295
        %v4135 = vsel %vm3879, %v4007, 4294967295
        %v4136 = vsel %vm3880, %v4008, 4294967295
        %v4137 = vsel %vm3881, %v4009, 4294967295
        %v4138 = vsel %vm3882, %v4010, 4294967295
        %v4139 = vsel %vm3883, %v4011, 4294967295
        %v4140 = vsel %vm3884, %v4012, 4294967295
        %v4141 = vsel %vm3885, %v4013, 4294967295
        %v4142 = vsel %vm3886, %v4014, 4294967295
        %v4143 = vsel %vm3887, %v4015, 4294967295
        %v4144 = vsel %vm3888, %v4016, 4294967295
        %v4145 = vsel %vm3889, %v4017, 4294967295
        %v4146 = vsel %vm3890, %v4018, 4294967295
        %v4147 = vsel %vm3891, %v4019, 4294967295
        %v4148 = vsel %vm3892, %v4020, 4294967295
        %v4149 = vsel %vm3893, %v4021, 4294967295
        %v4150 = vsel %vm3894, %v4022, 4294967295
        %v4151 = vsel %vm3895, %v4023, 4294967295
        %v4152 = vsel %vm3896, %v4024, 4294967295
        %v4153 = vsel %vm3897, %v4025, 4294967295
        %v4154 = vsel %vm3898, %v4026, 4294967295
        %v4155 = vsel %vm3899, %v4027, 4294967295
        %v4156 = vsel %vm3900, %v4028, 4294967295
        %v4157 = vsel %vm3901, %v4029, 4294967295
        %v4158 = vsel %vm3902, %v4030, 4294967295
        %v4159 = vsel %vm3903, %v4031, 4294967295
        %v4160 = vsel %vm3904, %v4032, 4294967295
        %v4161 = vsel %vm3905, %v4033, 4294967295
        %v4162 = vsel %vm3906, %v4034, 4294967295
        %v4163 = vsel %vm3907, %v4035, 4294967295
        %v4164 = vsel %vm3908, %v4036, 4294967295
        %v4165 = vsel %vm3909, %v4037, 4294967295
        %v4166 = vsel %vm3910, %v4038, 4294967295
        %4167 = vset.pattern.permute.xlu0 0
        %4168 = vperm.xlu0 %4167, %v4039
        %v4169 = vpop.permute.xlu0 %4168
        %4170 = vset.pattern.permute.xlu0 0
        %4171 = vperm.xlu0 %4170, %v4040
        %v4172 = vpop.permute.xlu0 %4171
        %4173 = vset.pattern.permute.xlu0 0
        %4174 = vperm.xlu0 %4173, %v4041
        %v4175 = vpop.permute.xlu0 %4174
        %4176 = vset.pattern.permute.xlu0 0
        %4177 = vperm.xlu0 %4176, %v4042
        %v4178 = vpop.permute.xlu0 %4177
        %4179 = vset.pattern.permute.xlu0 0
        %4180 = vperm.xlu0 %4179, %v4043
        %v4181 = vpop.permute.xlu0 %4180
        %4182 = vset.pattern.permute.xlu0 0
        %4183 = vperm.xlu0 %4182, %v4044
        %v4184 = vpop.permute.xlu0 %4183
        %4185 = vset.pattern.permute.xlu0 0
        %4186 = vperm.xlu0 %4185, %v4045
        %v4187 = vpop.permute.xlu0 %4186
        %4188 = vset.pattern.permute.xlu0 0
        %4189 = vperm.xlu0 %4188, %v4046
        %v4190 = vpop.permute.xlu0 %4189
        %4191 = vset.pattern.permute.xlu0 0
        %4192 = vperm.xlu0 %4191, %v4047
        %v4193 = vpop.permute.xlu0 %4192
        %4194 = vset.pattern.permute.xlu0 0
        %4195 = vperm.xlu0 %4194, %v4048
        %v4196 = vpop.permute.xlu0 %4195
        %4197 = vset.pattern.permute.xlu0 0
        %4198 = vperm.xlu0 %4197, %v4049
        %v4199 = vpop.permute.xlu0 %4198
        %4200 = vset.pattern.permute.xlu0 0
        %4201 = vperm.xlu0 %4200, %v4050
        %v4202 = vpop.permute.xlu0 %4201
        %4203 = vset.pattern.permute.xlu0 0
        %4204 = vperm.xlu0 %4203, %v4051
        %v4205 = vpop.permute.xlu0 %4204
        %4206 = vset.pattern.permute.xlu0 0
        %4207 = vperm.xlu0 %4206, %v4052
        %v4208 = vpop.permute.xlu0 %4207
        %4209 = vset.pattern.permute.xlu0 0
        %4210 = vperm.xlu0 %4209, %v4053
        %v4211 = vpop.permute.xlu0 %4210
        %4212 = vset.pattern.permute.xlu0 0
        %4213 = vperm.xlu0 %4212, %v4054
        %v4214 = vpop.permute.xlu0 %4213
        %4215 = vset.pattern.permute.xlu0 0
        %4216 = vperm.xlu0 %4215, %v4055
        %v4217 = vpop.permute.xlu0 %4216
        %4218 = vset.pattern.permute.xlu0 0
        %4219 = vperm.xlu0 %4218, %v4056
        %v4220 = vpop.permute.xlu0 %4219
        %4221 = vset.pattern.permute.xlu0 0
        %4222 = vperm.xlu0 %4221, %v4057
        %v4223 = vpop.permute.xlu0 %4222
        %4224 = vset.pattern.permute.xlu0 0
        %4225 = vperm.xlu0 %4224, %v4058
        %v4226 = vpop.permute.xlu0 %4225
        %4227 = vset.pattern.permute.xlu0 0
        %4228 = vperm.xlu0 %4227, %v4059
        %v4229 = vpop.permute.xlu0 %4228
        %4230 = vset.pattern.permute.xlu0 0
        %4231 = vperm.xlu0 %4230, %v4060
        %v4232 = vpop.permute.xlu0 %4231
        %4233 = vset.pattern.permute.xlu0 0
        %4234 = vperm.xlu0 %4233, %v4061
        %v4235 = vpop.permute.xlu0 %4234
        %4236 = vset.pattern.permute.xlu0 0
        %4237 = vperm.xlu0 %4236, %v4062
        %v4238 = vpop.permute.xlu0 %4237
        %4239 = vset.pattern.permute.xlu0 0
        %4240 = vperm.xlu0 %4239, %v4063
        %v4241 = vpop.permute.xlu0 %4240
        %4242 = vset.pattern.permute.xlu0 0
        %4243 = vperm.xlu0 %4242, %v4064
        %v4244 = vpop.permute.xlu0 %4243
        %4245 = vset.pattern.permute.xlu0 0
        %4246 = vperm.xlu0 %4245, %v4065
        %v4247 = vpop.permute.xlu0 %4246
        %4248 = vset.pattern.permute.xlu0 0
        %4249 = vperm.xlu0 %4248, %v4066
        %v4250 = vpop.permute.xlu0 %4249
        %4251 = vset.pattern.permute.xlu0 0
        %4252 = vperm.xlu0 %4251, %v4067
        %v4253 = vpop.permute.xlu0 %4252
        %4254 = vset.pattern.permute.xlu0 0
        %4255 = vperm.xlu0 %4254, %v4068
        %v4256 = vpop.permute.xlu0 %4255
        %4257 = vset.pattern.permute.xlu0 0
        %4258 = vperm.xlu0 %4257, %v4069
        %v4259 = vpop.permute.xlu0 %4258
        %4260 = vset.pattern.permute.xlu0 0
        %4261 = vperm.xlu0 %4260, %v4070
        %v4262 = vpop.permute.xlu0 %4261
        %4263 = vset.pattern.permute.xlu0 0
        %4264 = vperm.xlu0 %4263, %v4071
        %v4265 = vpop.permute.xlu0 %4264
        %4266 = vset.pattern.permute.xlu0 0
        %4267 = vperm.xlu0 %4266, %v4072
        %v4268 = vpop.permute.xlu0 %4267
        %4269 = vset.pattern.permute.xlu0 0
        %4270 = vperm.xlu0 %4269, %v4073
        %v4271 = vpop.permute.xlu0 %4270
        %4272 = vset.pattern.permute.xlu0 0
        %4273 = vperm.xlu0 %4272, %v4074
        %v4274 = vpop.permute.xlu0 %4273
        %4275 = vset.pattern.permute.xlu0 0
        %4276 = vperm.xlu0 %4275, %v4075
        %v4277 = vpop.permute.xlu0 %4276
        %4278 = vset.pattern.permute.xlu0 0
        %4279 = vperm.xlu0 %4278, %v4076
        %v4280 = vpop.permute.xlu0 %4279
        %4281 = vset.pattern.permute.xlu0 0
        %4282 = vperm.xlu0 %4281, %v4077
        %v4283 = vpop.permute.xlu0 %4282
        %4284 = vset.pattern.permute.xlu0 0
        %4285 = vperm.xlu0 %4284, %v4078
        %v4286 = vpop.permute.xlu0 %4285
        %4287 = vset.pattern.permute.xlu0 0
        %4288 = vperm.xlu0 %4287, %v4079
        %v4289 = vpop.permute.xlu0 %4288
        %4290 = vset.pattern.permute.xlu0 0
        %4291 = vperm.xlu0 %4290, %v4080
        %v4292 = vpop.permute.xlu0 %4291
        %4293 = vset.pattern.permute.xlu0 0
        %4294 = vperm.xlu0 %4293, %v4081
        %v4295 = vpop.permute.xlu0 %4294
        %4296 = vset.pattern.permute.xlu0 0
        %4297 = vperm.xlu0 %4296, %v4082
        %v4298 = vpop.permute.xlu0 %4297
        %4299 = vset.pattern.permute.xlu0 0
        %4300 = vperm.xlu0 %4299, %v4083
        %v4301 = vpop.permute.xlu0 %4300
        %4302 = vset.pattern.permute.xlu0 0
        %4303 = vperm.xlu0 %4302, %v4084
        %v4304 = vpop.permute.xlu0 %4303
        %4305 = vset.pattern.permute.xlu0 0
        %4306 = vperm.xlu0 %4305, %v4085
        %v4307 = vpop.permute.xlu0 %4306
        %4308 = vset.pattern.permute.xlu0 0
        %4309 = vperm.xlu0 %4308, %v4086
        %v4310 = vpop.permute.xlu0 %4309
        %4311 = vset.pattern.permute.xlu0 0
        %4312 = vperm.xlu0 %4311, %v4087
        %v4313 = vpop.permute.xlu0 %4312
        %4314 = vset.pattern.permute.xlu0 0
        %4315 = vperm.xlu0 %4314, %v4088
        %v4316 = vpop.permute.xlu0 %4315
        %4317 = vset.pattern.permute.xlu0 0
        %4318 = vperm.xlu0 %4317, %v4089
        %v4319 = vpop.permute.xlu0 %4318
        %4320 = vset.pattern.permute.xlu0 0
        %4321 = vperm.xlu0 %4320, %v4090
        %v4322 = vpop.permute.xlu0 %4321
        %4323 = vset.pattern.permute.xlu0 0
        %4324 = vperm.xlu0 %4323, %v4091
        %v4325 = vpop.permute.xlu0 %4324
        %4326 = vset.pattern.permute.xlu0 0
        %4327 = vperm.xlu0 %4326, %v4092
        %v4328 = vpop.permute.xlu0 %4327
        %4329 = vset.pattern.permute.xlu0 0
        %4330 = vperm.xlu0 %4329, %v4093
        %v4331 = vpop.permute.xlu0 %4330
        %4332 = vset.pattern.permute.xlu0 0
        %4333 = vperm.xlu0 %4332, %v4094
        %v4334 = vpop.permute.xlu0 %4333
        %4335 = vset.pattern.permute.xlu0 0
        %4336 = vperm.xlu0 %4335, %v4095
        %v4337 = vpop.permute.xlu0 %4336
        %4338 = vset.pattern.permute.xlu0 0
        %4339 = vperm.xlu0 %4338, %v4096
        %v4340 = vpop.permute.xlu0 %4339
        %4341 = vset.pattern.permute.xlu0 0
        %4342 = vperm.xlu0 %4341, %v4097
        %v4343 = vpop.permute.xlu0 %4342
        %4344 = vset.pattern.permute.xlu0 0
        %4345 = vperm.xlu0 %4344, %v4098
        %v4346 = vpop.permute.xlu0 %4345
        %4347 = vset.pattern.permute.xlu0 0
        %4348 = vperm.xlu0 %4347, %v4099
        %v4349 = vpop.permute.xlu0 %4348
        %4350 = vset.pattern.permute.xlu0 0
        %4351 = vperm.xlu0 %4350, %v4100
        %v4352 = vpop.permute.xlu0 %4351
        %4353 = vset.pattern.permute.xlu0 0
        %4354 = vperm.xlu0 %4353, %v4101
        %v4355 = vpop.permute.xlu0 %4354
        %4356 = vset.pattern.permute.xlu0 0
        %4357 = vperm.xlu0 %4356, %v4102
        %v4358 = vpop.permute.xlu0 %4357
        %4359 = vset.pattern.permute.xlu0 0
        %4360 = vperm.xlu0 %4359, %v4103
        %v4361 = vpop.permute.xlu0 %4360
        %4362 = vset.pattern.permute.xlu0 0
        %4363 = vperm.xlu0 %4362, %v4104
        %v4364 = vpop.permute.xlu0 %4363
        %4365 = vset.pattern.permute.xlu0 0
        %4366 = vperm.xlu0 %4365, %v4105
        %v4367 = vpop.permute.xlu0 %4366
        %4368 = vset.pattern.permute.xlu0 0
        %4369 = vperm.xlu0 %4368, %v4106
        %v4370 = vpop.permute.xlu0 %4369
        %4371 = vset.pattern.permute.xlu0 0
        %4372 = vperm.xlu0 %4371, %v4107
        %v4373 = vpop.permute.xlu0 %4372
        %4374 = vset.pattern.permute.xlu0 0
        %4375 = vperm.xlu0 %4374, %v4108
        %v4376 = vpop.permute.xlu0 %4375
        %4377 = vset.pattern.permute.xlu0 0
        %4378 = vperm.xlu0 %4377, %v4109
        %v4379 = vpop.permute.xlu0 %4378
        %4380 = vset.pattern.permute.xlu0 0
        %4381 = vperm.xlu0 %4380, %v4110
        %v4382 = vpop.permute.xlu0 %4381
        %4383 = vset.pattern.permute.xlu0 0
        %4384 = vperm.xlu0 %4383, %v4111
        %v4385 = vpop.permute.xlu0 %4384
        %4386 = vset.pattern.permute.xlu0 0
        %4387 = vperm.xlu0 %4386, %v4112
        %v4388 = vpop.permute.xlu0 %4387
        %4389 = vset.pattern.permute.xlu0 0
        %4390 = vperm.xlu0 %4389, %v4113
        %v4391 = vpop.permute.xlu0 %4390
        %4392 = vset.pattern.permute.xlu0 0
        %4393 = vperm.xlu0 %4392, %v4114
        %v4394 = vpop.permute.xlu0 %4393
        %4395 = vset.pattern.permute.xlu0 0
        %4396 = vperm.xlu0 %4395, %v4115
        %v4397 = vpop.permute.xlu0 %4396
        %4398 = vset.pattern.permute.xlu0 0
        %4399 = vperm.xlu0 %4398, %v4116
        %v4400 = vpop.permute.xlu0 %4399
        %4401 = vset.pattern.permute.xlu0 0
        %4402 = vperm.xlu0 %4401, %v4117
        %v4403 = vpop.permute.xlu0 %4402
        %4404 = vset.pattern.permute.xlu0 0
        %4405 = vperm.xlu0 %4404, %v4118
        %v4406 = vpop.permute.xlu0 %4405
        %4407 = vset.pattern.permute.xlu0 0
        %4408 = vperm.xlu0 %4407, %v4119
        %v4409 = vpop.permute.xlu0 %4408
        %4410 = vset.pattern.permute.xlu0 0
        %4411 = vperm.xlu0 %4410, %v4120
        %v4412 = vpop.permute.xlu0 %4411
        %4413 = vset.pattern.permute.xlu0 0
        %4414 = vperm.xlu0 %4413, %v4121
        %v4415 = vpop.permute.xlu0 %4414
        %4416 = vset.pattern.permute.xlu0 0
        %4417 = vperm.xlu0 %4416, %v4122
        %v4418 = vpop.permute.xlu0 %4417
        %4419 = vset.pattern.permute.xlu0 0
        %4420 = vperm.xlu0 %4419, %v4123
        %v4421 = vpop.permute.xlu0 %4420
        %4422 = vset.pattern.permute.xlu0 0
        %4423 = vperm.xlu0 %4422, %v4124
        %v4424 = vpop.permute.xlu0 %4423
        %4425 = vset.pattern.permute.xlu0 0
        %4426 = vperm.xlu0 %4425, %v4125
        %v4427 = vpop.permute.xlu0 %4426
        %4428 = vset.pattern.permute.xlu0 0
        %4429 = vperm.xlu0 %4428, %v4126
        %v4430 = vpop.permute.xlu0 %4429
        %4431 = vset.pattern.permute.xlu0 0
        %4432 = vperm.xlu0 %4431, %v4127
        %v4433 = vpop.permute.xlu0 %4432
        %4434 = vset.pattern.permute.xlu0 0
        %4435 = vperm.xlu0 %4434, %v4128
        %v4436 = vpop.permute.xlu0 %4435
        %4437 = vset.pattern.permute.xlu0 0
        %4438 = vperm.xlu0 %4437, %v4129
        %v4439 = vpop.permute.xlu0 %4438
        %4440 = vset.pattern.permute.xlu0 0
        %4441 = vperm.xlu0 %4440, %v4130
        %v4442 = vpop.permute.xlu0 %4441
        %4443 = vset.pattern.permute.xlu0 0
        %4444 = vperm.xlu0 %4443, %v4131
        %v4445 = vpop.permute.xlu0 %4444
        %4446 = vset.pattern.permute.xlu0 0
        %4447 = vperm.xlu0 %4446, %v4132
        %v4448 = vpop.permute.xlu0 %4447
        %4449 = vset.pattern.permute.xlu0 0
        %4450 = vperm.xlu0 %4449, %v4133
        %v4451 = vpop.permute.xlu0 %4450
        %4452 = vset.pattern.permute.xlu0 0
        %4453 = vperm.xlu0 %4452, %v4134
        %v4454 = vpop.permute.xlu0 %4453
        %4455 = vset.pattern.permute.xlu0 0
        %4456 = vperm.xlu0 %4455, %v4135
        %v4457 = vpop.permute.xlu0 %4456
        %4458 = vset.pattern.permute.xlu0 0
        %4459 = vperm.xlu0 %4458, %v4136
        %v4460 = vpop.permute.xlu0 %4459
        %4461 = vset.pattern.permute.xlu0 0
        %4462 = vperm.xlu0 %4461, %v4137
        %v4463 = vpop.permute.xlu0 %4462
        %4464 = vset.pattern.permute.xlu0 0
        %4465 = vperm.xlu0 %4464, %v4138
        %v4466 = vpop.permute.xlu0 %4465
        %4467 = vset.pattern.permute.xlu0 0
        %4468 = vperm.xlu0 %4467, %v4139
        %v4469 = vpop.permute.xlu0 %4468
        %4470 = vset.pattern.permute.xlu0 0
        %4471 = vperm.xlu0 %4470, %v4140
        %v4472 = vpop.permute.xlu0 %4471
        %4473 = vset.pattern.permute.xlu0 0
        %4474 = vperm.xlu0 %4473, %v4141
        %v4475 = vpop.permute.xlu0 %4474
        %4476 = vset.pattern.permute.xlu0 0
        %4477 = vperm.xlu0 %4476, %v4142
        %v4478 = vpop.permute.xlu0 %4477
        %4479 = vset.pattern.permute.xlu0 0
        %4480 = vperm.xlu0 %4479, %v4143
        %v4481 = vpop.permute.xlu0 %4480
        %4482 = vset.pattern.permute.xlu0 0
        %4483 = vperm.xlu0 %4482, %v4144
        %v4484 = vpop.permute.xlu0 %4483
        %4485 = vset.pattern.permute.xlu0 0
        %4486 = vperm.xlu0 %4485, %v4145
        %v4487 = vpop.permute.xlu0 %4486
        %4488 = vset.pattern.permute.xlu0 0
        %4489 = vperm.xlu0 %4488, %v4146
        %v4490 = vpop.permute.xlu0 %4489
        %4491 = vset.pattern.permute.xlu0 0
        %4492 = vperm.xlu0 %4491, %v4147
        %v4493 = vpop.permute.xlu0 %4492
        %4494 = vset.pattern.permute.xlu0 0
        %4495 = vperm.xlu0 %4494, %v4148
        %v4496 = vpop.permute.xlu0 %4495
        %4497 = vset.pattern.permute.xlu0 0
        %4498 = vperm.xlu0 %4497, %v4149
        %v4499 = vpop.permute.xlu0 %4498
        %4500 = vset.pattern.permute.xlu0 0
        %4501 = vperm.xlu0 %4500, %v4150
        %v4502 = vpop.permute.xlu0 %4501
        %4503 = vset.pattern.permute.xlu0 0
        %4504 = vperm.xlu0 %4503, %v4151
        %v4505 = vpop.permute.xlu0 %4504
        %4506 = vset.pattern.permute.xlu0 0
        %4507 = vperm.xlu0 %4506, %v4152
        %v4508 = vpop.permute.xlu0 %4507
        %4509 = vset.pattern.permute.xlu0 0
        %4510 = vperm.xlu0 %4509, %v4153
        %v4511 = vpop.permute.xlu0 %4510
        %4512 = vset.pattern.permute.xlu0 0
        %4513 = vperm.xlu0 %4512, %v4154
        %v4514 = vpop.permute.xlu0 %4513
        %4515 = vset.pattern.permute.xlu0 0
        %4516 = vperm.xlu0 %4515, %v4155
        %v4517 = vpop.permute.xlu0 %4516
        %4518 = vset.pattern.permute.xlu0 0
        %4519 = vperm.xlu0 %4518, %v4156
        %v4520 = vpop.permute.xlu0 %4519
        %4521 = vset.pattern.permute.xlu0 0
        %4522 = vperm.xlu0 %4521, %v4157
        %v4523 = vpop.permute.xlu0 %4522
        %4524 = vset.pattern.permute.xlu0 0
        %4525 = vperm.xlu0 %4524, %v4158
        %v4526 = vpop.permute.xlu0 %4525
        %4527 = vset.pattern.permute.xlu0 0
        %4528 = vperm.xlu0 %4527, %v4159
        %v4529 = vpop.permute.xlu0 %4528
        %4530 = vset.pattern.permute.xlu0 0
        %4531 = vperm.xlu0 %4530, %v4160
        %v4532 = vpop.permute.xlu0 %4531
        %4533 = vset.pattern.permute.xlu0 0
        %4534 = vperm.xlu0 %4533, %v4161
        %v4535 = vpop.permute.xlu0 %4534
        %4536 = vset.pattern.permute.xlu0 0
        %4537 = vperm.xlu0 %4536, %v4162
        %v4538 = vpop.permute.xlu0 %4537
        %4539 = vset.pattern.permute.xlu0 0
        %4540 = vperm.xlu0 %4539, %v4163
        %v4541 = vpop.permute.xlu0 %4540
        %4542 = vset.pattern.permute.xlu0 0
        %4543 = vperm.xlu0 %4542, %v4164
        %v4544 = vpop.permute.xlu0 %4543
        %4545 = vset.pattern.permute.xlu0 0
        %4546 = vperm.xlu0 %4545, %v4165
        %v4547 = vpop.permute.xlu0 %4546
        %4548 = vset.pattern.permute.xlu0 0
        %4549 = vperm.xlu0 %4548, %v4166
        %v4550 = vpop.permute.xlu0 %4549
        %vm4551 = vcmp.eq.s32.totalorder %v4169, %v350
        %vm4552 = vcmp.eq.s32.totalorder %v4172, %v350
        %vm4553 = vcmp.eq.s32.totalorder %v4175, %v350
        %vm4554 = vcmp.eq.s32.totalorder %v4178, %v350
        %vm4555 = vcmp.eq.s32.totalorder %v4181, %v350
        %vm4556 = vcmp.eq.s32.totalorder %v4184, %v350
        %vm4557 = vcmp.eq.s32.totalorder %v4187, %v350
        %vm4558 = vcmp.eq.s32.totalorder %v4190, %v350
        %vm4559 = vcmp.eq.s32.totalorder %v4193, %v350
        %vm4560 = vcmp.eq.s32.totalorder %v4196, %v350
        %vm4561 = vcmp.eq.s32.totalorder %v4199, %v350
        %vm4562 = vcmp.eq.s32.totalorder %v4202, %v350
        %vm4563 = vcmp.eq.s32.totalorder %v4205, %v350
        %vm4564 = vcmp.eq.s32.totalorder %v4208, %v350
        %vm4565 = vcmp.eq.s32.totalorder %v4211, %v350
        %vm4566 = vcmp.eq.s32.totalorder %v4214, %v350
        %vm4567 = vcmp.eq.s32.totalorder %v4217, %v350
        %vm4568 = vcmp.eq.s32.totalorder %v4220, %v350
        %vm4569 = vcmp.eq.s32.totalorder %v4223, %v350
        %vm4570 = vcmp.eq.s32.totalorder %v4226, %v350
        %vm4571 = vcmp.eq.s32.totalorder %v4229, %v350
        %vm4572 = vcmp.eq.s32.totalorder %v4232, %v350
        %vm4573 = vcmp.eq.s32.totalorder %v4235, %v350
        %vm4574 = vcmp.eq.s32.totalorder %v4238, %v350
        %vm4575 = vcmp.eq.s32.totalorder %v4241, %v350
        %vm4576 = vcmp.eq.s32.totalorder %v4244, %v350
        %vm4577 = vcmp.eq.s32.totalorder %v4247, %v350
        %vm4578 = vcmp.eq.s32.totalorder %v4250, %v350
        %vm4579 = vcmp.eq.s32.totalorder %v4253, %v350
        %vm4580 = vcmp.eq.s32.totalorder %v4256, %v350
        %vm4581 = vcmp.eq.s32.totalorder %v4259, %v350
        %vm4582 = vcmp.eq.s32.totalorder %v4262, %v350
        %vm4583 = vcmp.eq.s32.totalorder %v4265, %v350
        %vm4584 = vcmp.eq.s32.totalorder %v4268, %v350
        %vm4585 = vcmp.eq.s32.totalorder %v4271, %v350
        %vm4586 = vcmp.eq.s32.totalorder %v4274, %v350
        %vm4587 = vcmp.eq.s32.totalorder %v4277, %v350
        %vm4588 = vcmp.eq.s32.totalorder %v4280, %v350
        %vm4589 = vcmp.eq.s32.totalorder %v4283, %v350
        %vm4590 = vcmp.eq.s32.totalorder %v4286, %v350
        %vm4591 = vcmp.eq.s32.totalorder %v4289, %v350
        %vm4592 = vcmp.eq.s32.totalorder %v4292, %v350
        %vm4593 = vcmp.eq.s32.totalorder %v4295, %v350
        %vm4594 = vcmp.eq.s32.totalorder %v4298, %v350
        %vm4595 = vcmp.eq.s32.totalorder %v4301, %v350
        %vm4596 = vcmp.eq.s32.totalorder %v4304, %v350
        %vm4597 = vcmp.eq.s32.totalorder %v4307, %v350
        %vm4598 = vcmp.eq.s32.totalorder %v4310, %v350
        %vm4599 = vcmp.eq.s32.totalorder %v4313, %v350
        %vm4600 = vcmp.eq.s32.totalorder %v4316, %v350
        %vm4601 = vcmp.eq.s32.totalorder %v4319, %v350
        %vm4602 = vcmp.eq.s32.totalorder %v4322, %v350
        %vm4603 = vcmp.eq.s32.totalorder %v4325, %v350
        %vm4604 = vcmp.eq.s32.totalorder %v4328, %v350
        %vm4605 = vcmp.eq.s32.totalorder %v4331, %v350
        %vm4606 = vcmp.eq.s32.totalorder %v4334, %v350
        %vm4607 = vcmp.eq.s32.totalorder %v4337, %v350
        %vm4608 = vcmp.eq.s32.totalorder %v4340, %v350
        %vm4609 = vcmp.eq.s32.totalorder %v4343, %v350
        %vm4610 = vcmp.eq.s32.totalorder %v4346, %v350
        %vm4611 = vcmp.eq.s32.totalorder %v4349, %v350
        %vm4612 = vcmp.eq.s32.totalorder %v4352, %v350
        %vm4613 = vcmp.eq.s32.totalorder %v4355, %v350
        %vm4614 = vcmp.eq.s32.totalorder %v4358, %v350
        %vm4615 = vcmp.eq.s32.totalorder %v4361, %v350
        %vm4616 = vcmp.eq.s32.totalorder %v4364, %v350
        %vm4617 = vcmp.eq.s32.totalorder %v4367, %v350
        %vm4618 = vcmp.eq.s32.totalorder %v4370, %v350
        %vm4619 = vcmp.eq.s32.totalorder %v4373, %v350
        %vm4620 = vcmp.eq.s32.totalorder %v4376, %v350
        %vm4621 = vcmp.eq.s32.totalorder %v4379, %v350
        %vm4622 = vcmp.eq.s32.totalorder %v4382, %v350
        %vm4623 = vcmp.eq.s32.totalorder %v4385, %v350
        %vm4624 = vcmp.eq.s32.totalorder %v4388, %v350
        %vm4625 = vcmp.eq.s32.totalorder %v4391, %v350
        %vm4626 = vcmp.eq.s32.totalorder %v4394, %v350
        %vm4627 = vcmp.eq.s32.totalorder %v4397, %v350
        %vm4628 = vcmp.eq.s32.totalorder %v4400, %v350
        %vm4629 = vcmp.eq.s32.totalorder %v4403, %v350
        %vm4630 = vcmp.eq.s32.totalorder %v4406, %v350
        %vm4631 = vcmp.eq.s32.totalorder %v4409, %v350
        %vm4632 = vcmp.eq.s32.totalorder %v4412, %v350
        %vm4633 = vcmp.eq.s32.totalorder %v4415, %v350
        %vm4634 = vcmp.eq.s32.totalorder %v4418, %v350
        %vm4635 = vcmp.eq.s32.totalorder %v4421, %v350
        %vm4636 = vcmp.eq.s32.totalorder %v4424, %v350
        %vm4637 = vcmp.eq.s32.totalorder %v4427, %v350
        %vm4638 = vcmp.eq.s32.totalorder %v4430, %v350
        %vm4639 = vcmp.eq.s32.totalorder %v4433, %v350
        %vm4640 = vcmp.eq.s32.totalorder %v4436, %v350
        %vm4641 = vcmp.eq.s32.totalorder %v4439, %v350
        %vm4642 = vcmp.eq.s32.totalorder %v4442, %v350
        %vm4643 = vcmp.eq.s32.totalorder %v4445, %v350
        %vm4644 = vcmp.eq.s32.totalorder %v4448, %v350
        %vm4645 = vcmp.eq.s32.totalorder %v4451, %v350
        %vm4646 = vcmp.eq.s32.totalorder %v4454, %v350
        %vm4647 = vcmp.eq.s32.totalorder %v4457, %v350
        %vm4648 = vcmp.eq.s32.totalorder %v4460, %v350
        %vm4649 = vcmp.eq.s32.totalorder %v4463, %v350
        %vm4650 = vcmp.eq.s32.totalorder %v4466, %v350
        %vm4651 = vcmp.eq.s32.totalorder %v4469, %v350
        %vm4652 = vcmp.eq.s32.totalorder %v4472, %v350
        %vm4653 = vcmp.eq.s32.totalorder %v4475, %v350
        %vm4654 = vcmp.eq.s32.totalorder %v4478, %v350
        %vm4655 = vcmp.eq.s32.totalorder %v4481, %v350
        %vm4656 = vcmp.eq.s32.totalorder %v4484, %v350
        %vm4657 = vcmp.eq.s32.totalorder %v4487, %v350
        %vm4658 = vcmp.eq.s32.totalorder %v4490, %v350
        %vm4659 = vcmp.eq.s32.totalorder %v4493, %v350
        %vm4660 = vcmp.eq.s32.totalorder %v4496, %v350
        %vm4661 = vcmp.eq.s32.totalorder %v4499, %v350
        %vm4662 = vcmp.eq.s32.totalorder %v4502, %v350
        %vm4663 = vcmp.eq.s32.totalorder %v4505, %v350
        %vm4664 = vcmp.eq.s32.totalorder %v4508, %v350
        %vm4665 = vcmp.eq.s32.totalorder %v4511, %v350
        %vm4666 = vcmp.eq.s32.totalorder %v4514, %v350
        %vm4667 = vcmp.eq.s32.totalorder %v4517, %v350
        %vm4668 = vcmp.eq.s32.totalorder %v4520, %v350
        %vm4669 = vcmp.eq.s32.totalorder %v4523, %v350
        %vm4670 = vcmp.eq.s32.totalorder %v4526, %v350
        %vm4671 = vcmp.eq.s32.totalorder %v4529, %v350
        %vm4672 = vcmp.eq.s32.totalorder %v4532, %v350
        %vm4673 = vcmp.eq.s32.totalorder %v4535, %v350
        %vm4674 = vcmp.eq.s32.totalorder %v4538, %v350
        %vm4675 = vcmp.eq.s32.totalorder %v4541, %v350
        %vm4676 = vcmp.eq.s32.totalorder %v4544, %v350
        %vm4677 = vcmp.eq.s32.totalorder %v4547, %v350
        %vm4678 = vcmp.eq.s32.totalorder %v4550, %v350
        %v4679 = vsel %vm4551, 1, 0
        %v4680 = vsel %vm4552, 1, 0
        %v4681 = vsel %vm4553, 1, 0
        %v4682 = vsel %vm4554, 1, 0
        %v4683 = vsel %vm4555, 1, 0
        %v4684 = vsel %vm4556, 1, 0
        %v4685 = vsel %vm4557, 1, 0
        %v4686 = vsel %vm4558, 1, 0
        %v4687 = vsel %vm4559, 1, 0
        %v4688 = vsel %vm4560, 1, 0
        %v4689 = vsel %vm4561, 1, 0
        %v4690 = vsel %vm4562, 1, 0
        %v4691 = vsel %vm4563, 1, 0
        %v4692 = vsel %vm4564, 1, 0
        %v4693 = vsel %vm4565, 1, 0
        %v4694 = vsel %vm4566, 1, 0
        %v4695 = vsel %vm4567, 1, 0
        %v4696 = vsel %vm4568, 1, 0
        %v4697 = vsel %vm4569, 1, 0
        %v4698 = vsel %vm4570, 1, 0
        %v4699 = vsel %vm4571, 1, 0
        %v4700 = vsel %vm4572, 1, 0
        %v4701 = vsel %vm4573, 1, 0
        %v4702 = vsel %vm4574, 1, 0
        %v4703 = vsel %vm4575, 1, 0
        %v4704 = vsel %vm4576, 1, 0
        %v4705 = vsel %vm4577, 1, 0
        %v4706 = vsel %vm4578, 1, 0
        %v4707 = vsel %vm4579, 1, 0
        %v4708 = vsel %vm4580, 1, 0
        %v4709 = vsel %vm4581, 1, 0
        %v4710 = vsel %vm4582, 1, 0
        %v4711 = vsel %vm4583, 1, 0
        %v4712 = vsel %vm4584, 1, 0
        %v4713 = vsel %vm4585, 1, 0
        %v4714 = vsel %vm4586, 1, 0
        %v4715 = vsel %vm4587, 1, 0
        %v4716 = vsel %vm4588, 1, 0
        %v4717 = vsel %vm4589, 1, 0
        %v4718 = vsel %vm4590, 1, 0
        %v4719 = vsel %vm4591, 1, 0
        %v4720 = vsel %vm4592, 1, 0
        %v4721 = vsel %vm4593, 1, 0
        %v4722 = vsel %vm4594, 1, 0
        %v4723 = vsel %vm4595, 1, 0
        %v4724 = vsel %vm4596, 1, 0
        %v4725 = vsel %vm4597, 1, 0
        %v4726 = vsel %vm4598, 1, 0
        %v4727 = vsel %vm4599, 1, 0
        %v4728 = vsel %vm4600, 1, 0
        %v4729 = vsel %vm4601, 1, 0
        %v4730 = vsel %vm4602, 1, 0
        %v4731 = vsel %vm4603, 1, 0
        %v4732 = vsel %vm4604, 1, 0
        %v4733 = vsel %vm4605, 1, 0
        %v4734 = vsel %vm4606, 1, 0
        %v4735 = vsel %vm4607, 1, 0
        %v4736 = vsel %vm4608, 1, 0
        %v4737 = vsel %vm4609, 1, 0
        %v4738 = vsel %vm4610, 1, 0
        %v4739 = vsel %vm4611, 1, 0
        %v4740 = vsel %vm4612, 1, 0
        %v4741 = vsel %vm4613, 1, 0
        %v4742 = vsel %vm4614, 1, 0
        %v4743 = vsel %vm4615, 1, 0
        %v4744 = vsel %vm4616, 1, 0
        %v4745 = vsel %vm4617, 1, 0
        %v4746 = vsel %vm4618, 1, 0
        %v4747 = vsel %vm4619, 1, 0
        %v4748 = vsel %vm4620, 1, 0
        %v4749 = vsel %vm4621, 1, 0
        %v4750 = vsel %vm4622, 1, 0
        %v4751 = vsel %vm4623, 1, 0
        %v4752 = vsel %vm4624, 1, 0
        %v4753 = vsel %vm4625, 1, 0
        %v4754 = vsel %vm4626, 1, 0
        %v4755 = vsel %vm4627, 1, 0
        %v4756 = vsel %vm4628, 1, 0
        %v4757 = vsel %vm4629, 1, 0
        %v4758 = vsel %vm4630, 1, 0
        %v4759 = vsel %vm4631, 1, 0
        %v4760 = vsel %vm4632, 1, 0
        %v4761 = vsel %vm4633, 1, 0
        %v4762 = vsel %vm4634, 1, 0
        %v4763 = vsel %vm4635, 1, 0
        %v4764 = vsel %vm4636, 1, 0
        %v4765 = vsel %vm4637, 1, 0
        %v4766 = vsel %vm4638, 1, 0
        %v4767 = vsel %vm4639, 1, 0
        %v4768 = vsel %vm4640, 1, 0
        %v4769 = vsel %vm4641, 1, 0
        %v4770 = vsel %vm4642, 1, 0
        %v4771 = vsel %vm4643, 1, 0
        %v4772 = vsel %vm4644, 1, 0
        %v4773 = vsel %vm4645, 1, 0
        %v4774 = vsel %vm4646, 1, 0
        %v4775 = vsel %vm4647, 1, 0
        %v4776 = vsel %vm4648, 1, 0
        %v4777 = vsel %vm4649, 1, 0
        %v4778 = vsel %vm4650, 1, 0
        %v4779 = vsel %vm4651, 1, 0
        %v4780 = vsel %vm4652, 1, 0
        %v4781 = vsel %vm4653, 1, 0
        %v4782 = vsel %vm4654, 1, 0
        %v4783 = vsel %vm4655, 1, 0
        %v4784 = vsel %vm4656, 1, 0
        %v4785 = vsel %vm4657, 1, 0
        %v4786 = vsel %vm4658, 1, 0
        %v4787 = vsel %vm4659, 1, 0
        %v4788 = vsel %vm4660, 1, 0
        %v4789 = vsel %vm4661, 1, 0
        %v4790 = vsel %vm4662, 1, 0
        %v4791 = vsel %vm4663, 1, 0
        %v4792 = vsel %vm4664, 1, 0
        %v4793 = vsel %vm4665, 1, 0
        %v4794 = vsel %vm4666, 1, 0
        %v4795 = vsel %vm4667, 1, 0
        %v4796 = vsel %vm4668, 1, 0
        %v4797 = vsel %vm4669, 1, 0
        %v4798 = vsel %vm4670, 1, 0
        %v4799 = vsel %vm4671, 1, 0
        %v4800 = vsel %vm4672, 1, 0
        %v4801 = vsel %vm4673, 1, 0
        %v4802 = vsel %vm4674, 1, 0
        %v4803 = vsel %vm4675, 1, 0
        %v4804 = vsel %vm4676, 1, 0
        %v4805 = vsel %vm4677, 1, 0
        %v4806 = vsel %vm4678, 1, 0
        %v4807 = vcvt.s32.f32 %v4679
        %v4808 = vcvt.s32.f32 %v4680
        %v4809 = vcvt.s32.f32 %v4681
        %v4810 = vcvt.s32.f32 %v4682
        %v4811 = vcvt.s32.f32 %v4683
        %v4812 = vcvt.s32.f32 %v4684
        %v4813 = vcvt.s32.f32 %v4685
        %v4814 = vcvt.s32.f32 %v4686
        %v4815 = vcvt.s32.f32 %v4687
        %v4816 = vcvt.s32.f32 %v4688
        %v4817 = vcvt.s32.f32 %v4689
        %v4818 = vcvt.s32.f32 %v4690
        %v4819 = vcvt.s32.f32 %v4691
        %v4820 = vcvt.s32.f32 %v4692
        %v4821 = vcvt.s32.f32 %v4693
        %v4822 = vcvt.s32.f32 %v4694
        %v4823 = vcvt.s32.f32 %v4695
        %v4824 = vcvt.s32.f32 %v4696
        %v4825 = vcvt.s32.f32 %v4697
        %v4826 = vcvt.s32.f32 %v4698
        %v4827 = vcvt.s32.f32 %v4699
        %v4828 = vcvt.s32.f32 %v4700
        %v4829 = vcvt.s32.f32 %v4701
        %v4830 = vcvt.s32.f32 %v4702
        %v4831 = vcvt.s32.f32 %v4703
        %v4832 = vcvt.s32.f32 %v4704
        %v4833 = vcvt.s32.f32 %v4705
        %v4834 = vcvt.s32.f32 %v4706
        %v4835 = vcvt.s32.f32 %v4707
        %v4836 = vcvt.s32.f32 %v4708
        %v4837 = vcvt.s32.f32 %v4709
        %v4838 = vcvt.s32.f32 %v4710
        %v4839 = vcvt.s32.f32 %v4711
        %v4840 = vcvt.s32.f32 %v4712
        %v4841 = vcvt.s32.f32 %v4713
        %v4842 = vcvt.s32.f32 %v4714
        %v4843 = vcvt.s32.f32 %v4715
        %v4844 = vcvt.s32.f32 %v4716
        %v4845 = vcvt.s32.f32 %v4717
        %v4846 = vcvt.s32.f32 %v4718
        %v4847 = vcvt.s32.f32 %v4719
        %v4848 = vcvt.s32.f32 %v4720
        %v4849 = vcvt.s32.f32 %v4721
        %v4850 = vcvt.s32.f32 %v4722
        %v4851 = vcvt.s32.f32 %v4723
        %v4852 = vcvt.s32.f32 %v4724
        %v4853 = vcvt.s32.f32 %v4725
        %v4854 = vcvt.s32.f32 %v4726
        %v4855 = vcvt.s32.f32 %v4727
        %v4856 = vcvt.s32.f32 %v4728
        %v4857 = vcvt.s32.f32 %v4729
        %v4858 = vcvt.s32.f32 %v4730
        %v4859 = vcvt.s32.f32 %v4731
        %v4860 = vcvt.s32.f32 %v4732
        %v4861 = vcvt.s32.f32 %v4733
        %v4862 = vcvt.s32.f32 %v4734
        %v4863 = vcvt.s32.f32 %v4735
        %v4864 = vcvt.s32.f32 %v4736
        %v4865 = vcvt.s32.f32 %v4737
        %v4866 = vcvt.s32.f32 %v4738
        %v4867 = vcvt.s32.f32 %v4739
        %v4868 = vcvt.s32.f32 %v4740
        %v4869 = vcvt.s32.f32 %v4741
        %v4870 = vcvt.s32.f32 %v4742
        %v4871 = vcvt.s32.f32 %v4743
        %v4872 = vcvt.s32.f32 %v4744
        %v4873 = vcvt.s32.f32 %v4745
        %v4874 = vcvt.s32.f32 %v4746
        %v4875 = vcvt.s32.f32 %v4747
        %v4876 = vcvt.s32.f32 %v4748
        %v4877 = vcvt.s32.f32 %v4749
        %v4878 = vcvt.s32.f32 %v4750
        %v4879 = vcvt.s32.f32 %v4751
        %v4880 = vcvt.s32.f32 %v4752
        %v4881 = vcvt.s32.f32 %v4753
        %v4882 = vcvt.s32.f32 %v4754
        %v4883 = vcvt.s32.f32 %v4755
        %v4884 = vcvt.s32.f32 %v4756
        %v4885 = vcvt.s32.f32 %v4757
        %v4886 = vcvt.s32.f32 %v4758
        %v4887 = vcvt.s32.f32 %v4759
        %v4888 = vcvt.s32.f32 %v4760
        %v4889 = vcvt.s32.f32 %v4761
        %v4890 = vcvt.s32.f32 %v4762
        %v4891 = vcvt.s32.f32 %v4763
        %v4892 = vcvt.s32.f32 %v4764
        %v4893 = vcvt.s32.f32 %v4765
        %v4894 = vcvt.s32.f32 %v4766
        %v4895 = vcvt.s32.f32 %v4767
        %v4896 = vcvt.s32.f32 %v4768
        %v4897 = vcvt.s32.f32 %v4769
        %v4898 = vcvt.s32.f32 %v4770
        %v4899 = vcvt.s32.f32 %v4771
        %v4900 = vcvt.s32.f32 %v4772
        %v4901 = vcvt.s32.f32 %v4773
        %v4902 = vcvt.s32.f32 %v4774
        %v4903 = vcvt.s32.f32 %v4775
        %v4904 = vcvt.s32.f32 %v4776
        %v4905 = vcvt.s32.f32 %v4777
        %v4906 = vcvt.s32.f32 %v4778
        %v4907 = vcvt.s32.f32 %v4779
        %v4908 = vcvt.s32.f32 %v4780
        %v4909 = vcvt.s32.f32 %v4781
        %v4910 = vcvt.s32.f32 %v4782
        %v4911 = vcvt.s32.f32 %v4783
        %v4912 = vcvt.s32.f32 %v4784
        %v4913 = vcvt.s32.f32 %v4785
        %v4914 = vcvt.s32.f32 %v4786
        %v4915 = vcvt.s32.f32 %v4787
        %v4916 = vcvt.s32.f32 %v4788
        %v4917 = vcvt.s32.f32 %v4789
        %v4918 = vcvt.s32.f32 %v4790
        %v4919 = vcvt.s32.f32 %v4791
        %v4920 = vcvt.s32.f32 %v4792
        %v4921 = vcvt.s32.f32 %v4793
        %v4922 = vcvt.s32.f32 %v4794
        %v4923 = vcvt.s32.f32 %v4795
        %v4924 = vcvt.s32.f32 %v4796
        %v4925 = vcvt.s32.f32 %v4797
        %v4926 = vcvt.s32.f32 %v4798
        %v4927 = vcvt.s32.f32 %v4799
        %v4928 = vcvt.s32.f32 %v4800
        %v4929 = vcvt.s32.f32 %v4801
        %v4930 = vcvt.s32.f32 %v4802
        %v4931 = vcvt.s32.f32 %v4803
        %v4932 = vcvt.s32.f32 %v4804
        %v4933 = vcvt.s32.f32 %v4805
        %v4934 = vcvt.s32.f32 %v4806
        %v4935 = vrot.slane %v4807, 4
        %v4936 = vadd.f32 %v4807, %v4935
        %v4937 = vrot.slane %v4936, 2
        %v4938 = vadd.f32 %v4936, %v4937
        %v4939 = vrot.slane %v4938, 1
        %v4940 = vadd.f32 %v4938, %v4939
        %v4941 = vrot.slane %v4808, 4
        %v4942 = vadd.f32 %v4808, %v4941
        %v4943 = vrot.slane %v4942, 2
        %v4944 = vadd.f32 %v4942, %v4943
        %v4945 = vrot.slane %v4944, 1
        %v4946 = vadd.f32 %v4944, %v4945
        %v4947 = vrot.slane %v4809, 4
        %v4948 = vadd.f32 %v4809, %v4947
        %v4949 = vrot.slane %v4948, 2
        %v4950 = vadd.f32 %v4948, %v4949
        %v4951 = vrot.slane %v4950, 1
        %v4952 = vadd.f32 %v4950, %v4951
        %v4953 = vrot.slane %v4810, 4
        %v4954 = vadd.f32 %v4810, %v4953
        %v4955 = vrot.slane %v4954, 2
        %v4956 = vadd.f32 %v4954, %v4955
        %v4957 = vrot.slane %v4956, 1
        %v4958 = vadd.f32 %v4956, %v4957
        %v4959 = vrot.slane %v4811, 4
        %v4960 = vadd.f32 %v4811, %v4959
        %v4961 = vrot.slane %v4960, 2
        %v4962 = vadd.f32 %v4960, %v4961
        %v4963 = vrot.slane %v4962, 1
        %v4964 = vadd.f32 %v4962, %v4963
        %v4965 = vrot.slane %v4812, 4
        %v4966 = vadd.f32 %v4812, %v4965
        %v4967 = vrot.slane %v4966, 2
        %v4968 = vadd.f32 %v4966, %v4967
        %v4969 = vrot.slane %v4968, 1
        %v4970 = vadd.f32 %v4968, %v4969
        %v4971 = vrot.slane %v4813, 4
        %v4972 = vadd.f32 %v4813, %v4971
        %v4973 = vrot.slane %v4972, 2
        %v4974 = vadd.f32 %v4972, %v4973
        %v4975 = vrot.slane %v4974, 1
        %v4976 = vadd.f32 %v4974, %v4975
        %v4977 = vrot.slane %v4814, 4
        %v4978 = vadd.f32 %v4814, %v4977
        %v4979 = vrot.slane %v4978, 2
        %v4980 = vadd.f32 %v4978, %v4979
        %v4981 = vrot.slane %v4980, 1
        %v4982 = vadd.f32 %v4980, %v4981
        %v4983 = vrot.slane %v4815, 4
        %v4984 = vadd.f32 %v4815, %v4983
        %v4985 = vrot.slane %v4984, 2
        %v4986 = vadd.f32 %v4984, %v4985
        %v4987 = vrot.slane %v4986, 1
        %v4988 = vadd.f32 %v4986, %v4987
        %v4989 = vrot.slane %v4816, 4
        %v4990 = vadd.f32 %v4816, %v4989
        %v4991 = vrot.slane %v4990, 2
        %v4992 = vadd.f32 %v4990, %v4991
        %v4993 = vrot.slane %v4992, 1
        %v4994 = vadd.f32 %v4992, %v4993
        %v4995 = vrot.slane %v4817, 4
        %v4996 = vadd.f32 %v4817, %v4995
        %v4997 = vrot.slane %v4996, 2
        %v4998 = vadd.f32 %v4996, %v4997
        %v4999 = vrot.slane %v4998, 1
        %v5000 = vadd.f32 %v4998, %v4999
        %v5001 = vrot.slane %v4818, 4
        %v5002 = vadd.f32 %v4818, %v5001
        %v5003 = vrot.slane %v5002, 2
        %v5004 = vadd.f32 %v5002, %v5003
        %v5005 = vrot.slane %v5004, 1
        %v5006 = vadd.f32 %v5004, %v5005
        %v5007 = vrot.slane %v4819, 4
        %v5008 = vadd.f32 %v4819, %v5007
        %v5009 = vrot.slane %v5008, 2
        %v5010 = vadd.f32 %v5008, %v5009
        %v5011 = vrot.slane %v5010, 1
        %v5012 = vadd.f32 %v5010, %v5011
        %v5013 = vrot.slane %v4820, 4
        %v5014 = vadd.f32 %v4820, %v5013
        %v5015 = vrot.slane %v5014, 2
        %v5016 = vadd.f32 %v5014, %v5015
        %v5017 = vrot.slane %v5016, 1
        %v5018 = vadd.f32 %v5016, %v5017
        %v5019 = vrot.slane %v4821, 4
        %v5020 = vadd.f32 %v4821, %v5019
        %v5021 = vrot.slane %v5020, 2
        %v5022 = vadd.f32 %v5020, %v5021
        %v5023 = vrot.slane %v5022, 1
        %v5024 = vadd.f32 %v5022, %v5023
        %v5025 = vrot.slane %v4822, 4
        %v5026 = vadd.f32 %v4822, %v5025
        %v5027 = vrot.slane %v5026, 2
        %v5028 = vadd.f32 %v5026, %v5027
        %v5029 = vrot.slane %v5028, 1
        %v5030 = vadd.f32 %v5028, %v5029
        %v5031 = vrot.slane %v4823, 4
        %v5032 = vadd.f32 %v4823, %v5031
        %v5033 = vrot.slane %v5032, 2
        %v5034 = vadd.f32 %v5032, %v5033
        %v5035 = vrot.slane %v5034, 1
        %v5036 = vadd.f32 %v5034, %v5035
        %v5037 = vrot.slane %v4824, 4
        %v5038 = vadd.f32 %v4824, %v5037
        %v5039 = vrot.slane %v5038, 2
        %v5040 = vadd.f32 %v5038, %v5039
        %v5041 = vrot.slane %v5040, 1
        %v5042 = vadd.f32 %v5040, %v5041
        %v5043 = vrot.slane %v4825, 4
        %v5044 = vadd.f32 %v4825, %v5043
        %v5045 = vrot.slane %v5044, 2
        %v5046 = vadd.f32 %v5044, %v5045
        %v5047 = vrot.slane %v5046, 1
        %v5048 = vadd.f32 %v5046, %v5047
        %v5049 = vrot.slane %v4826, 4
        %v5050 = vadd.f32 %v4826, %v5049
        %v5051 = vrot.slane %v5050, 2
        %v5052 = vadd.f32 %v5050, %v5051
        %v5053 = vrot.slane %v5052, 1
        %v5054 = vadd.f32 %v5052, %v5053
        %v5055 = vrot.slane %v4827, 4
        %v5056 = vadd.f32 %v4827, %v5055
        %v5057 = vrot.slane %v5056, 2
        %v5058 = vadd.f32 %v5056, %v5057
        %v5059 = vrot.slane %v5058, 1
        %v5060 = vadd.f32 %v5058, %v5059
        %v5061 = vrot.slane %v4828, 4
        %v5062 = vadd.f32 %v4828, %v5061
        %v5063 = vrot.slane %v5062, 2
        %v5064 = vadd.f32 %v5062, %v5063
        %v5065 = vrot.slane %v5064, 1
        %v5066 = vadd.f32 %v5064, %v5065
        %v5067 = vrot.slane %v4829, 4
        %v5068 = vadd.f32 %v4829, %v5067
        %v5069 = vrot.slane %v5068, 2
        %v5070 = vadd.f32 %v5068, %v5069
        %v5071 = vrot.slane %v5070, 1
        %v5072 = vadd.f32 %v5070, %v5071
        %v5073 = vrot.slane %v4830, 4
        %v5074 = vadd.f32 %v4830, %v5073
        %v5075 = vrot.slane %v5074, 2
        %v5076 = vadd.f32 %v5074, %v5075
        %v5077 = vrot.slane %v5076, 1
        %v5078 = vadd.f32 %v5076, %v5077
        %v5079 = vrot.slane %v4831, 4
        %v5080 = vadd.f32 %v4831, %v5079
        %v5081 = vrot.slane %v5080, 2
        %v5082 = vadd.f32 %v5080, %v5081
        %v5083 = vrot.slane %v5082, 1
        %v5084 = vadd.f32 %v5082, %v5083
        %v5085 = vrot.slane %v4832, 4
        %v5086 = vadd.f32 %v4832, %v5085
        %v5087 = vrot.slane %v5086, 2
        %v5088 = vadd.f32 %v5086, %v5087
        %v5089 = vrot.slane %v5088, 1
        %v5090 = vadd.f32 %v5088, %v5089
        %v5091 = vrot.slane %v4833, 4
        %v5092 = vadd.f32 %v4833, %v5091
        %v5093 = vrot.slane %v5092, 2
        %v5094 = vadd.f32 %v5092, %v5093
        %v5095 = vrot.slane %v5094, 1
        %v5096 = vadd.f32 %v5094, %v5095
        %v5097 = vrot.slane %v4834, 4
        %v5098 = vadd.f32 %v4834, %v5097
        %v5099 = vrot.slane %v5098, 2
        %v5100 = vadd.f32 %v5098, %v5099
        %v5101 = vrot.slane %v5100, 1
        %v5102 = vadd.f32 %v5100, %v5101
        %v5103 = vrot.slane %v4835, 4
        %v5104 = vadd.f32 %v4835, %v5103
        %v5105 = vrot.slane %v5104, 2
        %v5106 = vadd.f32 %v5104, %v5105
        %v5107 = vrot.slane %v5106, 1
        %v5108 = vadd.f32 %v5106, %v5107
        %v5109 = vrot.slane %v4836, 4
        %v5110 = vadd.f32 %v4836, %v5109
        %v5111 = vrot.slane %v5110, 2
        %v5112 = vadd.f32 %v5110, %v5111
        %v5113 = vrot.slane %v5112, 1
        %v5114 = vadd.f32 %v5112, %v5113
        %v5115 = vrot.slane %v4837, 4
        %v5116 = vadd.f32 %v4837, %v5115
        %v5117 = vrot.slane %v5116, 2
        %v5118 = vadd.f32 %v5116, %v5117
        %v5119 = vrot.slane %v5118, 1
        %v5120 = vadd.f32 %v5118, %v5119
        %v5121 = vrot.slane %v4838, 4
        %v5122 = vadd.f32 %v4838, %v5121
        %v5123 = vrot.slane %v5122, 2
        %v5124 = vadd.f32 %v5122, %v5123
        %v5125 = vrot.slane %v5124, 1
        %v5126 = vadd.f32 %v5124, %v5125
        %v5127 = vrot.slane %v4839, 4
        %v5128 = vadd.f32 %v4839, %v5127
        %v5129 = vrot.slane %v5128, 2
        %v5130 = vadd.f32 %v5128, %v5129
        %v5131 = vrot.slane %v5130, 1
        %v5132 = vadd.f32 %v5130, %v5131
        %v5133 = vrot.slane %v4840, 4
        %v5134 = vadd.f32 %v4840, %v5133
        %v5135 = vrot.slane %v5134, 2
        %v5136 = vadd.f32 %v5134, %v5135
        %v5137 = vrot.slane %v5136, 1
        %v5138 = vadd.f32 %v5136, %v5137
        %v5139 = vrot.slane %v4841, 4
        %v5140 = vadd.f32 %v4841, %v5139
        %v5141 = vrot.slane %v5140, 2
        %v5142 = vadd.f32 %v5140, %v5141
        %v5143 = vrot.slane %v5142, 1
        %v5144 = vadd.f32 %v5142, %v5143
        %v5145 = vrot.slane %v4842, 4
        %v5146 = vadd.f32 %v4842, %v5145
        %v5147 = vrot.slane %v5146, 2
        %v5148 = vadd.f32 %v5146, %v5147
        %v5149 = vrot.slane %v5148, 1
        %v5150 = vadd.f32 %v5148, %v5149
        %v5151 = vrot.slane %v4843, 4
        %v5152 = vadd.f32 %v4843, %v5151
        %v5153 = vrot.slane %v5152, 2
        %v5154 = vadd.f32 %v5152, %v5153
        %v5155 = vrot.slane %v5154, 1
        %v5156 = vadd.f32 %v5154, %v5155
        %v5157 = vrot.slane %v4844, 4
        %v5158 = vadd.f32 %v4844, %v5157
        %v5159 = vrot.slane %v5158, 2
        %v5160 = vadd.f32 %v5158, %v5159
        %v5161 = vrot.slane %v5160, 1
        %v5162 = vadd.f32 %v5160, %v5161
        %v5163 = vrot.slane %v4845, 4
        %v5164 = vadd.f32 %v4845, %v5163
        %v5165 = vrot.slane %v5164, 2
        %v5166 = vadd.f32 %v5164, %v5165
        %v5167 = vrot.slane %v5166, 1
        %v5168 = vadd.f32 %v5166, %v5167
        %v5169 = vrot.slane %v4846, 4
        %v5170 = vadd.f32 %v4846, %v5169
        %v5171 = vrot.slane %v5170, 2
        %v5172 = vadd.f32 %v5170, %v5171
        %v5173 = vrot.slane %v5172, 1
        %v5174 = vadd.f32 %v5172, %v5173
        %v5175 = vrot.slane %v4847, 4
        %v5176 = vadd.f32 %v4847, %v5175
        %v5177 = vrot.slane %v5176, 2
        %v5178 = vadd.f32 %v5176, %v5177
        %v5179 = vrot.slane %v5178, 1
        %v5180 = vadd.f32 %v5178, %v5179
        %v5181 = vrot.slane %v4848, 4
        %v5182 = vadd.f32 %v4848, %v5181
        %v5183 = vrot.slane %v5182, 2
        %v5184 = vadd.f32 %v5182, %v5183
        %v5185 = vrot.slane %v5184, 1
        %v5186 = vadd.f32 %v5184, %v5185
        %v5187 = vrot.slane %v4849, 4
        %v5188 = vadd.f32 %v4849, %v5187
        %v5189 = vrot.slane %v5188, 2
        %v5190 = vadd.f32 %v5188, %v5189
        %v5191 = vrot.slane %v5190, 1
        %v5192 = vadd.f32 %v5190, %v5191
        %v5193 = vrot.slane %v4850, 4
        %v5194 = vadd.f32 %v4850, %v5193
        %v5195 = vrot.slane %v5194, 2
        %v5196 = vadd.f32 %v5194, %v5195
        %v5197 = vrot.slane %v5196, 1
        %v5198 = vadd.f32 %v5196, %v5197
        %v5199 = vrot.slane %v4851, 4
        %v5200 = vadd.f32 %v4851, %v5199
        %v5201 = vrot.slane %v5200, 2
        %v5202 = vadd.f32 %v5200, %v5201
        %v5203 = vrot.slane %v5202, 1
        %v5204 = vadd.f32 %v5202, %v5203
        %v5205 = vrot.slane %v4852, 4
        %v5206 = vadd.f32 %v4852, %v5205
        %v5207 = vrot.slane %v5206, 2
        %v5208 = vadd.f32 %v5206, %v5207
        %v5209 = vrot.slane %v5208, 1
        %v5210 = vadd.f32 %v5208, %v5209
        %v5211 = vrot.slane %v4853, 4
        %v5212 = vadd.f32 %v4853, %v5211
        %v5213 = vrot.slane %v5212, 2
        %v5214 = vadd.f32 %v5212, %v5213
        %v5215 = vrot.slane %v5214, 1
        %v5216 = vadd.f32 %v5214, %v5215
        %v5217 = vrot.slane %v4854, 4
        %v5218 = vadd.f32 %v4854, %v5217
        %v5219 = vrot.slane %v5218, 2
        %v5220 = vadd.f32 %v5218, %v5219
        %v5221 = vrot.slane %v5220, 1
        %v5222 = vadd.f32 %v5220, %v5221
        %v5223 = vrot.slane %v4855, 4
        %v5224 = vadd.f32 %v4855, %v5223
        %v5225 = vrot.slane %v5224, 2
        %v5226 = vadd.f32 %v5224, %v5225
        %v5227 = vrot.slane %v5226, 1
        %v5228 = vadd.f32 %v5226, %v5227
        %v5229 = vrot.slane %v4856, 4
        %v5230 = vadd.f32 %v4856, %v5229
        %v5231 = vrot.slane %v5230, 2
        %v5232 = vadd.f32 %v5230, %v5231
        %v5233 = vrot.slane %v5232, 1
        %v5234 = vadd.f32 %v5232, %v5233
        %v5235 = vrot.slane %v4857, 4
        %v5236 = vadd.f32 %v4857, %v5235
        %v5237 = vrot.slane %v5236, 2
        %v5238 = vadd.f32 %v5236, %v5237
        %v5239 = vrot.slane %v5238, 1
        %v5240 = vadd.f32 %v5238, %v5239
        %v5241 = vrot.slane %v4858, 4
        %v5242 = vadd.f32 %v4858, %v5241
        %v5243 = vrot.slane %v5242, 2
        %v5244 = vadd.f32 %v5242, %v5243
        %v5245 = vrot.slane %v5244, 1
        %v5246 = vadd.f32 %v5244, %v5245
        %v5247 = vrot.slane %v4859, 4
        %v5248 = vadd.f32 %v4859, %v5247
        %v5249 = vrot.slane %v5248, 2
        %v5250 = vadd.f32 %v5248, %v5249
        %v5251 = vrot.slane %v5250, 1
        %v5252 = vadd.f32 %v5250, %v5251
        %v5253 = vrot.slane %v4860, 4
        %v5254 = vadd.f32 %v4860, %v5253
        %v5255 = vrot.slane %v5254, 2
        %v5256 = vadd.f32 %v5254, %v5255
        %v5257 = vrot.slane %v5256, 1
        %v5258 = vadd.f32 %v5256, %v5257
        %v5259 = vrot.slane %v4861, 4
        %v5260 = vadd.f32 %v4861, %v5259
        %v5261 = vrot.slane %v5260, 2
        %v5262 = vadd.f32 %v5260, %v5261
        %v5263 = vrot.slane %v5262, 1
        %v5264 = vadd.f32 %v5262, %v5263
        %v5265 = vrot.slane %v4862, 4
        %v5266 = vadd.f32 %v4862, %v5265
        %v5267 = vrot.slane %v5266, 2
        %v5268 = vadd.f32 %v5266, %v5267
        %v5269 = vrot.slane %v5268, 1
        %v5270 = vadd.f32 %v5268, %v5269
        %v5271 = vrot.slane %v4863, 4
        %v5272 = vadd.f32 %v4863, %v5271
        %v5273 = vrot.slane %v5272, 2
        %v5274 = vadd.f32 %v5272, %v5273
        %v5275 = vrot.slane %v5274, 1
        %v5276 = vadd.f32 %v5274, %v5275
        %v5277 = vrot.slane %v4864, 4
        %v5278 = vadd.f32 %v4864, %v5277
        %v5279 = vrot.slane %v5278, 2
        %v5280 = vadd.f32 %v5278, %v5279
        %v5281 = vrot.slane %v5280, 1
        %v5282 = vadd.f32 %v5280, %v5281
        %v5283 = vrot.slane %v4865, 4
        %v5284 = vadd.f32 %v4865, %v5283
        %v5285 = vrot.slane %v5284, 2
        %v5286 = vadd.f32 %v5284, %v5285
        %v5287 = vrot.slane %v5286, 1
        %v5288 = vadd.f32 %v5286, %v5287
        %v5289 = vrot.slane %v4866, 4
        %v5290 = vadd.f32 %v4866, %v5289
        %v5291 = vrot.slane %v5290, 2
        %v5292 = vadd.f32 %v5290, %v5291
        %v5293 = vrot.slane %v5292, 1
        %v5294 = vadd.f32 %v5292, %v5293
        %v5295 = vrot.slane %v4867, 4
        %v5296 = vadd.f32 %v4867, %v5295
        %v5297 = vrot.slane %v5296, 2
        %v5298 = vadd.f32 %v5296, %v5297
        %v5299 = vrot.slane %v5298, 1
        %v5300 = vadd.f32 %v5298, %v5299
        %v5301 = vrot.slane %v4868, 4
        %v5302 = vadd.f32 %v4868, %v5301
        %v5303 = vrot.slane %v5302, 2
        %v5304 = vadd.f32 %v5302, %v5303
        %v5305 = vrot.slane %v5304, 1
        %v5306 = vadd.f32 %v5304, %v5305
        %v5307 = vrot.slane %v4869, 4
        %v5308 = vadd.f32 %v4869, %v5307
        %v5309 = vrot.slane %v5308, 2
        %v5310 = vadd.f32 %v5308, %v5309
        %v5311 = vrot.slane %v5310, 1
        %v5312 = vadd.f32 %v5310, %v5311
        %v5313 = vrot.slane %v4870, 4
        %v5314 = vadd.f32 %v4870, %v5313
        %v5315 = vrot.slane %v5314, 2
        %v5316 = vadd.f32 %v5314, %v5315
        %v5317 = vrot.slane %v5316, 1
        %v5318 = vadd.f32 %v5316, %v5317
        %v5319 = vrot.slane %v4871, 4
        %v5320 = vadd.f32 %v4871, %v5319
        %v5321 = vrot.slane %v5320, 2
        %v5322 = vadd.f32 %v5320, %v5321
        %v5323 = vrot.slane %v5322, 1
        %v5324 = vadd.f32 %v5322, %v5323
        %v5325 = vrot.slane %v4872, 4
        %v5326 = vadd.f32 %v4872, %v5325
        %v5327 = vrot.slane %v5326, 2
        %v5328 = vadd.f32 %v5326, %v5327
        %v5329 = vrot.slane %v5328, 1
        %v5330 = vadd.f32 %v5328, %v5329
        %v5331 = vrot.slane %v4873, 4
        %v5332 = vadd.f32 %v4873, %v5331
        %v5333 = vrot.slane %v5332, 2
        %v5334 = vadd.f32 %v5332, %v5333
        %v5335 = vrot.slane %v5334, 1
        %v5336 = vadd.f32 %v5334, %v5335
        %v5337 = vrot.slane %v4874, 4
        %v5338 = vadd.f32 %v4874, %v5337
        %v5339 = vrot.slane %v5338, 2
        %v5340 = vadd.f32 %v5338, %v5339
        %v5341 = vrot.slane %v5340, 1
        %v5342 = vadd.f32 %v5340, %v5341
        %v5343 = vrot.slane %v4875, 4
        %v5344 = vadd.f32 %v4875, %v5343
        %v5345 = vrot.slane %v5344, 2
        %v5346 = vadd.f32 %v5344, %v5345
        %v5347 = vrot.slane %v5346, 1
        %v5348 = vadd.f32 %v5346, %v5347
        %v5349 = vrot.slane %v4876, 4
        %v5350 = vadd.f32 %v4876, %v5349
        %v5351 = vrot.slane %v5350, 2
        %v5352 = vadd.f32 %v5350, %v5351
        %v5353 = vrot.slane %v5352, 1
        %v5354 = vadd.f32 %v5352, %v5353
        %v5355 = vrot.slane %v4877, 4
        %v5356 = vadd.f32 %v4877, %v5355
        %v5357 = vrot.slane %v5356, 2
        %v5358 = vadd.f32 %v5356, %v5357
        %v5359 = vrot.slane %v5358, 1
        %v5360 = vadd.f32 %v5358, %v5359
        %v5361 = vrot.slane %v4878, 4
        %v5362 = vadd.f32 %v4878, %v5361
        %v5363 = vrot.slane %v5362, 2
        %v5364 = vadd.f32 %v5362, %v5363
        %v5365 = vrot.slane %v5364, 1
        %v5366 = vadd.f32 %v5364, %v5365
        %v5367 = vrot.slane %v4879, 4
        %v5368 = vadd.f32 %v4879, %v5367
        %v5369 = vrot.slane %v5368, 2
        %v5370 = vadd.f32 %v5368, %v5369
        %v5371 = vrot.slane %v5370, 1
        %v5372 = vadd.f32 %v5370, %v5371
        %v5373 = vrot.slane %v4880, 4
        %v5374 = vadd.f32 %v4880, %v5373
        %v5375 = vrot.slane %v5374, 2
        %v5376 = vadd.f32 %v5374, %v5375
        %v5377 = vrot.slane %v5376, 1
        %v5378 = vadd.f32 %v5376, %v5377
        %v5379 = vrot.slane %v4881, 4
        %v5380 = vadd.f32 %v4881, %v5379
        %v5381 = vrot.slane %v5380, 2
        %v5382 = vadd.f32 %v5380, %v5381
        %v5383 = vrot.slane %v5382, 1
        %v5384 = vadd.f32 %v5382, %v5383
        %v5385 = vrot.slane %v4882, 4
        %v5386 = vadd.f32 %v4882, %v5385
        %v5387 = vrot.slane %v5386, 2
        %v5388 = vadd.f32 %v5386, %v5387
        %v5389 = vrot.slane %v5388, 1
        %v5390 = vadd.f32 %v5388, %v5389
        %v5391 = vrot.slane %v4883, 4
        %v5392 = vadd.f32 %v4883, %v5391
        %v5393 = vrot.slane %v5392, 2
        %v5394 = vadd.f32 %v5392, %v5393
        %v5395 = vrot.slane %v5394, 1
        %v5396 = vadd.f32 %v5394, %v5395
        %v5397 = vrot.slane %v4884, 4
        %v5398 = vadd.f32 %v4884, %v5397
        %v5399 = vrot.slane %v5398, 2
        %v5400 = vadd.f32 %v5398, %v5399
        %v5401 = vrot.slane %v5400, 1
        %v5402 = vadd.f32 %v5400, %v5401
        %v5403 = vrot.slane %v4885, 4
        %v5404 = vadd.f32 %v4885, %v5403
        %v5405 = vrot.slane %v5404, 2
        %v5406 = vadd.f32 %v5404, %v5405
        %v5407 = vrot.slane %v5406, 1
        %v5408 = vadd.f32 %v5406, %v5407
        %v5409 = vrot.slane %v4886, 4
        %v5410 = vadd.f32 %v4886, %v5409
        %v5411 = vrot.slane %v5410, 2
        %v5412 = vadd.f32 %v5410, %v5411
        %v5413 = vrot.slane %v5412, 1
        %v5414 = vadd.f32 %v5412, %v5413
        %v5415 = vrot.slane %v4887, 4
        %v5416 = vadd.f32 %v4887, %v5415
        %v5417 = vrot.slane %v5416, 2
        %v5418 = vadd.f32 %v5416, %v5417
        %v5419 = vrot.slane %v5418, 1
        %v5420 = vadd.f32 %v5418, %v5419
        %v5421 = vrot.slane %v4888, 4
        %v5422 = vadd.f32 %v4888, %v5421
        %v5423 = vrot.slane %v5422, 2
        %v5424 = vadd.f32 %v5422, %v5423
        %v5425 = vrot.slane %v5424, 1
        %v5426 = vadd.f32 %v5424, %v5425
        %v5427 = vrot.slane %v4889, 4
        %v5428 = vadd.f32 %v4889, %v5427
        %v5429 = vrot.slane %v5428, 2
        %v5430 = vadd.f32 %v5428, %v5429
        %v5431 = vrot.slane %v5430, 1
        %v5432 = vadd.f32 %v5430, %v5431
        %v5433 = vrot.slane %v4890, 4
        %v5434 = vadd.f32 %v4890, %v5433
        %v5435 = vrot.slane %v5434, 2
        %v5436 = vadd.f32 %v5434, %v5435
        %v5437 = vrot.slane %v5436, 1
        %v5438 = vadd.f32 %v5436, %v5437
        %v5439 = vrot.slane %v4891, 4
        %v5440 = vadd.f32 %v4891, %v5439
        %v5441 = vrot.slane %v5440, 2
        %v5442 = vadd.f32 %v5440, %v5441
        %v5443 = vrot.slane %v5442, 1
        %v5444 = vadd.f32 %v5442, %v5443
        %v5445 = vrot.slane %v4892, 4
        %v5446 = vadd.f32 %v4892, %v5445
        %v5447 = vrot.slane %v5446, 2
        %v5448 = vadd.f32 %v5446, %v5447
        %v5449 = vrot.slane %v5448, 1
        %v5450 = vadd.f32 %v5448, %v5449
        %v5451 = vrot.slane %v4893, 4
        %v5452 = vadd.f32 %v4893, %v5451
        %v5453 = vrot.slane %v5452, 2
        %v5454 = vadd.f32 %v5452, %v5453
        %v5455 = vrot.slane %v5454, 1
        %v5456 = vadd.f32 %v5454, %v5455
        %v5457 = vrot.slane %v4894, 4
        %v5458 = vadd.f32 %v4894, %v5457
        %v5459 = vrot.slane %v5458, 2
        %v5460 = vadd.f32 %v5458, %v5459
        %v5461 = vrot.slane %v5460, 1
        %v5462 = vadd.f32 %v5460, %v5461
        %v5463 = vrot.slane %v4895, 4
        %v5464 = vadd.f32 %v4895, %v5463
        %v5465 = vrot.slane %v5464, 2
        %v5466 = vadd.f32 %v5464, %v5465
        %v5467 = vrot.slane %v5466, 1
        %v5468 = vadd.f32 %v5466, %v5467
        %v5469 = vrot.slane %v4896, 4
        %v5470 = vadd.f32 %v4896, %v5469
        %v5471 = vrot.slane %v5470, 2
        %v5472 = vadd.f32 %v5470, %v5471
        %v5473 = vrot.slane %v5472, 1
        %v5474 = vadd.f32 %v5472, %v5473
        %v5475 = vrot.slane %v4897, 4
        %v5476 = vadd.f32 %v4897, %v5475
        %v5477 = vrot.slane %v5476, 2
        %v5478 = vadd.f32 %v5476, %v5477
        %v5479 = vrot.slane %v5478, 1
        %v5480 = vadd.f32 %v5478, %v5479
        %v5481 = vrot.slane %v4898, 4
        %v5482 = vadd.f32 %v4898, %v5481
        %v5483 = vrot.slane %v5482, 2
        %v5484 = vadd.f32 %v5482, %v5483
        %v5485 = vrot.slane %v5484, 1
        %v5486 = vadd.f32 %v5484, %v5485
        %v5487 = vrot.slane %v4899, 4
        %v5488 = vadd.f32 %v4899, %v5487
        %v5489 = vrot.slane %v5488, 2
        %v5490 = vadd.f32 %v5488, %v5489
        %v5491 = vrot.slane %v5490, 1
        %v5492 = vadd.f32 %v5490, %v5491
        %v5493 = vrot.slane %v4900, 4
        %v5494 = vadd.f32 %v4900, %v5493
        %v5495 = vrot.slane %v5494, 2
        %v5496 = vadd.f32 %v5494, %v5495
        %v5497 = vrot.slane %v5496, 1
        %v5498 = vadd.f32 %v5496, %v5497
        %v5499 = vrot.slane %v4901, 4
        %v5500 = vadd.f32 %v4901, %v5499
        %v5501 = vrot.slane %v5500, 2
        %v5502 = vadd.f32 %v5500, %v5501
        %v5503 = vrot.slane %v5502, 1
        %v5504 = vadd.f32 %v5502, %v5503
        %v5505 = vrot.slane %v4902, 4
        %v5506 = vadd.f32 %v4902, %v5505
        %v5507 = vrot.slane %v5506, 2
        %v5508 = vadd.f32 %v5506, %v5507
        %v5509 = vrot.slane %v5508, 1
        %v5510 = vadd.f32 %v5508, %v5509
        %v5511 = vrot.slane %v4903, 4
        %v5512 = vadd.f32 %v4903, %v5511
        %v5513 = vrot.slane %v5512, 2
        %v5514 = vadd.f32 %v5512, %v5513
        %v5515 = vrot.slane %v5514, 1
        %v5516 = vadd.f32 %v5514, %v5515
        %v5517 = vrot.slane %v4904, 4
        %v5518 = vadd.f32 %v4904, %v5517
        %v5519 = vrot.slane %v5518, 2
        %v5520 = vadd.f32 %v5518, %v5519
        %v5521 = vrot.slane %v5520, 1
        %v5522 = vadd.f32 %v5520, %v5521
        %v5523 = vrot.slane %v4905, 4
        %v5524 = vadd.f32 %v4905, %v5523
        %v5525 = vrot.slane %v5524, 2
        %v5526 = vadd.f32 %v5524, %v5525
        %v5527 = vrot.slane %v5526, 1
        %v5528 = vadd.f32 %v5526, %v5527
        %v5529 = vrot.slane %v4906, 4
        %v5530 = vadd.f32 %v4906, %v5529
        %v5531 = vrot.slane %v5530, 2
        %v5532 = vadd.f32 %v5530, %v5531
        %v5533 = vrot.slane %v5532, 1
        %v5534 = vadd.f32 %v5532, %v5533
        %v5535 = vrot.slane %v4907, 4
        %v5536 = vadd.f32 %v4907, %v5535
        %v5537 = vrot.slane %v5536, 2
        %v5538 = vadd.f32 %v5536, %v5537
        %v5539 = vrot.slane %v5538, 1
        %v5540 = vadd.f32 %v5538, %v5539
        %v5541 = vrot.slane %v4908, 4
        %v5542 = vadd.f32 %v4908, %v5541
        %v5543 = vrot.slane %v5542, 2
        %v5544 = vadd.f32 %v5542, %v5543
        %v5545 = vrot.slane %v5544, 1
        %v5546 = vadd.f32 %v5544, %v5545
        %v5547 = vrot.slane %v4909, 4
        %v5548 = vadd.f32 %v4909, %v5547
        %v5549 = vrot.slane %v5548, 2
        %v5550 = vadd.f32 %v5548, %v5549
        %v5551 = vrot.slane %v5550, 1
        %v5552 = vadd.f32 %v5550, %v5551
        %v5553 = vrot.slane %v4910, 4
        %v5554 = vadd.f32 %v4910, %v5553
        %v5555 = vrot.slane %v5554, 2
        %v5556 = vadd.f32 %v5554, %v5555
        %v5557 = vrot.slane %v5556, 1
        %v5558 = vadd.f32 %v5556, %v5557
        %v5559 = vrot.slane %v4911, 4
        %v5560 = vadd.f32 %v4911, %v5559
        %v5561 = vrot.slane %v5560, 2
        %v5562 = vadd.f32 %v5560, %v5561
        %v5563 = vrot.slane %v5562, 1
        %v5564 = vadd.f32 %v5562, %v5563
        %v5565 = vrot.slane %v4912, 4
        %v5566 = vadd.f32 %v4912, %v5565
        %v5567 = vrot.slane %v5566, 2
        %v5568 = vadd.f32 %v5566, %v5567
        %v5569 = vrot.slane %v5568, 1
        %v5570 = vadd.f32 %v5568, %v5569
        %v5571 = vrot.slane %v4913, 4
        %v5572 = vadd.f32 %v4913, %v5571
        %v5573 = vrot.slane %v5572, 2
        %v5574 = vadd.f32 %v5572, %v5573
        %v5575 = vrot.slane %v5574, 1
        %v5576 = vadd.f32 %v5574, %v5575
        %v5577 = vrot.slane %v4914, 4
        %v5578 = vadd.f32 %v4914, %v5577
        %v5579 = vrot.slane %v5578, 2
        %v5580 = vadd.f32 %v5578, %v5579
        %v5581 = vrot.slane %v5580, 1
        %v5582 = vadd.f32 %v5580, %v5581
        %v5583 = vrot.slane %v4915, 4
        %v5584 = vadd.f32 %v4915, %v5583
        %v5585 = vrot.slane %v5584, 2
        %v5586 = vadd.f32 %v5584, %v5585
        %v5587 = vrot.slane %v5586, 1
        %v5588 = vadd.f32 %v5586, %v5587
        %v5589 = vrot.slane %v4916, 4
        %v5590 = vadd.f32 %v4916, %v5589
        %v5591 = vrot.slane %v5590, 2
        %v5592 = vadd.f32 %v5590, %v5591
        %v5593 = vrot.slane %v5592, 1
        %v5594 = vadd.f32 %v5592, %v5593
        %v5595 = vrot.slane %v4917, 4
        %v5596 = vadd.f32 %v4917, %v5595
        %v5597 = vrot.slane %v5596, 2
        %v5598 = vadd.f32 %v5596, %v5597
        %v5599 = vrot.slane %v5598, 1
        %v5600 = vadd.f32 %v5598, %v5599
        %v5601 = vrot.slane %v4918, 4
        %v5602 = vadd.f32 %v4918, %v5601
        %v5603 = vrot.slane %v5602, 2
        %v5604 = vadd.f32 %v5602, %v5603
        %v5605 = vrot.slane %v5604, 1
        %v5606 = vadd.f32 %v5604, %v5605
        %v5607 = vrot.slane %v4919, 4
        %v5608 = vadd.f32 %v4919, %v5607
        %v5609 = vrot.slane %v5608, 2
        %v5610 = vadd.f32 %v5608, %v5609
        %v5611 = vrot.slane %v5610, 1
        %v5612 = vadd.f32 %v5610, %v5611
        %v5613 = vrot.slane %v4920, 4
        %v5614 = vadd.f32 %v4920, %v5613
        %v5615 = vrot.slane %v5614, 2
        %v5616 = vadd.f32 %v5614, %v5615
        %v5617 = vrot.slane %v5616, 1
        %v5618 = vadd.f32 %v5616, %v5617
        %v5619 = vrot.slane %v4921, 4
        %v5620 = vadd.f32 %v4921, %v5619
        %v5621 = vrot.slane %v5620, 2
        %v5622 = vadd.f32 %v5620, %v5621
        %v5623 = vrot.slane %v5622, 1
        %v5624 = vadd.f32 %v5622, %v5623
        %v5625 = vrot.slane %v4922, 4
        %v5626 = vadd.f32 %v4922, %v5625
        %v5627 = vrot.slane %v5626, 2
        %v5628 = vadd.f32 %v5626, %v5627
        %v5629 = vrot.slane %v5628, 1
        %v5630 = vadd.f32 %v5628, %v5629
        %v5631 = vrot.slane %v4923, 4
        %v5632 = vadd.f32 %v4923, %v5631
        %v5633 = vrot.slane %v5632, 2
        %v5634 = vadd.f32 %v5632, %v5633
        %v5635 = vrot.slane %v5634, 1
        %v5636 = vadd.f32 %v5634, %v5635
        %v5637 = vrot.slane %v4924, 4
        %v5638 = vadd.f32 %v4924, %v5637
        %v5639 = vrot.slane %v5638, 2
        %v5640 = vadd.f32 %v5638, %v5639
        %v5641 = vrot.slane %v5640, 1
        %v5642 = vadd.f32 %v5640, %v5641
        %v5643 = vrot.slane %v4925, 4
        %v5644 = vadd.f32 %v4925, %v5643
        %v5645 = vrot.slane %v5644, 2
        %v5646 = vadd.f32 %v5644, %v5645
        %v5647 = vrot.slane %v5646, 1
        %v5648 = vadd.f32 %v5646, %v5647
        %v5649 = vrot.slane %v4926, 4
        %v5650 = vadd.f32 %v4926, %v5649
        %v5651 = vrot.slane %v5650, 2
        %v5652 = vadd.f32 %v5650, %v5651
        %v5653 = vrot.slane %v5652, 1
        %v5654 = vadd.f32 %v5652, %v5653
        %v5655 = vrot.slane %v4927, 4
        %v5656 = vadd.f32 %v4927, %v5655
        %v5657 = vrot.slane %v5656, 2
        %v5658 = vadd.f32 %v5656, %v5657
        %v5659 = vrot.slane %v5658, 1
        %v5660 = vadd.f32 %v5658, %v5659
        %v5661 = vrot.slane %v4928, 4
        %v5662 = vadd.f32 %v4928, %v5661
        %v5663 = vrot.slane %v5662, 2
        %v5664 = vadd.f32 %v5662, %v5663
        %v5665 = vrot.slane %v5664, 1
        %v5666 = vadd.f32 %v5664, %v5665
        %v5667 = vrot.slane %v4929, 4
        %v5668 = vadd.f32 %v4929, %v5667
        %v5669 = vrot.slane %v5668, 2
        %v5670 = vadd.f32 %v5668, %v5669
        %v5671 = vrot.slane %v5670, 1
        %v5672 = vadd.f32 %v5670, %v5671
        %v5673 = vrot.slane %v4930, 4
        %v5674 = vadd.f32 %v4930, %v5673
        %v5675 = vrot.slane %v5674, 2
        %v5676 = vadd.f32 %v5674, %v5675
        %v5677 = vrot.slane %v5676, 1
        %v5678 = vadd.f32 %v5676, %v5677
        %v5679 = vrot.slane %v4931, 4
        %v5680 = vadd.f32 %v4931, %v5679
        %v5681 = vrot.slane %v5680, 2
        %v5682 = vadd.f32 %v5680, %v5681
        %v5683 = vrot.slane %v5682, 1
        %v5684 = vadd.f32 %v5682, %v5683
        %v5685 = vrot.slane %v4932, 4
        %v5686 = vadd.f32 %v4932, %v5685
        %v5687 = vrot.slane %v5686, 2
        %v5688 = vadd.f32 %v5686, %v5687
        %v5689 = vrot.slane %v5688, 1
        %v5690 = vadd.f32 %v5688, %v5689
        %v5691 = vrot.slane %v4933, 4
        %v5692 = vadd.f32 %v4933, %v5691
        %v5693 = vrot.slane %v5692, 2
        %v5694 = vadd.f32 %v5692, %v5693
        %v5695 = vrot.slane %v5694, 1
        %v5696 = vadd.f32 %v5694, %v5695
        %v5697 = vrot.slane %v4934, 4
        %v5698 = vadd.f32 %v4934, %v5697
        %v5699 = vrot.slane %v5698, 2
        %v5700 = vadd.f32 %v5698, %v5699
        %v5701 = vrot.slane %v5700, 1
        %v5702 = vadd.f32 %v5700, %v5701
        %v5703 = vpack.c.bf16 %v4940, %v4940
        %v5704 = vpack.c.bf16 %v4946, %v4946
        %v5705 = vpack.c.bf16 %v4952, %v4952
        %v5706 = vpack.c.bf16 %v4958, %v4958
        %v5707 = vpack.c.bf16 %v4964, %v4964
        %v5708 = vpack.c.bf16 %v4970, %v4970
        %v5709 = vpack.c.bf16 %v4976, %v4976
        %v5710 = vpack.c.bf16 %v4982, %v4982
        %v5711 = vpack.c.bf16 %v4988, %v4988
        %v5712 = vpack.c.bf16 %v4994, %v4994
        %v5713 = vpack.c.bf16 %v5000, %v5000
        %v5714 = vpack.c.bf16 %v5006, %v5006
        %v5715 = vpack.c.bf16 %v5012, %v5012
        %v5716 = vpack.c.bf16 %v5018, %v5018
        %v5717 = vpack.c.bf16 %v5024, %v5024
        %v5718 = vpack.c.bf16 %v5030, %v5030
        %v5719 = vpack.c.bf16 %v5036, %v5036
        %v5720 = vpack.c.bf16 %v5042, %v5042
        %v5721 = vpack.c.bf16 %v5048, %v5048
        %v5722 = vpack.c.bf16 %v5054, %v5054
        %v5723 = vpack.c.bf16 %v5060, %v5060
        %v5724 = vpack.c.bf16 %v5066, %v5066
        %v5725 = vpack.c.bf16 %v5072, %v5072
        %v5726 = vpack.c.bf16 %v5078, %v5078
        %v5727 = vpack.c.bf16 %v5084, %v5084
        %v5728 = vpack.c.bf16 %v5090, %v5090
        %v5729 = vpack.c.bf16 %v5096, %v5096
        %v5730 = vpack.c.bf16 %v5102, %v5102
        %v5731 = vpack.c.bf16 %v5108, %v5108
        %v5732 = vpack.c.bf16 %v5114, %v5114
        %v5733 = vpack.c.bf16 %v5120, %v5120
        %v5734 = vpack.c.bf16 %v5126, %v5126
        %v5735 = vpack.c.bf16 %v5132, %v5132
        %v5736 = vpack.c.bf16 %v5138, %v5138
        %v5737 = vpack.c.bf16 %v5144, %v5144
        %v5738 = vpack.c.bf16 %v5150, %v5150
        %v5739 = vpack.c.bf16 %v5156, %v5156
        %v5740 = vpack.c.bf16 %v5162, %v5162
        %v5741 = vpack.c.bf16 %v5168, %v5168
        %v5742 = vpack.c.bf16 %v5174, %v5174
        %v5743 = vpack.c.bf16 %v5180, %v5180
        %v5744 = vpack.c.bf16 %v5186, %v5186
        %v5745 = vpack.c.bf16 %v5192, %v5192
        %v5746 = vpack.c.bf16 %v5198, %v5198
        %v5747 = vpack.c.bf16 %v5204, %v5204
        %v5748 = vpack.c.bf16 %v5210, %v5210
        %v5749 = vpack.c.bf16 %v5216, %v5216
        %v5750 = vpack.c.bf16 %v5222, %v5222
        %v5751 = vpack.c.bf16 %v5228, %v5228
        %v5752 = vpack.c.bf16 %v5234, %v5234
        %v5753 = vpack.c.bf16 %v5240, %v5240
        %v5754 = vpack.c.bf16 %v5246, %v5246
        %v5755 = vpack.c.bf16 %v5252, %v5252
        %v5756 = vpack.c.bf16 %v5258, %v5258
        %v5757 = vpack.c.bf16 %v5264, %v5264
        %v5758 = vpack.c.bf16 %v5270, %v5270
        %v5759 = vpack.c.bf16 %v5276, %v5276
        %v5760 = vpack.c.bf16 %v5282, %v5282
        %v5761 = vpack.c.bf16 %v5288, %v5288
        %v5762 = vpack.c.bf16 %v5294, %v5294
        %v5763 = vpack.c.bf16 %v5300, %v5300
        %v5764 = vpack.c.bf16 %v5306, %v5306
        %v5765 = vpack.c.bf16 %v5312, %v5312
        %v5766 = vpack.c.bf16 %v5318, %v5318
        %v5767 = vpack.c.bf16 %v5324, %v5324
        %v5768 = vpack.c.bf16 %v5330, %v5330
        %v5769 = vpack.c.bf16 %v5336, %v5336
        %v5770 = vpack.c.bf16 %v5342, %v5342
        %v5771 = vpack.c.bf16 %v5348, %v5348
        %v5772 = vpack.c.bf16 %v5354, %v5354
        %v5773 = vpack.c.bf16 %v5360, %v5360
        %v5774 = vpack.c.bf16 %v5366, %v5366
        %v5775 = vpack.c.bf16 %v5372, %v5372
        %v5776 = vpack.c.bf16 %v5378, %v5378
        %v5777 = vpack.c.bf16 %v5384, %v5384
        %v5778 = vpack.c.bf16 %v5390, %v5390
        %v5779 = vpack.c.bf16 %v5396, %v5396
        %v5780 = vpack.c.bf16 %v5402, %v5402
        %v5781 = vpack.c.bf16 %v5408, %v5408
        %v5782 = vpack.c.bf16 %v5414, %v5414
        %v5783 = vpack.c.bf16 %v5420, %v5420
        %v5784 = vpack.c.bf16 %v5426, %v5426
        %v5785 = vpack.c.bf16 %v5432, %v5432
        %v5786 = vpack.c.bf16 %v5438, %v5438
        %v5787 = vpack.c.bf16 %v5444, %v5444
        %v5788 = vpack.c.bf16 %v5450, %v5450
        %v5789 = vpack.c.bf16 %v5456, %v5456
        %v5790 = vpack.c.bf16 %v5462, %v5462
        %v5791 = vpack.c.bf16 %v5468, %v5468
        %v5792 = vpack.c.bf16 %v5474, %v5474
        %v5793 = vpack.c.bf16 %v5480, %v5480
        %v5794 = vpack.c.bf16 %v5486, %v5486
        %v5795 = vpack.c.bf16 %v5492, %v5492
        %v5796 = vpack.c.bf16 %v5498, %v5498
        %v5797 = vpack.c.bf16 %v5504, %v5504
        %v5798 = vpack.c.bf16 %v5510, %v5510
        %v5799 = vpack.c.bf16 %v5516, %v5516
        %v5800 = vpack.c.bf16 %v5522, %v5522
        %v5801 = vpack.c.bf16 %v5528, %v5528
        %v5802 = vpack.c.bf16 %v5534, %v5534
        %v5803 = vpack.c.bf16 %v5540, %v5540
        %v5804 = vpack.c.bf16 %v5546, %v5546
        %v5805 = vpack.c.bf16 %v5552, %v5552
        %v5806 = vpack.c.bf16 %v5558, %v5558
        %v5807 = vpack.c.bf16 %v5564, %v5564
        %v5808 = vpack.c.bf16 %v5570, %v5570
        %v5809 = vpack.c.bf16 %v5576, %v5576
        %v5810 = vpack.c.bf16 %v5582, %v5582
        %v5811 = vpack.c.bf16 %v5588, %v5588
        %v5812 = vpack.c.bf16 %v5594, %v5594
        %v5813 = vpack.c.bf16 %v5600, %v5600
        %v5814 = vpack.c.bf16 %v5606, %v5606
        %v5815 = vpack.c.bf16 %v5612, %v5612
        %v5816 = vpack.c.bf16 %v5618, %v5618
        %v5817 = vpack.c.bf16 %v5624, %v5624
        %v5818 = vpack.c.bf16 %v5630, %v5630
        %v5819 = vpack.c.bf16 %v5636, %v5636
        %v5820 = vpack.c.bf16 %v5642, %v5642
        %v5821 = vpack.c.bf16 %v5648, %v5648
        %v5822 = vpack.c.bf16 %v5654, %v5654
        %v5823 = vpack.c.bf16 %v5660, %v5660
        %v5824 = vpack.c.bf16 %v5666, %v5666
        %v5825 = vpack.c.bf16 %v5672, %v5672
        %v5826 = vpack.c.bf16 %v5678, %v5678
        %v5827 = vpack.c.bf16 %v5684, %v5684
        %v5828 = vpack.c.bf16 %v5690, %v5690
        %v5829 = vpack.c.bf16 %v5696, %v5696
        %v5830 = vpack.c.bf16 %v5702, %v5702
        %v5959 = vunpack.c.l.b16 %v5703
        %v5960 = vunpack.c.l.b16 %v5704
        %v5961 = vunpack.c.l.b16 %v5705
        %v5962 = vunpack.c.l.b16 %v5706
        %v5963 = vunpack.c.l.b16 %v5707
        %v5964 = vunpack.c.l.b16 %v5708
        %v5965 = vunpack.c.l.b16 %v5709
        %v5966 = vunpack.c.l.b16 %v5710
        %v5967 = vunpack.c.l.b16 %v5711
        %v5968 = vunpack.c.l.b16 %v5712
        %v5969 = vunpack.c.l.b16 %v5713
        %v5970 = vunpack.c.l.b16 %v5714
        %v5971 = vunpack.c.l.b16 %v5715
        %v5972 = vunpack.c.l.b16 %v5716
        %v5973 = vunpack.c.l.b16 %v5717
        %v5974 = vunpack.c.l.b16 %v5718
        %v5975 = vunpack.c.l.b16 %v5719
        %v5976 = vunpack.c.l.b16 %v5720
        %v5977 = vunpack.c.l.b16 %v5721
        %v5978 = vunpack.c.l.b16 %v5722
        %v5979 = vunpack.c.l.b16 %v5723
        %v5980 = vunpack.c.l.b16 %v5724
        %v5981 = vunpack.c.l.b16 %v5725
        %v5982 = vunpack.c.l.b16 %v5726
        %v5983 = vunpack.c.l.b16 %v5727
        %v5984 = vunpack.c.l.b16 %v5728
        %v5985 = vunpack.c.l.b16 %v5729
        %v5986 = vunpack.c.l.b16 %v5730
        %v5987 = vunpack.c.l.b16 %v5731
        %v5988 = vunpack.c.l.b16 %v5732
        %v5989 = vunpack.c.l.b16 %v5733
        %v5990 = vunpack.c.l.b16 %v5734
        %v5991 = vunpack.c.l.b16 %v5735
        %v5992 = vunpack.c.l.b16 %v5736
        %v5993 = vunpack.c.l.b16 %v5737
        %v5994 = vunpack.c.l.b16 %v5738
        %v5995 = vunpack.c.l.b16 %v5739
        %v5996 = vunpack.c.l.b16 %v5740
        %v5997 = vunpack.c.l.b16 %v5741
        %v5998 = vunpack.c.l.b16 %v5742
        %v5999 = vunpack.c.l.b16 %v5743
        %v6000 = vunpack.c.l.b16 %v5744
        %v6001 = vunpack.c.l.b16 %v5745
        %v6002 = vunpack.c.l.b16 %v5746
        %v6003 = vunpack.c.l.b16 %v5747
        %v6004 = vunpack.c.l.b16 %v5748
        %v6005 = vunpack.c.l.b16 %v5749
        %v6006 = vunpack.c.l.b16 %v5750
        %v6007 = vunpack.c.l.b16 %v5751
        %v6008 = vunpack.c.l.b16 %v5752
        %v6009 = vunpack.c.l.b16 %v5753
        %v6010 = vunpack.c.l.b16 %v5754
        %v6011 = vunpack.c.l.b16 %v5755
        %v6012 = vunpack.c.l.b16 %v5756
        %v6013 = vunpack.c.l.b16 %v5757
        %v6014 = vunpack.c.l.b16 %v5758
        %v6015 = vunpack.c.l.b16 %v5759
        %v6016 = vunpack.c.l.b16 %v5760
        %v6017 = vunpack.c.l.b16 %v5761
        %v6018 = vunpack.c.l.b16 %v5762
        %v6019 = vunpack.c.l.b16 %v5763
        %v6020 = vunpack.c.l.b16 %v5764
        %v6021 = vunpack.c.l.b16 %v5765
        %v6022 = vunpack.c.l.b16 %v5766
        %v6023 = vunpack.c.l.b16 %v5767
        %v6024 = vunpack.c.l.b16 %v5768
        %v6025 = vunpack.c.l.b16 %v5769
        %v6026 = vunpack.c.l.b16 %v5770
        %v6027 = vunpack.c.l.b16 %v5771
        %v6028 = vunpack.c.l.b16 %v5772
        %v6029 = vunpack.c.l.b16 %v5773
        %v6030 = vunpack.c.l.b16 %v5774
        %v6031 = vunpack.c.l.b16 %v5775
        %v6032 = vunpack.c.l.b16 %v5776
        %v6033 = vunpack.c.l.b16 %v5777
        %v6034 = vunpack.c.l.b16 %v5778
        %v6035 = vunpack.c.l.b16 %v5779
        %v6036 = vunpack.c.l.b16 %v5780
        %v6037 = vunpack.c.l.b16 %v5781
        %v6038 = vunpack.c.l.b16 %v5782
        %v6039 = vunpack.c.l.b16 %v5783
        %v6040 = vunpack.c.l.b16 %v5784
        %v6041 = vunpack.c.l.b16 %v5785
        %v6042 = vunpack.c.l.b16 %v5786
        %v6043 = vunpack.c.l.b16 %v5787
        %v6044 = vunpack.c.l.b16 %v5788
        %v6045 = vunpack.c.l.b16 %v5789
        %v6046 = vunpack.c.l.b16 %v5790
        %v6047 = vunpack.c.l.b16 %v5791
        %v6048 = vunpack.c.l.b16 %v5792
        %v6049 = vunpack.c.l.b16 %v5793
        %v6050 = vunpack.c.l.b16 %v5794
        %v6051 = vunpack.c.l.b16 %v5795
        %v6052 = vunpack.c.l.b16 %v5796
        %v6053 = vunpack.c.l.b16 %v5797
        %v6054 = vunpack.c.l.b16 %v5798
        %v6055 = vunpack.c.l.b16 %v5799
        %v6056 = vunpack.c.l.b16 %v5800
        %v6057 = vunpack.c.l.b16 %v5801
        %v6058 = vunpack.c.l.b16 %v5802
        %v6059 = vunpack.c.l.b16 %v5803
        %v6060 = vunpack.c.l.b16 %v5804
        %v6061 = vunpack.c.l.b16 %v5805
        %v6062 = vunpack.c.l.b16 %v5806
        %v6063 = vunpack.c.l.b16 %v5807
        %v6064 = vunpack.c.l.b16 %v5808
        %v6065 = vunpack.c.l.b16 %v5809
        %v6066 = vunpack.c.l.b16 %v5810
        %v6067 = vunpack.c.l.b16 %v5811
        %v6068 = vunpack.c.l.b16 %v5812
        %v6069 = vunpack.c.l.b16 %v5813
        %v6070 = vunpack.c.l.b16 %v5814
        %v6071 = vunpack.c.l.b16 %v5815
        %v6072 = vunpack.c.l.b16 %v5816
        %v6073 = vunpack.c.l.b16 %v5817
        %v6074 = vunpack.c.l.b16 %v5818
        %v6075 = vunpack.c.l.b16 %v5819
        %v6076 = vunpack.c.l.b16 %v5820
        %v6077 = vunpack.c.l.b16 %v5821
        %v6078 = vunpack.c.l.b16 %v5822
        %v6079 = vunpack.c.l.b16 %v5823
        %v6080 = vunpack.c.l.b16 %v5824
        %v6081 = vunpack.c.l.b16 %v5825
        %v6082 = vunpack.c.l.b16 %v5826
        %v6083 = vunpack.c.l.b16 %v5827
        %v6084 = vunpack.c.l.b16 %v5828
        %v6085 = vunpack.c.l.b16 %v5829
        %v6086 = vunpack.c.l.b16 %v5830
        %v6087 = vsel %vm2927, %v5960, %v5959
        %v6088 = vsel %vm2929, %v5961, %v6087
        %v6089 = vsel %vm2931, %v5962, %v6088
        %v6090 = vsel %vm2933, %v5963, %v6089
        %v6091 = vsel %vm2935, %v5964, %v6090
        %v6092 = vsel %vm2937, %v5965, %v6091
        %v6093 = vsel %vm2939, %v5966, %v6092
        %v6094 = vsel %vm2927, %v5968, %v5967
        %v6095 = vsel %vm2929, %v5969, %v6094
        %v6096 = vsel %vm2931, %v5970, %v6095
        %v6097 = vsel %vm2933, %v5971, %v6096
        %v6098 = vsel %vm2935, %v5972, %v6097
        %v6099 = vsel %vm2937, %v5973, %v6098
        %v6100 = vsel %vm2939, %v5974, %v6099
        %v6101 = vsel %vm2927, %v5976, %v5975
        %v6102 = vsel %vm2929, %v5977, %v6101
        %v6103 = vsel %vm2931, %v5978, %v6102
        %v6104 = vsel %vm2933, %v5979, %v6103
        %v6105 = vsel %vm2935, %v5980, %v6104
        %v6106 = vsel %vm2937, %v5981, %v6105
        %v6107 = vsel %vm2939, %v5982, %v6106
        %v6108 = vsel %vm2927, %v5984, %v5983
        %v6109 = vsel %vm2929, %v5985, %v6108
        %v6110 = vsel %vm2931, %v5986, %v6109
        %v6111 = vsel %vm2933, %v5987, %v6110
        %v6112 = vsel %vm2935, %v5988, %v6111
        %v6113 = vsel %vm2937, %v5989, %v6112
        %v6114 = vsel %vm2939, %v5990, %v6113
        %v6115 = vsel %vm2927, %v5992, %v5991
        %v6116 = vsel %vm2929, %v5993, %v6115
        %v6117 = vsel %vm2931, %v5994, %v6116
        %v6118 = vsel %vm2933, %v5995, %v6117
        %v6119 = vsel %vm2935, %v5996, %v6118
        %v6120 = vsel %vm2937, %v5997, %v6119
        %v6121 = vsel %vm2939, %v5998, %v6120
        %v6122 = vsel %vm2927, %v6000, %v5999
        %v6123 = vsel %vm2929, %v6001, %v6122
        %v6124 = vsel %vm2931, %v6002, %v6123
        %v6125 = vsel %vm2933, %v6003, %v6124
        %v6126 = vsel %vm2935, %v6004, %v6125
        %v6127 = vsel %vm2937, %v6005, %v6126
        %v6128 = vsel %vm2939, %v6006, %v6127
        %v6129 = vsel %vm2927, %v6008, %v6007
        %v6130 = vsel %vm2929, %v6009, %v6129
        %v6131 = vsel %vm2931, %v6010, %v6130
        %v6132 = vsel %vm2933, %v6011, %v6131
        %v6133 = vsel %vm2935, %v6012, %v6132
        %v6134 = vsel %vm2937, %v6013, %v6133
        %v6135 = vsel %vm2939, %v6014, %v6134
        %v6136 = vsel %vm2927, %v6016, %v6015
        %v6137 = vsel %vm2929, %v6017, %v6136
        %v6138 = vsel %vm2931, %v6018, %v6137
        %v6139 = vsel %vm2933, %v6019, %v6138
        %v6140 = vsel %vm2935, %v6020, %v6139
        %v6141 = vsel %vm2937, %v6021, %v6140
        %v6142 = vsel %vm2939, %v6022, %v6141
        %v6143 = vsel %vm2927, %v6024, %v6023
        %v6144 = vsel %vm2929, %v6025, %v6143
        %v6145 = vsel %vm2931, %v6026, %v6144
        %v6146 = vsel %vm2933, %v6027, %v6145
        %v6147 = vsel %vm2935, %v6028, %v6146
        %v6148 = vsel %vm2937, %v6029, %v6147
        %v6149 = vsel %vm2939, %v6030, %v6148
        %v6150 = vsel %vm2927, %v6032, %v6031
        %v6151 = vsel %vm2929, %v6033, %v6150
        %v6152 = vsel %vm2931, %v6034, %v6151
        %v6153 = vsel %vm2933, %v6035, %v6152
        %v6154 = vsel %vm2935, %v6036, %v6153
        %v6155 = vsel %vm2937, %v6037, %v6154
        %v6156 = vsel %vm2939, %v6038, %v6155
        %v6157 = vsel %vm2927, %v6040, %v6039
        %v6158 = vsel %vm2929, %v6041, %v6157
        %v6159 = vsel %vm2931, %v6042, %v6158
        %v6160 = vsel %vm2933, %v6043, %v6159
        %v6161 = vsel %vm2935, %v6044, %v6160
        %v6162 = vsel %vm2937, %v6045, %v6161
        %v6163 = vsel %vm2939, %v6046, %v6162
        %v6164 = vsel %vm2927, %v6048, %v6047
        %v6165 = vsel %vm2929, %v6049, %v6164
        %v6166 = vsel %vm2931, %v6050, %v6165
        %v6167 = vsel %vm2933, %v6051, %v6166
        %v6168 = vsel %vm2935, %v6052, %v6167
        %v6169 = vsel %vm2937, %v6053, %v6168
        %v6170 = vsel %vm2939, %v6054, %v6169
        %v6171 = vsel %vm2927, %v6056, %v6055
        %v6172 = vsel %vm2929, %v6057, %v6171
        %v6173 = vsel %vm2931, %v6058, %v6172
        %v6174 = vsel %vm2933, %v6059, %v6173
        %v6175 = vsel %vm2935, %v6060, %v6174
        %v6176 = vsel %vm2937, %v6061, %v6175
        %v6177 = vsel %vm2939, %v6062, %v6176
        %v6178 = vsel %vm2927, %v6064, %v6063
        %v6179 = vsel %vm2929, %v6065, %v6178
        %v6180 = vsel %vm2931, %v6066, %v6179
        %v6181 = vsel %vm2933, %v6067, %v6180
        %v6182 = vsel %vm2935, %v6068, %v6181
        %v6183 = vsel %vm2937, %v6069, %v6182
        %v6184 = vsel %vm2939, %v6070, %v6183
        %v6185 = vsel %vm2927, %v6072, %v6071
        %v6186 = vsel %vm2929, %v6073, %v6185
        %v6187 = vsel %vm2931, %v6074, %v6186
        %v6188 = vsel %vm2933, %v6075, %v6187
        %v6189 = vsel %vm2935, %v6076, %v6188
        %v6190 = vsel %vm2937, %v6077, %v6189
        %v6191 = vsel %vm2939, %v6078, %v6190
        %v6192 = vsel %vm2927, %v6080, %v6079
        %v6193 = vsel %vm2929, %v6081, %v6192
        %v6194 = vsel %vm2931, %v6082, %v6193
        %v6195 = vsel %vm2933, %v6083, %v6194
        %v6196 = vsel %vm2935, %v6084, %v6195
        %v6197 = vsel %vm2937, %v6085, %v6196
        %v6198 = vsel %vm2939, %v6086, %v6197
        %v6199 = vpack.c.b16 %v6100, %v6093
        %v6200 = vpack.c.b16 %v6114, %v6107
        %v6201 = vpack.c.b16 %v6128, %v6121
        %v6202 = vpack.c.b16 %v6142, %v6135
        %v6203 = vpack.c.b16 %v6156, %v6149
        %v6204 = vpack.c.b16 %v6170, %v6163
        %v6205 = vpack.c.b16 %v6184, %v6177
        %v6206 = vpack.c.b16 %v6198, %v6191
        %6215 = vmatpush.bf16.msra.mxu0 %v3101
        %6216 = vmatpush.bf16.msra.mxu0 %v3100
        %6217 = vmatpush.bf16.msra.mxu0 %v3099
        %6218 = vmatpush.bf16.msra.mxu0 %v3098
        %6219 = vmatpush.bf16.msra.mxu0 %v3097
        %6220 = vmatpush.bf16.msra.mxu0 %v3096
        %6221 = vmatpush.bf16.msra.mxu0 %v3095
        %6222 = vmatpush.bf16.msra.mxu0 %v3094
        %6223 = vmatmul.bf16.gmra.mxu0 %v6199
        %v6224 = vpop.f32.mrf.mxu0
        %v6225 = vadd.f32 0.0, %v6224
        %v6226 = vpop.f32.mrf.mxu0
        %v6227 = vadd.f32 0.0, %v6226
        %6228 = vmatmul.bf16.gmra.mxu0 %v6200
        %v6229 = vpop.f32.mrf.mxu0
        %v6230 = vadd.f32 0.0, %v6229
        %v6231 = vpop.f32.mrf.mxu0
        %v6232 = vadd.f32 0.0, %v6231
        %6233 = vmatmul.bf16.gmra.mxu0 %v6201
        %v6234 = vpop.f32.mrf.mxu0
        %v6235 = vadd.f32 0.0, %v6234
        %v6236 = vpop.f32.mrf.mxu0
        %v6237 = vadd.f32 0.0, %v6236
        %6238 = vmatmul.bf16.gmra.mxu0 %v6202
        %v6239 = vpop.f32.mrf.mxu0
        %v6240 = vadd.f32 0.0, %v6239
        %v6241 = vpop.f32.mrf.mxu0
        %v6242 = vadd.f32 0.0, %v6241
        %6243 = vmatmul.bf16.gmra.mxu0 %v6203
        %v6244 = vpop.f32.mrf.mxu0
        %v6245 = vadd.f32 0.0, %v6244
        %v6246 = vpop.f32.mrf.mxu0
        %v6247 = vadd.f32 0.0, %v6246
        %6248 = vmatmul.bf16.gmra.mxu0 %v6204
        %v6249 = vpop.f32.mrf.mxu0
        %v6250 = vadd.f32 0.0, %v6249
        %v6251 = vpop.f32.mrf.mxu0
        %v6252 = vadd.f32 0.0, %v6251
        %6253 = vmatmul.bf16.gmra.mxu0 %v6205
        %v6254 = vpop.f32.mrf.mxu0
        %v6255 = vadd.f32 0.0, %v6254
        %v6256 = vpop.f32.mrf.mxu0
        %v6257 = vadd.f32 0.0, %v6256
        %6258 = vmatmul.bf16.gmra.mxu0 %v6206
        %v6259 = vpop.f32.mrf.mxu0
        %v6260 = vadd.f32 0.0, %v6259
        %v6261 = vpop.f32.mrf.mxu0
        %v6262 = vadd.f32 0.0, %v6261
        %6263 = vdwg.mxu0
        %vm6264 = vcmp.gt.s32.totalorder %v3527, 1
        %v6265 = vsel %vm6264, %v3527, 1
        %vm6266 = vcmp.gt.s32.totalorder %v3528, 1
        %v6267 = vsel %vm6266, %v3528, 1
        %vm6268 = vcmp.gt.s32.totalorder %v3529, 1
        %v6269 = vsel %vm6268, %v3529, 1
        %vm6270 = vcmp.gt.s32.totalorder %v3530, 1
        %v6271 = vsel %vm6270, %v3530, 1
        %vm6272 = vcmp.gt.s32.totalorder %v3531, 1
        %v6273 = vsel %vm6272, %v3531, 1
        %vm6274 = vcmp.gt.s32.totalorder %v3532, 1
        %v6275 = vsel %vm6274, %v3532, 1
        %vm6276 = vcmp.gt.s32.totalorder %v3533, 1
        %v6277 = vsel %vm6276, %v3533, 1
        %vm6278 = vcmp.gt.s32.totalorder %v3534, 1
        %v6279 = vsel %vm6278, %v3534, 1
        %vm6280 = vcmp.gt.s32.totalorder %v3535, 1
        %v6281 = vsel %vm6280, %v3535, 1
        %vm6282 = vcmp.gt.s32.totalorder %v3536, 1
        %v6283 = vsel %vm6282, %v3536, 1
        %vm6284 = vcmp.gt.s32.totalorder %v3537, 1
        %v6285 = vsel %vm6284, %v3537, 1
        %vm6286 = vcmp.gt.s32.totalorder %v3538, 1
        %v6287 = vsel %vm6286, %v3538, 1
        %vm6288 = vcmp.gt.s32.totalorder %v3539, 1
        %v6289 = vsel %vm6288, %v3539, 1
        %vm6290 = vcmp.gt.s32.totalorder %v3540, 1
        %v6291 = vsel %vm6290, %v3540, 1
        %vm6292 = vcmp.gt.s32.totalorder %v3541, 1
        %v6293 = vsel %vm6292, %v3541, 1
        %vm6294 = vcmp.gt.s32.totalorder %v3542, 1
        %v6295 = vsel %vm6294, %v3542, 1
        %v6296 = vcvt.s32.f32 %v6265
        %v6297 = vcvt.s32.f32 %v6267
        %v6298 = vcvt.s32.f32 %v6269
        %v6299 = vcvt.s32.f32 %v6271
        %v6300 = vcvt.s32.f32 %v6273
        %v6301 = vcvt.s32.f32 %v6275
        %v6302 = vcvt.s32.f32 %v6277
        %v6303 = vcvt.s32.f32 %v6279
        %v6304 = vcvt.s32.f32 %v6281
        %v6305 = vcvt.s32.f32 %v6283
        %v6306 = vcvt.s32.f32 %v6285
        %v6307 = vcvt.s32.f32 %v6287
        %v6308 = vcvt.s32.f32 %v6289
        %v6309 = vcvt.s32.f32 %v6291
        %v6310 = vcvt.s32.f32 %v6293
        %v6311 = vcvt.s32.f32 %v6295
        %6313 = vset.pattern.permute.xlu0 0
        %6314 = vperm.xlu0 %6313, %v6296
        %v6315 = vpop.permute.xlu0 %6314
        %6318 = vset.pattern.permute.xlu0 0
        %6319 = vperm.xlu0 %6318, %v6297
        %v6320 = vpop.permute.xlu0 %6319
        %6323 = vset.pattern.permute.xlu0 0
        %6324 = vperm.xlu0 %6323, %v6298
        %v6325 = vpop.permute.xlu0 %6324
        %6328 = vset.pattern.permute.xlu0 0
        %6329 = vperm.xlu0 %6328, %v6299
        %v6330 = vpop.permute.xlu0 %6329
        %6333 = vset.pattern.permute.xlu0 0
        %6334 = vperm.xlu0 %6333, %v6300
        %v6335 = vpop.permute.xlu0 %6334
        %6338 = vset.pattern.permute.xlu0 0
        %6339 = vperm.xlu0 %6338, %v6301
        %v6340 = vpop.permute.xlu0 %6339
        %6343 = vset.pattern.permute.xlu0 0
        %6344 = vperm.xlu0 %6343, %v6302
        %v6345 = vpop.permute.xlu0 %6344
        %6348 = vset.pattern.permute.xlu0 0
        %6349 = vperm.xlu0 %6348, %v6303
        %v6350 = vpop.permute.xlu0 %6349
        %6353 = vset.pattern.permute.xlu0 0
        %6354 = vperm.xlu0 %6353, %v6304
        %v6355 = vpop.permute.xlu0 %6354
        %6358 = vset.pattern.permute.xlu0 0
        %6359 = vperm.xlu0 %6358, %v6305
        %v6360 = vpop.permute.xlu0 %6359
        %6363 = vset.pattern.permute.xlu0 0
        %6364 = vperm.xlu0 %6363, %v6306
        %v6365 = vpop.permute.xlu0 %6364
        %6368 = vset.pattern.permute.xlu0 0
        %6369 = vperm.xlu0 %6368, %v6307
        %v6370 = vpop.permute.xlu0 %6369
        %6373 = vset.pattern.permute.xlu0 0
        %6374 = vperm.xlu0 %6373, %v6308
        %v6375 = vpop.permute.xlu0 %6374
        %6378 = vset.pattern.permute.xlu0 0
        %6379 = vperm.xlu0 %6378, %v6309
        %v6380 = vpop.permute.xlu0 %6379
        %6383 = vset.pattern.permute.xlu0 0
        %6384 = vperm.xlu0 %6383, %v6310
        %v6385 = vpop.permute.xlu0 %6384
        %6388 = vset.pattern.permute.xlu0 0
        %6389 = vperm.xlu0 %6388, %v6311
        %v6390 = vpop.permute.xlu0 %6389
        %v6392 = vrcp.pop %v6315
        %v6393 = vmul.f32 %v6315, %v6392
        %v6394 = vsub.f32 1.0, %v6393
        %v6395 = vmul.f32 %v6392, %v6394
        %v6396 = vadd.f32 %v6392, %v6395
        %vm6397 = vweird.f32 %v6315
        %vm6398 = vweird.f32 %v6392
        %vm6399 = vmor %vm6397, %vm6398
        %v6400 = vsel %vm6399, %v6392, %v6396
        %v6401 = vand.u32 2147483647, %v6315
        %vm6402 = vcmp.eq.f32.partialorder %v6401, 8.507059e+37
        %v6403 = vand.u32 %v6315, 2147483648
        %v6404 = vor.u32 1.1754944e-38, %v6403
        %v6405 = vsel %vm6402, %v6404, %v6400
        %v6406 = vmul.f32 %v6225, %v6405
        %v6407 = vrcp.pop %v6320
        %v6408 = vmul.f32 %v6320, %v6407
        %v6409 = vsub.f32 1.0, %v6408
        %v6410 = vmul.f32 %v6407, %v6409
        %v6411 = vadd.f32 %v6407, %v6410
        %vm6412 = vweird.f32 %v6320
        %vm6413 = vweird.f32 %v6407
        %vm6414 = vmor %vm6412, %vm6413
        %v6415 = vsel %vm6414, %v6407, %v6411
        %v6416 = vand.u32 2147483647, %v6320
        %vm6417 = vcmp.eq.f32.partialorder %v6416, 8.507059e+37
        %v6418 = vand.u32 %v6320, 2147483648
        %v6419 = vor.u32 1.1754944e-38, %v6418
        %v6420 = vsel %vm6417, %v6419, %v6415
        %v6421 = vmul.f32 %v6227, %v6420
        %v6422 = vrcp.pop %v6325
        %v6423 = vmul.f32 %v6325, %v6422
        %v6424 = vsub.f32 1.0, %v6423
        %v6425 = vmul.f32 %v6422, %v6424
        %v6426 = vadd.f32 %v6422, %v6425
        %vm6427 = vweird.f32 %v6325
        %vm6428 = vweird.f32 %v6422
        %vm6429 = vmor %vm6427, %vm6428
        %v6430 = vsel %vm6429, %v6422, %v6426
        %v6431 = vand.u32 2147483647, %v6325
        %vm6432 = vcmp.eq.f32.partialorder %v6431, 8.507059e+37
        %v6433 = vand.u32 %v6325, 2147483648
        %v6434 = vor.u32 1.1754944e-38, %v6433
        %v6435 = vsel %vm6432, %v6434, %v6430
        %v6436 = vmul.f32 %v6230, %v6435
        %v6437 = vrcp.pop %v6330
        %v6438 = vmul.f32 %v6330, %v6437
        %v6439 = vsub.f32 1.0, %v6438
        %v6440 = vmul.f32 %v6437, %v6439
        %v6441 = vadd.f32 %v6437, %v6440
        %vm6442 = vweird.f32 %v6330
        %vm6443 = vweird.f32 %v6437
        %vm6444 = vmor %vm6442, %vm6443
        %v6445 = vsel %vm6444, %v6437, %v6441
        %v6446 = vand.u32 2147483647, %v6330
        %vm6447 = vcmp.eq.f32.partialorder %v6446, 8.507059e+37
        %v6448 = vand.u32 %v6330, 2147483648
        %v6449 = vor.u32 1.1754944e-38, %v6448
        %v6450 = vsel %vm6447, %v6449, %v6445
        %v6451 = vmul.f32 %v6232, %v6450
        %v6452 = vrcp.pop %v6335
        %v6453 = vmul.f32 %v6335, %v6452
        %v6454 = vsub.f32 1.0, %v6453
        %v6455 = vmul.f32 %v6452, %v6454
        %v6456 = vadd.f32 %v6452, %v6455
        %vm6457 = vweird.f32 %v6335
        %vm6458 = vweird.f32 %v6452
        %vm6459 = vmor %vm6457, %vm6458
        %v6460 = vsel %vm6459, %v6452, %v6456
        %v6461 = vand.u32 2147483647, %v6335
        %vm6462 = vcmp.eq.f32.partialorder %v6461, 8.507059e+37
        %v6463 = vand.u32 %v6335, 2147483648
        %v6464 = vor.u32 1.1754944e-38, %v6463
        %v6465 = vsel %vm6462, %v6464, %v6460
        %v6466 = vmul.f32 %v6235, %v6465
        %v6467 = vrcp.pop %v6340
        %v6468 = vmul.f32 %v6340, %v6467
        %v6469 = vsub.f32 1.0, %v6468
        %v6470 = vmul.f32 %v6467, %v6469
        %v6471 = vadd.f32 %v6467, %v6470
        %vm6472 = vweird.f32 %v6340
        %vm6473 = vweird.f32 %v6467
        %vm6474 = vmor %vm6472, %vm6473
        %v6475 = vsel %vm6474, %v6467, %v6471
        %v6476 = vand.u32 2147483647, %v6340
        %vm6477 = vcmp.eq.f32.partialorder %v6476, 8.507059e+37
        %v6478 = vand.u32 %v6340, 2147483648
        %v6479 = vor.u32 1.1754944e-38, %v6478
        %v6480 = vsel %vm6477, %v6479, %v6475
        %v6481 = vmul.f32 %v6237, %v6480
        %v6482 = vrcp.pop %v6345
        %v6483 = vmul.f32 %v6345, %v6482
        %v6484 = vsub.f32 1.0, %v6483
        %v6485 = vmul.f32 %v6482, %v6484
        %v6486 = vadd.f32 %v6482, %v6485
        %vm6487 = vweird.f32 %v6345
        %vm6488 = vweird.f32 %v6482
        %vm6489 = vmor %vm6487, %vm6488
        %v6490 = vsel %vm6489, %v6482, %v6486
        %v6491 = vand.u32 2147483647, %v6345
        %vm6492 = vcmp.eq.f32.partialorder %v6491, 8.507059e+37
        %v6493 = vand.u32 %v6345, 2147483648
        %v6494 = vor.u32 1.1754944e-38, %v6493
        %v6495 = vsel %vm6492, %v6494, %v6490
        %v6496 = vmul.f32 %v6240, %v6495
        %v6497 = vrcp.pop %v6350
        %v6498 = vmul.f32 %v6350, %v6497
        %v6499 = vsub.f32 1.0, %v6498
        %v6500 = vmul.f32 %v6497, %v6499
        %v6501 = vadd.f32 %v6497, %v6500
        %vm6502 = vweird.f32 %v6350
        %vm6503 = vweird.f32 %v6497
        %vm6504 = vmor %vm6502, %vm6503
        %v6505 = vsel %vm6504, %v6497, %v6501
        %v6506 = vand.u32 2147483647, %v6350
        %vm6507 = vcmp.eq.f32.partialorder %v6506, 8.507059e+37
        %v6508 = vand.u32 %v6350, 2147483648
        %v6509 = vor.u32 1.1754944e-38, %v6508
        %v6510 = vsel %vm6507, %v6509, %v6505
        %v6511 = vmul.f32 %v6242, %v6510
        %v6512 = vrcp.pop %v6355
        %v6513 = vmul.f32 %v6355, %v6512
        %v6514 = vsub.f32 1.0, %v6513
        %v6515 = vmul.f32 %v6512, %v6514
        %v6516 = vadd.f32 %v6512, %v6515
        %vm6517 = vweird.f32 %v6355
        %vm6518 = vweird.f32 %v6512
        %vm6519 = vmor %vm6517, %vm6518
        %v6520 = vsel %vm6519, %v6512, %v6516
        %v6521 = vand.u32 2147483647, %v6355
        %vm6522 = vcmp.eq.f32.partialorder %v6521, 8.507059e+37
        %v6523 = vand.u32 %v6355, 2147483648
        %v6524 = vor.u32 1.1754944e-38, %v6523
        %v6525 = vsel %vm6522, %v6524, %v6520
        %v6526 = vmul.f32 %v6245, %v6525
        %v6527 = vrcp.pop %v6360
        %v6528 = vmul.f32 %v6360, %v6527
        %v6529 = vsub.f32 1.0, %v6528
        %v6530 = vmul.f32 %v6527, %v6529
        %v6531 = vadd.f32 %v6527, %v6530
        %vm6532 = vweird.f32 %v6360
        %vm6533 = vweird.f32 %v6527
        %vm6534 = vmor %vm6532, %vm6533
        %v6535 = vsel %vm6534, %v6527, %v6531
        %v6536 = vand.u32 2147483647, %v6360
        %vm6537 = vcmp.eq.f32.partialorder %v6536, 8.507059e+37
        %v6538 = vand.u32 %v6360, 2147483648
        %v6539 = vor.u32 1.1754944e-38, %v6538
        %v6540 = vsel %vm6537, %v6539, %v6535
        %v6541 = vmul.f32 %v6247, %v6540
        %v6542 = vrcp.pop %v6365
        %v6543 = vmul.f32 %v6365, %v6542
        %v6544 = vsub.f32 1.0, %v6543
        %v6545 = vmul.f32 %v6542, %v6544
        %v6546 = vadd.f32 %v6542, %v6545
        %vm6547 = vweird.f32 %v6365
        %vm6548 = vweird.f32 %v6542
        %vm6549 = vmor %vm6547, %vm6548
        %v6550 = vsel %vm6549, %v6542, %v6546
        %v6551 = vand.u32 2147483647, %v6365
        %vm6552 = vcmp.eq.f32.partialorder %v6551, 8.507059e+37
        %v6553 = vand.u32 %v6365, 2147483648
        %v6554 = vor.u32 1.1754944e-38, %v6553
        %v6555 = vsel %vm6552, %v6554, %v6550
        %v6556 = vmul.f32 %v6250, %v6555
        %v6557 = vrcp.pop %v6370
        %v6558 = vmul.f32 %v6370, %v6557
        %v6559 = vsub.f32 1.0, %v6558
        %v6560 = vmul.f32 %v6557, %v6559
        %v6561 = vadd.f32 %v6557, %v6560
        %vm6562 = vweird.f32 %v6370
        %vm6563 = vweird.f32 %v6557
        %vm6564 = vmor %vm6562, %vm6563
        %v6565 = vsel %vm6564, %v6557, %v6561
        %v6566 = vand.u32 2147483647, %v6370
        %vm6567 = vcmp.eq.f32.partialorder %v6566, 8.507059e+37
        %v6568 = vand.u32 %v6370, 2147483648
        %v6569 = vor.u32 1.1754944e-38, %v6568
        %v6570 = vsel %vm6567, %v6569, %v6565
        %v6571 = vmul.f32 %v6252, %v6570
        %v6572 = vrcp.pop %v6375
        %v6573 = vmul.f32 %v6375, %v6572
        %v6574 = vsub.f32 1.0, %v6573
        %v6575 = vmul.f32 %v6572, %v6574
        %v6576 = vadd.f32 %v6572, %v6575
        %vm6577 = vweird.f32 %v6375
        %vm6578 = vweird.f32 %v6572
        %vm6579 = vmor %vm6577, %vm6578
        %v6580 = vsel %vm6579, %v6572, %v6576
        %v6581 = vand.u32 2147483647, %v6375
        %vm6582 = vcmp.eq.f32.partialorder %v6581, 8.507059e+37
        %v6583 = vand.u32 %v6375, 2147483648
        %v6584 = vor.u32 1.1754944e-38, %v6583
        %v6585 = vsel %vm6582, %v6584, %v6580
        %v6586 = vmul.f32 %v6255, %v6585
        %v6587 = vrcp.pop %v6380
        %v6588 = vmul.f32 %v6380, %v6587
        %v6589 = vsub.f32 1.0, %v6588
        %v6590 = vmul.f32 %v6587, %v6589
        %v6591 = vadd.f32 %v6587, %v6590
        %vm6592 = vweird.f32 %v6380
        %vm6593 = vweird.f32 %v6587
        %vm6594 = vmor %vm6592, %vm6593
        %v6595 = vsel %vm6594, %v6587, %v6591
        %v6596 = vand.u32 2147483647, %v6380
        %vm6597 = vcmp.eq.f32.partialorder %v6596, 8.507059e+37
        %v6598 = vand.u32 %v6380, 2147483648
        %v6599 = vor.u32 1.1754944e-38, %v6598
        %v6600 = vsel %vm6597, %v6599, %v6595
        %v6601 = vmul.f32 %v6257, %v6600
        %v6602 = vrcp.pop %v6385
        %v6603 = vmul.f32 %v6385, %v6602
        %v6604 = vsub.f32 1.0, %v6603
        %v6605 = vmul.f32 %v6602, %v6604
        %v6606 = vadd.f32 %v6602, %v6605
        %vm6607 = vweird.f32 %v6385
        %vm6608 = vweird.f32 %v6602
        %vm6609 = vmor %vm6607, %vm6608
        %v6610 = vsel %vm6609, %v6602, %v6606
        %v6611 = vand.u32 2147483647, %v6385
        %vm6612 = vcmp.eq.f32.partialorder %v6611, 8.507059e+37
        %v6613 = vand.u32 %v6385, 2147483648
        %v6614 = vor.u32 1.1754944e-38, %v6613
        %v6615 = vsel %vm6612, %v6614, %v6610
        %v6616 = vmul.f32 %v6260, %v6615
        %v6617 = vrcp.pop %v6390
        %v6618 = vmul.f32 %v6390, %v6617
        %v6619 = vsub.f32 1.0, %v6618
        %v6620 = vmul.f32 %v6617, %v6619
        %v6621 = vadd.f32 %v6617, %v6620
        %vm6622 = vweird.f32 %v6390
        %vm6623 = vweird.f32 %v6617
        %vm6624 = vmor %vm6622, %vm6623
        %v6625 = vsel %vm6624, %v6617, %v6621
        %v6626 = vand.u32 2147483647, %v6390
        %vm6627 = vcmp.eq.f32.partialorder %v6626, 8.507059e+37
        %v6628 = vand.u32 %v6390, 2147483648
        %v6629 = vor.u32 1.1754944e-38, %v6628
        %v6630 = vsel %vm6627, %v6629, %v6625
        %v6631 = vmul.f32 %v6262, %v6630
        %v6632 = vsub.f32 %v3301, %v6406
        %v6633 = vsub.f32 %v3316, %v6421
        %v6634 = vsub.f32 %v3331, %v6436
        %v6635 = vsub.f32 %v3346, %v6451
        %v6636 = vsub.f32 %v3361, %v6466
        %v6637 = vsub.f32 %v3376, %v6481
        %v6638 = vsub.f32 %v3391, %v6496
        %v6639 = vsub.f32 %v3406, %v6511
        %v6640 = vsub.f32 %v3421, %v6526
        %v6641 = vsub.f32 %v3436, %v6541
        %v6642 = vsub.f32 %v3451, %v6556
        %v6643 = vsub.f32 %v3466, %v6571
        %v6644 = vsub.f32 %v3481, %v6586
        %v6645 = vsub.f32 %v3496, %v6601
        %v6646 = vsub.f32 %v3511, %v6616
        %v6647 = vsub.f32 %v3526, %v6631
        %v6648 = vand.u32 2147483647, %v6632
        %v6649 = vand.u32 2147483647, %v6633
        %v6650 = vand.u32 2147483647, %v6634
        %v6651 = vand.u32 2147483647, %v6635
        %v6652 = vand.u32 2147483647, %v6636
        %v6653 = vand.u32 2147483647, %v6637
        %v6654 = vand.u32 2147483647, %v6638
        %v6655 = vand.u32 2147483647, %v6639
        %v6656 = vand.u32 2147483647, %v6640
        %v6657 = vand.u32 2147483647, %v6641
        %v6658 = vand.u32 2147483647, %v6642
        %v6659 = vand.u32 2147483647, %v6643
        %v6660 = vand.u32 2147483647, %v6644
        %v6661 = vand.u32 2147483647, %v6645
        %v6662 = vand.u32 2147483647, %v6646
        %v6663 = vand.u32 2147483647, %v6647
        %v6664 = vmul.f32 %v3301, %v6406
        %v6665 = vmul.f32 %v3316, %v6421
        %v6666 = vmul.f32 %v3331, %v6436
        %v6667 = vmul.f32 %v3346, %v6451
        %v6668 = vmul.f32 %v3361, %v6466
        %v6669 = vmul.f32 %v3376, %v6481
        %v6670 = vmul.f32 %v3391, %v6496
        %v6671 = vmul.f32 %v3406, %v6511
        %v6672 = vmul.f32 %v3421, %v6526
        %v6673 = vmul.f32 %v3436, %v6541
        %v6674 = vmul.f32 %v3451, %v6556
        %v6675 = vmul.f32 %v3466, %v6571
        %v6676 = vmul.f32 %v3481, %v6586
        %v6677 = vmul.f32 %v3496, %v6601
        %v6678 = vmul.f32 %v3511, %v6616
        %v6679 = vmul.f32 %v3526, %v6631
        %v6680 = vpack.c.bf16 %v3316, %v3301
        %v6681 = vpack.c.bf16 %v3346, %v3331
        %v6682 = vpack.c.bf16 %v3376, %v3361
        %v6683 = vpack.c.bf16 %v3406, %v3391
        %v6684 = vpack.c.bf16 %v3436, %v3421
        %v6685 = vpack.c.bf16 %v3466, %v3451
        %v6686 = vpack.c.bf16 %v3496, %v3481
        %v6687 = vpack.c.bf16 %v3526, %v3511
        %v6688 = vld [vmem:[%s5] sm:$0xf]
        %v6689 = vld [vmem:[%s5 + $0x4] sm:$0xf]
        %v6690 = vld [vmem:[%s5 + $0x8] sm:$0xf]
        %v6691 = vld [vmem:[%s5 + $0xc] sm:$0xf]
        %v6692 = vpack.c.bf16 %v6421, %v6406
        %v6693 = vpack.c.bf16 %v6451, %v6436
        %v6694 = vpack.c.bf16 %v6481, %v6466
        %v6695 = vpack.c.bf16 %v6511, %v6496
        %v6696 = vpack.c.bf16 %v6541, %v6526
        %v6697 = vpack.c.bf16 %v6571, %v6556
        %v6698 = vpack.c.bf16 %v6601, %v6586
        %v6699 = vpack.c.bf16 %v6631, %v6616
        %v6700 = vld [vmem:[%s5 + $0x10] sm:$0xf]
        %v6701 = vld [vmem:[%s5 + $0x14] sm:$0xf]
        %v6702 = vld [vmem:[%s5 + $0x18] sm:$0xf]
        %v6703 = vld [vmem:[%s5 + $0x1c] sm:$0xf]
        %v6708 = vunpack.c.l.b16 %v6700
        %v6709 = vunpack.c.l.b16 %v6701
        %v6710 = vunpack.c.l.b16 %v6702
        %v6711 = vunpack.c.l.b16 %v6703
        %v6712 = vpack.c.b16 %v6709, %v6708
        %v6713 = vpack.c.b16 %v6711, %v6710
        %vm6716 = vcmask 261120
        %v6718 = vsel %vm6716, %v6692, 0
        %v6721 = vsel %vm6716, %v6693, 0
        %v6724 = vsel %vm6716, %v6694, 0
        %v6727 = vsel %vm6716, %v6695, 0
        %v6730 = vsel %vm6716, %v6696, 0
        %v6733 = vsel %vm6716, %v6697, 0
        %v6736 = vsel %vm6716, %v6698, 0
        %v6739 = vsel %vm6716, %v6699, 0
        %6741 = vmatpush.bf16.msra.mxu0 0
        %6742 = vmatpush.bf16.msra.mxu0 0
        %6743 = vmatpush.bf16.msra.mxu0 0
        %6744 = vmatpush.bf16.msra.mxu0 0
        %6745 = vmatpush.bf16.msra.mxu0 0
        %6746 = vmatpush.bf16.msra.mxu0 0
        %6747 = vmatpush.bf16.msra.mxu0 %v6713
        %6748 = vmatpush.bf16.msra.mxu0 %v6712
        %6749 = vmatmul.bf16.gmra.mxu0 %v6718
        %v6750 = vpop.f32.mrf.mxu0
        %v6751 = vadd.f32 0.0, %v6750
        %v6752 = vpop.f32.mrf.mxu0
        %v6753 = vadd.f32 0.0, %v6752
        %6754 = vmatmul.bf16.gmra.mxu0 %v6721
        %v6755 = vpop.f32.mrf.mxu0
        %v6756 = vadd.f32 0.0, %v6755
        %v6757 = vpop.f32.mrf.mxu0
        %v6758 = vadd.f32 0.0, %v6757
        %6759 = vmatmul.bf16.gmra.mxu0 %v6724
        %v6760 = vpop.f32.mrf.mxu0
        %v6761 = vadd.f32 0.0, %v6760
        %v6762 = vpop.f32.mrf.mxu0
        %v6763 = vadd.f32 0.0, %v6762
        %6764 = vmatmul.bf16.gmra.mxu0 %v6727
        %v6765 = vpop.f32.mrf.mxu0
        %v6766 = vadd.f32 0.0, %v6765
        %v6767 = vpop.f32.mrf.mxu0
        %v6768 = vadd.f32 0.0, %v6767
        %6769 = vmatmul.bf16.gmra.mxu0 %v6730
        %v6770 = vpop.f32.mrf.mxu0
        %v6771 = vadd.f32 0.0, %v6770
        %v6772 = vpop.f32.mrf.mxu0
        %v6773 = vadd.f32 0.0, %v6772
        %6774 = vmatmul.bf16.gmra.mxu0 %v6733
        %v6775 = vpop.f32.mrf.mxu0
        %v6776 = vadd.f32 0.0, %v6775
        %v6777 = vpop.f32.mrf.mxu0
        %v6778 = vadd.f32 0.0, %v6777
        %6779 = vmatmul.bf16.gmra.mxu0 %v6736
        %v6780 = vpop.f32.mrf.mxu0
        %v6781 = vadd.f32 0.0, %v6780
        %v6782 = vpop.f32.mrf.mxu0
        %v6783 = vadd.f32 0.0, %v6782
        %6784 = vmatmul.bf16.gmra.mxu0 %v6739
        %v6785 = vpop.f32.mrf.mxu0
        %v6786 = vadd.f32 0.0, %v6785
        %v6787 = vpop.f32.mrf.mxu0
        %v6788 = vadd.f32 0.0, %v6787
        %6789 = vdwg.mxu0
        %v6794 = vunpack.c.l.b16 %v6688
        %v6795 = vunpack.c.l.b16 %v6689
        %v6796 = vunpack.c.l.b16 %v6690
        %v6797 = vunpack.c.l.b16 %v6691
        %v6798 = vpack.c.b16 %v6795, %v6794
        %v6799 = vpack.c.b16 %v6797, %v6796
        %v6803 = vsel %vm6716, %v6680, 0
        %v6806 = vsel %vm6716, %v6681, 0
        %v6809 = vsel %vm6716, %v6682, 0
        %v6812 = vsel %vm6716, %v6683, 0
        %v6815 = vsel %vm6716, %v6684, 0
        %v6818 = vsel %vm6716, %v6685, 0
        %v6821 = vsel %vm6716, %v6686, 0
        %v6824 = vsel %vm6716, %v6687, 0
        %6826 = vmatpush.bf16.msra.mxu0 0
        %6827 = vmatpush.bf16.msra.mxu0 0
        %6828 = vmatpush.bf16.msra.mxu0 0
        %6829 = vmatpush.bf16.msra.mxu0 0
        %6830 = vmatpush.bf16.msra.mxu0 0
        %6831 = vmatpush.bf16.msra.mxu0 0
        %6832 = vmatpush.bf16.msra.mxu0 %v6799
        %6833 = vmatpush.bf16.msra.mxu0 %v6798
        %6834 = vmatmul.bf16.gmra.mxu0 %v6803
        %v6835 = vpop.f32.mrf.mxu0
        %v6836 = vadd.f32 %v6751, %v6835
        %v6837 = vpop.f32.mrf.mxu0
        %v6838 = vadd.f32 %v6753, %v6837
        %6839 = vmatmul.bf16.gmra.mxu0 %v6806
        %v6840 = vpop.f32.mrf.mxu0
        %v6841 = vadd.f32 %v6756, %v6840
        %v6842 = vpop.f32.mrf.mxu0
        %v6843 = vadd.f32 %v6758, %v6842
        %6844 = vmatmul.bf16.gmra.mxu0 %v6809
        %v6845 = vpop.f32.mrf.mxu0
        %v6846 = vadd.f32 %v6761, %v6845
        %v6847 = vpop.f32.mrf.mxu0
        %v6848 = vadd.f32 %v6763, %v6847
        %6849 = vmatmul.bf16.gmra.mxu0 %v6812
        %v6850 = vpop.f32.mrf.mxu0
        %v6851 = vadd.f32 %v6766, %v6850
        %v6852 = vpop.f32.mrf.mxu0
        %v6853 = vadd.f32 %v6768, %v6852
        %6854 = vmatmul.bf16.gmra.mxu0 %v6815
        %v6855 = vpop.f32.mrf.mxu0
        %v6856 = vadd.f32 %v6771, %v6855
        %v6857 = vpop.f32.mrf.mxu0
        %v6858 = vadd.f32 %v6773, %v6857
        %6859 = vmatmul.bf16.gmra.mxu0 %v6818
        %v6860 = vpop.f32.mrf.mxu0
        %v6861 = vadd.f32 %v6776, %v6860
        %v6862 = vpop.f32.mrf.mxu0
        %v6863 = vadd.f32 %v6778, %v6862
        %6864 = vmatmul.bf16.gmra.mxu0 %v6821
        %v6865 = vpop.f32.mrf.mxu0
        %v6866 = vadd.f32 %v6781, %v6865
        %v6867 = vpop.f32.mrf.mxu0
        %v6868 = vadd.f32 %v6783, %v6867
        %6869 = vmatmul.bf16.gmra.mxu0 %v6824
        %v6870 = vpop.f32.mrf.mxu0
        %v6871 = vadd.f32 %v6786, %v6870
        %v6872 = vpop.f32.mrf.mxu0
        %v6873 = vadd.f32 %v6788, %v6872
        %6874 = vdwg.mxu0
        %v6875 = vpack.c.bf16 %v6649, %v6648
        %v6876 = vpack.c.bf16 %v6651, %v6650
        %v6877 = vpack.c.bf16 %v6653, %v6652
        %v6878 = vpack.c.bf16 %v6655, %v6654
        %v6879 = vpack.c.bf16 %v6657, %v6656
        %v6880 = vpack.c.bf16 %v6659, %v6658
        %v6881 = vpack.c.bf16 %v6661, %v6660
        %v6882 = vpack.c.bf16 %v6663, %v6662
        %v6883 = vld [vmem:[%s5 + $0x20] sm:$0xf]
        %v6884 = vld [vmem:[%s5 + $0x24] sm:$0xf]
        %v6885 = vld [vmem:[%s5 + $0x28] sm:$0xf]
        %v6886 = vld [vmem:[%s5 + $0x2c] sm:$0xf]
        %v6891 = vunpack.c.l.b16 %v6883
        %v6892 = vunpack.c.l.b16 %v6884
        %v6893 = vunpack.c.l.b16 %v6885
        %v6894 = vunpack.c.l.b16 %v6886
        %v6895 = vpack.c.b16 %v6892, %v6891
        %v6896 = vpack.c.b16 %v6894, %v6893
        %v6900 = vsel %vm6716, %v6875, 0
        %v6903 = vsel %vm6716, %v6876, 0
        %v6906 = vsel %vm6716, %v6877, 0
        %v6909 = vsel %vm6716, %v6878, 0
        %v6912 = vsel %vm6716, %v6879, 0
        %v6915 = vsel %vm6716, %v6880, 0
        %v6918 = vsel %vm6716, %v6881, 0
        %v6921 = vsel %vm6716, %v6882, 0
        %6923 = vmatpush.bf16.msra.mxu0 0
        %6924 = vmatpush.bf16.msra.mxu0 0
        %6925 = vmatpush.bf16.msra.mxu0 0
        %6926 = vmatpush.bf16.msra.mxu0 0
        %6927 = vmatpush.bf16.msra.mxu0 0
        %6928 = vmatpush.bf16.msra.mxu0 0
        %6929 = vmatpush.bf16.msra.mxu0 %v6896
        %6930 = vmatpush.bf16.msra.mxu0 %v6895
        %6931 = vmatmul.bf16.gmra.mxu0 %v6900
        %v6932 = vpop.f32.mrf.mxu0
        %v6933 = vadd.f32 0.0, %v6932
        %v6934 = vpop.f32.mrf.mxu0
        %v6935 = vadd.f32 0.0, %v6934
        %6936 = vmatmul.bf16.gmra.mxu0 %v6903
        %v6937 = vpop.f32.mrf.mxu0
        %v6938 = vadd.f32 0.0, %v6937
        %v6939 = vpop.f32.mrf.mxu0
        %v6940 = vadd.f32 0.0, %v6939
        %6941 = vmatmul.bf16.gmra.mxu0 %v6906
        %v6942 = vpop.f32.mrf.mxu0
        %v6943 = vadd.f32 0.0, %v6942
        %v6944 = vpop.f32.mrf.mxu0
        %v6945 = vadd.f32 0.0, %v6944
        %6946 = vmatmul.bf16.gmra.mxu0 %v6909
        %v6947 = vpop.f32.mrf.mxu0
        %v6948 = vadd.f32 0.0, %v6947
        %v6949 = vpop.f32.mrf.mxu0
        %v6950 = vadd.f32 0.0, %v6949
        %6951 = vmatmul.bf16.gmra.mxu0 %v6912
        %v6952 = vpop.f32.mrf.mxu0
        %v6953 = vadd.f32 0.0, %v6952
        %v6954 = vpop.f32.mrf.mxu0
        %v6955 = vadd.f32 0.0, %v6954
        %6956 = vmatmul.bf16.gmra.mxu0 %v6915
        %v6957 = vpop.f32.mrf.mxu0
        %v6958 = vadd.f32 0.0, %v6957
        %v6959 = vpop.f32.mrf.mxu0
        %v6960 = vadd.f32 0.0, %v6959
        %6961 = vmatmul.bf16.gmra.mxu0 %v6918
        %v6962 = vpop.f32.mrf.mxu0
        %v6963 = vadd.f32 0.0, %v6962
        %v6964 = vpop.f32.mrf.mxu0
        %v6965 = vadd.f32 0.0, %v6964
        %6966 = vmatmul.bf16.gmra.mxu0 %v6921
        %v6967 = vpop.f32.mrf.mxu0
        %v6968 = vadd.f32 0.0, %v6967
        %v6969 = vpop.f32.mrf.mxu0
        %v6970 = vadd.f32 0.0, %v6969
        %6971 = vdwg.mxu0
        %v6972 = vadd.f32 %v6836, %v6933
        %v6973 = vadd.f32 %v6838, %v6935
        %v6974 = vadd.f32 %v6841, %v6938
        %v6975 = vadd.f32 %v6843, %v6940
        %v6976 = vadd.f32 %v6846, %v6943
        %v6977 = vadd.f32 %v6848, %v6945
        %v6978 = vadd.f32 %v6851, %v6948
        %v6979 = vadd.f32 %v6853, %v6950
        %v6980 = vadd.f32 %v6856, %v6953
        %v6981 = vadd.f32 %v6858, %v6955
        %v6982 = vadd.f32 %v6861, %v6958
        %v6983 = vadd.f32 %v6863, %v6960
        %v6984 = vadd.f32 %v6866, %v6963
        %v6985 = vadd.f32 %v6868, %v6965
        %v6986 = vadd.f32 %v6871, %v6968
        %v6987 = vadd.f32 %v6873, %v6970
        %v6988 = vpack.c.bf16 %v6665, %v6664
        %v6989 = vpack.c.bf16 %v6667, %v6666
        %v6990 = vpack.c.bf16 %v6669, %v6668
        %v6991 = vpack.c.bf16 %v6671, %v6670
        %v6992 = vpack.c.bf16 %v6673, %v6672
        %v6993 = vpack.c.bf16 %v6675, %v6674
        %v6994 = vpack.c.bf16 %v6677, %v6676
        %v6995 = vpack.c.bf16 %v6679, %v6678
        %v6996 = vld [vmem:[%s5 + $0x30] sm:$0xf]
        %v6997 = vld [vmem:[%s5 + $0x34] sm:$0xf]
        %v6998 = vld [vmem:[%s5 + $0x38] sm:$0xf]
        %v6999 = vld [vmem:[%s5 + $0x3c] sm:$0xf]
        %v7004 = vunpack.c.l.b16 %v6996
        %v7005 = vunpack.c.l.b16 %v6997
        %v7006 = vunpack.c.l.b16 %v6998
        %v7007 = vunpack.c.l.b16 %v6999
        %v7008 = vpack.c.b16 %v7005, %v7004
        %v7009 = vpack.c.b16 %v7007, %v7006
        %v7013 = vsel %vm6716, %v6988, 0
        %v7016 = vsel %vm6716, %v6989, 0
        %v7019 = vsel %vm6716, %v6990, 0
        %v7022 = vsel %vm6716, %v6991, 0
        %v7025 = vsel %vm6716, %v6992, 0
        %v7028 = vsel %vm6716, %v6993, 0
        %v7031 = vsel %vm6716, %v6994, 0
        %v7034 = vsel %vm6716, %v6995, 0
        %7036 = vmatpush.bf16.msra.mxu0 0
        %7037 = vmatpush.bf16.msra.mxu0 0
        %7038 = vmatpush.bf16.msra.mxu0 0
        %7039 = vmatpush.bf16.msra.mxu0 0
        %7040 = vmatpush.bf16.msra.mxu0 0
        %7041 = vmatpush.bf16.msra.mxu0 0
        %7042 = vmatpush.bf16.msra.mxu0 %v7009
        %7043 = vmatpush.bf16.msra.mxu0 %v7008
        %7044 = vmatmul.bf16.gmra.mxu0 %v7013
        %v7045 = vpop.f32.mrf.mxu0
        %v7046 = vadd.f32 0.0, %v7045
        %v7047 = vpop.f32.mrf.mxu0
        %v7048 = vadd.f32 0.0, %v7047
        %7049 = vmatmul.bf16.gmra.mxu0 %v7016
        %v7050 = vpop.f32.mrf.mxu0
        %v7051 = vadd.f32 0.0, %v7050
        %v7052 = vpop.f32.mrf.mxu0
        %v7053 = vadd.f32 0.0, %v7052
        %7054 = vmatmul.bf16.gmra.mxu0 %v7019
        %v7055 = vpop.f32.mrf.mxu0
        %v7056 = vadd.f32 0.0, %v7055
        %v7057 = vpop.f32.mrf.mxu0
        %v7058 = vadd.f32 0.0, %v7057
        %7059 = vmatmul.bf16.gmra.mxu0 %v7022
        %v7060 = vpop.f32.mrf.mxu0
        %v7061 = vadd.f32 0.0, %v7060
        %v7062 = vpop.f32.mrf.mxu0
        %v7063 = vadd.f32 0.0, %v7062
        %7064 = vmatmul.bf16.gmra.mxu0 %v7025
        %v7065 = vpop.f32.mrf.mxu0
        %v7066 = vadd.f32 0.0, %v7065
        %v7067 = vpop.f32.mrf.mxu0
        %v7068 = vadd.f32 0.0, %v7067
        %7069 = vmatmul.bf16.gmra.mxu0 %v7028
        %v7070 = vpop.f32.mrf.mxu0
        %v7071 = vadd.f32 0.0, %v7070
        %v7072 = vpop.f32.mrf.mxu0
        %v7073 = vadd.f32 0.0, %v7072
        %7074 = vmatmul.bf16.gmra.mxu0 %v7031
        %v7075 = vpop.f32.mrf.mxu0
        %v7076 = vadd.f32 0.0, %v7075
        %v7077 = vpop.f32.mrf.mxu0
        %v7078 = vadd.f32 0.0, %v7077
        %7079 = vmatmul.bf16.gmra.mxu0 %v7034
        %v7080 = vpop.f32.mrf.mxu0
        %v7081 = vadd.f32 0.0, %v7080
        %v7082 = vpop.f32.mrf.mxu0
        %v7083 = vadd.f32 0.0, %v7082
        %7084 = vdwg.mxu0
        %v7085 = vadd.f32 %v6972, %v7046
        %v7086 = vadd.f32 %v6973, %v7048
        %v7087 = vadd.f32 %v6974, %v7051
        %v7088 = vadd.f32 %v6975, %v7053
        %v7089 = vadd.f32 %v6976, %v7056
        %v7090 = vadd.f32 %v6977, %v7058
        %v7091 = vadd.f32 %v6978, %v7061
        %v7092 = vadd.f32 %v6979, %v7063
        %v7093 = vadd.f32 %v6980, %v7066
        %v7094 = vadd.f32 %v6981, %v7068
        %v7095 = vadd.f32 %v6982, %v7071
        %v7096 = vadd.f32 %v6983, %v7073
        %v7097 = vadd.f32 %v6984, %v7076
        %v7098 = vadd.f32 %v6985, %v7078
        %v7099 = vadd.f32 %v6986, %v7081
        %v7100 = vadd.f32 %v6987, %v7083
        %v7101 = vld [vmem:[%s6] sm:$0x1]
        %v7103 = vperm.slane %v7101, 0
        %v7105 = vadd.f32 %v7085, %v7103
        %v7106 = vadd.f32 %v7086, %v7103
        %v7107 = vadd.f32 %v7087, %v7103
        %v7108 = vadd.f32 %v7088, %v7103
        %v7109 = vadd.f32 %v7089, %v7103
        %v7110 = vadd.f32 %v7090, %v7103
        %v7111 = vadd.f32 %v7091, %v7103
        %v7112 = vadd.f32 %v7092, %v7103
        %v7113 = vadd.f32 %v7093, %v7103
        %v7114 = vadd.f32 %v7094, %v7103
        %v7115 = vadd.f32 %v7095, %v7103
        %v7116 = vadd.f32 %v7096, %v7103
        %v7117 = vadd.f32 %v7097, %v7103
        %v7118 = vadd.f32 %v7098, %v7103
        %v7119 = vadd.f32 %v7099, %v7103
        %v7120 = vadd.f32 %v7100, %v7103
        %7121 = vst [vmem:[%s320] sm:$0xff] %v7105
        %7122 = vst [vmem:[%s320 + $0x8] sm:$0xff] %v7106
        %7123 = vst [vmem:[%s320 + $0x10] sm:$0xff] %v7107
        %7124 = vst [vmem:[%s320 + $0x18] sm:$0xff] %v7108
        %7125 = vst [vmem:[%s320 + $0x20] sm:$0xff] %v7109
        %7126 = vst [vmem:[%s320 + $0x28] sm:$0xff] %v7110
        %7127 = vst [vmem:[%s320 + $0x30] sm:$0xff] %v7111
        %7128 = vst [vmem:[%s320 + $0x38] sm:$0xff] %v7112
        %7129 = vst [vmem:[%s320 + $0x40] sm:$0xff] %v7113
        %7130 = vst [vmem:[%s320 + $0x48] sm:$0xff] %v7114
        %7131 = vst [vmem:[%s320 + $0x50] sm:$0xff] %v7115
        %7132 = vst [vmem:[%s320 + $0x58] sm:$0xff] %v7116
        %7133 = vst [vmem:[%s320 + $0x60] sm:$0xff] %v7117
        %7134 = vst [vmem:[%s320 + $0x68] sm:$0xff] %v7118
        %7135 = vst [vmem:[%s320 + $0x70] sm:$0xff] %v7119
        %7136 = vst [vmem:[%s320 + $0x78] sm:$0xff] %v7120
        %s7137 = sand.u32 %s196, 1
        %s7138 = scalar_lea.sflag [#allocation3], %s7137
        %s7139 = sand.u32 %s196, 1
        %s7140 = smul.addr %s7139, 128
        %s7141 = scalar_lea.vmem [#allocation2], %s7140
        // Predicated region
        $region49: #{tpu_custom_call.1} parent=47 // pred_check
          %p7142 = pneg %p206
        $region50: #{tpu_custom_call.1} parent=47 // pred_check_branch
          %7144 = sbr.rel (%p7142) target = $region52
        $region51: #{tpu_custom_call.1} parent=47 // pred_region
          %s7145 = smul.u32 16, %s21
          %7147 = vsyncadd %s7138, 0
          %s7148 = smul.addr %s7145, 8
          %s7149 = scalar_lea.hbm %s7, %s7148
          %s7150 = sshll.u32 %s7141, 4
          %s7151 = int_to_ptr.vmem [resolvable:$true] %s7150
          %s7152 = sshll.u32 %s7149, 4
          %s7153 = int_to_ptr.hbm [resolvable:$true] %s7152
          %7158 = dma.vmem_to_hbm [thread:$0]  %s7151, 2048, %s7153, %s7138, 128, 128, 8
        $region52: #{tpu_custom_call.1} parent=47 // pred_fallthru
          _
      $region48: #{tpu_custom_call.1} parent=5 // pred_fallthru
        _
      %p7159 = scmp.le.s32.totalorder 2, %s16
      // Predicated region
      $region53: #{tpu_custom_call.1} parent=5 // pred_check
        %p7160 = pneg %p7159
      $region54: #{tpu_custom_call.1} parent=5 // pred_check_branch
        %7162 = sbr.rel (%p7160) target = $region56
      $region55: #{tpu_custom_call.1} parent=5 // pred_region
        %s7163 = ssub.s32 %s16, 2
        // Predicated region
        $region57: #{tpu_custom_call.1} parent=55 // pred_check
          %p7164 = pneg %p212
        $region58: #{tpu_custom_call.1} parent=55 // pred_check_branch
          %7166 = sbr.rel (%p7164) target = $region60
        $region59: #{tpu_custom_call.1} parent=55 // pred_region
          %s7167 = sand.u32 %s197, 1
          %s7168 = scalar_lea.sflag [#allocation3], %s7167
          %s7169 = sand.u32 %s197, 1
          %s7170 = smul.addr %s7169, 128
          %s7171 = scalar_lea.vmem [#allocation2], %s7170
          %7173 = dma.done %s7168, 2048
        $region60: #{tpu_custom_call.1} parent=55 // pred_fallthru
          _
      $region56: #{tpu_custom_call.1} parent=5 // pred_fallthru
        _
    $region6: #{tpu_custom_call.1} parent=1 // loop_footer
      %s20 = sadd.s32 1, %s16
    $region7: #{tpu_custom_call.1} parent=1 // loop_footer_branch
      %15 = sbr.rel target = $region3
    $region8: #{tpu_custom_call.1} parent=1 // loop_exit
      _
    %7174 = vsyncpa [#allocation3], 1
    %s7175 = scalar_lea.sflag [#allocation3], 1
    %7176 = vsyncpa %s7175, 1

</llo_original>
